<compile_context>
chip_gen: v7x
topology: tpu7x:2x2x1
jax: 0.10.0
libtpu: 0.0.40
codegen_flags: <defaults>
</compile_context>

<pallas_src>
import functools

import jax
import jax.numpy as jnp
from jax.experimental import pallas as pl
from jax.experimental.pallas import tpu as pltpu

LANE = 128
NEG_INF = -1e30                 # finite "minus infinity" additive mask value
DEFAULT_BATCH_TILE = 16         # >= bf16 sublane tile (16): fills MXU rows / sublanes


def _round_up(x, m):
    return (x + m - 1) // m * m


@functools.lru_cache(maxsize=None)
def _single_buffer_weights_supported():
    """Probe whether this Pallas build supports single-buffered constant inputs
    (review: weight blocks never change, so no double buffer is needed)."""
    if not hasattr(pl, "Buffered"):
        return False
    try:
        def _k(x_ref, o_ref):
            o_ref[...] = x_ref[...] + 1.0

        f = pl.pallas_call(
            _k,
            grid=(2,),
            in_specs=[pl.BlockSpec((8, 128), lambda i: (0, 0),
                                   pipeline_mode=pl.Buffered(1))],
            out_specs=pl.BlockSpec((8, 128), lambda i: (0, 0)),
            out_shape=jax.ShapeDtypeStruct((8, 128), jnp.float32))
        jax.block_until_ready(f(jnp.zeros((8, 128), jnp.float32)))
        return True
    except Exception:
        return False


def _const_spec(shape):
    """BlockSpec for a grid-invariant (weight) operand."""
    index_map = lambda bi, t: (0,) * len(shape)
    if _single_buffer_weights_supported():
        return pl.BlockSpec(shape, index_map, pipeline_mode=pl.Buffered(1))
    return pl.BlockSpec(shape, index_map)


# -----------------------------------------------------------------------------
# Kernel: grid = (batch tiles, decode steps).  One invocation = one decode step
# for Bt batch rows.  Recurrent state lives in VMEM scratch across the T axis.
# All feature/key dims are already zero-padded to multiples of 128 lanes.
# -----------------------------------------------------------------------------
def decoder_seq_kernel(x_ref, h0_ref, c0_ref, o0_ref,
                       w_x_ref, w_o_ref, w_h_ref, b_g_ref,
                       enc_proj_ref, enc_hid_ref, maskadd_ref, w_comb_ref,
                       out_ref, attn_ref, h_out_ref, c_out_ref,
                       h_sc, c_sc, o_sc, score_sc, ctx_sc):
    t = pl.program_id(1)
    bt, hp = h_sc.shape

    # t == 0: load the initial recurrent state of this batch tile into scratch.
    @pl.when(t == 0)
    def _():
        h_sc[...] = h0_ref[...]
        c_sc[...] = c0_ref[...]
        o_sc[...] = o0_ref[...]

    # ---- fused nn.LSTMCell gates (PyTorch order i, f, g, o), M = Bt ---------
    # Ybar_t = [x_t, o_prev]; b_ih + b_hh folded into one bias in the wrapper.
    gates = (jnp.dot(x_ref[...], w_x_ref[...],
                     preferred_element_type=jnp.float32)
             + jnp.dot(o_sc[...].astype(jnp.bfloat16), w_o_ref[...],
                       preferred_element_type=jnp.float32)
             + jnp.dot(h_sc[...].astype(jnp.bfloat16), w_h_ref[...],
                       preferred_element_type=jnp.float32)
             + b_g_ref[...])
    i_g = jax.nn.sigmoid(gates[:, 0 * hp:1 * hp])
    f_g = jax.nn.sigmoid(gates[:, 1 * hp:2 * hp])
    g_g = jnp.tanh(gates[:, 2 * hp:3 * hp])
    o_g = jax.nn.sigmoid(gates[:, 3 * hp:4 * hp])
    c_new = f_g * c_sc[...] + i_g * g_g
    h_new = o_g * jnp.tanh(c_new)
    c_sc[...] = c_new
    h_sc[...] = h_new
    c_out_ref[...] = c_new          # t-invariant block: HBM keeps the last step
    h_out_ref[...] = h_new

    h_bf = h_new.astype(jnp.bfloat16)

    # ---- attention scores: per-batch-row matvec on the MXU ------------------
    # (keys differ per batch element, so M=1 per row is inherent; static unroll
    #  over the batch tile keeps everything 2-D and layout-friendly)
    for b in range(bt):
        score_sc[b:b + 1, :] = jax.lax.dot_general(
            h_bf[b:b + 1, :], enc_proj_ref[b],
            dimension_numbers=(((1,), (1,)), ((), ())),
            preferred_element_type=jnp.float32)

    s = score_sc[...] + maskadd_ref[...]          # additive mask: 0 / NEG_INF
    s = s - jnp.max(s, axis=-1, keepdims=True)
    e = jnp.exp(s)
    denom = jnp.sum(e, axis=-1, keepdims=True)
    attn = e * pl.reciprocal(denom, approx=False)  # exact: weights sum to 1
    attn_ref[...] = attn

    # ---- context vector: per-batch-row (1,Sp)x(Sp,2Hp) on the MXU -----------
    attn_bf = attn.astype(jnp.bfloat16)
    for b in range(bt):
        ctx_sc[b:b + 1, :] = jnp.dot(attn_bf[b:b + 1, :], enc_hid_ref[b],
                                     preferred_element_type=jnp.float32)

    # ---- combined_projection([ctx, h]) + tanh; nn.Dropout is identity (eval)
    v = (jnp.dot(ctx_sc[...].astype(jnp.bfloat16), w_comb_ref[0:2 * hp, :],
                 preferred_element_type=jnp.float32)
         + jnp.dot(h_bf, w_comb_ref[2 * hp:3 * hp, :],
                   preferred_element_type=jnp.float32))
    o_new = jnp.tanh(v)
    o_sc[...] = o_new
    out_ref[...] = o_new


def _decoder_steps_call(xs, h0, c0, o0, w_x, w_o, w_h, b_g,
                        enc_proj, enc_hid, maskadd, w_comb, *, bt):
    T, Bp, Ep = xs.shape
    Hp = h0.shape[1]
    Sp = enc_proj.shape[1]
    nb = Bp // bt

    in_specs = [
        pl.BlockSpec((None, bt, Ep), lambda bi, t: (t, bi, 0)),       # x_t
        pl.BlockSpec((bt, Hp), lambda bi, t: (bi, 0)),                # h0
        pl.BlockSpec((bt, Hp), lambda bi, t: (bi, 0)),                # c0
        pl.BlockSpec((bt, Hp), lambda bi, t: (bi, 0)),                # o0
        _const_spec((Ep, 4 * Hp)),                                    # W_x
        _const_spec((Hp, 4 * Hp)),                                    # W_o
        _const_spec((Hp, 4 * Hp)),                                    # W_h
        _const_spec((1, 4 * Hp)),                                     # bias
        pl.BlockSpec((bt, Sp, Hp), lambda bi, t: (bi, 0, 0)),         # enc_proj (t-invariant)
        pl.BlockSpec((bt, Sp, 2 * Hp), lambda bi, t: (bi, 0, 0)),     # enc_hid  (t-invariant)
        pl.BlockSpec((bt, Sp), lambda bi, t: (bi, 0)),                # additive mask
        _const_spec((3 * Hp, Hp)),                                    # W_comb
    ]
    out_specs = [
        pl.BlockSpec((None, bt, Hp), lambda bi, t: (t, bi, 0)),       # output per step
        pl.BlockSpec((None, bt, Sp), lambda bi, t: (t, bi, 0)),       # attn per step
        pl.BlockSpec((bt, Hp), lambda bi, t: (bi, 0)),                # final h
        pl.BlockSpec((bt, Hp), lambda bi, t: (bi, 0)),                # final c
    ]
    out_shape = (
        jax.ShapeDtypeStruct((T, Bp, Hp), jnp.float32),
        jax.ShapeDtypeStruct((T, Bp, Sp), jnp.float32),
        jax.ShapeDtypeStruct((Bp, Hp), jnp.float32),
        jax.ShapeDtypeStruct((Bp, Hp), jnp.float32),
    )
    scratch_shapes = [
        pltpu.VMEM((bt, Hp), jnp.float32),        # h state
        pltpu.VMEM((bt, Hp), jnp.float32),        # c state
        pltpu.VMEM((bt, Hp), jnp.float32),        # o_prev state
        pltpu.VMEM((bt, Sp), jnp.float32),        # attention scores
        pltpu.VMEM((bt, 2 * Hp), jnp.float32),    # context vector
    ]

    # VMEM budget: double-buffered blocks + weights + scratch, with headroom.
    # Capped at 48 MiB so it fits v7x's 64 MiB per-core VMEM (review).
    block_bytes = (bt * Ep * 2 + 3 * bt * Hp * 4
                   + bt * Sp * Hp * 2 + bt * Sp * 2 * Hp * 2 + bt * Sp * 4
                   + bt * Hp * 4 + bt * Sp * 4 + 2 * bt * Hp * 4)
    weight_bytes = (Ep + 2 * Hp) * 4 * Hp * 2 + 4 * Hp * 4 + 3 * Hp * Hp * 2
    scratch_bytes = (5 * bt * Hp + bt * Sp) * 4
    vmem_limit = int(min(48 << 20,
                         max(16 << 20,
                             2 * (2 * block_bytes + 2 * weight_bytes + scratch_bytes))))

    def _nb(a):
        return int(a.size) * a.dtype.itemsize

    steps = Bp * T
    flops = 2 * steps * ((Ep + 2 * Hp) * 4 * Hp + Sp * Hp + Sp * 2 * Hp + 3 * Hp * Hp)
    transcendentals = steps * (6 * Hp + Sp)
    bytes_accessed = sum(_nb(a) for a in (xs, h0, c0, o0, w_x, w_o, w_h, b_g,
                                          enc_proj, enc_hid, maskadd, w_comb))
    bytes_accessed += (T * Bp * (Hp + Sp) + 2 * Bp * Hp) * 4

    return pl.pallas_call(
        decoder_seq_kernel,
        grid_spec=pltpu.PrefetchScalarGridSpec(
            num_scalar_prefetch=0,
            grid=(nb, T),
            in_specs=in_specs,
            out_specs=out_specs,
            scratch_shapes=scratch_shapes),
        out_shape=out_shape,
        compiler_params=pltpu.CompilerParams(
            dimension_semantics=("parallel", "arbitrary"),
            vmem_limit_bytes=vmem_limit),
        cost_estimate=pl.CostEstimate(flops=int(flops),
                                      transcendentals=int(transcendentals),
                                      bytes_accessed=int(bytes_accessed)),
    )(xs, h0, c0, o0, w_x, w_o, w_h, b_g, enc_proj, enc_hid, maskadd, w_comb)


# -----------------------------------------------------------------------------
# One-time parameter transform: split LSTM weights per input stream, fold the
# two biases, pad feature dims to 128-lane multiples, cast MXU operands to bf16.
# -----------------------------------------------------------------------------
def pack_decoder_params(raw, E, H):
    Hp = _round_up(H, LANE)
    Ep = _round_up(E, LANE)

    def pad_gate_cols(w, rows_p):
        # (rows, 4H) -> (rows_p, 4Hp), each gate's H columns padded to Hp.
        rows = w.shape[0]
        w = w.reshape(rows, 4, H)
        out = jnp.zeros((rows_p, 4, Hp), jnp.float32).at[:rows, :, :H].set(w)
        return out.reshape(rows_p, 4 * Hp)

    w_x = pad_gate_cols(raw["w_ih"][:E], Ep).astype(jnp.bfloat16)
    w_o = pad_gate_cols(raw["w_ih"][E:], Hp).astype(jnp.bfloat16)
    w_h = pad_gate_cols(raw["w_hh"], Hp).astype(jnp.bfloat16)
    b = (raw["b_ih"] + raw["b_hh"]).reshape(4, H)
    b_g = jnp.zeros((4, Hp), jnp.float32).at[:, :H].set(b).reshape(1, 4 * Hp)

    # combined_projection weight (3H, H): rows [0:2H] act on the context vector
    # (feature width 2H zero-padded to 2Hp), rows [2H:3H] on the hidden state.
    w_comb = jnp.zeros((3 * Hp, Hp), jnp.float32)
    w_comb = w_comb.at[:2 * H, :H].set(raw["w_comb"][:2 * H])
    w_comb = w_comb.at[2 * Hp:2 * Hp + H, :H].set(raw["w_comb"][2 * H:])
    w_comb = w_comb.astype(jnp.bfloat16)

    return {"char_table": raw["char_table"], "char_proj": raw["char_proj"],
            "w_x": w_x, "w_o": w_o, "w_h": w_h, "b_g": b_g, "w_comb": w_comb,
            "E": E, "H": H, "Hp": Hp, "Ep": Ep}


def char_embedding(x_chars, char_table, char_proj):
    # TODO(synk): CharEmbedding's definition is not provided in the reference
    # module; approximated (plain-JAX glue outside the kernel) as char lookup +
    # mean-pool over char positions + linear projection to embedding_dim.
    emb = char_table[x_chars]            # (..., L, Cd)
    pooled = jnp.mean(emb, axis=-2)      # (..., Cd)
    return pooled @ char_proj            # (..., E)


def decoder_forward_steps(x_chars, enc_hidden, dec_state, enc_projection,
                          o_prev, packed, enc_masks=None,
                          batch_tile=DEFAULT_BATCH_TILE):
    """Runs T teacher-forced decoder steps in ONE fused kernel (time loop is a
    sequential grid axis; encoder state is DMA'd once per batch tile)."""
    E, H, Hp, Ep = packed["E"], packed["H"], packed["Hp"], packed["Ep"]
    h, c = dec_state
    T = x_chars.shape[0]
    B, S = enc_projection.shape[0], enc_projection.shape[1]
    Sp = _round_up(S, LANE)
    Bt = batch_tile
    Bp = _round_up(B, Bt)

    x = char_embedding(x_chars, packed["char_table"], packed["char_proj"])   # (T,B,E)
    xs = jnp.zeros((T, Bp, Ep), jnp.float32).at[:, :B, :E].set(x).astype(jnp.bfloat16)

    def pad_state(a):
        return jnp.zeros((Bp, Hp), jnp.float32).at[:B, :H].set(a)

    h0, c0, o0 = pad_state(h), pad_state(c), pad_state(o_prev)

    enc_proj_p = jnp.zeros((Bp, Sp, Hp), jnp.float32)
    enc_proj_p = enc_proj_p.at[:B, :S, :H].set(enc_projection).astype(jnp.bfloat16)
    enc_hid_p = jnp.zeros((Bp, Sp, 2 * Hp), jnp.float32)
    enc_hid_p = enc_hid_p.at[:B, :S, :2 * H].set(enc_hidden).astype(jnp.bfloat16)

    if enc_masks is None:
        enc_masks = jnp.zeros((B, S), jnp.float32)
    # Additive mask: NEG_INF for user-masked keys and for padded key/batch rows.
    maskadd = jnp.full((Bp, Sp), NEG_INF, jnp.float32)
    maskadd = maskadd.at[:B, :S].set(jnp.where(enc_masks != 0, NEG_INF, 0.0))

    outs, attns, hT, cT = _decoder_steps_call(
        xs, h0, c0, o0, packed["w_x"], packed["w_o"], packed["w_h"],
        packed["b_g"], enc_proj_p, enc_hid_p, maskadd, packed["w_comb"], bt=Bt)

    return outs[:, :B, :H], (hT[:B, :H], cT[:B, :H]), attns[:, :B, :S]


def decoder_forward(x_chars, enc_hidden, dec_state, enc_projection, o_prev,
                    packed, enc_masks=None, batch_tile=DEFAULT_BATCH_TILE):
    """Equivalent of Decoder.forward (one decode step, eval mode)."""
    outs, (h_new, c_new), attns = decoder_forward_steps(
        x_chars, enc_hidden, dec_state, enc_projection, o_prev, packed,
        enc_masks, batch_tile=batch_tile)
    # PyTorch returns attention weights with shape (B, 1, S).
    return outs[0], (h_new, c_new), attns[0][:, None, :]


# -----------------------------------------------------------------------------
# Pure-JAX reference (f32, exact module math) for a sanity check.
# -----------------------------------------------------------------------------
def reference_step(x_chars, enc_hidden, dec_state, enc_projection, o_prev,
                   raw, enc_masks):
    h, c = dec_state
    H = h.shape[1]
    x = char_embedding(x_chars, raw["char_table"], raw["char_proj"])
    ybar = jnp.concatenate([x[0], o_prev], axis=1)
    gates = ybar @ raw["w_ih"] + raw["b_ih"] + h @ raw["w_hh"] + raw["b_hh"]
    i_g = jax.nn.sigmoid(gates[:, :H])
    f_g = jax.nn.sigmoid(gates[:, H:2 * H])
    g_g = jnp.tanh(gates[:, 2 * H:3 * H])
    o_g = jax.nn.sigmoid(gates[:, 3 * H:])
    c_new = f_g * c + i_g * g_g
    h_new = o_g * jnp.tanh(c_new)
    score = jnp.einsum('bsh,bh->bs', enc_projection, h_new)
    score = jnp.where(enc_masks != 0, -jnp.inf, score)
    attn = jax.nn.softmax(score, axis=1)
    ctx = jnp.einsum('bs,bsd->bd', attn, enc_hidden)
    out = jnp.tanh(jnp.concatenate([ctx, h_new], axis=1) @ raw["w_comb"])
    return out, (h_new, c_new), attn


if __name__ == "__main__":
    B, H, E, S, T = 32, 32, 32, 10, 4
    num_embeddings, char_dim, max_word_len, pad_idx = 30, 16, 6, 0

    key = jax.random.PRNGKey(0)
    keys = jax.random.split(key, 12)
    scale = 0.1

    char_table = jax.random.normal(keys[0], (num_embeddings, char_dim),
                                   jnp.float32) * scale
    char_table = char_table.at[pad_idx].set(0.0)
    raw_params = {
        "char_table": char_table,
        "char_proj": jax.random.normal(keys[1], (char_dim, E), jnp.float32) * scale,
        "w_ih": jax.random.normal(keys[2], (E + H, 4 * H), jnp.float32) * scale,
        "b_ih": jax.random.normal(keys[3], (4 * H,), jnp.float32) * scale,
        "w_hh": jax.random.normal(keys[4], (H, 4 * H), jnp.float32) * scale,
        "b_hh": jax.random.normal(keys[5], (4 * H,), jnp.float32) * scale,
        "w_comb": jax.random.normal(keys[6], (3 * H, H), jnp.float32) * scale,
    }
    packed = pack_decoder_params(raw_params, E, H)

    xs_chars = jax.random.randint(keys[7], (T, B, max_word_len), 0, num_embeddings)
    enc_hidden = jax.random.normal(keys[8], (B, S, 2 * H), jnp.float32) * scale
    enc_projection = jax.random.normal(keys[9], (B, S, H), jnp.float32) * scale
    o_prev = jax.random.normal(keys[10], (B, H), jnp.float32) * scale
    dec_state = (jnp.zeros((B, H), jnp.float32), jnp.zeros((B, H), jnp.float32))
    enc_masks = jnp.zeros((B, S), jnp.float32).at[1, S - 2:].set(1.0)

    tol = 2e-2   # bf16 MXU operands vs f32 reference (exact reciprocal in softmax)

    # ---- single decode step (== Decoder.forward semantics) -----------------
    out, (h1, c1), attn_w = decoder_forward(
        xs_chars[0:1], enc_hidden, dec_state, enc_projection, o_prev,
        packed, enc_masks)
    jax.block_until_ready((out, h1, c1, attn_w))
    assert out.shape == (B, H) and h1.shape == (B, H)
    assert c1.shape == (B, H) and attn_w.shape == (B, 1, S)

    r_out, (r_h, r_c), r_attn = reference_step(
        xs_chars[0:1], enc_hidden, dec_state, enc_projection, o_prev,
        raw_params, enc_masks)
    assert float(jnp.max(jnp.abs(out - r_out))) < tol
    assert float(jnp.max(jnp.abs(h1 - r_h))) < tol
    assert float(jnp.max(jnp.abs(c1 - r_c))) < tol
    assert float(jnp.max(jnp.abs(attn_w[:, 0, :] - r_attn))) < tol

    # ---- fused multi-step decode: time loop inside the kernel ---------------
    outs, (hT, cT), attns = decoder_forward_steps(
        xs_chars, enc_hidden, dec_state, enc_projection, o_prev,
        packed, enc_masks)
    jax.block_until_ready((outs, hT, cT, attns))
    assert outs.shape == (T, B, H) and attns.shape == (T, B, S)

    r_state, r_o = dec_state, o_prev
    r_outs, r_attns = [], []
    for t in range(T):
        r_o, r_state, r_at = reference_step(
            xs_chars[t:t + 1], enc_hidden, r_state, enc_projection, r_o,
            raw_params, enc_masks)
        r_outs.append(r_o)
        r_attns.append(r_at)
    r_outs = jnp.stack(r_outs)
    r_attns = jnp.stack(r_attns)
    assert float(jnp.max(jnp.abs(outs - r_outs))) < tol
    assert float(jnp.max(jnp.abs(attns - r_attns))) < tol
    assert float(jnp.max(jnp.abs(hT - r_state[0]))) < tol
    assert float(jnp.max(jnp.abs(cT - r_state[1]))) < tol

    print("KERNEL_OK")
</pallas_src>

<mosaic_0001>
module attributes {stable_mosaic.version = 11 : i64} {
  func.func @_k(%arg0: i32, %arg1: memref<8x128xf32, #tpu.memory_space<vmem>>, %arg2: memref<8x128xf32, #tpu.memory_space<vmem>>) attributes {dimension_semantics = [#tpu.dimension_semantics<arbitrary>], iteration_bounds = array<i64: 2>, scalar_prefetch = 0 : i64, scratch_operands = 0 : i64, tpu.core_type = #tpu.core_type<tc>, window_params = [{pipeline_mode = #tpu.pipeline_mode<synchronous>, transform_indices = @transform_0, window_bounds = array<i64: 8, 128>}, {pipeline_mode = #tpu.pipeline_mode<synchronous>, transform_indices = @transform_1, window_bounds = array<i64: 8, 128>}]} {
    %c0 = arith.constant 0 : index
    %c0_0 = arith.constant 0 : index
    %0 = vector.load %arg1[%c0, %c0_0] : memref<8x128xf32, #tpu.memory_space<vmem>>, vector<8x128xf32>
    %cst = arith.constant 1.000000e+00 : f32
    %1 = vector.broadcast %cst : f32 to vector<8x128xf32>
    %2 = arith.addf %0, %1 : vector<8x128xf32>
    %c0_1 = arith.constant 0 : index
    %c0_2 = arith.constant 0 : index
    %3 = vector.load %arg2[%c0_1, %c0_2] : memref<8x128xf32, #tpu.memory_space<vmem>>, vector<8x128xf32>
    tpu.vector_store %arg2[%c0_1, %c0_2], %2 {strides = array<i32>} : memref<8x128xf32, #tpu.memory_space<vmem>>, vector<8x128xf32>,
    return
  }
  func.func @transform_0(%arg0: i32) -> (i32, i32) {
    %c0_i32 = arith.constant 0 : i32
    %c0_i32_0 = arith.constant 0 : i32
    %c0_i32_1 = arith.constant 0 : i32
    return %c0_i32, %c0_i32_0 : i32, i32
  }
  func.func @transform_1(%arg0: i32) -> (i32, i32) {
    %c0_i32 = arith.constant 0 : i32
    %c0_i32_0 = arith.constant 0 : i32
    %c0_i32_1 = arith.constant 0 : i32
    return %c0_i32, %c0_i32_0 : i32, i32
  }
}

module attributes {stable_mosaic.version = 11 : i64} {
  func.func @decoder_seq_kernel(%arg0: i32, %arg1: i32, %arg2: memref<1x16x128xbf16, #tpu.memory_space<vmem>>, %arg3: memref<16x128xf32, #tpu.memory_space<vmem>>, %arg4: memref<16x128xf32, #tpu.memory_space<vmem>>, %arg5: memref<16x128xf32, #tpu.memory_space<vmem>>, %arg6: memref<128x512xbf16, #tpu.memory_space<vmem>>, %arg7: memref<128x512xbf16, #tpu.memory_space<vmem>>, %arg8: memref<128x512xbf16, #tpu.memory_space<vmem>>, %arg9: memref<1x512xf32, #tpu.memory_space<vmem>>, %arg10: memref<16x128x128xbf16, #tpu.memory_space<vmem>>, %arg11: memref<16x128x256xbf16, #tpu.memory_space<vmem>>, %arg12: memref<16x128xf32, #tpu.memory_space<vmem>>, %arg13: memref<384x128xbf16, #tpu.memory_space<vmem>>, %arg14: memref<1x16x128xf32, #tpu.memory_space<vmem>>, %arg15: memref<1x16x128xf32, #tpu.memory_space<vmem>>, %arg16: memref<16x128xf32, #tpu.memory_space<vmem>>, %arg17: memref<16x128xf32, #tpu.memory_space<vmem>>, %arg18: memref<16x128xf32, #tpu.memory_space<vmem>>, %arg19: memref<16x128xf32, #tpu.memory_space<vmem>>, %arg20: memref<16x128xf32, #tpu.memory_space<vmem>>, %arg21: memref<16x128xf32, #tpu.memory_space<vmem>>, %arg22: memref<16x256xf32, #tpu.memory_space<vmem>>) attributes {dimension_semantics = [#tpu.dimension_semantics<parallel>, #tpu.dimension_semantics<arbitrary>], iteration_bounds = array<i64: 2, 1>, scalar_prefetch = 0 : i64, scratch_operands = 5 : i64, tpu.core_type = #tpu.core_type<tc>, window_params = [{transform_indices = @transform_0, window_bounds = array<i64: 1, 16, 128>}, {transform_indices = @transform_1, window_bounds = array<i64: 16, 128>}, {transform_indices = @transform_2, window_bounds = array<i64: 16, 128>}, {transform_indices = @transform_3, window_bounds = array<i64: 16, 128>}, {pipeline_mode = #tpu.pipeline_mode<synchronous>, transform_indices = @transform_4, window_bounds = array<i64: 128, 512>}, {pipeline_mode = #tpu.pipeline_mode<synchronous>, transform_indices = @transform_5, window_bounds = array<i64: 128, 512>}, {pipeline_mode = #tpu.pipeline_mode<synchronous>, transform_indices = @transform_6, window_bounds = array<i64: 128, 512>}, {pipeline_mode = #tpu.pipeline_mode<synchronous>, transform_indices = @transform_7, window_bounds = array<i64: 1, 512>}, {transform_indices = @transform_8, window_bounds = array<i64: 16, 128, 128>}, {transform_indices = @transform_9, window_bounds = array<i64: 16, 128, 256>}, {transform_indices = @transform_10, window_bounds = array<i64: 16, 128>}, {pipeline_mode = #tpu.pipeline_mode<synchronous>, transform_indices = @transform_11, window_bounds = array<i64: 384, 128>}, {transform_indices = @transform_12, window_bounds = array<i64: 1, 16, 128>}, {transform_indices = @transform_13, window_bounds = array<i64: 1, 16, 128>}, {transform_indices = @transform_14, window_bounds = array<i64: 16, 128>}, {transform_indices = @transform_15, window_bounds = array<i64: 16, 128>}]} {
    %c0_i32 = arith.constant 0 : i32
    %0 = arith.cmpi eq, %arg1, %c0_i32 : i32
    %1 = arith.extui %0 : i1 to i32
    %c0_i32_0 = arith.constant 0 : i32
    %2 = arith.cmpi ne, %1, %c0_i32_0 : i32
    scf.if %2 {
      %c0_228 = arith.constant 0 : index
      %c0_229 = arith.constant 0 : index
      %240 = vector.load %arg3[%c0_228, %c0_229] : memref<16x128xf32, #tpu.memory_space<vmem>>, vector<16x128xf32>
      %c0_230 = arith.constant 0 : index
      %c0_231 = arith.constant 0 : index
      %241 = vector.load %arg18[%c0_230, %c0_231] : memref<16x128xf32, #tpu.memory_space<vmem>>, vector<16x128xf32>
      tpu.vector_store %arg18[%c0_230, %c0_231], %240 {strides = array<i32>} : memref<16x128xf32, #tpu.memory_space<vmem>>, vector<16x128xf32>,
      %c0_232 = arith.constant 0 : index
      %c0_233 = arith.constant 0 : index
      %242 = vector.load %arg4[%c0_232, %c0_233] : memref<16x128xf32, #tpu.memory_space<vmem>>, vector<16x128xf32>
      %c0_234 = arith.constant 0 : index
      %c0_235 = arith.constant 0 : index
      %243 = vector.load %arg19[%c0_234, %c0_235] : memref<16x128xf32, #tpu.memory_space<vmem>>, vector<16x128xf32>
      tpu.vector_store %arg19[%c0_234, %c0_235], %242 {strides = array<i32>} : memref<16x128xf32, #tpu.memory_space<vmem>>, vector<16x128xf32>,
      %c0_236 = arith.constant 0 : index
      %c0_237 = arith.constant 0 : index
      %244 = vector.load %arg5[%c0_236, %c0_237] : memref<16x128xf32, #tpu.memory_space<vmem>>, vector<16x128xf32>
      %c0_238 = arith.constant 0 : index
      %c0_239 = arith.constant 0 : index
      %245 = vector.load %arg20[%c0_238, %c0_239] : memref<16x128xf32, #tpu.memory_space<vmem>>, vector<16x128xf32>
      tpu.vector_store %arg20[%c0_238, %c0_239], %244 {strides = array<i32>} : memref<16x128xf32, #tpu.memory_space<vmem>>, vector<16x128xf32>,
    } else {
    }
    %c0 = arith.constant 0 : index
    %c0_1 = arith.constant 0 : index
    %c0_2 = arith.constant 0 : index
    %3 = vector.load %arg2[%c0, %c0_1, %c0_2] : memref<1x16x128xbf16, #tpu.memory_space<vmem>>, vector<1x16x128xbf16>
    %4 = vector.shape_cast %3 : vector<1x16x128xbf16> to vector<16x128xbf16>
    %c0_3 = arith.constant 0 : index
    %c0_4 = arith.constant 0 : index
    %5 = vector.load %arg6[%c0_3, %c0_4] : memref<128x512xbf16, #tpu.memory_space<vmem>>, vector<128x512xbf16>
    %cst = arith.constant dense<0.000000e+00> : vector<16x512xf32>
    %6 = tpu.matmul %4, %5, %cst {dimension_numbers = #tpu.dot_dimension_numbers<[1], [0], [0], [1], [0, 0, 1, 1], [], []>} : vector<16x128xbf16>, vector<128x512xbf16>, vector<16x512xf32> -> vector<16x512xf32>
    %c0_5 = arith.constant 0 : index
    %c0_6 = arith.constant 0 : index
    %7 = vector.load %arg20[%c0_5, %c0_6] : memref<16x128xf32, #tpu.memory_space<vmem>>, vector<16x128xf32>
    %8 = arith.truncf %7 : vector<16x128xf32> to vector<16x128xbf16>
    %c0_7 = arith.constant 0 : index
    %c0_8 = arith.constant 0 : index
    %9 = vector.load %arg7[%c0_7, %c0_8] : memref<128x512xbf16, #tpu.memory_space<vmem>>, vector<128x512xbf16>
    %cst_9 = arith.constant dense<0.000000e+00> : vector<16x512xf32>
    %10 = tpu.matmul %8, %9, %cst_9 {dimension_numbers = #tpu.dot_dimension_numbers<[1], [0], [0], [1], [0, 0, 1, 1], [], []>} : vector<16x128xbf16>, vector<128x512xbf16>, vector<16x512xf32> -> vector<16x512xf32>
    %11 = arith.addf %6, %10 : vector<16x512xf32>
    %c0_10 = arith.constant 0 : index
    %c0_11 = arith.constant 0 : index
    %12 = vector.load %arg18[%c0_10, %c0_11] : memref<16x128xf32, #tpu.memory_space<vmem>>, vector<16x128xf32>
    %13 = arith.truncf %12 : vector<16x128xf32> to vector<16x128xbf16>
    %c0_12 = arith.constant 0 : index
    %c0_13 = arith.constant 0 : index
    %14 = vector.load %arg8[%c0_12, %c0_13] : memref<128x512xbf16, #tpu.memory_space<vmem>>, vector<128x512xbf16>
    %cst_14 = arith.constant dense<0.000000e+00> : vector<16x512xf32>
    %15 = tpu.matmul %13, %14, %cst_14 {dimension_numbers = #tpu.dot_dimension_numbers<[1], [0], [0], [1], [0, 0, 1, 1], [], []>} : vector<16x128xbf16>, vector<128x512xbf16>, vector<16x512xf32> -> vector<16x512xf32>
    %16 = arith.addf %11, %15 : vector<16x512xf32>
    %c0_15 = arith.constant 0 : index
    %c0_16 = arith.constant 0 : index
    %17 = vector.load %arg9[%c0_15, %c0_16] : memref<1x512xf32, #tpu.memory_space<vmem>>, vector<1x512xf32>
    %18 = vector.broadcast %17 : vector<1x512xf32> to vector<16x512xf32>
    %19 = arith.addf %16, %18 : vector<16x512xf32>
    %20 = vector.extract_strided_slice %19 {offsets = [0, 0], sizes = [16, 128], strides = [1, 1]} : vector<16x512xf32> to vector<16x128xf32>
    %21 = arith.negf %20 : vector<16x128xf32>
    %22 = math.exp %21 : vector<16x128xf32>
    %cst_17 = arith.constant 1.000000e+00 : f32
    %23 = vector.broadcast %cst_17 : f32 to vector<16x128xf32>
    %24 = arith.addf %23, %22 : vector<16x128xf32>
    %25 = arith.divf %23, %24 : vector<16x128xf32>
    %26 = vector.extract_strided_slice %19 {offsets = [0, 128], sizes = [16, 128], strides = [1, 1]} : vector<16x512xf32> to vector<16x128xf32>
    %27 = arith.negf %26 : vector<16x128xf32>
    %28 = math.exp %27 : vector<16x128xf32>
    %cst_18 = arith.constant 1.000000e+00 : f32
    %29 = vector.broadcast %cst_18 : f32 to vector<16x128xf32>
    %30 = arith.addf %29, %28 : vector<16x128xf32>
    %31 = arith.divf %29, %30 : vector<16x128xf32>
    %32 = vector.extract_strided_slice %19 {offsets = [0, 256], sizes = [16, 128], strides = [1, 1]} : vector<16x512xf32> to vector<16x128xf32>
    %33 = math.tanh %32 : vector<16x128xf32>
    %34 = vector.extract_strided_slice %19 {offsets = [0, 384], sizes = [16, 128], strides = [1, 1]} : vector<16x512xf32> to vector<16x128xf32>
    %35 = arith.negf %34 : vector<16x128xf32>
    %36 = math.exp %35 : vector<16x128xf32>
    %cst_19 = arith.constant 1.000000e+00 : f32
    %37 = vector.broadcast %cst_19 : f32 to vector<16x128xf32>
    %38 = arith.addf %37, %36 : vector<16x128xf32>
    %39 = arith.divf %37, %38 : vector<16x128xf32>
    %c0_20 = arith.constant 0 : index
    %c0_21 = arith.constant 0 : index
    %40 = vector.load %arg19[%c0_20, %c0_21] : memref<16x128xf32, #tpu.memory_space<vmem>>, vector<16x128xf32>
    %41 = arith.mulf %31, %40 : vector<16x128xf32>
    %42 = arith.mulf %25, %33 : vector<16x128xf32>
    %43 = arith.addf %41, %42 : vector<16x128xf32>
    %44 = math.tanh %43 : vector<16x128xf32>
    %45 = arith.mulf %39, %44 : vector<16x128xf32>
    %c0_22 = arith.constant 0 : index
    %c0_23 = arith.constant 0 : index
    %46 = vector.load %arg19[%c0_22, %c0_23] : memref<16x128xf32, #tpu.memory_space<vmem>>, vector<16x128xf32>
    tpu.vector_store %arg19[%c0_22, %c0_23], %43 {strides = array<i32>} : memref<16x128xf32, #tpu.memory_space<vmem>>, vector<16x128xf32>,
    %c0_24 = arith.constant 0 : index
    %c0_25 = arith.constant 0 : index
    %47 = vector.load %arg18[%c0_24, %c0_25] : memref<16x128xf32, #tpu.memory_space<vmem>>, vector<16x128xf32>
    tpu.vector_store %arg18[%c0_24, %c0_25], %45 {strides = array<i32>} : memref<16x128xf32, #tpu.memory_space<vmem>>, vector<16x128xf32>,
    %c0_26 = arith.constant 0 : index
    %c0_27 = arith.constant 0 : index
    %48 = vector.load %arg17[%c0_26, %c0_27] : memref<16x128xf32, #tpu.memory_space<vmem>>, vector<16x128xf32>
    tpu.vector_store %arg17[%c0_26, %c0_27], %43 {strides = array<i32>} : memref<16x128xf32, #tpu.memory_space<vmem>>, vector<16x128xf32>,
    %c0_28 = arith.constant 0 : index
    %c0_29 = arith.constant 0 : index
    %49 = vector.load %arg16[%c0_28, %c0_29] : memref<16x128xf32, #tpu.memory_space<vmem>>, vector<16x128xf32>
    tpu.vector_store %arg16[%c0_28, %c0_29], %45 {strides = array<i32>} : memref<16x128xf32, #tpu.memory_space<vmem>>, vector<16x128xf32>,
    %50 = arith.truncf %45 : vector<16x128xf32> to vector<16x128xbf16>
    %51 = vector.extract_strided_slice %50 {offsets = [0, 0], sizes = [1, 128], strides = [1, 1]} : vector<16x128xbf16> to vector<1x128xbf16>
    %c0_30 = arith.constant 0 : index
    %c0_31 = arith.constant 0 : index
    %c0_32 = arith.constant 0 : index
    %52 = vector.load %arg10[%c0_30, %c0_31, %c0_32] : memref<16x128x128xbf16, #tpu.memory_space<vmem>>, vector<1x128x128xbf16>
    %53 = vector.shape_cast %52 : vector<1x128x128xbf16> to vector<128x128xbf16>
    %cst_33 = arith.constant dense<0.000000e+00> : vector<1x128xf32>
    %54 = tpu.matmul %51, %53, %cst_33 {dimension_numbers = #tpu.dot_dimension_numbers<[1], [1], [0], [0], [0, 0, 1, 0], [], []>} : vector<1x128xbf16>, vector<128x128xbf16>, vector<1x128xf32> -> vector<1x128xf32>
    %c0_34 = arith.constant 0 : index
    %c0_35 = arith.constant 0 : index
    %55 = vector.load %arg21[%c0_34, %c0_35] : memref<16x128xf32, #tpu.memory_space<vmem>>, vector<1x128xf32>
    tpu.vector_store %arg21[%c0_34, %c0_35], %54 {strides = array<i32>} : memref<16x128xf32, #tpu.memory_space<vmem>>, vector<1x128xf32>,
    %56 = vector.extract_strided_slice %50 {offsets = [1, 0], sizes = [1, 128], strides = [1, 1]} : vector<16x128xbf16> to vector<1x128xbf16>
    %c1 = arith.constant 1 : index
    %c0_36 = arith.constant 0 : index
    %c0_37 = arith.constant 0 : index
    %57 = vector.load %arg10[%c1, %c0_36, %c0_37] : memref<16x128x128xbf16, #tpu.memory_space<vmem>>, vector<1x128x128xbf16>
    %58 = vector.shape_cast %57 : vector<1x128x128xbf16> to vector<128x128xbf16>
    %cst_38 = arith.constant dense<0.000000e+00> : vector<1x128xf32>
    %59 = tpu.matmul %56, %58, %cst_38 {dimension_numbers = #tpu.dot_dimension_numbers<[1], [1], [0], [0], [0, 0, 1, 0], [], []>} : vector<1x128xbf16>, vector<128x128xbf16>, vector<1x128xf32> -> vector<1x128xf32>
    %c1_39 = arith.constant 1 : index
    %c0_40 = arith.constant 0 : index
    %60 = vector.load %arg21[%c1_39, %c0_40] : memref<16x128xf32, #tpu.memory_space<vmem>>, vector<1x128xf32>
    tpu.vector_store %arg21[%c1_39, %c0_40], %59 {strides = array<i32>} : memref<16x128xf32, #tpu.memory_space<vmem>>, vector<1x128xf32>,
    %61 = vector.extract_strided_slice %50 {offsets = [2, 0], sizes = [1, 128], strides = [1, 1]} : vector<16x128xbf16> to vector<1x128xbf16>
    %c2 = arith.constant 2 : index
    %c0_41 = arith.constant 0 : index
    %c0_42 = arith.constant 0 : index
    %62 = vector.load %arg10[%c2, %c0_41, %c0_42] : memref<16x128x128xbf16, #tpu.memory_space<vmem>>, vector<1x128x128xbf16>
    %63 = vector.shape_cast %62 : vector<1x128x128xbf16> to vector<128x128xbf16>
    %cst_43 = arith.constant dense<0.000000e+00> : vector<1x128xf32>
    %64 = tpu.matmul %61, %63, %cst_43 {dimension_numbers = #tpu.dot_dimension_numbers<[1], [1], [0], [0], [0, 0, 1, 0], [], []>} : vector<1x128xbf16>, vector<128x128xbf16>, vector<1x128xf32> -> vector<1x128xf32>
    %c2_44 = arith.constant 2 : index
    %c0_45 = arith.constant 0 : index
    %65 = vector.load %arg21[%c2_44, %c0_45] : memref<16x128xf32, #tpu.memory_space<vmem>>, vector<1x128xf32>
    tpu.vector_store %arg21[%c2_44, %c0_45], %64 {strides = array<i32>} : memref<16x128xf32, #tpu.memory_space<vmem>>, vector<1x128xf32>,
    %66 = vector.extract_strided_slice %50 {offsets = [3, 0], sizes = [1, 128], strides = [1, 1]} : vector<16x128xbf16> to vector<1x128xbf16>
    %c3 = arith.constant 3 : index
    %c0_46 = arith.constant 0 : index
    %c0_47 = arith.constant 0 : index
    %67 = vector.load %arg10[%c3, %c0_46, %c0_47] : memref<16x128x128xbf16, #tpu.memory_space<vmem>>, vector<1x128x128xbf16>
    %68 = vector.shape_cast %67 : vector<1x128x128xbf16> to vector<128x128xbf16>
    %cst_48 = arith.constant dense<0.000000e+00> : vector<1x128xf32>
    %69 = tpu.matmul %66, %68, %cst_48 {dimension_numbers = #tpu.dot_dimension_numbers<[1], [1], [0], [0], [0, 0, 1, 0], [], []>} : vector<1x128xbf16>, vector<128x128xbf16>, vector<1x128xf32> -> vector<1x128xf32>
    %c3_49 = arith.constant 3 : index
    %c0_50 = arith.constant 0 : index
    %70 = vector.load %arg21[%c3_49, %c0_50] : memref<16x128xf32, #tpu.memory_space<vmem>>, vector<1x128xf32>
    tpu.vector_store %arg21[%c3_49, %c0_50], %69 {strides = array<i32>} : memref<16x128xf32, #tpu.memory_space<vmem>>, vector<1x128xf32>,
    %71 = vector.extract_strided_slice %50 {offsets = [4, 0], sizes = [1, 128], strides = [1, 1]} : vector<16x128xbf16> to vector<1x128xbf16>
    %c4 = arith.constant 4 : index
    %c0_51 = arith.constant 0 : index
    %c0_52 = arith.constant 0 : index
    %72 = vector.load %arg10[%c4, %c0_51, %c0_52] : memref<16x128x128xbf16, #tpu.memory_space<vmem>>, vector<1x128x128xbf16>
    %73 = vector.shape_cast %72 : vector<1x128x128xbf16> to vector<128x128xbf16>
    %cst_53 = arith.constant dense<0.000000e+00> : vector<1x128xf32>
    %74 = tpu.matmul %71, %73, %cst_53 {dimension_numbers = #tpu.dot_dimension_numbers<[1], [1], [0], [0], [0, 0, 1, 0], [], []>} : vector<1x128xbf16>, vector<128x128xbf16>, vector<1x128xf32> -> vector<1x128xf32>
    %c4_54 = arith.constant 4 : index
    %c0_55 = arith.constant 0 : index
    %75 = vector.load %arg21[%c4_54, %c0_55] : memref<16x128xf32, #tpu.memory_space<vmem>>, vector<1x128xf32>
    tpu.vector_store %arg21[%c4_54, %c0_55], %74 {strides = array<i32>} : memref<16x128xf32, #tpu.memory_space<vmem>>, vector<1x128xf32>,
    %76 = vector.extract_strided_slice %50 {offsets = [5, 0], sizes = [1, 128], strides = [1, 1]} : vector<16x128xbf16> to vector<1x128xbf16>
    %c5 = arith.constant 5 : index
    %c0_56 = arith.constant 0 : index
    %c0_57 = arith.constant 0 : index
    %77 = vector.load %arg10[%c5, %c0_56, %c0_57] : memref<16x128x128xbf16, #tpu.memory_space<vmem>>, vector<1x128x128xbf16>
    %78 = vector.shape_cast %77 : vector<1x128x128xbf16> to vector<128x128xbf16>
    %cst_58 = arith.constant dense<0.000000e+00> : vector<1x128xf32>
    %79 = tpu.matmul %76, %78, %cst_58 {dimension_numbers = #tpu.dot_dimension_numbers<[1], [1], [0], [0], [0, 0, 1, 0], [], []>} : vector<1x128xbf16>, vector<128x128xbf16>, vector<1x128xf32> -> vector<1x128xf32>
    %c5_59 = arith.constant 5 : index
    %c0_60 = arith.constant 0 : index
    %80 = vector.load %arg21[%c5_59, %c0_60] : memref<16x128xf32, #tpu.memory_space<vmem>>, vector<1x128xf32>
    tpu.vector_store %arg21[%c5_59, %c0_60], %79 {strides = array<i32>} : memref<16x128xf32, #tpu.memory_space<vmem>>, vector<1x128xf32>,
    %81 = vector.extract_strided_slice %50 {offsets = [6, 0], sizes = [1, 128], strides = [1, 1]} : vector<16x128xbf16> to vector<1x128xbf16>
    %c6 = arith.constant 6 : index
    %c0_61 = arith.constant 0 : index
    %c0_62 = arith.constant 0 : index
    %82 = vector.load %arg10[%c6, %c0_61, %c0_62] : memref<16x128x128xbf16, #tpu.memory_space<vmem>>, vector<1x128x128xbf16>
    %83 = vector.shape_cast %82 : vector<1x128x128xbf16> to vector<128x128xbf16>
    %cst_63 = arith.constant dense<0.000000e+00> : vector<1x128xf32>
    %84 = tpu.matmul %81, %83, %cst_63 {dimension_numbers = #tpu.dot_dimension_numbers<[1], [1], [0], [0], [0, 0, 1, 0], [], []>} : vector<1x128xbf16>, vector<128x128xbf16>, vector<1x128xf32> -> vector<1x128xf32>
    %c6_64 = arith.constant 6 : index
    %c0_65 = arith.constant 0 : index
    %85 = vector.load %arg21[%c6_64, %c0_65] : memref<16x128xf32, #tpu.memory_space<vmem>>, vector<1x128xf32>
    tpu.vector_store %arg21[%c6_64, %c0_65], %84 {strides = array<i32>} : memref<16x128xf32, #tpu.memory_space<vmem>>, vector<1x128xf32>,
    %86 = vector.extract_strided_slice %50 {offsets = [7, 0], sizes = [1, 128], strides = [1, 1]} : vector<16x128xbf16> to vector<1x128xbf16>
    %c7 = arith.constant 7 : index
    %c0_66 = arith.constant 0 : index
    %c0_67 = arith.constant 0 : index
    %87 = vector.load %arg10[%c7, %c0_66, %c0_67] : memref<16x128x128xbf16, #tpu.memory_space<vmem>>, vector<1x128x128xbf16>
    %88 = vector.shape_cast %87 : vector<1x128x128xbf16> to vector<128x128xbf16>
    %cst_68 = arith.constant dense<0.000000e+00> : vector<1x128xf32>
    %89 = tpu.matmul %86, %88, %cst_68 {dimension_numbers = #tpu.dot_dimension_numbers<[1], [1], [0], [0], [0, 0, 1, 0], [], []>} : vector<1x128xbf16>, vector<128x128xbf16>, vector<1x128xf32> -> vector<1x128xf32>
    %c7_69 = arith.constant 7 : index
    %c0_70 = arith.constant 0 : index
    %90 = vector.load %arg21[%c7_69, %c0_70] : memref<16x128xf32, #tpu.memory_space<vmem>>, vector<1x128xf32>
    tpu.vector_store %arg21[%c7_69, %c0_70], %89 {strides = array<i32>} : memref<16x128xf32, #tpu.memory_space<vmem>>, vector<1x128xf32>,
    %91 = vector.extract_strided_slice %50 {offsets = [8, 0], sizes = [1, 128], strides = [1, 1]} : vector<16x128xbf16> to vector<1x128xbf16>
    %c8 = arith.constant 8 : index
    %c0_71 = arith.constant 0 : index
    %c0_72 = arith.constant 0 : index
    %92 = vector.load %arg10[%c8, %c0_71, %c0_72] : memref<16x128x128xbf16, #tpu.memory_space<vmem>>, vector<1x128x128xbf16>
    %93 = vector.shape_cast %92 : vector<1x128x128xbf16> to vector<128x128xbf16>
    %cst_73 = arith.constant dense<0.000000e+00> : vector<1x128xf32>
    %94 = tpu.matmul %91, %93, %cst_73 {dimension_numbers = #tpu.dot_dimension_numbers<[1], [1], [0], [0], [0, 0, 1, 0], [], []>} : vector<1x128xbf16>, vector<128x128xbf16>, vector<1x128xf32> -> vector<1x128xf32>
    %c8_74 = arith.constant 8 : index
    %c0_75 = arith.constant 0 : index
    %95 = vector.load %arg21[%c8_74, %c0_75] : memref<16x128xf32, #tpu.memory_space<vmem>>, vector<1x128xf32>
    tpu.vector_store %arg21[%c8_74, %c0_75], %94 {strides = array<i32>} : memref<16x128xf32, #tpu.memory_space<vmem>>, vector<1x128xf32>,
    %96 = vector.extract_strided_slice %50 {offsets = [9, 0], sizes = [1, 128], strides = [1, 1]} : vector<16x128xbf16> to vector<1x128xbf16>
    %c9 = arith.constant 9 : index
    %c0_76 = arith.constant 0 : index
    %c0_77 = arith.constant 0 : index
    %97 = vector.load %arg10[%c9, %c0_76, %c0_77] : memref<16x128x128xbf16, #tpu.memory_space<vmem>>, vector<1x128x128xbf16>
    %98 = vector.shape_cast %97 : vector<1x128x128xbf16> to vector<128x128xbf16>
    %cst_78 = arith.constant dense<0.000000e+00> : vector<1x128xf32>
    %99 = tpu.matmul %96, %98, %cst_78 {dimension_numbers = #tpu.dot_dimension_numbers<[1], [1], [0], [0], [0, 0, 1, 0], [], []>} : vector<1x128xbf16>, vector<128x128xbf16>, vector<1x128xf32> -> vector<1x128xf32>
    %c9_79 = arith.constant 9 : index
    %c0_80 = arith.constant 0 : index
    %100 = vector.load %arg21[%c9_79, %c0_80] : memref<16x128xf32, #tpu.memory_space<vmem>>, vector<1x128xf32>
    tpu.vector_store %arg21[%c9_79, %c0_80], %99 {strides = array<i32>} : memref<16x128xf32, #tpu.memory_space<vmem>>, vector<1x128xf32>,
    %101 = vector.extract_strided_slice %50 {offsets = [10, 0], sizes = [1, 128], strides = [1, 1]} : vector<16x128xbf16> to vector<1x128xbf16>
    %c10 = arith.constant 10 : index
    %c0_81 = arith.constant 0 : index
    %c0_82 = arith.constant 0 : index
    %102 = vector.load %arg10[%c10, %c0_81, %c0_82] : memref<16x128x128xbf16, #tpu.memory_space<vmem>>, vector<1x128x128xbf16>
    %103 = vector.shape_cast %102 : vector<1x128x128xbf16> to vector<128x128xbf16>
    %cst_83 = arith.constant dense<0.000000e+00> : vector<1x128xf32>
    %104 = tpu.matmul %101, %103, %cst_83 {dimension_numbers = #tpu.dot_dimension_numbers<[1], [1], [0], [0], [0, 0, 1, 0], [], []>} : vector<1x128xbf16>, vector<128x128xbf16>, vector<1x128xf32> -> vector<1x128xf32>
    %c10_84 = arith.constant 10 : index
    %c0_85 = arith.constant 0 : index
    %105 = vector.load %arg21[%c10_84, %c0_85] : memref<16x128xf32, #tpu.memory_space<vmem>>, vector<1x128xf32>
    tpu.vector_store %arg21[%c10_84, %c0_85], %104 {strides = array<i32>} : memref<16x128xf32, #tpu.memory_space<vmem>>, vector<1x128xf32>,
    %106 = vector.extract_strided_slice %50 {offsets = [11, 0], sizes = [1, 128], strides = [1, 1]} : vector<16x128xbf16> to vector<1x128xbf16>
    %c11 = arith.constant 11 : index
    %c0_86 = arith.constant 0 : index
    %c0_87 = arith.constant 0 : index
    %107 = vector.load %arg10[%c11, %c0_86, %c0_87] : memref<16x128x128xbf16, #tpu.memory_space<vmem>>, vector<1x128x128xbf16>
    %108 = vector.shape_cast %107 : vector<1x128x128xbf16> to vector<128x128xbf16>
    %cst_88 = arith.constant dense<0.000000e+00> : vector<1x128xf32>
    %109 = tpu.matmul %106, %108, %cst_88 {dimension_numbers = #tpu.dot_dimension_numbers<[1], [1], [0], [0], [0, 0, 1, 0], [], []>} : vector<1x128xbf16>, vector<128x128xbf16>, vector<1x128xf32> -> vector<1x128xf32>
    %c11_89 = arith.constant 11 : index
    %c0_90 = arith.constant 0 : index
    %110 = vector.load %arg21[%c11_89, %c0_90] : memref<16x128xf32, #tpu.memory_space<vmem>>, vector<1x128xf32>
    tpu.vector_store %arg21[%c11_89, %c0_90], %109 {strides = array<i32>} : memref<16x128xf32, #tpu.memory_space<vmem>>, vector<1x128xf32>,
    %111 = vector.extract_strided_slice %50 {offsets = [12, 0], sizes = [1, 128], strides = [1, 1]} : vector<16x128xbf16> to vector<1x128xbf16>
    %c12 = arith.constant 12 : index
    %c0_91 = arith.constant 0 : index
    %c0_92 = arith.constant 0 : index
    %112 = vector.load %arg10[%c12, %c0_91, %c0_92] : memref<16x128x128xbf16, #tpu.memory_space<vmem>>, vector<1x128x128xbf16>
    %113 = vector.shape_cast %112 : vector<1x128x128xbf16> to vector<128x128xbf16>
    %cst_93 = arith.constant dense<0.000000e+00> : vector<1x128xf32>
    %114 = tpu.matmul %111, %113, %cst_93 {dimension_numbers = #tpu.dot_dimension_numbers<[1], [1], [0], [0], [0, 0, 1, 0], [], []>} : vector<1x128xbf16>, vector<128x128xbf16>, vector<1x128xf32> -> vector<1x128xf32>
    %c12_94 = arith.constant 12 : index
    %c0_95 = arith.constant 0 : index
    %115 = vector.load %arg21[%c12_94, %c0_95] : memref<16x128xf32, #tpu.memory_space<vmem>>, vector<1x128xf32>
    tpu.vector_store %arg21[%c12_94, %c0_95], %114 {strides = array<i32>} : memref<16x128xf32, #tpu.memory_space<vmem>>, vector<1x128xf32>,
    %116 = vector.extract_strided_slice %50 {offsets = [13, 0], sizes = [1, 128], strides = [1, 1]} : vector<16x128xbf16> to vector<1x128xbf16>
    %c13 = arith.constant 13 : index
    %c0_96 = arith.constant 0 : index
    %c0_97 = arith.constant 0 : index
    %117 = vector.load %arg10[%c13, %c0_96, %c0_97] : memref<16x128x128xbf16, #tpu.memory_space<vmem>>, vector<1x128x128xbf16>
    %118 = vector.shape_cast %117 : vector<1x128x128xbf16> to vector<128x128xbf16>
    %cst_98 = arith.constant dense<0.000000e+00> : vector<1x128xf32>
    %119 = tpu.matmul %116, %118, %cst_98 {dimension_numbers = #tpu.dot_dimension_numbers<[1], [1], [0], [0], [0, 0, 1, 0], [], []>} : vector<1x128xbf16>, vector<128x128xbf16>, vector<1x128xf32> -> vector<1x128xf32>
    %c13_99 = arith.constant 13 : index
    %c0_100 = arith.constant 0 : index
    %120 = vector.load %arg21[%c13_99, %c0_100] : memref<16x128xf32, #tpu.memory_space<vmem>>, vector<1x128xf32>
    tpu.vector_store %arg21[%c13_99, %c0_100], %119 {strides = array<i32>} : memref<16x128xf32, #tpu.memory_space<vmem>>, vector<1x128xf32>,
    %121 = vector.extract_strided_slice %50 {offsets = [14, 0], sizes = [1, 128], strides = [1, 1]} : vector<16x128xbf16> to vector<1x128xbf16>
    %c14 = arith.constant 14 : index
    %c0_101 = arith.constant 0 : index
    %c0_102 = arith.constant 0 : index
    %122 = vector.load %arg10[%c14, %c0_101, %c0_102] : memref<16x128x128xbf16, #tpu.memory_space<vmem>>, vector<1x128x128xbf16>
    %123 = vector.shape_cast %122 : vector<1x128x128xbf16> to vector<128x128xbf16>
    %cst_103 = arith.constant dense<0.000000e+00> : vector<1x128xf32>
    %124 = tpu.matmul %121, %123, %cst_103 {dimension_numbers = #tpu.dot_dimension_numbers<[1], [1], [0], [0], [0, 0, 1, 0], [], []>} : vector<1x128xbf16>, vector<128x128xbf16>, vector<1x128xf32> -> vector<1x128xf32>
    %c14_104 = arith.constant 14 : index
    %c0_105 = arith.constant 0 : index
    %125 = vector.load %arg21[%c14_104, %c0_105] : memref<16x128xf32, #tpu.memory_space<vmem>>, vector<1x128xf32>
    tpu.vector_store %arg21[%c14_104, %c0_105], %124 {strides = array<i32>} : memref<16x128xf32, #tpu.memory_space<vmem>>, vector<1x128xf32>,
    %126 = vector.extract_strided_slice %50 {offsets = [15, 0], sizes = [1, 128], strides = [1, 1]} : vector<16x128xbf16> to vector<1x128xbf16>
    %c15 = arith.constant 15 : index
    %c0_106 = arith.constant 0 : index
    %c0_107 = arith.constant 0 : index
    %127 = vector.load %arg10[%c15, %c0_106, %c0_107] : memref<16x128x128xbf16, #tpu.memory_space<vmem>>, vector<1x128x128xbf16>
    %128 = vector.shape_cast %127 : vector<1x128x128xbf16> to vector<128x128xbf16>
    %cst_108 = arith.constant dense<0.000000e+00> : vector<1x128xf32>
    %129 = tpu.matmul %126, %128, %cst_108 {dimension_numbers = #tpu.dot_dimension_numbers<[1], [1], [0], [0], [0, 0, 1, 0], [], []>} : vector<1x128xbf16>, vector<128x128xbf16>, vector<1x128xf32> -> vector<1x128xf32>
    %c15_109 = arith.constant 15 : index
    %c0_110 = arith.constant 0 : index
    %130 = vector.load %arg21[%c15_109, %c0_110] : memref<16x128xf32, #tpu.memory_space<vmem>>, vector<1x128xf32>
    tpu.vector_store %arg21[%c15_109, %c0_110], %129 {strides = array<i32>} : memref<16x128xf32, #tpu.memory_space<vmem>>, vector<1x128xf32>,
    %c0_111 = arith.constant 0 : index
    %c0_112 = arith.constant 0 : index
    %131 = vector.load %arg21[%c0_111, %c0_112] : memref<16x128xf32, #tpu.memory_space<vmem>>, vector<16x128xf32>
    %c0_113 = arith.constant 0 : index
    %c0_114 = arith.constant 0 : index
    %132 = vector.load %arg12[%c0_113, %c0_114] : memref<16x128xf32, #tpu.memory_space<vmem>>, vector<16x128xf32>
    %133 = arith.addf %131, %132 : vector<16x128xf32>
    %cst_115 = arith.constant dense<0xFF800000> : vector<16xf32>
    %134 = vector.multi_reduction <maximumf>, %133, %cst_115 [1] : vector<16x128xf32> to vector<16xf32>
    %135 = vector.shape_cast %134 : vector<16xf32> to vector<16x1xf32>
    %136 = vector.broadcast %135 : vector<16x1xf32> to vector<16x128xf32>
    %137 = arith.subf %133, %136 : vector<16x128xf32>
    %138 = math.exp %137 : vector<16x128xf32>
    %cst_116 = arith.constant dense<0.000000e+00> : vector<16xf32>
    %139 = vector.multi_reduction <add>, %138, %cst_116 [1] : vector<16x128xf32> to vector<16xf32>
    %140 = vector.shape_cast %139 : vector<16xf32> to vector<16x1xf32>
    %141 = tpu.reciprocal %140 : vector<16x1xf32> -> vector<16x1xf32>
    %142 = vector.broadcast %141 : vector<16x1xf32> to vector<16x128xf32>
    %143 = arith.mulf %138, %142 : vector<16x128xf32>
    %c0_117 = arith.constant 0 : index
    %c0_118 = arith.constant 0 : index
    %c0_119 = arith.constant 0 : index
    %144 = vector.load %arg15[%c0_117, %c0_118, %c0_119] : memref<1x16x128xf32, #tpu.memory_space<vmem>>, vector<1x16x128xf32>
    %145 = vector.shape_cast %144 : vector<1x16x128xf32> to vector<16x128xf32>
    %146 = vector.shape_cast %143 : vector<16x128xf32> to vector<1x16x128xf32>
    tpu.vector_store %arg15[%c0_117, %c0_118, %c0_119], %146 {strides = array<i32>} : memref<1x16x128xf32, #tpu.memory_space<vmem>>, vector<1x16x128xf32>,
    %147 = arith.truncf %143 : vector<16x128xf32> to vector<16x128xbf16>
    %148 = vector.extract_strided_slice %147 {offsets = [0, 0], sizes = [1, 128], strides = [1, 1]} : vector<16x128xbf16> to vector<1x128xbf16>
    %c0_120 = arith.constant 0 : index
    %c0_121 = arith.constant 0 : index
    %c0_122 = arith.constant 0 : index
    %149 = vector.load %arg11[%c0_120, %c0_121, %c0_122] : memref<16x128x256xbf16, #tpu.memory_space<vmem>>, vector<1x128x256xbf16>
    %150 = vector.shape_cast %149 : vector<1x128x256xbf16> to vector<128x256xbf16>
    %cst_123 = arith.constant dense<0.000000e+00> : vector<1x256xf32>
    %151 = tpu.matmul %148, %150, %cst_123 {dimension_numbers = #tpu.dot_dimension_numbers<[1], [0], [0], [1], [0, 0, 1, 1], [], []>} : vector<1x128xbf16>, vector<128x256xbf16>, vector<1x256xf32> -> vector<1x256xf32>
    %c0_124 = arith.constant 0 : index
    %c0_125 = arith.constant 0 : index
    %152 = vector.load %arg22[%c0_124, %c0_125] : memref<16x256xf32, #tpu.memory_space<vmem>>, vector<1x256xf32>
    tpu.vector_store %arg22[%c0_124, %c0_125], %151 {strides = array<i32>} : memref<16x256xf32, #tpu.memory_space<vmem>>, vector<1x256xf32>,
    %153 = vector.extract_strided_slice %147 {offsets = [1, 0], sizes = [1, 128], strides = [1, 1]} : vector<16x128xbf16> to vector<1x128xbf16>
    %c1_126 = arith.constant 1 : index
    %c0_127 = arith.constant 0 : index
    %c0_128 = arith.constant 0 : index
    %154 = vector.load %arg11[%c1_126, %c0_127, %c0_128] : memref<16x128x256xbf16, #tpu.memory_space<vmem>>, vector<1x128x256xbf16>
    %155 = vector.shape_cast %154 : vector<1x128x256xbf16> to vector<128x256xbf16>
    %cst_129 = arith.constant dense<0.000000e+00> : vector<1x256xf32>
    %156 = tpu.matmul %153, %155, %cst_129 {dimension_numbers = #tpu.dot_dimension_numbers<[1], [0], [0], [1], [0, 0, 1, 1], [], []>} : vector<1x128xbf16>, vector<128x256xbf16>, vector<1x256xf32> -> vector<1x256xf32>
    %c1_130 = arith.constant 1 : index
    %c0_131 = arith.constant 0 : index
    %157 = vector.load %arg22[%c1_130, %c0_131] : memref<16x256xf32, #tpu.memory_space<vmem>>, vector<1x256xf32>
    tpu.vector_store %arg22[%c1_130, %c0_131], %156 {strides = array<i32>} : memref<16x256xf32, #tpu.memory_space<vmem>>, vector<1x256xf32>,
    %158 = vector.extract_strided_slice %147 {offsets = [2, 0], sizes = [1, 128], strides = [1, 1]} : vector<16x128xbf16> to vector<1x128xbf16>
    %c2_132 = arith.constant 2 : index
    %c0_133 = arith.constant 0 : index
    %c0_134 = arith.constant 0 : index
    %159 = vector.load %arg11[%c2_132, %c0_133, %c0_134] : memref<16x128x256xbf16, #tpu.memory_space<vmem>>, vector<1x128x256xbf16>
    %160 = vector.shape_cast %159 : vector<1x128x256xbf16> to vector<128x256xbf16>
    %cst_135 = arith.constant dense<0.000000e+00> : vector<1x256xf32>
    %161 = tpu.matmul %158, %160, %cst_135 {dimension_numbers = #tpu.dot_dimension_numbers<[1], [0], [0], [1], [0, 0, 1, 1], [], []>} : vector<1x128xbf16>, vector<128x256xbf16>, vector<1x256xf32> -> vector<1x256xf32>
    %c2_136 = arith.constant 2 : index
    %c0_137 = arith.constant 0 : index
    %162 = vector.load %arg22[%c2_136, %c0_137] : memref<16x256xf32, #tpu.memory_space<vmem>>, vector<1x256xf32>
    tpu.vector_store %arg22[%c2_136, %c0_137], %161 {strides = array<i32>} : memref<16x256xf32, #tpu.memory_space<vmem>>, vector<1x256xf32>,
    %163 = vector.extract_strided_slice %147 {offsets = [3, 0], sizes = [1, 128], strides = [1, 1]} : vector<16x128xbf16> to vector<1x128xbf16>
    %c3_138 = arith.constant 3 : index
    %c0_139 = arith.constant 0 : index
    %c0_140 = arith.constant 0 : index
    %164 = vector.load %arg11[%c3_138, %c0_139, %c0_140] : memref<16x128x256xbf16, #tpu.memory_space<vmem>>, vector<1x128x256xbf16>
    %165 = vector.shape_cast %164 : vector<1x128x256xbf16> to vector<128x256xbf16>
    %cst_141 = arith.constant dense<0.000000e+00> : vector<1x256xf32>
    %166 = tpu.matmul %163, %165, %cst_141 {dimension_numbers = #tpu.dot_dimension_numbers<[1], [0], [0], [1], [0, 0, 1, 1], [], []>} : vector<1x128xbf16>, vector<128x256xbf16>, vector<1x256xf32> -> vector<1x256xf32>
    %c3_142 = arith.constant 3 : index
    %c0_143 = arith.constant 0 : index
    %167 = vector.load %arg22[%c3_142, %c0_143] : memref<16x256xf32, #tpu.memory_space<vmem>>, vector<1x256xf32>
    tpu.vector_store %arg22[%c3_142, %c0_143], %166 {strides = array<i32>} : memref<16x256xf32, #tpu.memory_space<vmem>>, vector<1x256xf32>,
    %168 = vector.extract_strided_slice %147 {offsets = [4, 0], sizes = [1, 128], strides = [1, 1]} : vector<16x128xbf16> to vector<1x128xbf16>
    %c4_144 = arith.constant 4 : index
    %c0_145 = arith.constant 0 : index
    %c0_146 = arith.constant 0 : index
    %169 = vector.load %arg11[%c4_144, %c0_145, %c0_146] : memref<16x128x256xbf16, #tpu.memory_space<vmem>>, vector<1x128x256xbf16>
    %170 = vector.shape_cast %169 : vector<1x128x256xbf16> to vector<128x256xbf16>
    %cst_147 = arith.constant dense<0.000000e+00> : vector<1x256xf32>
    %171 = tpu.matmul %168, %170, %cst_147 {dimension_numbers = #tpu.dot_dimension_numbers<[1], [0], [0], [1], [0, 0, 1, 1], [], []>} : vector<1x128xbf16>, vector<128x256xbf16>, vector<1x256xf32> -> vector<1x256xf32>
    %c4_148 = arith.constant 4 : index
    %c0_149 = arith.constant 0 : index
    %172 = vector.load %arg22[%c4_148, %c0_149] : memref<16x256xf32, #tpu.memory_space<vmem>>, vector<1x256xf32>
    tpu.vector_store %arg22[%c4_148, %c0_149], %171 {strides = array<i32>} : memref<16x256xf32, #tpu.memory_space<vmem>>, vector<1x256xf32>,
    %173 = vector.extract_strided_slice %147 {offsets = [5, 0], sizes = [1, 128], strides = [1, 1]} : vector<16x128xbf16> to vector<1x128xbf16>
    %c5_150 = arith.constant 5 : index
    %c0_151 = arith.constant 0 : index
    %c0_152 = arith.constant 0 : index
    %174 = vector.load %arg11[%c5_150, %c0_151, %c0_152] : memref<16x128x256xbf16, #tpu.memory_space<vmem>>, vector<1x128x256xbf16>
    %175 = vector.shape_cast %174 : vector<1x128x256xbf16> to vector<128x256xbf16>
    %cst_153 = arith.constant dense<0.000000e+00> : vector<1x256xf32>
    %176 = tpu.matmul %173, %175, %cst_153 {dimension_numbers = #tpu.dot_dimension_numbers<[1], [0], [0], [1], [0, 0, 1, 1], [], []>} : vector<1x128xbf16>, vector<128x256xbf16>, vector<1x256xf32> -> vector<1x256xf32>
    %c5_154 = arith.constant 5 : index
    %c0_155 = arith.constant 0 : index
    %177 = vector.load %arg22[%c5_154, %c0_155] : memref<16x256xf32, #tpu.memory_space<vmem>>, vector<1x256xf32>
    tpu.vector_store %arg22[%c5_154, %c0_155], %176 {strides = array<i32>} : memref<16x256xf32, #tpu.memory_space<vmem>>, vector<1x256xf32>,
    %178 = vector.extract_strided_slice %147 {offsets = [6, 0], sizes = [1, 128], strides = [1, 1]} : vector<16x128xbf16> to vector<1x128xbf16>
    %c6_156 = arith.constant 6 : index
    %c0_157 = arith.constant 0 : index
    %c0_158 = arith.constant 0 : index
    %179 = vector.load %arg11[%c6_156, %c0_157, %c0_158] : memref<16x128x256xbf16, #tpu.memory_space<vmem>>, vector<1x128x256xbf16>
    %180 = vector.shape_cast %179 : vector<1x128x256xbf16> to vector<128x256xbf16>
    %cst_159 = arith.constant dense<0.000000e+00> : vector<1x256xf32>
    %181 = tpu.matmul %178, %180, %cst_159 {dimension_numbers = #tpu.dot_dimension_numbers<[1], [0], [0], [1], [0, 0, 1, 1], [], []>} : vector<1x128xbf16>, vector<128x256xbf16>, vector<1x256xf32> -> vector<1x256xf32>
    %c6_160 = arith.constant 6 : index
    %c0_161 = arith.constant 0 : index
    %182 = vector.load %arg22[%c6_160, %c0_161] : memref<16x256xf32, #tpu.memory_space<vmem>>, vector<1x256xf32>
    tpu.vector_store %arg22[%c6_160, %c0_161], %181 {strides = array<i32>} : memref<16x256xf32, #tpu.memory_space<vmem>>, vector<1x256xf32>,
    %183 = vector.extract_strided_slice %147 {offsets = [7, 0], sizes = [1, 128], strides = [1, 1]} : vector<16x128xbf16> to vector<1x128xbf16>
    %c7_162 = arith.constant 7 : index
    %c0_163 = arith.constant 0 : index
    %c0_164 = arith.constant 0 : index
    %184 = vector.load %arg11[%c7_162, %c0_163, %c0_164] : memref<16x128x256xbf16, #tpu.memory_space<vmem>>, vector<1x128x256xbf16>
    %185 = vector.shape_cast %184 : vector<1x128x256xbf16> to vector<128x256xbf16>
    %cst_165 = arith.constant dense<0.000000e+00> : vector<1x256xf32>
    %186 = tpu.matmul %183, %185, %cst_165 {dimension_numbers = #tpu.dot_dimension_numbers<[1], [0], [0], [1], [0, 0, 1, 1], [], []>} : vector<1x128xbf16>, vector<128x256xbf16>, vector<1x256xf32> -> vector<1x256xf32>
    %c7_166 = arith.constant 7 : index
    %c0_167 = arith.constant 0 : index
    %187 = vector.load %arg22[%c7_166, %c0_167] : memref<16x256xf32, #tpu.memory_space<vmem>>, vector<1x256xf32>
    tpu.vector_store %arg22[%c7_166, %c0_167], %186 {strides = array<i32>} : memref<16x256xf32, #tpu.memory_space<vmem>>, vector<1x256xf32>,
    %188 = vector.extract_strided_slice %147 {offsets = [8, 0], sizes = [1, 128], strides = [1, 1]} : vector<16x128xbf16> to vector<1x128xbf16>
    %c8_168 = arith.constant 8 : index
    %c0_169 = arith.constant 0 : index
    %c0_170 = arith.constant 0 : index
    %189 = vector.load %arg11[%c8_168, %c0_169, %c0_170] : memref<16x128x256xbf16, #tpu.memory_space<vmem>>, vector<1x128x256xbf16>
    %190 = vector.shape_cast %189 : vector<1x128x256xbf16> to vector<128x256xbf16>
    %cst_171 = arith.constant dense<0.000000e+00> : vector<1x256xf32>
    %191 = tpu.matmul %188, %190, %cst_171 {dimension_numbers = #tpu.dot_dimension_numbers<[1], [0], [0], [1], [0, 0, 1, 1], [], []>} : vector<1x128xbf16>, vector<128x256xbf16>, vector<1x256xf32> -> vector<1x256xf32>
    %c8_172 = arith.constant 8 : index
    %c0_173 = arith.constant 0 : index
    %192 = vector.load %arg22[%c8_172, %c0_173] : memref<16x256xf32, #tpu.memory_space<vmem>>, vector<1x256xf32>
    tpu.vector_store %arg22[%c8_172, %c0_173], %191 {strides = array<i32>} : memref<16x256xf32, #tpu.memory_space<vmem>>, vector<1x256xf32>,
    %193 = vector.extract_strided_slice %147 {offsets = [9, 0], sizes = [1, 128], strides = [1, 1]} : vector<16x128xbf16> to vector<1x128xbf16>
    %c9_174 = arith.constant 9 : index
    %c0_175 = arith.constant 0 : index
    %c0_176 = arith.constant 0 : index
    %194 = vector.load %arg11[%c9_174, %c0_175, %c0_176] : memref<16x128x256xbf16, #tpu.memory_space<vmem>>, vector<1x128x256xbf16>
    %195 = vector.shape_cast %194 : vector<1x128x256xbf16> to vector<128x256xbf16>
    %cst_177 = arith.constant dense<0.000000e+00> : vector<1x256xf32>
    %196 = tpu.matmul %193, %195, %cst_177 {dimension_numbers = #tpu.dot_dimension_numbers<[1], [0], [0], [1], [0, 0, 1, 1], [], []>} : vector<1x128xbf16>, vector<128x256xbf16>, vector<1x256xf32> -> vector<1x256xf32>
    %c9_178 = arith.constant 9 : index
    %c0_179 = arith.constant 0 : index
    %197 = vector.load %arg22[%c9_178, %c0_179] : memref<16x256xf32, #tpu.memory_space<vmem>>, vector<1x256xf32>
    tpu.vector_store %arg22[%c9_178, %c0_179], %196 {strides = array<i32>} : memref<16x256xf32, #tpu.memory_space<vmem>>, vector<1x256xf32>,
    %198 = vector.extract_strided_slice %147 {offsets = [10, 0], sizes = [1, 128], strides = [1, 1]} : vector<16x128xbf16> to vector<1x128xbf16>
    %c10_180 = arith.constant 10 : index
    %c0_181 = arith.constant 0 : index
    %c0_182 = arith.constant 0 : index
    %199 = vector.load %arg11[%c10_180, %c0_181, %c0_182] : memref<16x128x256xbf16, #tpu.memory_space<vmem>>, vector<1x128x256xbf16>
    %200 = vector.shape_cast %199 : vector<1x128x256xbf16> to vector<128x256xbf16>
    %cst_183 = arith.constant dense<0.000000e+00> : vector<1x256xf32>
    %201 = tpu.matmul %198, %200, %cst_183 {dimension_numbers = #tpu.dot_dimension_numbers<[1], [0], [0], [1], [0, 0, 1, 1], [], []>} : vector<1x128xbf16>, vector<128x256xbf16>, vector<1x256xf32> -> vector<1x256xf32>
    %c10_184 = arith.constant 10 : index
    %c0_185 = arith.constant 0 : index
    %202 = vector.load %arg22[%c10_184, %c0_185] : memref<16x256xf32, #tpu.memory_space<vmem>>, vector<1x256xf32>
    tpu.vector_store %arg22[%c10_184, %c0_185], %201 {strides = array<i32>} : memref<16x256xf32, #tpu.memory_space<vmem>>, vector<1x256xf32>,
    %203 = vector.extract_strided_slice %147 {offsets = [11, 0], sizes = [1, 128], strides = [1, 1]} : vector<16x128xbf16> to vector<1x128xbf16>
    %c11_186 = arith.constant 11 : index
    %c0_187 = arith.constant 0 : index
    %c0_188 = arith.constant 0 : index
    %204 = vector.load %arg11[%c11_186, %c0_187, %c0_188] : memref<16x128x256xbf16, #tpu.memory_space<vmem>>, vector<1x128x256xbf16>
    %205 = vector.shape_cast %204 : vector<1x128x256xbf16> to vector<128x256xbf16>
    %cst_189 = arith.constant dense<0.000000e+00> : vector<1x256xf32>
    %206 = tpu.matmul %203, %205, %cst_189 {dimension_numbers = #tpu.dot_dimension_numbers<[1], [0], [0], [1], [0, 0, 1, 1], [], []>} : vector<1x128xbf16>, vector<128x256xbf16>, vector<1x256xf32> -> vector<1x256xf32>
    %c11_190 = arith.constant 11 : index
    %c0_191 = arith.constant 0 : index
    %207 = vector.load %arg22[%c11_190, %c0_191] : memref<16x256xf32, #tpu.memory_space<vmem>>, vector<1x256xf32>
    tpu.vector_store %arg22[%c11_190, %c0_191], %206 {strides = array<i32>} : memref<16x256xf32, #tpu.memory_space<vmem>>, vector<1x256xf32>,
    %208 = vector.extract_strided_slice %147 {offsets = [12, 0], sizes = [1, 128], strides = [1, 1]} : vector<16x128xbf16> to vector<1x128xbf16>
    %c12_192 = arith.constant 12 : index
    %c0_193 = arith.constant 0 : index
    %c0_194 = arith.constant 0 : index
    %209 = vector.load %arg11[%c12_192, %c0_193, %c0_194] : memref<16x128x256xbf16, #tpu.memory_space<vmem>>, vector<1x128x256xbf16>
    %210 = vector.shape_cast %209 : vector<1x128x256xbf16> to vector<128x256xbf16>
    %cst_195 = arith.constant dense<0.000000e+00> : vector<1x256xf32>
    %211 = tpu.matmul %208, %210, %cst_195 {dimension_numbers = #tpu.dot_dimension_numbers<[1], [0], [0], [1], [0, 0, 1, 1], [], []>} : vector<1x128xbf16>, vector<128x256xbf16>, vector<1x256xf32> -> vector<1x256xf32>
    %c12_196 = arith.constant 12 : index
    %c0_197 = arith.constant 0 : index
    %212 = vector.load %arg22[%c12_196, %c0_197] : memref<16x256xf32, #tpu.memory_space<vmem>>, vector<1x256xf32>
    tpu.vector_store %arg22[%c12_196, %c0_197], %211 {strides = array<i32>} : memref<16x256xf32, #tpu.memory_space<vmem>>, vector<1x256xf32>,
    %213 = vector.extract_strided_slice %147 {offsets = [13, 0], sizes = [1, 128], strides = [1, 1]} : vector<16x128xbf16> to vector<1x128xbf16>
    %c13_198 = arith.constant 13 : index
    %c0_199 = arith.constant 0 : index
    %c0_200 = arith.constant 0 : index
    %214 = vector.load %arg11[%c13_198, %c0_199, %c0_200] : memref<16x128x256xbf16, #tpu.memory_space<vmem>>, vector<1x128x256xbf16>
    %215 = vector.shape_cast %214 : vector<1x128x256xbf16> to vector<128x256xbf16>
    %cst_201 = arith.constant dense<0.000000e+00> : vector<1x256xf32>
    %216 = tpu.matmul %213, %215, %cst_201 {dimension_numbers = #tpu.dot_dimension_numbers<[1], [0], [0], [1], [0, 0, 1, 1], [], []>} : vector<1x128xbf16>, vector<128x256xbf16>, vector<1x256xf32> -> vector<1x256xf32>
    %c13_202 = arith.constant 13 : index
    %c0_203 = arith.constant 0 : index
    %217 = vector.load %arg22[%c13_202, %c0_203] : memref<16x256xf32, #tpu.memory_space<vmem>>, vector<1x256xf32>
    tpu.vector_store %arg22[%c13_202, %c0_203], %216 {strides = array<i32>} : memref<16x256xf32, #tpu.memory_space<vmem>>, vector<1x256xf32>,
    %218 = vector.extract_strided_slice %147 {offsets = [14, 0], sizes = [1, 128], strides = [1, 1]} : vector<16x128xbf16> to vector<1x128xbf16>
    %c14_204 = arith.constant 14 : index
    %c0_205 = arith.constant 0 : index
    %c0_206 = arith.constant 0 : index
    %219 = vector.load %arg11[%c14_204, %c0_205, %c0_206] : memref<16x128x256xbf16, #tpu.memory_space<vmem>>, vector<1x128x256xbf16>
    %220 = vector.shape_cast %219 : vector<1x128x256xbf16> to vector<128x256xbf16>
    %cst_207 = arith.constant dense<0.000000e+00> : vector<1x256xf32>
    %221 = tpu.matmul %218, %220, %cst_207 {dimension_numbers = #tpu.dot_dimension_numbers<[1], [0], [0], [1], [0, 0, 1, 1], [], []>} : vector<1x128xbf16>, vector<128x256xbf16>, vector<1x256xf32> -> vector<1x256xf32>
    %c14_208 = arith.constant 14 : index
    %c0_209 = arith.constant 0 : index
    %222 = vector.load %arg22[%c14_208, %c0_209] : memref<16x256xf32, #tpu.memory_space<vmem>>, vector<1x256xf32>
    tpu.vector_store %arg22[%c14_208, %c0_209], %221 {strides = array<i32>} : memref<16x256xf32, #tpu.memory_space<vmem>>, vector<1x256xf32>,
    %223 = vector.extract_strided_slice %147 {offsets = [15, 0], sizes = [1, 128], strides = [1, 1]} : vector<16x128xbf16> to vector<1x128xbf16>
    %c15_210 = arith.constant 15 : index
    %c0_211 = arith.constant 0 : index
    %c0_212 = arith.constant 0 : index
    %224 = vector.load %arg11[%c15_210, %c0_211, %c0_212] : memref<16x128x256xbf16, #tpu.memory_space<vmem>>, vector<1x128x256xbf16>
    %225 = vector.shape_cast %224 : vector<1x128x256xbf16> to vector<128x256xbf16>
    %cst_213 = arith.constant dense<0.000000e+00> : vector<1x256xf32>
    %226 = tpu.matmul %223, %225, %cst_213 {dimension_numbers = #tpu.dot_dimension_numbers<[1], [0], [0], [1], [0, 0, 1, 1], [], []>} : vector<1x128xbf16>, vector<128x256xbf16>, vector<1x256xf32> -> vector<1x256xf32>
    %c15_214 = arith.constant 15 : index
    %c0_215 = arith.constant 0 : index
    %227 = vector.load %arg22[%c15_214, %c0_215] : memref<16x256xf32, #tpu.memory_space<vmem>>, vector<1x256xf32>
    tpu.vector_store %arg22[%c15_214, %c0_215], %226 {strides = array<i32>} : memref<16x256xf32, #tpu.memory_space<vmem>>, vector<1x256xf32>,
    %c0_216 = arith.constant 0 : index
    %c0_217 = arith.constant 0 : index
    %228 = vector.load %arg22[%c0_216, %c0_217] : memref<16x256xf32, #tpu.memory_space<vmem>>, vector<16x256xf32>
    %229 = arith.truncf %228 : vector<16x256xf32> to vector<16x256xbf16>
    %c0_218 = arith.constant 0 : index
    %c0_219 = arith.constant 0 : index
    %230 = vector.load %arg13[%c0_218, %c0_219] : memref<384x128xbf16, #tpu.memory_space<vmem>>, vector<256x128xbf16>
    %cst_220 = arith.constant dense<0.000000e+00> : vector<16x128xf32>
    %231 = tpu.matmul %229, %230, %cst_220 {dimension_numbers = #tpu.dot_dimension_numbers<[1], [0], [0], [1], [0, 0, 1, 1], [], []>} : vector<16x256xbf16>, vector<256x128xbf16>, vector<16x128xf32> -> vector<16x128xf32>
    %c256 = arith.constant 256 : index
    %c0_221 = arith.constant 0 : index
    %232 = vector.load %arg13[%c256, %c0_221] : memref<384x128xbf16, #tpu.memory_space<vmem>>, vector<128x128xbf16>
    %cst_222 = arith.constant dense<0.000000e+00> : vector<16x128xf32>
    %233 = tpu.matmul %50, %232, %cst_222 {dimension_numbers = #tpu.dot_dimension_numbers<[1], [0], [0], [1], [0, 0, 1, 1], [], []>} : vector<16x128xbf16>, vector<128x128xbf16>, vector<16x128xf32> -> vector<16x128xf32>
    %234 = arith.addf %231, %233 : vector<16x128xf32>
    %235 = math.tanh %234 : vector<16x128xf32>
    %c0_223 = arith.constant 0 : index
    %c0_224 = arith.constant 0 : index
    %236 = vector.load %arg20[%c0_223, %c0_224] : memref<16x128xf32, #tpu.memory_space<vmem>>, vector<16x128xf32>
    tpu.vector_store %arg20[%c0_223, %c0_224], %235 {strides = array<i32>} : memref<16x128xf32, #tpu.memory_space<vmem>>, vector<16x128xf32>,
    %c0_225 = arith.constant 0 : index
    %c0_226 = arith.constant 0 : index
    %c0_227 = arith.constant 0 : index
    %237 = vector.load %arg14[%c0_225, %c0_226, %c0_227] : memref<1x16x128xf32, #tpu.memory_space<vmem>>, vector<1x16x128xf32>
    %238 = vector.shape_cast %237 : vector<1x16x128xf32> to vector<16x128xf32>
    %239 = vector.shape_cast %235 : vector<16x128xf32> to vector<1x16x128xf32>
    tpu.vector_store %arg14[%c0_225, %c0_226, %c0_227], %239 {strides = array<i32>} : memref<1x16x128xf32, #tpu.memory_space<vmem>>, vector<1x16x128xf32>,
    return
  }
  func.func @transform_0(%arg0: i32, %arg1: i32) -> (i32, i32, i32) {
    %c0_i32 = arith.constant 0 : i32
    %c0_i32_0 = arith.constant 0 : i32
    return %arg1, %arg0, %c0_i32 : i32, i32, i32
  }
  func.func @transform_1(%arg0: i32, %arg1: i32) -> (i32, i32) {
    %c0_i32 = arith.constant 0 : i32
    %c0_i32_0 = arith.constant 0 : i32
    return %arg0, %c0_i32 : i32, i32
  }
  func.func @transform_2(%arg0: i32, %arg1: i32) -> (i32, i32) {
    %c0_i32 = arith.constant 0 : i32
    %c0_i32_0 = arith.constant 0 : i32
    return %arg0, %c0_i32 : i32, i32
  }
  func.func @transform_3(%arg0: i32, %arg1: i32) -> (i32, i32) {
    %c0_i32 = arith.constant 0 : i32
    %c0_i32_0 = arith.constant 0 : i32
    return %arg0, %c0_i32 : i32, i32
  }
  func.func @transform_4(%arg0: i32, %arg1: i32) -> (i32, i32) {
    %c0_i32 = arith.constant 0 : i32
    %c0_i32_0 = arith.constant 0 : i32
    %c0_i32_1 = arith.constant 0 : i32
    return %c0_i32, %c0_i32_0 : i32, i32
  }
  func.func @transform_5(%arg0: i32, %arg1: i32) -> (i32, i32) {
    %c0_i32 = arith.constant 0 : i32
    %c0_i32_0 = arith.constant 0 : i32
    %c0_i32_1 = arith.constant 0 : i32
    return %c0_i32, %c0_i32_0 : i32, i32
  }
  func.func @transform_6(%arg0: i32, %arg1: i32) -> (i32, i32) {
    %c0_i32 = arith.constant 0 : i32
    %c0_i32_0 = arith.constant 0 : i32
    %c0_i32_1 = arith.constant 0 : i32
    return %c0_i32, %c0_i32_0 : i32, i32
  }
  func.func @transform_7(%arg0: i32, %arg1: i32) -> (i32, i32) {
    %c0_i32 = arith.constant 0 : i32
    %c0_i32_0 = arith.constant 0 : i32
    %c0_i32_1 = arith.constant 0 : i32
    return %c0_i32, %c0_i32_0 : i32, i32
  }
  func.func @transform_8(%arg0: i32, %arg1: i32) -> (i32, i32, i32) {
    %c0_i32 = arith.constant 0 : i32
    %c0_i32_0 = arith.constant 0 : i32
    %c0_i32_1 = arith.constant 0 : i32
    return %arg0, %c0_i32, %c0_i32_0 : i32, i32, i32
  }
  func.func @transform_9(%arg0: i32, %arg1: i32) -> (i32, i32, i32) {
    %c0_i32 = arith.constant 0 : i32
    %c0_i32_0 = arith.constant 0 : i32
    %c0_i32_1 = arith.constant 0 : i32
    return %arg0, %c0_i32, %c0_i32_0 : i32, i32, i32
  }
  func.func @transform_10(%arg0: i32, %arg1: i32) -> (i32, i32) {
    %c0_i32 = arith.constant 0 : i32
    %c0_i32_0 = arith.constant 0 : i32
    return %arg0, %c0_i32 : i32, i32
  }
  func.func @transform_11(%arg0: i32, %arg1: i32) -> (i32, i32) {
    %c0_i32 = arith.constant 0 : i32
    %c0_i32_0 = arith.constant 0 : i32
    %c0_i32_1 = arith.constant 0 : i32
    return %c0_i32, %c0_i32_0 : i32, i32
  }
  func.func @transform_12(%arg0: i32, %arg1: i32) -> (i32, i32, i32) {
    %c0_i32 = arith.constant 0 : i32
    %c0_i32_0 = arith.constant 0 : i32
    return %arg1, %arg0, %c0_i32 : i32, i32, i32
  }
  func.func @transform_13(%arg0: i32, %arg1: i32) -> (i32, i32, i32) {
    %c0_i32 = arith.constant 0 : i32
    %c0_i32_0 = arith.constant 0 : i32
    return %arg1, %arg0, %c0_i32 : i32, i32, i32
  }
  func.func @transform_14(%arg0: i32, %arg1: i32) -> (i32, i32) {
    %c0_i32 = arith.constant 0 : i32
    %c0_i32_0 = arith.constant 0 : i32
    return %arg0, %c0_i32 : i32, i32
  }
  func.func @transform_15(%arg0: i32, %arg1: i32) -> (i32, i32) {
    %c0_i32 = arith.constant 0 : i32
    %c0_i32_0 = arith.constant 0 : i32
    return %arg0, %c0_i32 : i32, i32
  }
}

</mosaic_0001>

<llo_original>
// kernel: tpu_custom_call.1
$region0: #{tpu_custom_call.1}
  #allocation0 [shape = 'u32[]', space=smem, size = 0x4, offset = 0x4, fixed_abs, tag = 'smem constant byte address 0x4 - core index']
  #allocation1 [shape = 'u32[144,128]{1,0:T(1,128)}', space=vmem, size = 0x12000, scoped, tag = 'internal scratch']
  %s0 = inlined_call_operand.hbm [shape: f32[8,128], index: 0, kind: input, shape index: {}]
  %s1 = inlined_call_operand.hbm [shape: f32[8,128], index: 1, kind: output, shape index: {}]
  %s2 = sld [smem:[#allocation0]]
  $region41: #{tpu_custom_call.1} parent=0
    _
  %s4 = ssub.s32 1, %s2
  %s5 = scalar_select 0, %s4, %s2
  $region1: #{tpu_custom_call.1} parent=0
    #allocation2 [shape = 'u8[4096]{0}', space=vmem, size = 0x1000, scoped, tag = 'input window, operand 0, single buffered']
    #allocation3 [shape = 's32[2]{0}', space=sflag, size = 0x8, scoped, tag = 'scoped memory for tpu_custom_call.1']
    #allocation4 [shape = 's32[2]{0}', space=sflag, size = 0x8, scoped, tag = 'scoped memory for tpu_custom_call.1']
    #allocation5 [shape = 'u8[4096]{0}', space=vmem, size = 0x1000, scoped, tag = 'output window, operand 0, single buffered']
    %6 = vsyncpa [#allocation3], 0
    %7 = vsyncpa [#allocation4], 0
    loop: start=0, step=1, limit=4
    $region2: #{tpu_custom_call.1} parent=1 // loop_pre_header
      _
    $region3: #{tpu_custom_call.1} parent=1 // loop_header
      %s9 = sphi 0, %s13
      %p10 = scmp.ge.s32.totalorder %s9, 4
      %s17 = sphi 0, %s17
      %s19 = sphi 0, %s17
      %s20 = sphi 0, %s19
      %s34 = sphi 0, %s20
      %s38 = sphi 0, %s38
      %s40 = sphi 0, %s38
      %s41 = sphi 0, %s40
      %s55 = sphi 0, %s41
    $region4: #{tpu_custom_call.1} parent=1 // loop_header_branch
      %12 = sbr.rel (%p10) target = $region8
    $region5: #{tpu_custom_call.1} parent=1 // loop_body
      %s14 = ssub.s32 %s9, 1
      %s15 = ssub.s32 %s9, 2
      %s16 = sadd.s32 %s9, 1
      %s18 = sadd.s32 %s17, 1
      %p21 = scmp.eq.s32.totalorder %s9, 1
      %p22 = scmp.ne.s32.totalorder %s17, %s19
      %p23 = scmp.eq.s32.totalorder %s9, 0
      %p24 = por %p22, %p23
      %p25 = scmp.ne.s32.totalorder %s17, %s19
      %p26 = scmp.eq.s32.totalorder %s14, 1
      %p27 = por %p25, %p26
      %p28 = scmp.ne.s32.totalorder %s19, %s20
      %p29 = scmp.eq.s32.totalorder %s14, 0
      %p30 = por %p28, %p29
      %p31 = scmp.ne.s32.totalorder %s19, %s20
      %p32 = scmp.eq.s32.totalorder %s15, 1
      %p33 = por %p31, %p32
      %p35 = scmp.ne.s32.totalorder %s20, %s34
      %p36 = scmp.eq.s32.totalorder %s15, 0
      %p37 = por %p35, %p36
      %s39 = sadd.s32 %s38, 1
      %p42 = scmp.eq.s32.totalorder %s9, 1
      %p43 = scmp.ne.s32.totalorder %s38, %s40
      %p44 = scmp.eq.s32.totalorder %s9, 0
      %p45 = por %p43, %p44
      %p46 = scmp.ne.s32.totalorder %s38, %s40
      %p47 = scmp.eq.s32.totalorder %s14, 1
      %p48 = por %p46, %p47
      %p49 = scmp.ne.s32.totalorder %s40, %s41
      %p50 = scmp.eq.s32.totalorder %s14, 0
      %p51 = por %p49, %p50
      %p52 = scmp.ne.s32.totalorder %s40, %s41
      %p53 = scmp.eq.s32.totalorder %s15, 1
      %p54 = por %p52, %p53
      %p56 = scmp.ne.s32.totalorder %s41, %s55
      %p57 = scmp.eq.s32.totalorder %s15, 0
      %p58 = por %p56, %p57
      %p59 = scmp.le.s32.totalorder 1, %s9
      %p60 = scmp.lt.s32.totalorder %s9, 3
      %p61 = pnand %p59, %p60
      %p62 = pneg %p61
      // Predicated region
      $region9: #{tpu_custom_call.1} parent=5 // pred_check
        _
      $region10: #{tpu_custom_call.1} parent=5 // pred_check_branch
        %64 = sbr.rel (%p61) target = $region12
      $region11: #{tpu_custom_call.1} parent=5 // pred_region
        %s65 = ssub.s32 %s9, 1
        // Predicated region
        $region13: #{tpu_custom_call.1} parent=11 // pred_check
          %p66 = pneg %p30
        $region14: #{tpu_custom_call.1} parent=11 // pred_check_branch
          %68 = sbr.rel (%p66) target = $region16
        $region15: #{tpu_custom_call.1} parent=11 // pred_region
          %s70 = ssub.s32 128, 128
          %71 = vsyncadd [#allocation3], %s70
          %s73 = sshll.u32 [#allocation2], 4
          %s74 = int_to_ptr.vmem [resolvable:$true] %s73
          %76 = dma.hbm_to_vmem [thread:$0]  %s0, 128, %s74, [#allocation3]
        $region16: #{tpu_custom_call.1} parent=11 // pred_fallthru
          _
      $region12: #{tpu_custom_call.1} parent=5 // pred_fallthru
        _
      %p77 = scmp.lt.s32.totalorder %s9, 2
      // Predicated region
      $region17: #{tpu_custom_call.1} parent=5 // pred_check
        %p78 = pneg %p77
      $region18: #{tpu_custom_call.1} parent=5 // pred_check_branch
        %80 = sbr.rel (%p78) target = $region20
      $region19: #{tpu_custom_call.1} parent=5 // pred_region
        _
      $region20: #{tpu_custom_call.1} parent=5 // pred_fallthru
        _
      %p81 = scmp.le.s32.totalorder 1, %s9
      %p82 = scmp.lt.s32.totalorder %s9, 3
      %p83 = pnand %p81, %p82
      %p84 = pneg %p83
      // Predicated region
      $region21: #{tpu_custom_call.1} parent=5 // pred_check
        _
      $region22: #{tpu_custom_call.1} parent=5 // pred_check_branch
        %86 = sbr.rel (%p83) target = $region24
      $region23: #{tpu_custom_call.1} parent=5 // pred_region
        %s87 = ssub.s32 %s9, 1
        // Predicated region
        $region25: #{tpu_custom_call.1} parent=23 // pred_check
          %p88 = pneg %p30
        $region26: #{tpu_custom_call.1} parent=23 // pred_check_branch
          %90 = sbr.rel (%p88) target = $region28
        $region27: #{tpu_custom_call.1} parent=23 // pred_region
          %91 = dma.done [#allocation3], 128
        $region28: #{tpu_custom_call.1} parent=23 // pred_fallthru
          _
        %p92 = pneg %p30
        %p93 = pneg %p27
        %p94 = pneg %p51
        %p95 = pneg %p48
        %v96 = vld [vmem:[#allocation2] sm:$0xff]
        %v97 = vadd.f32 %v96, 1.0
        %98 = vst [vmem:[#allocation5] sm:$0xff] %v97
        // Predicated region
        $region29: #{tpu_custom_call.1} parent=23 // pred_check
          %p99 = pneg %p48
        $region30: #{tpu_custom_call.1} parent=23 // pred_check_branch
          %101 = sbr.rel (%p99) target = $region32
        $region31: #{tpu_custom_call.1} parent=23 // pred_region
          %s103 = ssub.s32 128, 128
          %104 = vsyncadd [#allocation4], %s103
          %s106 = sshll.u32 [#allocation5], 4
          %s107 = int_to_ptr.vmem [resolvable:$true] %s106
          %109 = dma.vmem_to_hbm [thread:$0]  %s107, 128, %s1, [#allocation4]
        $region32: #{tpu_custom_call.1} parent=23 // pred_fallthru
          _
        // Predicated region
        $region33: #{tpu_custom_call.1} parent=23 // pred_check
          %p110 = pneg %p48
        $region34: #{tpu_custom_call.1} parent=23 // pred_check_branch
          %112 = sbr.rel (%p110) target = $region36
        $region35: #{tpu_custom_call.1} parent=23 // pred_region
          %113 = dma.done [#allocation4], 128
        $region36: #{tpu_custom_call.1} parent=23 // pred_fallthru
          _
      $region24: #{tpu_custom_call.1} parent=5 // pred_fallthru
        _
      %p114 = scmp.le.s32.totalorder 2, %s9
      // Predicated region
      $region37: #{tpu_custom_call.1} parent=5 // pred_check
        %p115 = pneg %p114
      $region38: #{tpu_custom_call.1} parent=5 // pred_check_branch
        %117 = sbr.rel (%p115) target = $region40
      $region39: #{tpu_custom_call.1} parent=5 // pred_region
        %s118 = ssub.s32 %s9, 2
      $region40: #{tpu_custom_call.1} parent=5 // pred_fallthru
        _
    $region6: #{tpu_custom_call.1} parent=1 // loop_footer
      %s13 = sadd.s32 1, %s9
    $region7: #{tpu_custom_call.1} parent=1 // loop_footer_branch
      %8 = sbr.rel target = $region3
    $region8: #{tpu_custom_call.1} parent=1 // loop_exit
      _
    %119 = vsyncpa [#allocation3], 1
    %s120 = scalar_lea.sflag [#allocation3], 1
    %121 = vsyncpa %s120, 1
    %122 = vsyncpa [#allocation4], 1
    %s123 = scalar_lea.sflag [#allocation4], 1
    %124 = vsyncpa %s123, 1

// kernel: tpu_custom_call.1
$region0: #{tpu_custom_call.1}
  #allocation0 [shape = 'u32[]', space=smem, size = 0x4, offset = 0x4, fixed_abs, tag = 'smem constant byte address 0x4 - core index']
  #allocation1 [shape = 'u32[144,128]{1,0:T(1,128)}', space=vmem, size = 0x12000, scoped, tag = 'internal scratch']
  #allocation2 [shape = 'f32[16,128]{1,0:T(8,128)}', space=vmem, size = 0x2000, scoped, tag = 'scratch operand']
  #allocation3 [shape = 'f32[16,128]{1,0:T(8,128)}', space=vmem, size = 0x2000, scoped, tag = 'scratch operand']
  #allocation4 [shape = 'f32[16,128]{1,0:T(8,128)}', space=vmem, size = 0x2000, scoped, tag = 'scratch operand']
  #allocation5 [shape = 'f32[16,128]{1,0:T(8,128)}', space=vmem, size = 0x2000, scoped, tag = 'scratch operand']
  #allocation6 [shape = 'f32[16,256]{1,0:T(8,128)}', space=vmem, size = 0x4000, scoped, tag = 'scratch operand']
  %s0 = inlined_call_operand.hbm [shape: bf16[1,32,128], index: 0, kind: input, shape index: {}]
  %s1 = inlined_call_operand.hbm [shape: f32[32,128], index: 1, kind: input, shape index: {}]
  %s2 = inlined_call_operand.hbm [shape: f32[32,128], index: 2, kind: input, shape index: {}]
  %s3 = inlined_call_operand.hbm [shape: f32[32,128], index: 3, kind: input, shape index: {}]
  %s4 = inlined_call_operand.hbm [shape: bf16[128,512], index: 4, kind: input, shape index: {}]
  %s5 = inlined_call_operand.hbm [shape: bf16[128,512], index: 5, kind: input, shape index: {}]
  %s6 = inlined_call_operand.hbm [shape: bf16[128,512], index: 6, kind: input, shape index: {}]
  %s7 = inlined_call_operand.hbm [shape: f32[1,512], index: 7, kind: input, shape index: {}]
  %s8 = inlined_call_operand.hbm [shape: bf16[32,128,128], index: 8, kind: input, shape index: {}]
  %s9 = inlined_call_operand.hbm [shape: bf16[32,128,256], index: 9, kind: input, shape index: {}]
  %s10 = inlined_call_operand.hbm [shape: f32[32,128], index: 10, kind: input, shape index: {}]
  %s11 = inlined_call_operand.hbm [shape: bf16[384,128], index: 11, kind: input, shape index: {}]
  %s12 = inlined_call_operand.hbm [shape: f32[1,32,128], index: 12, kind: output, shape index: {0}]
  %s13 = inlined_call_operand.hbm [shape: f32[1,32,128], index: 13, kind: output, shape index: {1}]
  %s14 = inlined_call_operand.hbm [shape: f32[32,128], index: 14, kind: output, shape index: {2}]
  %s15 = inlined_call_operand.hbm [shape: f32[32,128], index: 15, kind: output, shape index: {3}]
  %16 = xla_tuple %s12, %s13, %s14, %s15
  %s17 = sld [smem:[#allocation0]]
  $region157: #{tpu_custom_call.1} parent=0
    _
  %s19 = ssub.s32 1, %s17
  %s20 = scalar_select 0, %s19, %s17
  $region1: #{tpu_custom_call.1} parent=0
    #allocation7 [shape = 'u8[8192]{0}', space=vmem, size = 0x2000, scoped, tag = 'input window, operand 0']
    #allocation8 [shape = 's32[2]{0}', space=sflag, size = 0x8, scoped, tag = 'scoped memory for tpu_custom_call.1']
    #allocation9 [shape = 's32[2]{0}', space=sflag, size = 0x8, scoped, tag = 'scoped memory for tpu_custom_call.1']
    #allocation10 [shape = 'u8[16384]{0}', space=vmem, size = 0x4000, scoped, tag = 'input window, operand 1']
    #allocation11 [shape = 's32[2]{0}', space=sflag, size = 0x8, scoped, tag = 'scoped memory for tpu_custom_call.1']
    #allocation12 [shape = 'u8[16384]{0}', space=vmem, size = 0x4000, scoped, tag = 'input window, operand 2']
    #allocation13 [shape = 'u8[16384]{0}', space=vmem, size = 0x4000, scoped, tag = 'input window, operand 3']
    #allocation14 [shape = 's32[2]{0}', space=sflag, size = 0x8, scoped, tag = 'scoped memory for tpu_custom_call.1']
    #allocation15 [shape = 'u8[131072]{0}', space=vmem, size = 0x20000, scoped, tag = 'input window, operand 4, single buffered']
    #allocation16 [shape = 'u8[131072]{0}', space=vmem, size = 0x20000, scoped, tag = 'input window, operand 5, single buffered']
    #allocation17 [shape = 's32[1]{0}', space=sflag, size = 0x4, scoped, tag = 'scoped memory for tpu_custom_call.1']
    #allocation18 [shape = 'u8[131072]{0}', space=vmem, size = 0x20000, scoped, tag = 'input window, operand 6, single buffered']
    #allocation19 [shape = 'u8[2048]{0}', space=vmem, size = 0x800, scoped, tag = 'input window, operand 7, single buffered']
    #allocation20 [shape = 's32[1]{0}', space=sflag, size = 0x4, scoped, tag = 'scoped memory for tpu_custom_call.1']
    #allocation21 [shape = 'u8[1048576]{0}', space=vmem, size = 0x100000, scoped, tag = 'input window, operand 8']
    #allocation22 [shape = 'u8[2097152]{0}', space=vmem, size = 0x200000, scoped, tag = 'input window, operand 9']
    #allocation23 [shape = 'u8[16384]{0}', space=vmem, size = 0x4000, scoped, tag = 'input window, operand 10']
    #allocation24 [shape = 'u8[98304]{0}', space=vmem, size = 0x18000, scoped, tag = 'input window, operand 11, single buffered']
    #allocation25 [shape = 'u8[16384]{0}', space=vmem, size = 0x4000, scoped, tag = 'output window, operand 0']
    #allocation26 [shape = 'u8[16384]{0}', space=vmem, size = 0x4000, scoped, tag = 'output window, operand 1']
    #allocation27 [shape = 's32[2]{0}', space=sflag, size = 0x8, scoped, tag = 'scoped memory for tpu_custom_call.1']
    #allocation28 [shape = 'u8[16384]{0}', space=vmem, size = 0x4000, scoped, tag = 'output window, operand 2']
    #allocation29 [shape = 'u8[16384]{0}', space=vmem, size = 0x4000, scoped, tag = 'output window, operand 3']
    #allocation30 [shape = 's32[2]{0}', space=sflag, size = 0x8, scoped, tag = 'scoped memory for tpu_custom_call.1']
    %21 = vsyncpa [#allocation8], 0
    %s22 = scalar_lea.sflag [#allocation8], 1
    %23 = vsyncpa %s22, 0
    %24 = vsyncpa [#allocation11], 0
    %s25 = scalar_lea.sflag [#allocation11], 1
    %26 = vsyncpa %s25, 0
    %27 = vsyncpa [#allocation14], 0
    %s28 = scalar_lea.sflag [#allocation14], 1
    %29 = vsyncpa %s28, 0
    %30 = vsyncpa [#allocation17], 0
    %31 = vsyncpa [#allocation20], 0
    %32 = vsyncpa [#allocation9], 0
    %s33 = scalar_lea.sflag [#allocation9], 1
    %34 = vsyncpa %s33, 0
    %35 = vsyncpa [#allocation27], 0
    %s36 = scalar_lea.sflag [#allocation27], 1
    %37 = vsyncpa %s36, 0
    %38 = vsyncpa [#allocation30], 0
    %s39 = scalar_lea.sflag [#allocation30], 1
    %40 = vsyncpa %s39, 0
    loop: start=0, step=1, limit=4
    $region2: #{tpu_custom_call.1} parent=1 // loop_pre_header
      _
    $region3: #{tpu_custom_call.1} parent=1 // loop_header
      %s42 = sphi 0, %s46
      %p43 = scmp.ge.s32.totalorder %s42, 4
      %s49 = sphi 0, %s61
      %s50 = sphi 0, %s57
      %s51 = sphi 0, %s49
      %s52 = sphi 0, %s50
      %s53 = sphi 0, %s51
      %s54 = sphi 0, %s52
      %s66 = sphi 0, %s68
      %s69 = sphi 0, %s66
      %s70 = sphi 0, %s69
      %s86 = sphi 0, %s70
      %s92 = sphi 0, %s94
      %s95 = sphi 0, %s92
      %s96 = sphi 0, %s95
      %s112 = sphi 0, %s96
      %s118 = sphi 0, %s120
      %s121 = sphi 0, %s118
      %s122 = sphi 0, %s121
      %s138 = sphi 0, %s122
      %s144 = sphi 0, %s146
      %s147 = sphi 0, %s144
      %s148 = sphi 0, %s147
      %s164 = sphi 0, %s148
      %s168 = sphi 0, %s168
      %s170 = sphi 0, %s168
      %s171 = sphi 0, %s170
      %s185 = sphi 0, %s171
      %s189 = sphi 0, %s189
      %s191 = sphi 0, %s189
      %s192 = sphi 0, %s191
      %s206 = sphi 0, %s192
      %s210 = sphi 0, %s210
      %s212 = sphi 0, %s210
      %s213 = sphi 0, %s212
      %s227 = sphi 0, %s213
      %s231 = sphi 0, %s231
      %s233 = sphi 0, %s231
      %s234 = sphi 0, %s233
      %s248 = sphi 0, %s234
      %s254 = sphi 0, %s256
      %s257 = sphi 0, %s254
      %s258 = sphi 0, %s257
      %s274 = sphi 0, %s258
      %s280 = sphi 0, %s282
      %s283 = sphi 0, %s280
      %s284 = sphi 0, %s283
      %s300 = sphi 0, %s284
      %s306 = sphi 0, %s308
      %s309 = sphi 0, %s306
      %s310 = sphi 0, %s309
      %s326 = sphi 0, %s310
      %s330 = sphi 0, %s330
      %s332 = sphi 0, %s330
      %s333 = sphi 0, %s332
      %s347 = sphi 0, %s333
      %s355 = sphi 0, %s357
      %s358 = sphi 0, %s355
      %s359 = sphi 0, %s358
      %s375 = sphi 0, %s359
      %s383 = sphi 0, %s385
      %s386 = sphi 0, %s383
      %s387 = sphi 0, %s386
      %s403 = sphi 0, %s387
      %s409 = sphi 0, %s411
      %s412 = sphi 0, %s409
      %s413 = sphi 0, %s412
      %s429 = sphi 0, %s413
      %s435 = sphi 0, %s437
      %s438 = sphi 0, %s435
      %s439 = sphi 0, %s438
      %s455 = sphi 0, %s439
    $region4: #{tpu_custom_call.1} parent=1 // loop_header_branch
      %45 = sbr.rel (%p43) target = $region8
    $region5: #{tpu_custom_call.1} parent=1 // loop_body
      %s47 = ssub.s32 %s42, 1
      %s48 = ssub.s32 %s42, 2
      %s55 = sadd.s32 1, %s50
      %p56 = scmp.ge.s32.totalorder %s55, 1
      %s57 = scalar_select %p56, 0, %s55
      %s58 = sadd.s32 1, %s49
      %s59 = scalar_select %p56, %s58, %s49
      %p60 = scmp.ge.s32.totalorder %s59, 2
      %s61 = scalar_select %p60, 0, %s59
      %s62 = ssub.s32 %s50, %s57
      %s63 = ssub.s32 %s49, %s61
      %s64 = sor.u32 %s62, %s63
      %p65 = scmp.eq.s32.totalorder %s64, 0
      %s67 = sadd.s32 %s66, 1
      %s68 = scalar_select %p65, %s66, %s67
      %p71 = pneg %p65
      %p72 = scmp.eq.s32.totalorder %s42, 1
      %p73 = por %p71, %p72
      %p74 = scmp.ne.s32.totalorder %s66, %s69
      %p75 = scmp.eq.s32.totalorder %s42, 0
      %p76 = por %p74, %p75
      %p77 = scmp.ne.s32.totalorder %s66, %s69
      %p78 = scmp.eq.s32.totalorder %s47, 1
      %p79 = por %p77, %p78
      %p80 = scmp.ne.s32.totalorder %s69, %s70
      %p81 = scmp.eq.s32.totalorder %s47, 0
      %p82 = por %p80, %p81
      %p83 = scmp.ne.s32.totalorder %s69, %s70
      %p84 = scmp.eq.s32.totalorder %s48, 1
      %p85 = por %p83, %p84
      %p87 = scmp.ne.s32.totalorder %s70, %s86
      %p88 = scmp.eq.s32.totalorder %s48, 0
      %p89 = por %p87, %p88
      %s90 = ssub.s32 %s49, %s61
      %p91 = scmp.eq.s32.totalorder %s90, 0
      %s93 = sadd.s32 %s92, 1
      %s94 = scalar_select %p91, %s92, %s93
      %p97 = pneg %p91
      %p98 = scmp.eq.s32.totalorder %s42, 1
      %p99 = por %p97, %p98
      %p100 = scmp.ne.s32.totalorder %s92, %s95
      %p101 = scmp.eq.s32.totalorder %s42, 0
      %p102 = por %p100, %p101
      %p103 = scmp.ne.s32.totalorder %s92, %s95
      %p104 = scmp.eq.s32.totalorder %s47, 1
      %p105 = por %p103, %p104
      %p106 = scmp.ne.s32.totalorder %s95, %s96
      %p107 = scmp.eq.s32.totalorder %s47, 0
      %p108 = por %p106, %p107
      %p109 = scmp.ne.s32.totalorder %s95, %s96
      %p110 = scmp.eq.s32.totalorder %s48, 1
      %p111 = por %p109, %p110
      %p113 = scmp.ne.s32.totalorder %s96, %s112
      %p114 = scmp.eq.s32.totalorder %s48, 0
      %p115 = por %p113, %p114
      %s116 = ssub.s32 %s49, %s61
      %p117 = scmp.eq.s32.totalorder %s116, 0
      %s119 = sadd.s32 %s118, 1
      %s120 = scalar_select %p117, %s118, %s119
      %p123 = pneg %p117
      %p124 = scmp.eq.s32.totalorder %s42, 1
      %p125 = por %p123, %p124
      %p126 = scmp.ne.s32.totalorder %s118, %s121
      %p127 = scmp.eq.s32.totalorder %s42, 0
      %p128 = por %p126, %p127
      %p129 = scmp.ne.s32.totalorder %s118, %s121
      %p130 = scmp.eq.s32.totalorder %s47, 1
      %p131 = por %p129, %p130
      %p132 = scmp.ne.s32.totalorder %s121, %s122
      %p133 = scmp.eq.s32.totalorder %s47, 0
      %p134 = por %p132, %p133
      %p135 = scmp.ne.s32.totalorder %s121, %s122
      %p136 = scmp.eq.s32.totalorder %s48, 1
      %p137 = por %p135, %p136
      %p139 = scmp.ne.s32.totalorder %s122, %s138
      %p140 = scmp.eq.s32.totalorder %s48, 0
      %p141 = por %p139, %p140
      %s142 = ssub.s32 %s49, %s61
      %p143 = scmp.eq.s32.totalorder %s142, 0
      %s145 = sadd.s32 %s144, 1
      %s146 = scalar_select %p143, %s144, %s145
      %p149 = pneg %p143
      %p150 = scmp.eq.s32.totalorder %s42, 1
      %p151 = por %p149, %p150
      %p152 = scmp.ne.s32.totalorder %s144, %s147
      %p153 = scmp.eq.s32.totalorder %s42, 0
      %p154 = por %p152, %p153
      %p155 = scmp.ne.s32.totalorder %s144, %s147
      %p156 = scmp.eq.s32.totalorder %s47, 1
      %p157 = por %p155, %p156
      %p158 = scmp.ne.s32.totalorder %s147, %s148
      %p159 = scmp.eq.s32.totalorder %s47, 0
      %p160 = por %p158, %p159
      %p161 = scmp.ne.s32.totalorder %s147, %s148
      %p162 = scmp.eq.s32.totalorder %s48, 1
      %p163 = por %p161, %p162
      %p165 = scmp.ne.s32.totalorder %s148, %s164
      %p166 = scmp.eq.s32.totalorder %s48, 0
      %p167 = por %p165, %p166
      %s169 = sadd.s32 %s168, 1
      %p172 = scmp.eq.s32.totalorder %s42, 1
      %p173 = scmp.ne.s32.totalorder %s168, %s170
      %p174 = scmp.eq.s32.totalorder %s42, 0
      %p175 = por %p173, %p174
      %p176 = scmp.ne.s32.totalorder %s168, %s170
      %p177 = scmp.eq.s32.totalorder %s47, 1
      %p178 = por %p176, %p177
      %p179 = scmp.ne.s32.totalorder %s170, %s171
      %p180 = scmp.eq.s32.totalorder %s47, 0
      %p181 = por %p179, %p180
      %p182 = scmp.ne.s32.totalorder %s170, %s171
      %p183 = scmp.eq.s32.totalorder %s48, 1
      %p184 = por %p182, %p183
      %p186 = scmp.ne.s32.totalorder %s171, %s185
      %p187 = scmp.eq.s32.totalorder %s48, 0
      %p188 = por %p186, %p187
      %s190 = sadd.s32 %s189, 1
      %p193 = scmp.eq.s32.totalorder %s42, 1
      %p194 = scmp.ne.s32.totalorder %s189, %s191
      %p195 = scmp.eq.s32.totalorder %s42, 0
      %p196 = por %p194, %p195
      %p197 = scmp.ne.s32.totalorder %s189, %s191
      %p198 = scmp.eq.s32.totalorder %s47, 1
      %p199 = por %p197, %p198
      %p200 = scmp.ne.s32.totalorder %s191, %s192
      %p201 = scmp.eq.s32.totalorder %s47, 0
      %p202 = por %p200, %p201
      %p203 = scmp.ne.s32.totalorder %s191, %s192
      %p204 = scmp.eq.s32.totalorder %s48, 1
      %p205 = por %p203, %p204
      %p207 = scmp.ne.s32.totalorder %s192, %s206
      %p208 = scmp.eq.s32.totalorder %s48, 0
      %p209 = por %p207, %p208
      %s211 = sadd.s32 %s210, 1
      %p214 = scmp.eq.s32.totalorder %s42, 1
      %p215 = scmp.ne.s32.totalorder %s210, %s212
      %p216 = scmp.eq.s32.totalorder %s42, 0
      %p217 = por %p215, %p216
      %p218 = scmp.ne.s32.totalorder %s210, %s212
      %p219 = scmp.eq.s32.totalorder %s47, 1
      %p220 = por %p218, %p219
      %p221 = scmp.ne.s32.totalorder %s212, %s213
      %p222 = scmp.eq.s32.totalorder %s47, 0
      %p223 = por %p221, %p222
      %p224 = scmp.ne.s32.totalorder %s212, %s213
      %p225 = scmp.eq.s32.totalorder %s48, 1
      %p226 = por %p224, %p225
      %p228 = scmp.ne.s32.totalorder %s213, %s227
      %p229 = scmp.eq.s32.totalorder %s48, 0
      %p230 = por %p228, %p229
      %s232 = sadd.s32 %s231, 1
      %p235 = scmp.eq.s32.totalorder %s42, 1
      %p236 = scmp.ne.s32.totalorder %s231, %s233
      %p237 = scmp.eq.s32.totalorder %s42, 0
      %p238 = por %p236, %p237
      %p239 = scmp.ne.s32.totalorder %s231, %s233
      %p240 = scmp.eq.s32.totalorder %s47, 1
      %p241 = por %p239, %p240
      %p242 = scmp.ne.s32.totalorder %s233, %s234
      %p243 = scmp.eq.s32.totalorder %s47, 0
      %p244 = por %p242, %p243
      %p245 = scmp.ne.s32.totalorder %s233, %s234
      %p246 = scmp.eq.s32.totalorder %s48, 1
      %p247 = por %p245, %p246
      %p249 = scmp.ne.s32.totalorder %s234, %s248
      %p250 = scmp.eq.s32.totalorder %s48, 0
      %p251 = por %p249, %p250
      %s252 = ssub.s32 %s49, %s61
      %p253 = scmp.eq.s32.totalorder %s252, 0
      %s255 = sadd.s32 %s254, 1
      %s256 = scalar_select %p253, %s254, %s255
      %p259 = pneg %p253
      %p260 = scmp.eq.s32.totalorder %s42, 1
      %p261 = por %p259, %p260
      %p262 = scmp.ne.s32.totalorder %s254, %s257
      %p263 = scmp.eq.s32.totalorder %s42, 0
      %p264 = por %p262, %p263
      %p265 = scmp.ne.s32.totalorder %s254, %s257
      %p266 = scmp.eq.s32.totalorder %s47, 1
      %p267 = por %p265, %p266
      %p268 = scmp.ne.s32.totalorder %s257, %s258
      %p269 = scmp.eq.s32.totalorder %s47, 0
      %p270 = por %p268, %p269
      %p271 = scmp.ne.s32.totalorder %s257, %s258
      %p272 = scmp.eq.s32.totalorder %s48, 1
      %p273 = por %p271, %p272
      %p275 = scmp.ne.s32.totalorder %s258, %s274
      %p276 = scmp.eq.s32.totalorder %s48, 0
      %p277 = por %p275, %p276
      %s278 = ssub.s32 %s49, %s61
      %p279 = scmp.eq.s32.totalorder %s278, 0
      %s281 = sadd.s32 %s280, 1
      %s282 = scalar_select %p279, %s280, %s281
      %p285 = pneg %p279
      %p286 = scmp.eq.s32.totalorder %s42, 1
      %p287 = por %p285, %p286
      %p288 = scmp.ne.s32.totalorder %s280, %s283
      %p289 = scmp.eq.s32.totalorder %s42, 0
      %p290 = por %p288, %p289
      %p291 = scmp.ne.s32.totalorder %s280, %s283
      %p292 = scmp.eq.s32.totalorder %s47, 1
      %p293 = por %p291, %p292
      %p294 = scmp.ne.s32.totalorder %s283, %s284
      %p295 = scmp.eq.s32.totalorder %s47, 0
      %p296 = por %p294, %p295
      %p297 = scmp.ne.s32.totalorder %s283, %s284
      %p298 = scmp.eq.s32.totalorder %s48, 1
      %p299 = por %p297, %p298
      %p301 = scmp.ne.s32.totalorder %s284, %s300
      %p302 = scmp.eq.s32.totalorder %s48, 0
      %p303 = por %p301, %p302
      %s304 = ssub.s32 %s49, %s61
      %p305 = scmp.eq.s32.totalorder %s304, 0
      %s307 = sadd.s32 %s306, 1
      %s308 = scalar_select %p305, %s306, %s307
      %p311 = pneg %p305
      %p312 = scmp.eq.s32.totalorder %s42, 1
      %p313 = por %p311, %p312
      %p314 = scmp.ne.s32.totalorder %s306, %s309
      %p315 = scmp.eq.s32.totalorder %s42, 0
      %p316 = por %p314, %p315
      %p317 = scmp.ne.s32.totalorder %s306, %s309
      %p318 = scmp.eq.s32.totalorder %s47, 1
      %p319 = por %p317, %p318
      %p320 = scmp.ne.s32.totalorder %s309, %s310
      %p321 = scmp.eq.s32.totalorder %s47, 0
      %p322 = por %p320, %p321
      %p323 = scmp.ne.s32.totalorder %s309, %s310
      %p324 = scmp.eq.s32.totalorder %s48, 1
      %p325 = por %p323, %p324
      %p327 = scmp.ne.s32.totalorder %s310, %s326
      %p328 = scmp.eq.s32.totalorder %s48, 0
      %p329 = por %p327, %p328
      %s331 = sadd.s32 %s330, 1
      %p334 = scmp.eq.s32.totalorder %s42, 1
      %p335 = scmp.ne.s32.totalorder %s330, %s332
      %p336 = scmp.eq.s32.totalorder %s42, 0
      %p337 = por %p335, %p336
      %p338 = scmp.ne.s32.totalorder %s330, %s332
      %p339 = scmp.eq.s32.totalorder %s47, 1
      %p340 = por %p338, %p339
      %p341 = scmp.ne.s32.totalorder %s332, %s333
      %p342 = scmp.eq.s32.totalorder %s47, 0
      %p343 = por %p341, %p342
      %p344 = scmp.ne.s32.totalorder %s332, %s333
      %p345 = scmp.eq.s32.totalorder %s48, 1
      %p346 = por %p344, %p345
      %p348 = scmp.ne.s32.totalorder %s333, %s347
      %p349 = scmp.eq.s32.totalorder %s48, 0
      %p350 = por %p348, %p349
      %s351 = ssub.s32 %s50, %s57
      %s352 = ssub.s32 %s49, %s61
      %s353 = sor.u32 %s351, %s352
      %p354 = scmp.eq.s32.totalorder %s353, 0
      %s356 = sadd.s32 %s355, 1
      %s357 = scalar_select %p354, %s355, %s356
      %p360 = pneg %p354
      %p361 = scmp.eq.s32.totalorder %s42, 1
      %p362 = por %p360, %p361
      %p363 = scmp.ne.s32.totalorder %s355, %s358
      %p364 = scmp.eq.s32.totalorder %s42, 0
      %p365 = por %p363, %p364
      %p366 = scmp.ne.s32.totalorder %s355, %s358
      %p367 = scmp.eq.s32.totalorder %s47, 1
      %p368 = por %p366, %p367
      %p369 = scmp.ne.s32.totalorder %s358, %s359
      %p370 = scmp.eq.s32.totalorder %s47, 0
      %p371 = por %p369, %p370
      %p372 = scmp.ne.s32.totalorder %s358, %s359
      %p373 = scmp.eq.s32.totalorder %s48, 1
      %p374 = por %p372, %p373
      %p376 = scmp.ne.s32.totalorder %s359, %s375
      %p377 = scmp.eq.s32.totalorder %s48, 0
      %p378 = por %p376, %p377
      %s379 = ssub.s32 %s50, %s57
      %s380 = ssub.s32 %s49, %s61
      %s381 = sor.u32 %s379, %s380
      %p382 = scmp.eq.s32.totalorder %s381, 0
      %s384 = sadd.s32 %s383, 1
      %s385 = scalar_select %p382, %s383, %s384
      %p388 = pneg %p382
      %p389 = scmp.eq.s32.totalorder %s42, 1
      %p390 = por %p388, %p389
      %p391 = scmp.ne.s32.totalorder %s383, %s386
      %p392 = scmp.eq.s32.totalorder %s42, 0
      %p393 = por %p391, %p392
      %p394 = scmp.ne.s32.totalorder %s383, %s386
      %p395 = scmp.eq.s32.totalorder %s47, 1
      %p396 = por %p394, %p395
      %p397 = scmp.ne.s32.totalorder %s386, %s387
      %p398 = scmp.eq.s32.totalorder %s47, 0
      %p399 = por %p397, %p398
      %p400 = scmp.ne.s32.totalorder %s386, %s387
      %p401 = scmp.eq.s32.totalorder %s48, 1
      %p402 = por %p400, %p401
      %p404 = scmp.ne.s32.totalorder %s387, %s403
      %p405 = scmp.eq.s32.totalorder %s48, 0
      %p406 = por %p404, %p405
      %s407 = ssub.s32 %s49, %s61
      %p408 = scmp.eq.s32.totalorder %s407, 0
      %s410 = sadd.s32 %s409, 1
      %s411 = scalar_select %p408, %s409, %s410
      %p414 = pneg %p408
      %p415 = scmp.eq.s32.totalorder %s42, 1
      %p416 = por %p414, %p415
      %p417 = scmp.ne.s32.totalorder %s409, %s412
      %p418 = scmp.eq.s32.totalorder %s42, 0
      %p419 = por %p417, %p418
      %p420 = scmp.ne.s32.totalorder %s409, %s412
      %p421 = scmp.eq.s32.totalorder %s47, 1
      %p422 = por %p420, %p421
      %p423 = scmp.ne.s32.totalorder %s412, %s413
      %p424 = scmp.eq.s32.totalorder %s47, 0
      %p425 = por %p423, %p424
      %p426 = scmp.ne.s32.totalorder %s412, %s413
      %p427 = scmp.eq.s32.totalorder %s48, 1
      %p428 = por %p426, %p427
      %p430 = scmp.ne.s32.totalorder %s413, %s429
      %p431 = scmp.eq.s32.totalorder %s48, 0
      %p432 = por %p430, %p431
      %s433 = ssub.s32 %s49, %s61
      %p434 = scmp.eq.s32.totalorder %s433, 0
      %s436 = sadd.s32 %s435, 1
      %s437 = scalar_select %p434, %s435, %s436
      %p440 = pneg %p434
      %p441 = scmp.eq.s32.totalorder %s42, 1
      %p442 = por %p440, %p441
      %p443 = scmp.ne.s32.totalorder %s435, %s438
      %p444 = scmp.eq.s32.totalorder %s42, 0
      %p445 = por %p443, %p444
      %p446 = scmp.ne.s32.totalorder %s435, %s438
      %p447 = scmp.eq.s32.totalorder %s47, 1
      %p448 = por %p446, %p447
      %p449 = scmp.ne.s32.totalorder %s438, %s439
      %p450 = scmp.eq.s32.totalorder %s47, 0
      %p451 = por %p449, %p450
      %p452 = scmp.ne.s32.totalorder %s438, %s439
      %p453 = scmp.eq.s32.totalorder %s48, 1
      %p454 = por %p452, %p453
      %p456 = scmp.ne.s32.totalorder %s439, %s455
      %p457 = scmp.eq.s32.totalorder %s48, 0
      %p458 = por %p456, %p457
      %p459 = scmp.le.s32.totalorder 1, %s42
      %p460 = scmp.lt.s32.totalorder %s42, 3
      %p461 = pnand %p459, %p460
      %p462 = pneg %p461
      // Predicated region
      $region9: #{tpu_custom_call.1} parent=5 // pred_check
        _
      $region10: #{tpu_custom_call.1} parent=5 // pred_check_branch
        %464 = sbr.rel (%p461) target = $region12
      $region11: #{tpu_custom_call.1} parent=5 // pred_region
        %s465 = ssub.s32 %s42, 1
        // Predicated region
        $region13: #{tpu_custom_call.1} parent=11 // pred_check
          %p466 = pneg %p181
        $region14: #{tpu_custom_call.1} parent=11 // pred_check_branch
          %468 = sbr.rel (%p466) target = $region16
        $region15: #{tpu_custom_call.1} parent=11 // pred_region
          %s470 = ssub.s32 4096, 4096
          %471 = vsyncadd [#allocation14], %s470
          %s472 = sshll.u32 [#allocation15], 4
          %s473 = int_to_ptr.vmem [resolvable:$true] %s472
          %478 = dma.hbm_to_vmem [thread:$0]  %s4, 4096, %s473, [#allocation14], 256, 256, 16
        $region16: #{tpu_custom_call.1} parent=11 // pred_fallthru
          _
        // Predicated region
        $region17: #{tpu_custom_call.1} parent=11 // pred_check
          %p479 = pneg %p202
        $region18: #{tpu_custom_call.1} parent=11 // pred_check_branch
          %481 = sbr.rel (%p479) target = $region20
        $region19: #{tpu_custom_call.1} parent=11 // pred_region
          %s483 = ssub.s32 4096, 4096
          %484 = vsyncadd [#allocation17], %s483
          %s485 = sshll.u32 [#allocation16], 4
          %s486 = int_to_ptr.vmem [resolvable:$true] %s485
          %491 = dma.hbm_to_vmem [thread:$0]  %s5, 4096, %s486, [#allocation17], 256, 256, 16
        $region20: #{tpu_custom_call.1} parent=11 // pred_fallthru
          _
        // Predicated region
        $region21: #{tpu_custom_call.1} parent=11 // pred_check
          %p492 = pneg %p223
        $region22: #{tpu_custom_call.1} parent=11 // pred_check_branch
          %494 = sbr.rel (%p492) target = $region24
        $region23: #{tpu_custom_call.1} parent=11 // pred_region
          %s496 = ssub.s32 4096, 4096
          %497 = vsyncadd [#allocation17], %s496
          %s498 = sshll.u32 [#allocation18], 4
          %s499 = int_to_ptr.vmem [resolvable:$true] %s498
          %504 = dma.hbm_to_vmem [thread:$0]  %s6, 4096, %s499, [#allocation17], 256, 256, 16
        $region24: #{tpu_custom_call.1} parent=11 // pred_fallthru
          _
        // Predicated region
        $region25: #{tpu_custom_call.1} parent=11 // pred_check
          %p505 = pneg %p244
        $region26: #{tpu_custom_call.1} parent=11 // pred_check_branch
          %507 = sbr.rel (%p505) target = $region28
        $region27: #{tpu_custom_call.1} parent=11 // pred_region
          %s509 = ssub.s32 64, 64
          %510 = vsyncadd [#allocation20], %s509
          %s512 = sshll.u32 [#allocation19], 4
          %s513 = int_to_ptr.vmem [resolvable:$true] %s512
          %515 = dma.hbm_to_vmem [thread:$0]  %s7, 64, %s513, [#allocation20]
        $region28: #{tpu_custom_call.1} parent=11 // pred_fallthru
          _
        // Predicated region
        $region29: #{tpu_custom_call.1} parent=11 // pred_check
          %p516 = pneg %p343
        $region30: #{tpu_custom_call.1} parent=11 // pred_check_branch
          %518 = sbr.rel (%p516) target = $region32
        $region31: #{tpu_custom_call.1} parent=11 // pred_region
          %s520 = ssub.s32 3072, 3072
          %521 = vsyncadd [#allocation17], %s520
          %s522 = sshll.u32 [#allocation24], 4
          %s523 = int_to_ptr.vmem [resolvable:$true] %s522
          %528 = dma.hbm_to_vmem [thread:$0]  %s11, 3072, %s523, [#allocation17], 64, 64, 4
        $region32: #{tpu_custom_call.1} parent=11 // pred_fallthru
          _
      $region12: #{tpu_custom_call.1} parent=5 // pred_fallthru
        _
      %p529 = scmp.lt.s32.totalorder %s42, 2
      // Predicated region
      $region33: #{tpu_custom_call.1} parent=5 // pred_check
        %p530 = pneg %p529
      $region34: #{tpu_custom_call.1} parent=5 // pred_check_branch
        %532 = sbr.rel (%p530) target = $region36
      $region35: #{tpu_custom_call.1} parent=5 // pred_region
        // Predicated region
        $region37: #{tpu_custom_call.1} parent=35 // pred_check
          %p533 = pneg %p76
        $region38: #{tpu_custom_call.1} parent=35 // pred_check_branch
          %535 = sbr.rel (%p533) target = $region40
        $region39: #{tpu_custom_call.1} parent=35 // pred_region
          %s536 = sand.u32 %s42, 1
          %s537 = scalar_lea.sflag [#allocation8], %s536
          %s538 = sand.u32 %s66, 1
          %s539 = smul.addr %s538, 8
          %s540 = scalar_lea.vmem [#allocation7], %s539
          %s541 = smul.u32 2, %s49
          %s543 = ssub.s32 128, 128
          %544 = vsyncadd %s537, %s543
          %s545 = smul.addr %s50, 4
          %s546 = sadd.s32 %s541, %s545
          %s547 = smul.addr %s546, 64
          %s548 = scalar_lea.hbm %s0, %s547
          %s549 = sshll.u32 %s540, 4
          %s550 = int_to_ptr.vmem [resolvable:$true] %s549
          %555 = dma.hbm_to_vmem [thread:$0]  %s548, 128, %s550, %s537, 64, 64, 4
        $region40: #{tpu_custom_call.1} parent=35 // pred_fallthru
          _
        // Predicated region
        $region41: #{tpu_custom_call.1} parent=35 // pred_check
          %p556 = pneg %p102
        $region42: #{tpu_custom_call.1} parent=35 // pred_check_branch
          %558 = sbr.rel (%p556) target = $region44
        $region43: #{tpu_custom_call.1} parent=35 // pred_region
          %s559 = sand.u32 %s42, 1
          %s560 = scalar_lea.sflag [#allocation11], %s559
          %s561 = sand.u32 %s92, 1
          %s562 = smul.addr %s561, 16
          %s563 = scalar_lea.vmem [#allocation10], %s562
          %s564 = smul.u32 2, %s49
          %s566 = ssub.s32 256, 256
          %567 = vsyncadd %s560, %s566
          %s568 = smul.addr %s564, 128
          %s569 = scalar_lea.hbm %s1, %s568
          %s570 = sshll.u32 %s563, 4
          %s571 = int_to_ptr.vmem [resolvable:$true] %s570
          %576 = dma.hbm_to_vmem [thread:$0]  %s569, 256, %s571, %s560, 128, 128, 8
        $region44: #{tpu_custom_call.1} parent=35 // pred_fallthru
          _
        // Predicated region
        $region45: #{tpu_custom_call.1} parent=35 // pred_check
          %p577 = pneg %p128
        $region46: #{tpu_custom_call.1} parent=35 // pred_check_branch
          %579 = sbr.rel (%p577) target = $region48
        $region47: #{tpu_custom_call.1} parent=35 // pred_region
          %s580 = sand.u32 %s42, 1
          %s581 = scalar_lea.sflag [#allocation11], %s580
          %s582 = sand.u32 %s118, 1
          %s583 = smul.addr %s582, 16
          %s584 = scalar_lea.vmem [#allocation12], %s583
          %s585 = smul.u32 2, %s49
          %s587 = ssub.s32 256, 256
          %588 = vsyncadd %s581, %s587
          %s589 = smul.addr %s585, 128
          %s590 = scalar_lea.hbm %s2, %s589
          %s591 = sshll.u32 %s584, 4
          %s592 = int_to_ptr.vmem [resolvable:$true] %s591
          %597 = dma.hbm_to_vmem [thread:$0]  %s590, 256, %s592, %s581, 128, 128, 8
        $region48: #{tpu_custom_call.1} parent=35 // pred_fallthru
          _
        // Predicated region
        $region49: #{tpu_custom_call.1} parent=35 // pred_check
          %p598 = pneg %p154
        $region50: #{tpu_custom_call.1} parent=35 // pred_check_branch
          %600 = sbr.rel (%p598) target = $region52
        $region51: #{tpu_custom_call.1} parent=35 // pred_region
          %s601 = sand.u32 %s42, 1
          %s602 = scalar_lea.sflag [#allocation14], %s601
          %s603 = sand.u32 %s144, 1
          %s604 = smul.addr %s603, 16
          %s605 = scalar_lea.vmem [#allocation13], %s604
          %s606 = smul.u32 2, %s49
          %s608 = ssub.s32 256, 256
          %609 = vsyncadd %s602, %s608
          %s610 = smul.addr %s606, 128
          %s611 = scalar_lea.hbm %s3, %s610
          %s612 = sshll.u32 %s605, 4
          %s613 = int_to_ptr.vmem [resolvable:$true] %s612
          %618 = dma.hbm_to_vmem [thread:$0]  %s611, 256, %s613, %s602, 128, 128, 8
        $region52: #{tpu_custom_call.1} parent=35 // pred_fallthru
          _
        // Predicated region
        $region53: #{tpu_custom_call.1} parent=35 // pred_check
          %p619 = pneg %p264
        $region54: #{tpu_custom_call.1} parent=35 // pred_check_branch
          %621 = sbr.rel (%p619) target = $region56
        $region55: #{tpu_custom_call.1} parent=35 // pred_region
          %s622 = sand.u32 %s42, 1
          %s623 = scalar_lea.sflag [#allocation8], %s622
          %s624 = sand.u32 %s254, 1
          %s625 = smul.addr %s624, 1024
          %s626 = scalar_lea.vmem [#allocation21], %s625
          %s627 = smul.u32 16, %s49
          %s629 = ssub.s32 16384, 16384
          %630 = vsyncadd %s623, %s629
          %s631 = smul.addr %s627, 16
          %s632 = smul.addr %s631, 64
          %s633 = scalar_lea.hbm %s8, %s632
          %s634 = sshll.u32 %s626, 4
          %s635 = int_to_ptr.vmem [resolvable:$true] %s634
          %640 = dma.hbm_to_vmem [thread:$0]  %s633, 16384, %s635, %s623, 64, 64, 4
        $region56: #{tpu_custom_call.1} parent=35 // pred_fallthru
          _
        // Predicated region
        $region57: #{tpu_custom_call.1} parent=35 // pred_check
          %p641 = pneg %p290
        $region58: #{tpu_custom_call.1} parent=35 // pred_check_branch
          %643 = sbr.rel (%p641) target = $region60
        $region59: #{tpu_custom_call.1} parent=35 // pred_region
          %s644 = sand.u32 %s42, 1
          %s645 = scalar_lea.sflag [#allocation11], %s644
          %s646 = sand.u32 %s280, 1
          %s647 = smul.addr %s646, 2048
          %s648 = scalar_lea.vmem [#allocation22], %s647
          %s649 = smul.u32 16, %s49
          %s651 = ssub.s32 32768, 32768
          %652 = vsyncadd %s645, %s651
          %s653 = smul.addr %s649, 32
          %s654 = smul.addr %s653, 64
          %s655 = scalar_lea.hbm %s9, %s654
          %s656 = sshll.u32 %s648, 4
          %s657 = int_to_ptr.vmem [resolvable:$true] %s656
          %662 = dma.hbm_to_vmem [thread:$0]  %s655, 32768, %s657, %s645, 128, 128, 8
        $region60: #{tpu_custom_call.1} parent=35 // pred_fallthru
          _
        // Predicated region
        $region61: #{tpu_custom_call.1} parent=35 // pred_check
          %p663 = pneg %p316
        $region62: #{tpu_custom_call.1} parent=35 // pred_check_branch
          %665 = sbr.rel (%p663) target = $region64
        $region63: #{tpu_custom_call.1} parent=35 // pred_region
          %s666 = sand.u32 %s42, 1
          %s667 = scalar_lea.sflag [#allocation14], %s666
          %s668 = sand.u32 %s306, 1
          %s669 = smul.addr %s668, 16
          %s670 = scalar_lea.vmem [#allocation23], %s669
          %s671 = smul.u32 2, %s49
          %s673 = ssub.s32 256, 256
          %674 = vsyncadd %s667, %s673
          %s675 = smul.addr %s671, 128
          %s676 = scalar_lea.hbm %s10, %s675
          %s677 = sshll.u32 %s670, 4
          %s678 = int_to_ptr.vmem [resolvable:$true] %s677
          %683 = dma.hbm_to_vmem [thread:$0]  %s676, 256, %s678, %s667, 128, 128, 8
        $region64: #{tpu_custom_call.1} parent=35 // pred_fallthru
          _
      $region36: #{tpu_custom_call.1} parent=5 // pred_fallthru
        _
      %p684 = scmp.le.s32.totalorder 1, %s42
      %p685 = scmp.lt.s32.totalorder %s42, 3
      %p686 = pnand %p684, %p685
      %p687 = pneg %p686
      // Predicated region
      $region65: #{tpu_custom_call.1} parent=5 // pred_check
        _
      $region66: #{tpu_custom_call.1} parent=5 // pred_check_branch
        %689 = sbr.rel (%p686) target = $region68
      $region67: #{tpu_custom_call.1} parent=5 // pred_region
        %s690 = ssub.s32 %s42, 1
        %s691 = sand.u32 %s47, 1
        %s692 = scalar_lea.sflag [#allocation8], %s691
        %s693 = sand.u32 %s69, 1
        %s694 = smul.addr %s693, 8
        %s695 = scalar_lea.vmem [#allocation7], %s694
        // Predicated region
        $region69: #{tpu_custom_call.1} parent=67 // pred_check
          %p696 = pneg %p82
        $region70: #{tpu_custom_call.1} parent=67 // pred_check_branch
          %698 = sbr.rel (%p696) target = $region72
        $region71: #{tpu_custom_call.1} parent=67 // pred_region
          %699 = dma.done %s692, 128
        $region72: #{tpu_custom_call.1} parent=67 // pred_fallthru
          _
        %s700 = sand.u32 %s47, 1
        %s701 = scalar_lea.sflag [#allocation11], %s700
        %s702 = sand.u32 %s95, 1
        %s703 = smul.addr %s702, 16
        %s704 = scalar_lea.vmem [#allocation10], %s703
        // Predicated region
        $region73: #{tpu_custom_call.1} parent=67 // pred_check
          %p705 = pneg %p108
        $region74: #{tpu_custom_call.1} parent=67 // pred_check_branch
          %707 = sbr.rel (%p705) target = $region76
        $region75: #{tpu_custom_call.1} parent=67 // pred_region
          %708 = dma.done %s701, 256
        $region76: #{tpu_custom_call.1} parent=67 // pred_fallthru
          _
        %s709 = sand.u32 %s47, 1
        %s710 = scalar_lea.sflag [#allocation11], %s709
        %s711 = sand.u32 %s121, 1
        %s712 = smul.addr %s711, 16
        %s713 = scalar_lea.vmem [#allocation12], %s712
        // Predicated region
        $region77: #{tpu_custom_call.1} parent=67 // pred_check
          %p714 = pneg %p134
        $region78: #{tpu_custom_call.1} parent=67 // pred_check_branch
          %716 = sbr.rel (%p714) target = $region80
        $region79: #{tpu_custom_call.1} parent=67 // pred_region
          %717 = dma.done %s710, 256
        $region80: #{tpu_custom_call.1} parent=67 // pred_fallthru
          _
        %s718 = sand.u32 %s47, 1
        %s719 = scalar_lea.sflag [#allocation14], %s718
        %s720 = sand.u32 %s147, 1
        %s721 = smul.addr %s720, 16
        %s722 = scalar_lea.vmem [#allocation13], %s721
        // Predicated region
        $region81: #{tpu_custom_call.1} parent=67 // pred_check
          %p723 = pneg %p160
        $region82: #{tpu_custom_call.1} parent=67 // pred_check_branch
          %725 = sbr.rel (%p723) target = $region84
        $region83: #{tpu_custom_call.1} parent=67 // pred_region
          %726 = dma.done %s719, 256
        $region84: #{tpu_custom_call.1} parent=67 // pred_fallthru
          _
        // Predicated region
        $region85: #{tpu_custom_call.1} parent=67 // pred_check
          %p727 = pneg %p181
        $region86: #{tpu_custom_call.1} parent=67 // pred_check_branch
          %729 = sbr.rel (%p727) target = $region88
        $region87: #{tpu_custom_call.1} parent=67 // pred_region
          %730 = dma.done [#allocation14], 4096
        $region88: #{tpu_custom_call.1} parent=67 // pred_fallthru
          _
        // Predicated region
        $region89: #{tpu_custom_call.1} parent=67 // pred_check
          %p731 = pneg %p202
        $region90: #{tpu_custom_call.1} parent=67 // pred_check_branch
          %733 = sbr.rel (%p731) target = $region92
        $region91: #{tpu_custom_call.1} parent=67 // pred_region
          %734 = dma.done [#allocation17], 4096
        $region92: #{tpu_custom_call.1} parent=67 // pred_fallthru
          _
        // Predicated region
        $region93: #{tpu_custom_call.1} parent=67 // pred_check
          %p735 = pneg %p223
        $region94: #{tpu_custom_call.1} parent=67 // pred_check_branch
          %737 = sbr.rel (%p735) target = $region96
        $region95: #{tpu_custom_call.1} parent=67 // pred_region
          %738 = dma.done [#allocation17], 4096
        $region96: #{tpu_custom_call.1} parent=67 // pred_fallthru
          _
        // Predicated region
        $region97: #{tpu_custom_call.1} parent=67 // pred_check
          %p739 = pneg %p244
        $region98: #{tpu_custom_call.1} parent=67 // pred_check_branch
          %741 = sbr.rel (%p739) target = $region100
        $region99: #{tpu_custom_call.1} parent=67 // pred_region
          %742 = dma.done [#allocation20], 64
        $region100: #{tpu_custom_call.1} parent=67 // pred_fallthru
          _
        %s743 = sand.u32 %s47, 1
        %s744 = scalar_lea.sflag [#allocation8], %s743
        %s745 = sand.u32 %s257, 1
        %s746 = smul.addr %s745, 1024
        %s747 = scalar_lea.vmem [#allocation21], %s746
        // Predicated region
        $region101: #{tpu_custom_call.1} parent=67 // pred_check
          %p748 = pneg %p270
        $region102: #{tpu_custom_call.1} parent=67 // pred_check_branch
          %750 = sbr.rel (%p748) target = $region104
        $region103: #{tpu_custom_call.1} parent=67 // pred_region
          %751 = dma.done %s744, 16384
        $region104: #{tpu_custom_call.1} parent=67 // pred_fallthru
          _
        %s752 = sand.u32 %s47, 1
        %s753 = scalar_lea.sflag [#allocation11], %s752
        %s754 = sand.u32 %s283, 1
        %s755 = smul.addr %s754, 2048
        %s756 = scalar_lea.vmem [#allocation22], %s755
        // Predicated region
        $region105: #{tpu_custom_call.1} parent=67 // pred_check
          %p757 = pneg %p296
        $region106: #{tpu_custom_call.1} parent=67 // pred_check_branch
          %759 = sbr.rel (%p757) target = $region108
        $region107: #{tpu_custom_call.1} parent=67 // pred_region
          %760 = dma.done %s753, 32768
        $region108: #{tpu_custom_call.1} parent=67 // pred_fallthru
          _
        %s761 = sand.u32 %s47, 1
        %s762 = scalar_lea.sflag [#allocation14], %s761
        %s763 = sand.u32 %s309, 1
        %s764 = smul.addr %s763, 16
        %s765 = scalar_lea.vmem [#allocation23], %s764
        // Predicated region
        $region109: #{tpu_custom_call.1} parent=67 // pred_check
          %p766 = pneg %p322
        $region110: #{tpu_custom_call.1} parent=67 // pred_check_branch
          %768 = sbr.rel (%p766) target = $region112
        $region111: #{tpu_custom_call.1} parent=67 // pred_region
          %769 = dma.done %s762, 256
        $region112: #{tpu_custom_call.1} parent=67 // pred_fallthru
          _
        // Predicated region
        $region113: #{tpu_custom_call.1} parent=67 // pred_check
          %p770 = pneg %p343
        $region114: #{tpu_custom_call.1} parent=67 // pred_check_branch
          %772 = sbr.rel (%p770) target = $region116
        $region115: #{tpu_custom_call.1} parent=67 // pred_region
          %773 = dma.done [#allocation17], 3072
        $region116: #{tpu_custom_call.1} parent=67 // pred_fallthru
          _
        %s774 = sand.u32 %s47, 1
        %s775 = scalar_lea.sflag [#allocation8], %s774
        %s776 = sand.u32 %s69, 1
        %s777 = smul.addr %s776, 8
        %s778 = scalar_lea.vmem [#allocation7], %s777
        %p779 = pneg %p82
        %p780 = pneg %p79
        %s781 = sand.u32 %s47, 1
        %s782 = scalar_lea.sflag [#allocation11], %s781
        %s783 = sand.u32 %s95, 1
        %s784 = smul.addr %s783, 16
        %s785 = scalar_lea.vmem [#allocation10], %s784
        %p786 = pneg %p108
        %p787 = pneg %p105
        %s788 = sand.u32 %s47, 1
        %s789 = scalar_lea.sflag [#allocation11], %s788
        %s790 = sand.u32 %s121, 1
        %s791 = smul.addr %s790, 16
        %s792 = scalar_lea.vmem [#allocation12], %s791
        %p793 = pneg %p134
        %p794 = pneg %p131
        %s795 = sand.u32 %s47, 1
        %s796 = scalar_lea.sflag [#allocation14], %s795
        %s797 = sand.u32 %s147, 1
        %s798 = smul.addr %s797, 16
        %s799 = scalar_lea.vmem [#allocation13], %s798
        %p800 = pneg %p160
        %p801 = pneg %p157
        %p802 = pneg %p181
        %p803 = pneg %p178
        %p804 = pneg %p202
        %p805 = pneg %p199
        %p806 = pneg %p223
        %p807 = pneg %p220
        %p808 = pneg %p244
        %p809 = pneg %p241
        %s810 = sand.u32 %s47, 1
        %s811 = scalar_lea.sflag [#allocation8], %s810
        %s812 = sand.u32 %s257, 1
        %s813 = smul.addr %s812, 1024
        %s814 = scalar_lea.vmem [#allocation21], %s813
        %p815 = pneg %p270
        %p816 = pneg %p267
        %s817 = sand.u32 %s47, 1
        %s818 = scalar_lea.sflag [#allocation11], %s817
        %s819 = sand.u32 %s283, 1
        %s820 = smul.addr %s819, 2048
        %s821 = scalar_lea.vmem [#allocation22], %s820
        %p822 = pneg %p296
        %p823 = pneg %p293
        %s824 = sand.u32 %s47, 1
        %s825 = scalar_lea.sflag [#allocation14], %s824
        %s826 = sand.u32 %s309, 1
        %s827 = smul.addr %s826, 16
        %s828 = scalar_lea.vmem [#allocation23], %s827
        %p829 = pneg %p322
        %p830 = pneg %p319
        %p831 = pneg %p343
        %p832 = pneg %p340
        %p833 = pneg %p371
        %p834 = pneg %p368
        %s835 = sand.u32 %s358, 1
        %s836 = scalar_lea.sflag [#allocation9], %s835
        %s837 = sand.u32 %s358, 1
        %s838 = smul.addr %s837, 16
        %s839 = scalar_lea.vmem [#allocation25], %s838
        %p840 = pneg %p399
        %p841 = pneg %p396
        %s842 = sand.u32 %s47, 1
        %s843 = scalar_lea.sflag [#allocation27], %s842
        %s844 = sand.u32 %s386, 1
        %s845 = smul.addr %s844, 16
        %s846 = scalar_lea.vmem [#allocation26], %s845
        %p847 = pneg %p425
        %p848 = pneg %p422
        %s849 = sand.u32 %s47, 1
        %s850 = scalar_lea.sflag [#allocation27], %s849
        %s851 = sand.u32 %s412, 1
        %s852 = smul.addr %s851, 16
        %s853 = scalar_lea.vmem [#allocation28], %s852
        %p854 = pneg %p451
        %p855 = pneg %p448
        %s856 = sand.u32 %s438, 1
        %s857 = scalar_lea.sflag [#allocation30], %s856
        %s858 = sand.u32 %s438, 1
        %s859 = smul.addr %s858, 16
        %s860 = scalar_lea.vmem [#allocation29], %s859
        %s861 = smul.u32 2, %s51
        %s862 = smul.u32 2, %s51
        %s863 = smul.u32 2, %s51
        %s864 = smul.u32 2, %s51
        %s865 = smul.u32 16, %s51
        %s866 = smul.u32 16, %s51
        %s867 = smul.u32 2, %s51
        %s868 = smul.u32 2, %s51
        %s869 = smul.u32 2, %s51
        %s870 = smul.u32 2, %s51
        %s871 = smul.u32 2, %s51
        %p873 = scmp.eq.s32.totalorder %s52, 0
        // Predicated region
        $region117: #{tpu_custom_call.1} parent=67 // pred_check
          %p874 = pneg %p873
        $region118: #{tpu_custom_call.1} parent=67 // pred_check_branch
          %876 = sbr.rel (%p874) target = $region120
        $region119: #{tpu_custom_call.1} parent=67 // pred_region
          %v877 = vld [vmem:[%s704] sm:$0xff]
          %v878 = vld [vmem:[%s704 + $0x8] sm:$0xff]
          %879 = vst [vmem:[#allocation2] sm:$0xff] %v877
          %880 = vst [vmem:[#allocation2 + $0x8] sm:$0xff] %v878
          %v881 = vld [vmem:[%s713] sm:$0xff]
          %v882 = vld [vmem:[%s713 + $0x8] sm:$0xff]
          %883 = vst [vmem:[#allocation3] sm:$0xff] %v881
          %884 = vst [vmem:[#allocation3 + $0x8] sm:$0xff] %v882
          %v885 = vld [vmem:[%s722] sm:$0xff]
          %v886 = vld [vmem:[%s722 + $0x8] sm:$0xff]
          %887 = vst [vmem:[#allocation4] sm:$0xff] %v885
          %888 = vst [vmem:[#allocation4 + $0x8] sm:$0xff] %v886
        $region120: #{tpu_custom_call.1} parent=67 // pred_fallthru
          _
        %v889 = vld [vmem:[%s695] sm:$0xf]
        %v890 = vld [vmem:[%s695 + $0x4] sm:$0xf]
        %v891 = vld [vmem:[#allocation15] sm:$0xff]
        %v892 = vld [vmem:[#allocation15 + $0x8] sm:$0xff]
        %v893 = vld [vmem:[#allocation15 + $0x10] sm:$0xff]
        %v894 = vld [vmem:[#allocation15 + $0x18] sm:$0xff]
        %v895 = vld [vmem:[#allocation15 + $0x20] sm:$0xff]
        %v896 = vld [vmem:[#allocation15 + $0x28] sm:$0xff]
        %v897 = vld [vmem:[#allocation15 + $0x30] sm:$0xff]
        %v898 = vld [vmem:[#allocation15 + $0x38] sm:$0xff]
        %v899 = vld [vmem:[#allocation15 + $0x40] sm:$0xff]
        %v900 = vld [vmem:[#allocation15 + $0x48] sm:$0xff]
        %v901 = vld [vmem:[#allocation15 + $0x50] sm:$0xff]
        %v902 = vld [vmem:[#allocation15 + $0x58] sm:$0xff]
        %v903 = vld [vmem:[#allocation15 + $0x60] sm:$0xff]
        %v904 = vld [vmem:[#allocation15 + $0x68] sm:$0xff]
        %v905 = vld [vmem:[#allocation15 + $0x70] sm:$0xff]
        %v906 = vld [vmem:[#allocation15 + $0x78] sm:$0xff]
        %v907 = vld [vmem:[#allocation15 + $0x80] sm:$0xff]
        %v908 = vld [vmem:[#allocation15 + $0x88] sm:$0xff]
        %v909 = vld [vmem:[#allocation15 + $0x90] sm:$0xff]
        %v910 = vld [vmem:[#allocation15 + $0x98] sm:$0xff]
        %v911 = vld [vmem:[#allocation15 + $0xa0] sm:$0xff]
        %v912 = vld [vmem:[#allocation15 + $0xa8] sm:$0xff]
        %v913 = vld [vmem:[#allocation15 + $0xb0] sm:$0xff]
        %v914 = vld [vmem:[#allocation15 + $0xb8] sm:$0xff]
        %v915 = vld [vmem:[#allocation15 + $0xc0] sm:$0xff]
        %v916 = vld [vmem:[#allocation15 + $0xc8] sm:$0xff]
        %v917 = vld [vmem:[#allocation15 + $0xd0] sm:$0xff]
        %v918 = vld [vmem:[#allocation15 + $0xd8] sm:$0xff]
        %v919 = vld [vmem:[#allocation15 + $0xe0] sm:$0xff]
        %v920 = vld [vmem:[#allocation15 + $0xe8] sm:$0xff]
        %v921 = vld [vmem:[#allocation15 + $0xf0] sm:$0xff]
        %v922 = vld [vmem:[#allocation15 + $0xf8] sm:$0xff]
        %v923 = vld [vmem:[#allocation4] sm:$0xff]
        %v924 = vld [vmem:[#allocation4 + $0x8] sm:$0xff]
        %v925 = vpack.c.bf16 %v924, %v923
        %v926 = vld [vmem:[#allocation16] sm:$0xff]
        %v927 = vld [vmem:[#allocation16 + $0x8] sm:$0xff]
        %v928 = vld [vmem:[#allocation16 + $0x10] sm:$0xff]
        %v929 = vld [vmem:[#allocation16 + $0x18] sm:$0xff]
        %v930 = vld [vmem:[#allocation16 + $0x20] sm:$0xff]
        %v931 = vld [vmem:[#allocation16 + $0x28] sm:$0xff]
        %v932 = vld [vmem:[#allocation16 + $0x30] sm:$0xff]
        %v933 = vld [vmem:[#allocation16 + $0x38] sm:$0xff]
        %v934 = vld [vmem:[#allocation16 + $0x40] sm:$0xff]
        %v935 = vld [vmem:[#allocation16 + $0x48] sm:$0xff]
        %v936 = vld [vmem:[#allocation16 + $0x50] sm:$0xff]
        %v937 = vld [vmem:[#allocation16 + $0x58] sm:$0xff]
        %v938 = vld [vmem:[#allocation16 + $0x60] sm:$0xff]
        %v939 = vld [vmem:[#allocation16 + $0x68] sm:$0xff]
        %v940 = vld [vmem:[#allocation16 + $0x70] sm:$0xff]
        %v941 = vld [vmem:[#allocation16 + $0x78] sm:$0xff]
        %v942 = vld [vmem:[#allocation16 + $0x80] sm:$0xff]
        %v943 = vld [vmem:[#allocation16 + $0x88] sm:$0xff]
        %v944 = vld [vmem:[#allocation16 + $0x90] sm:$0xff]
        %v945 = vld [vmem:[#allocation16 + $0x98] sm:$0xff]
        %v946 = vld [vmem:[#allocation16 + $0xa0] sm:$0xff]
        %v947 = vld [vmem:[#allocation16 + $0xa8] sm:$0xff]
        %v948 = vld [vmem:[#allocation16 + $0xb0] sm:$0xff]
        %v949 = vld [vmem:[#allocation16 + $0xb8] sm:$0xff]
        %v950 = vld [vmem:[#allocation16 + $0xc0] sm:$0xff]
        %v951 = vld [vmem:[#allocation16 + $0xc8] sm:$0xff]
        %v952 = vld [vmem:[#allocation16 + $0xd0] sm:$0xff]
        %v953 = vld [vmem:[#allocation16 + $0xd8] sm:$0xff]
        %v954 = vld [vmem:[#allocation16 + $0xe0] sm:$0xff]
        %v955 = vld [vmem:[#allocation16 + $0xe8] sm:$0xff]
        %v956 = vld [vmem:[#allocation16 + $0xf0] sm:$0xff]
        %v957 = vld [vmem:[#allocation16 + $0xf8] sm:$0xff]
        %v990 = vunpack.c.l.b16 %v926
        %v991 = vunpack.c.h.b16 %v926
        %v992 = vunpack.c.l.b16 %v927
        %v993 = vunpack.c.h.b16 %v927
        %v994 = vunpack.c.l.b16 %v928
        %v995 = vunpack.c.h.b16 %v928
        %v996 = vunpack.c.l.b16 %v929
        %v997 = vunpack.c.h.b16 %v929
        %v998 = vunpack.c.l.b16 %v930
        %v999 = vunpack.c.h.b16 %v930
        %v1000 = vunpack.c.l.b16 %v931
        %v1001 = vunpack.c.h.b16 %v931
        %v1002 = vunpack.c.l.b16 %v932
        %v1003 = vunpack.c.h.b16 %v932
        %v1004 = vunpack.c.l.b16 %v933
        %v1005 = vunpack.c.h.b16 %v933
        %v1006 = vunpack.c.l.b16 %v934
        %v1007 = vunpack.c.h.b16 %v934
        %v1008 = vunpack.c.l.b16 %v935
        %v1009 = vunpack.c.h.b16 %v935
        %v1010 = vunpack.c.l.b16 %v936
        %v1011 = vunpack.c.h.b16 %v936
        %v1012 = vunpack.c.l.b16 %v937
        %v1013 = vunpack.c.h.b16 %v937
        %v1014 = vunpack.c.l.b16 %v938
        %v1015 = vunpack.c.h.b16 %v938
        %v1016 = vunpack.c.l.b16 %v939
        %v1017 = vunpack.c.h.b16 %v939
        %v1018 = vunpack.c.l.b16 %v940
        %v1019 = vunpack.c.h.b16 %v940
        %v1020 = vunpack.c.l.b16 %v941
        %v1021 = vunpack.c.h.b16 %v941
        %v1022 = vunpack.c.l.b16 %v942
        %v1023 = vunpack.c.h.b16 %v942
        %v1024 = vunpack.c.l.b16 %v943
        %v1025 = vunpack.c.h.b16 %v943
        %v1026 = vunpack.c.l.b16 %v944
        %v1027 = vunpack.c.h.b16 %v944
        %v1028 = vunpack.c.l.b16 %v945
        %v1029 = vunpack.c.h.b16 %v945
        %v1030 = vunpack.c.l.b16 %v946
        %v1031 = vunpack.c.h.b16 %v946
        %v1032 = vunpack.c.l.b16 %v947
        %v1033 = vunpack.c.h.b16 %v947
        %v1034 = vunpack.c.l.b16 %v948
        %v1035 = vunpack.c.h.b16 %v948
        %v1036 = vunpack.c.l.b16 %v949
        %v1037 = vunpack.c.h.b16 %v949
        %v1038 = vunpack.c.l.b16 %v950
        %v1039 = vunpack.c.h.b16 %v950
        %v1040 = vunpack.c.l.b16 %v951
        %v1041 = vunpack.c.h.b16 %v951
        %v1042 = vunpack.c.l.b16 %v952
        %v1043 = vunpack.c.h.b16 %v952
        %v1044 = vunpack.c.l.b16 %v953
        %v1045 = vunpack.c.h.b16 %v953
        %v1046 = vunpack.c.l.b16 %v954
        %v1047 = vunpack.c.h.b16 %v954
        %v1048 = vunpack.c.l.b16 %v955
        %v1049 = vunpack.c.h.b16 %v955
        %v1050 = vunpack.c.l.b16 %v956
        %v1051 = vunpack.c.h.b16 %v956
        %v1052 = vunpack.c.l.b16 %v957
        %v1053 = vunpack.c.h.b16 %v957
        %v1054 = vpack.c.b16 %v994, %v990
        %v1055 = vpack.c.b16 %v995, %v991
        %v1056 = vpack.c.b16 %v996, %v992
        %v1057 = vpack.c.b16 %v997, %v993
        %v1058 = vpack.c.b16 %v1002, %v998
        %v1059 = vpack.c.b16 %v1003, %v999
        %v1060 = vpack.c.b16 %v1004, %v1000
        %v1061 = vpack.c.b16 %v1005, %v1001
        %v1062 = vpack.c.b16 %v1010, %v1006
        %v1063 = vpack.c.b16 %v1011, %v1007
        %v1064 = vpack.c.b16 %v1012, %v1008
        %v1065 = vpack.c.b16 %v1013, %v1009
        %v1066 = vpack.c.b16 %v1018, %v1014
        %v1067 = vpack.c.b16 %v1019, %v1015
        %v1068 = vpack.c.b16 %v1020, %v1016
        %v1069 = vpack.c.b16 %v1021, %v1017
        %v1070 = vpack.c.b16 %v1026, %v1022
        %v1071 = vpack.c.b16 %v1027, %v1023
        %v1072 = vpack.c.b16 %v1028, %v1024
        %v1073 = vpack.c.b16 %v1029, %v1025
        %v1074 = vpack.c.b16 %v1034, %v1030
        %v1075 = vpack.c.b16 %v1035, %v1031
        %v1076 = vpack.c.b16 %v1036, %v1032
        %v1077 = vpack.c.b16 %v1037, %v1033
        %v1078 = vpack.c.b16 %v1042, %v1038
        %v1079 = vpack.c.b16 %v1043, %v1039
        %v1080 = vpack.c.b16 %v1044, %v1040
        %v1081 = vpack.c.b16 %v1045, %v1041
        %v1082 = vpack.c.b16 %v1050, %v1046
        %v1083 = vpack.c.b16 %v1051, %v1047
        %v1084 = vpack.c.b16 %v1052, %v1048
        %v1085 = vpack.c.b16 %v1053, %v1049
        %1118 = vmatprep.subr.bf16.mxu0 %v1055
        %1119 = vmatpush1.bf16.msra.mxu0 %v1054
        %1120 = vmatprep.subr.bf16.mxu0 %v1059
        %1121 = vmatpush1.bf16.msra.mxu0 %v1058
        %1122 = vmatprep.subr.bf16.mxu0 %v1063
        %1123 = vmatpush1.bf16.msra.mxu0 %v1062
        %1124 = vmatprep.subr.bf16.mxu0 %v1067
        %1125 = vmatpush1.bf16.msra.mxu0 %v1066
        %1126 = vmatprep.subr.bf16.mxu0 %v1071
        %1127 = vmatpush1.bf16.msra.mxu0 %v1070
        %1128 = vmatprep.subr.bf16.mxu0 %v1075
        %1129 = vmatpush1.bf16.msra.mxu0 %v1074
        %1130 = vmatprep.subr.bf16.mxu0 %v1079
        %1131 = vmatpush1.bf16.msra.mxu0 %v1078
        %1132 = vmatprep.subr.bf16.mxu0 %v1083
        %1133 = vmatpush1.bf16.msra.mxu0 %v1082
        %1134 = vmatprep.subr.bf16.mxu0 0
        %1135 = vmatpush1.bf16.msra.mxu0 0
        %1136 = vmatprep.subr.bf16.mxu0 0
        %1137 = vmatpush1.bf16.msra.mxu0 0
        %1138 = vmatprep.subr.bf16.mxu0 0
        %1139 = vmatpush1.bf16.msra.mxu0 0
        %1140 = vmatprep.subr.bf16.mxu0 0
        %1141 = vmatpush1.bf16.msra.mxu0 0
        %1142 = vmatprep.subr.bf16.mxu0 0
        %1143 = vmatpush1.bf16.msra.mxu0 0
        %1144 = vmatprep.subr.bf16.mxu0 0
        %1145 = vmatpush1.bf16.msra.mxu0 0
        %1146 = vmatprep.subr.bf16.mxu0 0
        %1147 = vmatpush1.bf16.msra.mxu0 0
        %1148 = vmatprep.subr.bf16.mxu0 0
        %1149 = vmatpush1.bf16.msra.mxu0 0
        %1150 = vmatprep.mubr.bf16.mxu0 0
        %1151 = vmatmul.mubr.bf16.gmra.mrb[0].mxu0 %v925
        %v1152 = vpop.f32.mrb[0].mxu0
        %v1153 = vadd.f32 0.0, %v1152
        %v1154 = vpop.f32.mrb[0].mxu0
        %v1155 = vadd.f32 0.0, %v1154
        %v1156 = vpop.f32.mrb[0].mxu0
        %v1157 = vadd.f32 0.0, %v1156
        %v1158 = vpop.f32.mrb[0].mxu0
        %v1159 = vadd.f32 0.0, %v1158
        %1160 = vdwg.mxu0
        %1161 = vmatprep.subr.bf16.mxu0 %v1057
        %1162 = vmatpush1.bf16.msra.mxu0 %v1056
        %1163 = vmatprep.subr.bf16.mxu0 %v1061
        %1164 = vmatpush1.bf16.msra.mxu0 %v1060
        %1165 = vmatprep.subr.bf16.mxu0 %v1065
        %1166 = vmatpush1.bf16.msra.mxu0 %v1064
        %1167 = vmatprep.subr.bf16.mxu0 %v1069
        %1168 = vmatpush1.bf16.msra.mxu0 %v1068
        %1169 = vmatprep.subr.bf16.mxu0 %v1073
        %1170 = vmatpush1.bf16.msra.mxu0 %v1072
        %1171 = vmatprep.subr.bf16.mxu0 %v1077
        %1172 = vmatpush1.bf16.msra.mxu0 %v1076
        %1173 = vmatprep.subr.bf16.mxu0 %v1081
        %1174 = vmatpush1.bf16.msra.mxu0 %v1080
        %1175 = vmatprep.subr.bf16.mxu0 %v1085
        %1176 = vmatpush1.bf16.msra.mxu0 %v1084
        %1177 = vmatprep.subr.bf16.mxu0 0
        %1178 = vmatpush1.bf16.msra.mxu0 0
        %1179 = vmatprep.subr.bf16.mxu0 0
        %1180 = vmatpush1.bf16.msra.mxu0 0
        %1181 = vmatprep.subr.bf16.mxu0 0
        %1182 = vmatpush1.bf16.msra.mxu0 0
        %1183 = vmatprep.subr.bf16.mxu0 0
        %1184 = vmatpush1.bf16.msra.mxu0 0
        %1185 = vmatprep.subr.bf16.mxu0 0
        %1186 = vmatpush1.bf16.msra.mxu0 0
        %1187 = vmatprep.subr.bf16.mxu0 0
        %1188 = vmatpush1.bf16.msra.mxu0 0
        %1189 = vmatprep.subr.bf16.mxu0 0
        %1190 = vmatpush1.bf16.msra.mxu0 0
        %1191 = vmatprep.subr.bf16.mxu0 0
        %1192 = vmatpush1.bf16.msra.mxu0 0
        %1193 = vmatprep.mubr.bf16.mxu0 0
        %1194 = vmatmul.mubr.bf16.gmra.mrb[0].mxu0 %v925
        %v1195 = vpop.f32.mrb[0].mxu0
        %v1196 = vadd.f32 0.0, %v1195
        %v1197 = vpop.f32.mrb[0].mxu0
        %v1198 = vadd.f32 0.0, %v1197
        %v1199 = vpop.f32.mrb[0].mxu0
        %v1200 = vadd.f32 0.0, %v1199
        %v1201 = vpop.f32.mrb[0].mxu0
        %v1202 = vadd.f32 0.0, %v1201
        %1203 = vdwg.mxu0
        %v1206 = vunpack.c.l.b16 %v889
        %v1207 = vunpack.c.l.b16 %v890
        %v1208 = vpack.c.b16 %v1207, %v1206
        %v1242 = vunpack.c.l.b16 %v891
        %v1243 = vunpack.c.h.b16 %v891
        %v1244 = vunpack.c.l.b16 %v892
        %v1245 = vunpack.c.h.b16 %v892
        %v1246 = vunpack.c.l.b16 %v893
        %v1247 = vunpack.c.h.b16 %v893
        %v1248 = vunpack.c.l.b16 %v894
        %v1249 = vunpack.c.h.b16 %v894
        %v1250 = vunpack.c.l.b16 %v895
        %v1251 = vunpack.c.h.b16 %v895
        %v1252 = vunpack.c.l.b16 %v896
        %v1253 = vunpack.c.h.b16 %v896
        %v1254 = vunpack.c.l.b16 %v897
        %v1255 = vunpack.c.h.b16 %v897
        %v1256 = vunpack.c.l.b16 %v898
        %v1257 = vunpack.c.h.b16 %v898
        %v1258 = vunpack.c.l.b16 %v899
        %v1259 = vunpack.c.h.b16 %v899
        %v1260 = vunpack.c.l.b16 %v900
        %v1261 = vunpack.c.h.b16 %v900
        %v1262 = vunpack.c.l.b16 %v901
        %v1263 = vunpack.c.h.b16 %v901
        %v1264 = vunpack.c.l.b16 %v902
        %v1265 = vunpack.c.h.b16 %v902
        %v1266 = vunpack.c.l.b16 %v903
        %v1267 = vunpack.c.h.b16 %v903
        %v1268 = vunpack.c.l.b16 %v904
        %v1269 = vunpack.c.h.b16 %v904
        %v1270 = vunpack.c.l.b16 %v905
        %v1271 = vunpack.c.h.b16 %v905
        %v1272 = vunpack.c.l.b16 %v906
        %v1273 = vunpack.c.h.b16 %v906
        %v1274 = vunpack.c.l.b16 %v907
        %v1275 = vunpack.c.h.b16 %v907
        %v1276 = vunpack.c.l.b16 %v908
        %v1277 = vunpack.c.h.b16 %v908
        %v1278 = vunpack.c.l.b16 %v909
        %v1279 = vunpack.c.h.b16 %v909
        %v1280 = vunpack.c.l.b16 %v910
        %v1281 = vunpack.c.h.b16 %v910
        %v1282 = vunpack.c.l.b16 %v911
        %v1283 = vunpack.c.h.b16 %v911
        %v1284 = vunpack.c.l.b16 %v912
        %v1285 = vunpack.c.h.b16 %v912
        %v1286 = vunpack.c.l.b16 %v913
        %v1287 = vunpack.c.h.b16 %v913
        %v1288 = vunpack.c.l.b16 %v914
        %v1289 = vunpack.c.h.b16 %v914
        %v1290 = vunpack.c.l.b16 %v915
        %v1291 = vunpack.c.h.b16 %v915
        %v1292 = vunpack.c.l.b16 %v916
        %v1293 = vunpack.c.h.b16 %v916
        %v1294 = vunpack.c.l.b16 %v917
        %v1295 = vunpack.c.h.b16 %v917
        %v1296 = vunpack.c.l.b16 %v918
        %v1297 = vunpack.c.h.b16 %v918
        %v1298 = vunpack.c.l.b16 %v919
        %v1299 = vunpack.c.h.b16 %v919
        %v1300 = vunpack.c.l.b16 %v920
        %v1301 = vunpack.c.h.b16 %v920
        %v1302 = vunpack.c.l.b16 %v921
        %v1303 = vunpack.c.h.b16 %v921
        %v1304 = vunpack.c.l.b16 %v922
        %v1305 = vunpack.c.h.b16 %v922
        %v1306 = vpack.c.b16 %v1246, %v1242
        %v1307 = vpack.c.b16 %v1247, %v1243
        %v1308 = vpack.c.b16 %v1248, %v1244
        %v1309 = vpack.c.b16 %v1249, %v1245
        %v1310 = vpack.c.b16 %v1254, %v1250
        %v1311 = vpack.c.b16 %v1255, %v1251
        %v1312 = vpack.c.b16 %v1256, %v1252
        %v1313 = vpack.c.b16 %v1257, %v1253
        %v1314 = vpack.c.b16 %v1262, %v1258
        %v1315 = vpack.c.b16 %v1263, %v1259
        %v1316 = vpack.c.b16 %v1264, %v1260
        %v1317 = vpack.c.b16 %v1265, %v1261
        %v1318 = vpack.c.b16 %v1270, %v1266
        %v1319 = vpack.c.b16 %v1271, %v1267
        %v1320 = vpack.c.b16 %v1272, %v1268
        %v1321 = vpack.c.b16 %v1273, %v1269
        %v1322 = vpack.c.b16 %v1278, %v1274
        %v1323 = vpack.c.b16 %v1279, %v1275
        %v1324 = vpack.c.b16 %v1280, %v1276
        %v1325 = vpack.c.b16 %v1281, %v1277
        %v1326 = vpack.c.b16 %v1286, %v1282
        %v1327 = vpack.c.b16 %v1287, %v1283
        %v1328 = vpack.c.b16 %v1288, %v1284
        %v1329 = vpack.c.b16 %v1289, %v1285
        %v1330 = vpack.c.b16 %v1294, %v1290
        %v1331 = vpack.c.b16 %v1295, %v1291
        %v1332 = vpack.c.b16 %v1296, %v1292
        %v1333 = vpack.c.b16 %v1297, %v1293
        %v1334 = vpack.c.b16 %v1302, %v1298
        %v1335 = vpack.c.b16 %v1303, %v1299
        %v1336 = vpack.c.b16 %v1304, %v1300
        %v1337 = vpack.c.b16 %v1305, %v1301
        %1370 = vmatprep.subr.bf16.mxu0 %v1307
        %1371 = vmatpush1.bf16.msra.mxu0 %v1306
        %1372 = vmatprep.subr.bf16.mxu0 %v1311
        %1373 = vmatpush1.bf16.msra.mxu0 %v1310
        %1374 = vmatprep.subr.bf16.mxu0 %v1315
        %1375 = vmatpush1.bf16.msra.mxu0 %v1314
        %1376 = vmatprep.subr.bf16.mxu0 %v1319
        %1377 = vmatpush1.bf16.msra.mxu0 %v1318
        %1378 = vmatprep.subr.bf16.mxu0 %v1323
        %1379 = vmatpush1.bf16.msra.mxu0 %v1322
        %1380 = vmatprep.subr.bf16.mxu0 %v1327
        %1381 = vmatpush1.bf16.msra.mxu0 %v1326
        %1382 = vmatprep.subr.bf16.mxu0 %v1331
        %1383 = vmatpush1.bf16.msra.mxu0 %v1330
        %1384 = vmatprep.subr.bf16.mxu0 %v1335
        %1385 = vmatpush1.bf16.msra.mxu0 %v1334
        %1386 = vmatprep.subr.bf16.mxu0 0
        %1387 = vmatpush1.bf16.msra.mxu0 0
        %1388 = vmatprep.subr.bf16.mxu0 0
        %1389 = vmatpush1.bf16.msra.mxu0 0
        %1390 = vmatprep.subr.bf16.mxu0 0
        %1391 = vmatpush1.bf16.msra.mxu0 0
        %1392 = vmatprep.subr.bf16.mxu0 0
        %1393 = vmatpush1.bf16.msra.mxu0 0
        %1394 = vmatprep.subr.bf16.mxu0 0
        %1395 = vmatpush1.bf16.msra.mxu0 0
        %1396 = vmatprep.subr.bf16.mxu0 0
        %1397 = vmatpush1.bf16.msra.mxu0 0
        %1398 = vmatprep.subr.bf16.mxu0 0
        %1399 = vmatpush1.bf16.msra.mxu0 0
        %1400 = vmatprep.subr.bf16.mxu0 0
        %1401 = vmatpush1.bf16.msra.mxu0 0
        %1402 = vmatprep.mubr.bf16.mxu0 0
        %1403 = vmatmul.mubr.bf16.gmra.mrb[0].mxu0 %v1208
        %v1404 = vpop.f32.mrb[0].mxu0
        %v1405 = vadd.f32 %v1153, %v1404
        %v1406 = vpop.f32.mrb[0].mxu0
        %v1407 = vadd.f32 %v1155, %v1406
        %v1408 = vpop.f32.mrb[0].mxu0
        %v1409 = vadd.f32 %v1157, %v1408
        %v1410 = vpop.f32.mrb[0].mxu0
        %v1411 = vadd.f32 %v1159, %v1410
        %1412 = vdwg.mxu0
        %1413 = vmatprep.subr.bf16.mxu0 %v1309
        %1414 = vmatpush1.bf16.msra.mxu0 %v1308
        %1415 = vmatprep.subr.bf16.mxu0 %v1313
        %1416 = vmatpush1.bf16.msra.mxu0 %v1312
        %1417 = vmatprep.subr.bf16.mxu0 %v1317
        %1418 = vmatpush1.bf16.msra.mxu0 %v1316
        %1419 = vmatprep.subr.bf16.mxu0 %v1321
        %1420 = vmatpush1.bf16.msra.mxu0 %v1320
        %1421 = vmatprep.subr.bf16.mxu0 %v1325
        %1422 = vmatpush1.bf16.msra.mxu0 %v1324
        %1423 = vmatprep.subr.bf16.mxu0 %v1329
        %1424 = vmatpush1.bf16.msra.mxu0 %v1328
        %1425 = vmatprep.subr.bf16.mxu0 %v1333
        %1426 = vmatpush1.bf16.msra.mxu0 %v1332
        %1427 = vmatprep.subr.bf16.mxu0 %v1337
        %1428 = vmatpush1.bf16.msra.mxu0 %v1336
        %1429 = vmatprep.subr.bf16.mxu0 0
        %1430 = vmatpush1.bf16.msra.mxu0 0
        %1431 = vmatprep.subr.bf16.mxu0 0
        %1432 = vmatpush1.bf16.msra.mxu0 0
        %1433 = vmatprep.subr.bf16.mxu0 0
        %1434 = vmatpush1.bf16.msra.mxu0 0
        %1435 = vmatprep.subr.bf16.mxu0 0
        %1436 = vmatpush1.bf16.msra.mxu0 0
        %1437 = vmatprep.subr.bf16.mxu0 0
        %1438 = vmatpush1.bf16.msra.mxu0 0
        %1439 = vmatprep.subr.bf16.mxu0 0
        %1440 = vmatpush1.bf16.msra.mxu0 0
        %1441 = vmatprep.subr.bf16.mxu0 0
        %1442 = vmatpush1.bf16.msra.mxu0 0
        %1443 = vmatprep.subr.bf16.mxu0 0
        %1444 = vmatpush1.bf16.msra.mxu0 0
        %1445 = vmatprep.mubr.bf16.mxu0 0
        %1446 = vmatmul.mubr.bf16.gmra.mrb[0].mxu0 %v1208
        %v1447 = vpop.f32.mrb[0].mxu0
        %v1448 = vadd.f32 %v1196, %v1447
        %v1449 = vpop.f32.mrb[0].mxu0
        %v1450 = vadd.f32 %v1198, %v1449
        %v1451 = vpop.f32.mrb[0].mxu0
        %v1452 = vadd.f32 %v1200, %v1451
        %v1453 = vpop.f32.mrb[0].mxu0
        %v1454 = vadd.f32 %v1202, %v1453
        %1455 = vdwg.mxu0
        %v1456 = vld [vmem:[#allocation2] sm:$0xff]
        %v1457 = vld [vmem:[#allocation2 + $0x8] sm:$0xff]
        %v1458 = vpack.c.bf16 %v1457, %v1456
        %v1459 = vld [vmem:[#allocation18] sm:$0xff]
        %v1460 = vld [vmem:[#allocation18 + $0x8] sm:$0xff]
        %v1461 = vld [vmem:[#allocation18 + $0x10] sm:$0xff]
        %v1462 = vld [vmem:[#allocation18 + $0x18] sm:$0xff]
        %v1463 = vld [vmem:[#allocation18 + $0x20] sm:$0xff]
        %v1464 = vld [vmem:[#allocation18 + $0x28] sm:$0xff]
        %v1465 = vld [vmem:[#allocation18 + $0x30] sm:$0xff]
        %v1466 = vld [vmem:[#allocation18 + $0x38] sm:$0xff]
        %v1467 = vld [vmem:[#allocation18 + $0x40] sm:$0xff]
        %v1468 = vld [vmem:[#allocation18 + $0x48] sm:$0xff]
        %v1469 = vld [vmem:[#allocation18 + $0x50] sm:$0xff]
        %v1470 = vld [vmem:[#allocation18 + $0x58] sm:$0xff]
        %v1471 = vld [vmem:[#allocation18 + $0x60] sm:$0xff]
        %v1472 = vld [vmem:[#allocation18 + $0x68] sm:$0xff]
        %v1473 = vld [vmem:[#allocation18 + $0x70] sm:$0xff]
        %v1474 = vld [vmem:[#allocation18 + $0x78] sm:$0xff]
        %v1475 = vld [vmem:[#allocation18 + $0x80] sm:$0xff]
        %v1476 = vld [vmem:[#allocation18 + $0x88] sm:$0xff]
        %v1477 = vld [vmem:[#allocation18 + $0x90] sm:$0xff]
        %v1478 = vld [vmem:[#allocation18 + $0x98] sm:$0xff]
        %v1479 = vld [vmem:[#allocation18 + $0xa0] sm:$0xff]
        %v1480 = vld [vmem:[#allocation18 + $0xa8] sm:$0xff]
        %v1481 = vld [vmem:[#allocation18 + $0xb0] sm:$0xff]
        %v1482 = vld [vmem:[#allocation18 + $0xb8] sm:$0xff]
        %v1483 = vld [vmem:[#allocation18 + $0xc0] sm:$0xff]
        %v1484 = vld [vmem:[#allocation18 + $0xc8] sm:$0xff]
        %v1485 = vld [vmem:[#allocation18 + $0xd0] sm:$0xff]
        %v1486 = vld [vmem:[#allocation18 + $0xd8] sm:$0xff]
        %v1487 = vld [vmem:[#allocation18 + $0xe0] sm:$0xff]
        %v1488 = vld [vmem:[#allocation18 + $0xe8] sm:$0xff]
        %v1489 = vld [vmem:[#allocation18 + $0xf0] sm:$0xff]
        %v1490 = vld [vmem:[#allocation18 + $0xf8] sm:$0xff]
        %v1523 = vunpack.c.l.b16 %v1459
        %v1524 = vunpack.c.h.b16 %v1459
        %v1525 = vunpack.c.l.b16 %v1460
        %v1526 = vunpack.c.h.b16 %v1460
        %v1527 = vunpack.c.l.b16 %v1461
        %v1528 = vunpack.c.h.b16 %v1461
        %v1529 = vunpack.c.l.b16 %v1462
        %v1530 = vunpack.c.h.b16 %v1462
        %v1531 = vunpack.c.l.b16 %v1463
        %v1532 = vunpack.c.h.b16 %v1463
        %v1533 = vunpack.c.l.b16 %v1464
        %v1534 = vunpack.c.h.b16 %v1464
        %v1535 = vunpack.c.l.b16 %v1465
        %v1536 = vunpack.c.h.b16 %v1465
        %v1537 = vunpack.c.l.b16 %v1466
        %v1538 = vunpack.c.h.b16 %v1466
        %v1539 = vunpack.c.l.b16 %v1467
        %v1540 = vunpack.c.h.b16 %v1467
        %v1541 = vunpack.c.l.b16 %v1468
        %v1542 = vunpack.c.h.b16 %v1468
        %v1543 = vunpack.c.l.b16 %v1469
        %v1544 = vunpack.c.h.b16 %v1469
        %v1545 = vunpack.c.l.b16 %v1470
        %v1546 = vunpack.c.h.b16 %v1470
        %v1547 = vunpack.c.l.b16 %v1471
        %v1548 = vunpack.c.h.b16 %v1471
        %v1549 = vunpack.c.l.b16 %v1472
        %v1550 = vunpack.c.h.b16 %v1472
        %v1551 = vunpack.c.l.b16 %v1473
        %v1552 = vunpack.c.h.b16 %v1473
        %v1553 = vunpack.c.l.b16 %v1474
        %v1554 = vunpack.c.h.b16 %v1474
        %v1555 = vunpack.c.l.b16 %v1475
        %v1556 = vunpack.c.h.b16 %v1475
        %v1557 = vunpack.c.l.b16 %v1476
        %v1558 = vunpack.c.h.b16 %v1476
        %v1559 = vunpack.c.l.b16 %v1477
        %v1560 = vunpack.c.h.b16 %v1477
        %v1561 = vunpack.c.l.b16 %v1478
        %v1562 = vunpack.c.h.b16 %v1478
        %v1563 = vunpack.c.l.b16 %v1479
        %v1564 = vunpack.c.h.b16 %v1479
        %v1565 = vunpack.c.l.b16 %v1480
        %v1566 = vunpack.c.h.b16 %v1480
        %v1567 = vunpack.c.l.b16 %v1481
        %v1568 = vunpack.c.h.b16 %v1481
        %v1569 = vunpack.c.l.b16 %v1482
        %v1570 = vunpack.c.h.b16 %v1482
        %v1571 = vunpack.c.l.b16 %v1483
        %v1572 = vunpack.c.h.b16 %v1483
        %v1573 = vunpack.c.l.b16 %v1484
        %v1574 = vunpack.c.h.b16 %v1484
        %v1575 = vunpack.c.l.b16 %v1485
        %v1576 = vunpack.c.h.b16 %v1485
        %v1577 = vunpack.c.l.b16 %v1486
        %v1578 = vunpack.c.h.b16 %v1486
        %v1579 = vunpack.c.l.b16 %v1487
        %v1580 = vunpack.c.h.b16 %v1487
        %v1581 = vunpack.c.l.b16 %v1488
        %v1582 = vunpack.c.h.b16 %v1488
        %v1583 = vunpack.c.l.b16 %v1489
        %v1584 = vunpack.c.h.b16 %v1489
        %v1585 = vunpack.c.l.b16 %v1490
        %v1586 = vunpack.c.h.b16 %v1490
        %v1587 = vpack.c.b16 %v1527, %v1523
        %v1588 = vpack.c.b16 %v1528, %v1524
        %v1589 = vpack.c.b16 %v1529, %v1525
        %v1590 = vpack.c.b16 %v1530, %v1526
        %v1591 = vpack.c.b16 %v1535, %v1531
        %v1592 = vpack.c.b16 %v1536, %v1532
        %v1593 = vpack.c.b16 %v1537, %v1533
        %v1594 = vpack.c.b16 %v1538, %v1534
        %v1595 = vpack.c.b16 %v1543, %v1539
        %v1596 = vpack.c.b16 %v1544, %v1540
        %v1597 = vpack.c.b16 %v1545, %v1541
        %v1598 = vpack.c.b16 %v1546, %v1542
        %v1599 = vpack.c.b16 %v1551, %v1547
        %v1600 = vpack.c.b16 %v1552, %v1548
        %v1601 = vpack.c.b16 %v1553, %v1549
        %v1602 = vpack.c.b16 %v1554, %v1550
        %v1603 = vpack.c.b16 %v1559, %v1555
        %v1604 = vpack.c.b16 %v1560, %v1556
        %v1605 = vpack.c.b16 %v1561, %v1557
        %v1606 = vpack.c.b16 %v1562, %v1558
        %v1607 = vpack.c.b16 %v1567, %v1563
        %v1608 = vpack.c.b16 %v1568, %v1564
        %v1609 = vpack.c.b16 %v1569, %v1565
        %v1610 = vpack.c.b16 %v1570, %v1566
        %v1611 = vpack.c.b16 %v1575, %v1571
        %v1612 = vpack.c.b16 %v1576, %v1572
        %v1613 = vpack.c.b16 %v1577, %v1573
        %v1614 = vpack.c.b16 %v1578, %v1574
        %v1615 = vpack.c.b16 %v1583, %v1579
        %v1616 = vpack.c.b16 %v1584, %v1580
        %v1617 = vpack.c.b16 %v1585, %v1581
        %v1618 = vpack.c.b16 %v1586, %v1582
        %1651 = vmatprep.subr.bf16.mxu0 %v1588
        %1652 = vmatpush1.bf16.msra.mxu0 %v1587
        %1653 = vmatprep.subr.bf16.mxu0 %v1592
        %1654 = vmatpush1.bf16.msra.mxu0 %v1591
        %1655 = vmatprep.subr.bf16.mxu0 %v1596
        %1656 = vmatpush1.bf16.msra.mxu0 %v1595
        %1657 = vmatprep.subr.bf16.mxu0 %v1600
        %1658 = vmatpush1.bf16.msra.mxu0 %v1599
        %1659 = vmatprep.subr.bf16.mxu0 %v1604
        %1660 = vmatpush1.bf16.msra.mxu0 %v1603
        %1661 = vmatprep.subr.bf16.mxu0 %v1608
        %1662 = vmatpush1.bf16.msra.mxu0 %v1607
        %1663 = vmatprep.subr.bf16.mxu0 %v1612
        %1664 = vmatpush1.bf16.msra.mxu0 %v1611
        %1665 = vmatprep.subr.bf16.mxu0 %v1616
        %1666 = vmatpush1.bf16.msra.mxu0 %v1615
        %1667 = vmatprep.subr.bf16.mxu0 0
        %1668 = vmatpush1.bf16.msra.mxu0 0
        %1669 = vmatprep.subr.bf16.mxu0 0
        %1670 = vmatpush1.bf16.msra.mxu0 0
        %1671 = vmatprep.subr.bf16.mxu0 0
        %1672 = vmatpush1.bf16.msra.mxu0 0
        %1673 = vmatprep.subr.bf16.mxu0 0
        %1674 = vmatpush1.bf16.msra.mxu0 0
        %1675 = vmatprep.subr.bf16.mxu0 0
        %1676 = vmatpush1.bf16.msra.mxu0 0
        %1677 = vmatprep.subr.bf16.mxu0 0
        %1678 = vmatpush1.bf16.msra.mxu0 0
        %1679 = vmatprep.subr.bf16.mxu0 0
        %1680 = vmatpush1.bf16.msra.mxu0 0
        %1681 = vmatprep.subr.bf16.mxu0 0
        %1682 = vmatpush1.bf16.msra.mxu0 0
        %1683 = vmatprep.mubr.bf16.mxu0 0
        %1684 = vmatmul.mubr.bf16.gmra.mrb[0].mxu0 %v1458
        %v1685 = vpop.f32.mrb[0].mxu0
        %v1686 = vadd.f32 0.0, %v1685
        %v1687 = vpop.f32.mrb[0].mxu0
        %v1688 = vadd.f32 0.0, %v1687
        %v1689 = vpop.f32.mrb[0].mxu0
        %v1690 = vadd.f32 0.0, %v1689
        %v1691 = vpop.f32.mrb[0].mxu0
        %v1692 = vadd.f32 0.0, %v1691
        %1693 = vdwg.mxu0
        %1694 = vmatprep.subr.bf16.mxu0 %v1590
        %1695 = vmatpush1.bf16.msra.mxu0 %v1589
        %1696 = vmatprep.subr.bf16.mxu0 %v1594
        %1697 = vmatpush1.bf16.msra.mxu0 %v1593
        %1698 = vmatprep.subr.bf16.mxu0 %v1598
        %1699 = vmatpush1.bf16.msra.mxu0 %v1597
        %1700 = vmatprep.subr.bf16.mxu0 %v1602
        %1701 = vmatpush1.bf16.msra.mxu0 %v1601
        %1702 = vmatprep.subr.bf16.mxu0 %v1606
        %1703 = vmatpush1.bf16.msra.mxu0 %v1605
        %1704 = vmatprep.subr.bf16.mxu0 %v1610
        %1705 = vmatpush1.bf16.msra.mxu0 %v1609
        %1706 = vmatprep.subr.bf16.mxu0 %v1614
        %1707 = vmatpush1.bf16.msra.mxu0 %v1613
        %1708 = vmatprep.subr.bf16.mxu0 %v1618
        %1709 = vmatpush1.bf16.msra.mxu0 %v1617
        %1710 = vmatprep.subr.bf16.mxu0 0
        %1711 = vmatpush1.bf16.msra.mxu0 0
        %1712 = vmatprep.subr.bf16.mxu0 0
        %1713 = vmatpush1.bf16.msra.mxu0 0
        %1714 = vmatprep.subr.bf16.mxu0 0
        %1715 = vmatpush1.bf16.msra.mxu0 0
        %1716 = vmatprep.subr.bf16.mxu0 0
        %1717 = vmatpush1.bf16.msra.mxu0 0
        %1718 = vmatprep.subr.bf16.mxu0 0
        %1719 = vmatpush1.bf16.msra.mxu0 0
        %1720 = vmatprep.subr.bf16.mxu0 0
        %1721 = vmatpush1.bf16.msra.mxu0 0
        %1722 = vmatprep.subr.bf16.mxu0 0
        %1723 = vmatpush1.bf16.msra.mxu0 0
        %1724 = vmatprep.subr.bf16.mxu0 0
        %1725 = vmatpush1.bf16.msra.mxu0 0
        %1726 = vmatprep.mubr.bf16.mxu0 0
        %1727 = vmatmul.mubr.bf16.gmra.mrb[0].mxu0 %v1458
        %v1728 = vpop.f32.mrb[0].mxu0
        %v1729 = vadd.f32 0.0, %v1728
        %v1730 = vpop.f32.mrb[0].mxu0
        %v1731 = vadd.f32 0.0, %v1730
        %v1732 = vpop.f32.mrb[0].mxu0
        %v1733 = vadd.f32 0.0, %v1732
        %v1734 = vpop.f32.mrb[0].mxu0
        %v1735 = vadd.f32 0.0, %v1734
        %1736 = vdwg.mxu0
        %v1737 = vadd.f32 %v1405, %v1686
        %v1738 = vadd.f32 %v1407, %v1688
        %v1739 = vadd.f32 %v1448, %v1729
        %v1740 = vadd.f32 %v1450, %v1731
        %v1741 = vadd.f32 %v1409, %v1690
        %v1742 = vadd.f32 %v1411, %v1692
        %v1743 = vadd.f32 %v1452, %v1733
        %v1744 = vadd.f32 %v1454, %v1735
        %v1745 = vld [vmem:[#allocation19] sm:$0xf]
        %v1747 = vlaneseq
        %v1748 = vshrl.u32 %v1747, 7
        %v1749 = vsub.s32 0, %v1748
        %v1750 = vrot.slane %v1745, %v1749
        %v1751 = vlaneseq
        %v1752 = vshrl.u32 %v1751, 7
        %v1753 = vsub.s32 1, %v1752
        %v1754 = vrot.slane %v1745, %v1753
        %v1755 = vlaneseq
        %v1756 = vshrl.u32 %v1755, 7
        %v1757 = vsub.s32 2, %v1756
        %v1758 = vrot.slane %v1745, %v1757
        %v1759 = vlaneseq
        %v1760 = vshrl.u32 %v1759, 7
        %v1761 = vsub.s32 3, %v1760
        %v1762 = vrot.slane %v1745, %v1761
        %v1767 = vadd.f32 %v1737, %v1750
        %v1768 = vadd.f32 %v1738, %v1754
        %v1769 = vadd.f32 %v1739, %v1758
        %v1770 = vadd.f32 %v1740, %v1762
        %v1771 = vadd.f32 %v1741, %v1750
        %v1772 = vadd.f32 %v1742, %v1754
        %v1773 = vadd.f32 %v1743, %v1758
        %v1774 = vadd.f32 %v1744, %v1762
        %v1775 = vxor.u32 %v1767, 2147483648
        %v1776 = vxor.u32 %v1771, 2147483648
        %v1777 = vmul.f32 %v1775, 1.442695
        %v1778 = vpow.pop %v1777
        %v1779 = vmul.f32 %v1776, 1.442695
        %v1780 = vpow.pop %v1779
        %v1781 = vadd.f32 %v1778, 1.0
        %v1782 = vadd.f32 %v1780, 1.0
        %v1783 = vrcp.pop %v1781
        %v1784 = vmul.f32 1.0, %v1783
        %v1785 = vrcp.pop %v1782
        %v1786 = vmul.f32 1.0, %v1785
        %v1787 = vxor.u32 %v1768, 2147483648
        %v1788 = vxor.u32 %v1772, 2147483648
        %v1789 = vmul.f32 %v1787, 1.442695
        %v1790 = vpow.pop %v1789
        %v1791 = vmul.f32 %v1788, 1.442695
        %v1792 = vpow.pop %v1791
        %v1793 = vadd.f32 %v1790, 1.0
        %v1794 = vadd.f32 %v1792, 1.0
        %v1795 = vrcp.pop %v1793
        %v1796 = vmul.f32 1.0, %v1795
        %v1797 = vrcp.pop %v1794
        %v1798 = vmul.f32 1.0, %v1797
        %v1799 = vtanh.pop %v1769
        %v1800 = vtanh.pop %v1773
        %v1801 = vxor.u32 %v1770, 2147483648
        %v1802 = vxor.u32 %v1774, 2147483648
        %v1803 = vmul.f32 %v1801, 1.442695
        %v1804 = vpow.pop %v1803
        %v1805 = vmul.f32 %v1802, 1.442695
        %v1806 = vpow.pop %v1805
        %v1807 = vadd.f32 %v1804, 1.0
        %v1808 = vadd.f32 %v1806, 1.0
        %v1809 = vrcp.pop %v1807
        %v1810 = vmul.f32 1.0, %v1809
        %v1811 = vrcp.pop %v1808
        %v1812 = vmul.f32 1.0, %v1811
        %v1813 = vld [vmem:[#allocation3] sm:$0xff]
        %v1814 = vld [vmem:[#allocation3 + $0x8] sm:$0xff]
        %v1815 = vmul.f32 %v1796, %v1813
        %v1816 = vmul.f32 %v1798, %v1814
        %v1817 = vmul.f32 %v1784, %v1799
        %v1818 = vmul.f32 %v1786, %v1800
        %v1819 = vadd.f32 %v1815, %v1817
        %v1820 = vadd.f32 %v1816, %v1818
        %v1821 = vtanh.pop %v1819
        %v1822 = vtanh.pop %v1820
        %v1823 = vmul.f32 %v1810, %v1821
        %v1824 = vmul.f32 %v1812, %v1822
        %1825 = vst [vmem:[#allocation3] sm:$0xff] %v1819
        %1826 = vst [vmem:[#allocation3 + $0x8] sm:$0xff] %v1820
        %1827 = vst [vmem:[#allocation2] sm:$0xff] %v1823
        %1828 = vst [vmem:[#allocation2 + $0x8] sm:$0xff] %v1824
        %1829 = vst [vmem:[%s860] sm:$0xff] %v1819
        %1830 = vst [vmem:[%s860 + $0x8] sm:$0xff] %v1820
        %1831 = vst [vmem:[%s853] sm:$0xff] %v1823
        %1832 = vst [vmem:[%s853 + $0x8] sm:$0xff] %v1824
        %v1833 = vpack.c.bf16 %v1824, %v1823
        %v1834 = vld [vmem:[%s747] sm:$0xf]
        %v1835 = vld [vmem:[%s747 + $0x4] sm:$0xf]
        %v1836 = vld [vmem:[%s747 + $0x8] sm:$0xf]
        %v1837 = vld [vmem:[%s747 + $0xc] sm:$0xf]
        %v1838 = vld [vmem:[%s747 + $0x10] sm:$0xf]
        %v1839 = vld [vmem:[%s747 + $0x14] sm:$0xf]
        %v1840 = vld [vmem:[%s747 + $0x18] sm:$0xf]
        %v1841 = vld [vmem:[%s747 + $0x1c] sm:$0xf]
        %v1842 = vld [vmem:[%s747 + $0x20] sm:$0xf]
        %v1843 = vld [vmem:[%s747 + $0x24] sm:$0xf]
        %v1844 = vld [vmem:[%s747 + $0x28] sm:$0xf]
        %v1845 = vld [vmem:[%s747 + $0x2c] sm:$0xf]
        %v1846 = vld [vmem:[%s747 + $0x30] sm:$0xf]
        %v1847 = vld [vmem:[%s747 + $0x34] sm:$0xf]
        %v1848 = vld [vmem:[%s747 + $0x38] sm:$0xf]
        %v1849 = vld [vmem:[%s747 + $0x3c] sm:$0xf]
        %v1866 = vunpack.c.l.b16 %v1834
        %v1867 = vunpack.c.l.b16 %v1835
        %v1868 = vunpack.c.l.b16 %v1836
        %v1869 = vunpack.c.l.b16 %v1837
        %v1870 = vunpack.c.l.b16 %v1838
        %v1871 = vunpack.c.l.b16 %v1839
        %v1872 = vunpack.c.l.b16 %v1840
        %v1873 = vunpack.c.l.b16 %v1841
        %v1874 = vunpack.c.l.b16 %v1842
        %v1875 = vunpack.c.l.b16 %v1843
        %v1876 = vunpack.c.l.b16 %v1844
        %v1877 = vunpack.c.l.b16 %v1845
        %v1878 = vunpack.c.l.b16 %v1846
        %v1879 = vunpack.c.l.b16 %v1847
        %v1880 = vunpack.c.l.b16 %v1848
        %v1881 = vunpack.c.l.b16 %v1849
        %v1882 = vpack.c.b16 %v1867, %v1866
        %v1883 = vpack.c.b16 %v1869, %v1868
        %v1884 = vpack.c.b16 %v1871, %v1870
        %v1885 = vpack.c.b16 %v1873, %v1872
        %v1886 = vpack.c.b16 %v1875, %v1874
        %v1887 = vpack.c.b16 %v1877, %v1876
        %v1888 = vpack.c.b16 %v1879, %v1878
        %v1889 = vpack.c.b16 %v1881, %v1880
        %1898 = vmatprep.subr.bf16.mxu0 0
        %1899 = vmatpush1.bf16.xpose.msra.mxu0 %v1882
        %1900 = vmatprep.subr.bf16.mxu0 0
        %1901 = vmatpush1.bf16.xpose.msra.mxu0 %v1883
        %1902 = vmatprep.subr.bf16.mxu0 0
        %1903 = vmatpush1.bf16.xpose.msra.mxu0 %v1884
        %1904 = vmatprep.subr.bf16.mxu0 0
        %1905 = vmatpush1.bf16.xpose.msra.mxu0 %v1885
        %1906 = vmatprep.subr.bf16.mxu0 0
        %1907 = vmatpush1.bf16.xpose.msra.mxu0 %v1886
        %1908 = vmatprep.subr.bf16.mxu0 0
        %1909 = vmatpush1.bf16.xpose.msra.mxu0 %v1887
        %1910 = vmatprep.subr.bf16.mxu0 0
        %1911 = vmatpush1.bf16.xpose.msra.mxu0 %v1888
        %1912 = vmatprep.subr.bf16.mxu0 0
        %1913 = vmatpush1.bf16.xpose.msra.mxu0 %v1889
        %1914 = vmatprep.subr.bf16.mxu0 0
        %1915 = vmatpush1.bf16.xpose.msra.mxu0 0
        %1916 = vmatprep.subr.bf16.mxu0 0
        %1917 = vmatpush1.bf16.xpose.msra.mxu0 0
        %1918 = vmatprep.subr.bf16.mxu0 0
        %1919 = vmatpush1.bf16.xpose.msra.mxu0 0
        %1920 = vmatprep.subr.bf16.mxu0 0
        %1921 = vmatpush1.bf16.xpose.msra.mxu0 0
        %1922 = vmatprep.subr.bf16.mxu0 0
        %1923 = vmatpush1.bf16.xpose.msra.mxu0 0
        %1924 = vmatprep.subr.bf16.mxu0 0
        %1925 = vmatpush1.bf16.xpose.msra.mxu0 0
        %1926 = vmatprep.subr.bf16.mxu0 0
        %1927 = vmatpush1.bf16.xpose.msra.mxu0 0
        %1928 = vmatprep.subr.bf16.mxu0 0
        %1929 = vmatpush1.bf16.xpose.msra.mxu0 0
        %1930 = vmatprep.mubr.bf16.mxu0 0
        %1931 = vmatmul.mubr.bf16.gmra.mrb[0].mxu0 %v1833
        %v1932 = vpop.f32.mrb[0].mxu0
        %v1933 = vadd.f32 0.0, %v1932
        %v1934 = vpop.f32.mrb[0].mxu0
        %v1935 = vpop.f32.mrb[0].mxu0
        %v1936 = vpop.f32.mrb[0].mxu0
        %1937 = vdwg.mxu0
        %1938 = vst [vmem:[#allocation5] sm:$0x1] %v1933
        %s1939 = scalar_lea.vmem %s747, 64 [#allocation21]
        %v1940 = vld [vmem:[%s1939] sm:$0xf]
        %v1941 = vld [vmem:[%s1939 + $0x4] sm:$0xf]
        %v1942 = vld [vmem:[%s1939 + $0x8] sm:$0xf]
        %v1943 = vld [vmem:[%s1939 + $0xc] sm:$0xf]
        %v1944 = vld [vmem:[%s1939 + $0x10] sm:$0xf]
        %v1945 = vld [vmem:[%s1939 + $0x14] sm:$0xf]
        %v1946 = vld [vmem:[%s1939 + $0x18] sm:$0xf]
        %v1947 = vld [vmem:[%s1939 + $0x1c] sm:$0xf]
        %v1948 = vld [vmem:[%s1939 + $0x20] sm:$0xf]
        %v1949 = vld [vmem:[%s1939 + $0x24] sm:$0xf]
        %v1950 = vld [vmem:[%s1939 + $0x28] sm:$0xf]
        %v1951 = vld [vmem:[%s1939 + $0x2c] sm:$0xf]
        %v1952 = vld [vmem:[%s1939 + $0x30] sm:$0xf]
        %v1953 = vld [vmem:[%s1939 + $0x34] sm:$0xf]
        %v1954 = vld [vmem:[%s1939 + $0x38] sm:$0xf]
        %v1955 = vld [vmem:[%s1939 + $0x3c] sm:$0xf]
        %v1957 = vshrl.u32 %v1833, 16
        %v1976 = vunpack.c.l.b16 %v1940
        %v1977 = vunpack.c.l.b16 %v1941
        %v1978 = vunpack.c.l.b16 %v1942
        %v1979 = vunpack.c.l.b16 %v1943
        %v1980 = vunpack.c.l.b16 %v1944
        %v1981 = vunpack.c.l.b16 %v1945
        %v1982 = vunpack.c.l.b16 %v1946
        %v1983 = vunpack.c.l.b16 %v1947
        %v1984 = vunpack.c.l.b16 %v1948
        %v1985 = vunpack.c.l.b16 %v1949
        %v1986 = vunpack.c.l.b16 %v1950
        %v1987 = vunpack.c.l.b16 %v1951
        %v1988 = vunpack.c.l.b16 %v1952
        %v1989 = vunpack.c.l.b16 %v1953
        %v1990 = vunpack.c.l.b16 %v1954
        %v1991 = vunpack.c.l.b16 %v1955
        %v1992 = vpack.c.b16 %v1977, %v1976
        %v1993 = vpack.c.b16 %v1979, %v1978
        %v1994 = vpack.c.b16 %v1981, %v1980
        %v1995 = vpack.c.b16 %v1983, %v1982
        %v1996 = vpack.c.b16 %v1985, %v1984
        %v1997 = vpack.c.b16 %v1987, %v1986
        %v1998 = vpack.c.b16 %v1989, %v1988
        %v1999 = vpack.c.b16 %v1991, %v1990
        %2008 = vmatprep.subr.bf16.mxu0 0
        %2009 = vmatpush1.bf16.xpose.msra.mxu0 %v1992
        %2010 = vmatprep.subr.bf16.mxu0 0
        %2011 = vmatpush1.bf16.xpose.msra.mxu0 %v1993
        %2012 = vmatprep.subr.bf16.mxu0 0
        %2013 = vmatpush1.bf16.xpose.msra.mxu0 %v1994
        %2014 = vmatprep.subr.bf16.mxu0 0
        %2015 = vmatpush1.bf16.xpose.msra.mxu0 %v1995
        %2016 = vmatprep.subr.bf16.mxu0 0
        %2017 = vmatpush1.bf16.xpose.msra.mxu0 %v1996
        %2018 = vmatprep.subr.bf16.mxu0 0
        %2019 = vmatpush1.bf16.xpose.msra.mxu0 %v1997
        %2020 = vmatprep.subr.bf16.mxu0 0
        %2021 = vmatpush1.bf16.xpose.msra.mxu0 %v1998
        %2022 = vmatprep.subr.bf16.mxu0 0
        %2023 = vmatpush1.bf16.xpose.msra.mxu0 %v1999
        %2024 = vmatprep.subr.bf16.mxu0 0
        %2025 = vmatpush1.bf16.xpose.msra.mxu0 0
        %2026 = vmatprep.subr.bf16.mxu0 0
        %2027 = vmatpush1.bf16.xpose.msra.mxu0 0
        %2028 = vmatprep.subr.bf16.mxu0 0
        %2029 = vmatpush1.bf16.xpose.msra.mxu0 0
        %2030 = vmatprep.subr.bf16.mxu0 0
        %2031 = vmatpush1.bf16.xpose.msra.mxu0 0
        %2032 = vmatprep.subr.bf16.mxu0 0
        %2033 = vmatpush1.bf16.xpose.msra.mxu0 0
        %2034 = vmatprep.subr.bf16.mxu0 0
        %2035 = vmatpush1.bf16.xpose.msra.mxu0 0
        %2036 = vmatprep.subr.bf16.mxu0 0
        %2037 = vmatpush1.bf16.xpose.msra.mxu0 0
        %2038 = vmatprep.subr.bf16.mxu0 0
        %2039 = vmatpush1.bf16.xpose.msra.mxu0 0
        %2040 = vmatprep.mubr.bf16.mxu0 0
        %2041 = vmatmul.mubr.bf16.gmra.mrb[0].mxu0 %v1957
        %v2042 = vpop.f32.mrb[0].mxu0
        %v2043 = vadd.f32 0.0, %v2042
        %v2044 = vpop.f32.mrb[0].mxu0
        %v2045 = vpop.f32.mrb[0].mxu0
        %v2046 = vpop.f32.mrb[0].mxu0
        %2047 = vdwg.mxu0
        %2048 = vst [vmem:[#allocation5 + $0x1] sm:$0x1] %v2043
        %s2049 = scalar_lea.vmem %s747, 128 [#allocation21]
        %v2050 = vld [vmem:[%s2049] sm:$0xf]
        %v2051 = vld [vmem:[%s2049 + $0x4] sm:$0xf]
        %v2052 = vld [vmem:[%s2049 + $0x8] sm:$0xf]
        %v2053 = vld [vmem:[%s2049 + $0xc] sm:$0xf]
        %v2054 = vld [vmem:[%s2049 + $0x10] sm:$0xf]
        %v2055 = vld [vmem:[%s2049 + $0x14] sm:$0xf]
        %v2056 = vld [vmem:[%s2049 + $0x18] sm:$0xf]
        %v2057 = vld [vmem:[%s2049 + $0x1c] sm:$0xf]
        %v2058 = vld [vmem:[%s2049 + $0x20] sm:$0xf]
        %v2059 = vld [vmem:[%s2049 + $0x24] sm:$0xf]
        %v2060 = vld [vmem:[%s2049 + $0x28] sm:$0xf]
        %v2061 = vld [vmem:[%s2049 + $0x2c] sm:$0xf]
        %v2062 = vld [vmem:[%s2049 + $0x30] sm:$0xf]
        %v2063 = vld [vmem:[%s2049 + $0x34] sm:$0xf]
        %v2064 = vld [vmem:[%s2049 + $0x38] sm:$0xf]
        %v2065 = vld [vmem:[%s2049 + $0x3c] sm:$0xf]
        %v2067 = vrot.slane %v1833, 1
        %v2085 = vunpack.c.l.b16 %v2050
        %v2086 = vunpack.c.l.b16 %v2051
        %v2087 = vunpack.c.l.b16 %v2052
        %v2088 = vunpack.c.l.b16 %v2053
        %v2089 = vunpack.c.l.b16 %v2054
        %v2090 = vunpack.c.l.b16 %v2055
        %v2091 = vunpack.c.l.b16 %v2056
        %v2092 = vunpack.c.l.b16 %v2057
        %v2093 = vunpack.c.l.b16 %v2058
        %v2094 = vunpack.c.l.b16 %v2059
        %v2095 = vunpack.c.l.b16 %v2060
        %v2096 = vunpack.c.l.b16 %v2061
        %v2097 = vunpack.c.l.b16 %v2062
        %v2098 = vunpack.c.l.b16 %v2063
        %v2099 = vunpack.c.l.b16 %v2064
        %v2100 = vunpack.c.l.b16 %v2065
        %v2101 = vpack.c.b16 %v2086, %v2085
        %v2102 = vpack.c.b16 %v2088, %v2087
        %v2103 = vpack.c.b16 %v2090, %v2089
        %v2104 = vpack.c.b16 %v2092, %v2091
        %v2105 = vpack.c.b16 %v2094, %v2093
        %v2106 = vpack.c.b16 %v2096, %v2095
        %v2107 = vpack.c.b16 %v2098, %v2097
        %v2108 = vpack.c.b16 %v2100, %v2099
        %2117 = vmatprep.subr.bf16.mxu0 0
        %2118 = vmatpush1.bf16.xpose.msra.mxu0 %v2101
        %2119 = vmatprep.subr.bf16.mxu0 0
        %2120 = vmatpush1.bf16.xpose.msra.mxu0 %v2102
        %2121 = vmatprep.subr.bf16.mxu0 0
        %2122 = vmatpush1.bf16.xpose.msra.mxu0 %v2103
        %2123 = vmatprep.subr.bf16.mxu0 0
        %2124 = vmatpush1.bf16.xpose.msra.mxu0 %v2104
        %2125 = vmatprep.subr.bf16.mxu0 0
        %2126 = vmatpush1.bf16.xpose.msra.mxu0 %v2105
        %2127 = vmatprep.subr.bf16.mxu0 0
        %2128 = vmatpush1.bf16.xpose.msra.mxu0 %v2106
        %2129 = vmatprep.subr.bf16.mxu0 0
        %2130 = vmatpush1.bf16.xpose.msra.mxu0 %v2107
        %2131 = vmatprep.subr.bf16.mxu0 0
        %2132 = vmatpush1.bf16.xpose.msra.mxu0 %v2108
        %2133 = vmatprep.subr.bf16.mxu0 0
        %2134 = vmatpush1.bf16.xpose.msra.mxu0 0
        %2135 = vmatprep.subr.bf16.mxu0 0
        %2136 = vmatpush1.bf16.xpose.msra.mxu0 0
        %2137 = vmatprep.subr.bf16.mxu0 0
        %2138 = vmatpush1.bf16.xpose.msra.mxu0 0
        %2139 = vmatprep.subr.bf16.mxu0 0
        %2140 = vmatpush1.bf16.xpose.msra.mxu0 0
        %2141 = vmatprep.subr.bf16.mxu0 0
        %2142 = vmatpush1.bf16.xpose.msra.mxu0 0
        %2143 = vmatprep.subr.bf16.mxu0 0
        %2144 = vmatpush1.bf16.xpose.msra.mxu0 0
        %2145 = vmatprep.subr.bf16.mxu0 0
        %2146 = vmatpush1.bf16.xpose.msra.mxu0 0
        %2147 = vmatprep.subr.bf16.mxu0 0
        %2148 = vmatpush1.bf16.xpose.msra.mxu0 0
        %2149 = vmatprep.mubr.bf16.mxu0 0
        %2150 = vmatmul.mubr.bf16.gmra.mrb[0].mxu0 %v2067
        %v2151 = vpop.f32.mrb[0].mxu0
        %v2152 = vadd.f32 0.0, %v2151
        %v2153 = vpop.f32.mrb[0].mxu0
        %v2154 = vpop.f32.mrb[0].mxu0
        %v2155 = vpop.f32.mrb[0].mxu0
        %2156 = vdwg.mxu0
        %2157 = vst [vmem:[#allocation5 + $0x2] sm:$0x1] %v2152
        %s2158 = scalar_lea.vmem %s747, 192 [#allocation21]
        %v2159 = vld [vmem:[%s2158] sm:$0xf]
        %v2160 = vld [vmem:[%s2158 + $0x4] sm:$0xf]
        %v2161 = vld [vmem:[%s2158 + $0x8] sm:$0xf]
        %v2162 = vld [vmem:[%s2158 + $0xc] sm:$0xf]
        %v2163 = vld [vmem:[%s2158 + $0x10] sm:$0xf]
        %v2164 = vld [vmem:[%s2158 + $0x14] sm:$0xf]
        %v2165 = vld [vmem:[%s2158 + $0x18] sm:$0xf]
        %v2166 = vld [vmem:[%s2158 + $0x1c] sm:$0xf]
        %v2167 = vld [vmem:[%s2158 + $0x20] sm:$0xf]
        %v2168 = vld [vmem:[%s2158 + $0x24] sm:$0xf]
        %v2169 = vld [vmem:[%s2158 + $0x28] sm:$0xf]
        %v2170 = vld [vmem:[%s2158 + $0x2c] sm:$0xf]
        %v2171 = vld [vmem:[%s2158 + $0x30] sm:$0xf]
        %v2172 = vld [vmem:[%s2158 + $0x34] sm:$0xf]
        %v2173 = vld [vmem:[%s2158 + $0x38] sm:$0xf]
        %v2174 = vld [vmem:[%s2158 + $0x3c] sm:$0xf]
        %v2175 = vrot.slane %v1957, 1
        %v2193 = vunpack.c.l.b16 %v2159
        %v2194 = vunpack.c.l.b16 %v2160
        %v2195 = vunpack.c.l.b16 %v2161
        %v2196 = vunpack.c.l.b16 %v2162
        %v2197 = vunpack.c.l.b16 %v2163
        %v2198 = vunpack.c.l.b16 %v2164
        %v2199 = vunpack.c.l.b16 %v2165
        %v2200 = vunpack.c.l.b16 %v2166
        %v2201 = vunpack.c.l.b16 %v2167
        %v2202 = vunpack.c.l.b16 %v2168
        %v2203 = vunpack.c.l.b16 %v2169
        %v2204 = vunpack.c.l.b16 %v2170
        %v2205 = vunpack.c.l.b16 %v2171
        %v2206 = vunpack.c.l.b16 %v2172
        %v2207 = vunpack.c.l.b16 %v2173
        %v2208 = vunpack.c.l.b16 %v2174
        %v2209 = vpack.c.b16 %v2194, %v2193
        %v2210 = vpack.c.b16 %v2196, %v2195
        %v2211 = vpack.c.b16 %v2198, %v2197
        %v2212 = vpack.c.b16 %v2200, %v2199
        %v2213 = vpack.c.b16 %v2202, %v2201
        %v2214 = vpack.c.b16 %v2204, %v2203
        %v2215 = vpack.c.b16 %v2206, %v2205
        %v2216 = vpack.c.b16 %v2208, %v2207
        %2225 = vmatprep.subr.bf16.mxu0 0
        %2226 = vmatpush1.bf16.xpose.msra.mxu0 %v2209
        %2227 = vmatprep.subr.bf16.mxu0 0
        %2228 = vmatpush1.bf16.xpose.msra.mxu0 %v2210
        %2229 = vmatprep.subr.bf16.mxu0 0
        %2230 = vmatpush1.bf16.xpose.msra.mxu0 %v2211
        %2231 = vmatprep.subr.bf16.mxu0 0
        %2232 = vmatpush1.bf16.xpose.msra.mxu0 %v2212
        %2233 = vmatprep.subr.bf16.mxu0 0
        %2234 = vmatpush1.bf16.xpose.msra.mxu0 %v2213
        %2235 = vmatprep.subr.bf16.mxu0 0
        %2236 = vmatpush1.bf16.xpose.msra.mxu0 %v2214
        %2237 = vmatprep.subr.bf16.mxu0 0
        %2238 = vmatpush1.bf16.xpose.msra.mxu0 %v2215
        %2239 = vmatprep.subr.bf16.mxu0 0
        %2240 = vmatpush1.bf16.xpose.msra.mxu0 %v2216
        %2241 = vmatprep.subr.bf16.mxu0 0
        %2242 = vmatpush1.bf16.xpose.msra.mxu0 0
        %2243 = vmatprep.subr.bf16.mxu0 0
        %2244 = vmatpush1.bf16.xpose.msra.mxu0 0
        %2245 = vmatprep.subr.bf16.mxu0 0
        %2246 = vmatpush1.bf16.xpose.msra.mxu0 0
        %2247 = vmatprep.subr.bf16.mxu0 0
        %2248 = vmatpush1.bf16.xpose.msra.mxu0 0
        %2249 = vmatprep.subr.bf16.mxu0 0
        %2250 = vmatpush1.bf16.xpose.msra.mxu0 0
        %2251 = vmatprep.subr.bf16.mxu0 0
        %2252 = vmatpush1.bf16.xpose.msra.mxu0 0
        %2253 = vmatprep.subr.bf16.mxu0 0
        %2254 = vmatpush1.bf16.xpose.msra.mxu0 0
        %2255 = vmatprep.subr.bf16.mxu0 0
        %2256 = vmatpush1.bf16.xpose.msra.mxu0 0
        %2257 = vmatprep.mubr.bf16.mxu0 0
        %2258 = vmatmul.mubr.bf16.gmra.mrb[0].mxu0 %v2175
        %v2259 = vpop.f32.mrb[0].mxu0
        %v2260 = vadd.f32 0.0, %v2259
        %v2261 = vpop.f32.mrb[0].mxu0
        %v2262 = vpop.f32.mrb[0].mxu0
        %v2263 = vpop.f32.mrb[0].mxu0
        %2264 = vdwg.mxu0
        %2265 = vst [vmem:[#allocation5 + $0x3] sm:$0x1] %v2260
        %s2266 = scalar_lea.vmem %s747, 256 [#allocation21]
        %v2267 = vld [vmem:[%s2266] sm:$0xf]
        %v2268 = vld [vmem:[%s2266 + $0x4] sm:$0xf]
        %v2269 = vld [vmem:[%s2266 + $0x8] sm:$0xf]
        %v2270 = vld [vmem:[%s2266 + $0xc] sm:$0xf]
        %v2271 = vld [vmem:[%s2266 + $0x10] sm:$0xf]
        %v2272 = vld [vmem:[%s2266 + $0x14] sm:$0xf]
        %v2273 = vld [vmem:[%s2266 + $0x18] sm:$0xf]
        %v2274 = vld [vmem:[%s2266 + $0x1c] sm:$0xf]
        %v2275 = vld [vmem:[%s2266 + $0x20] sm:$0xf]
        %v2276 = vld [vmem:[%s2266 + $0x24] sm:$0xf]
        %v2277 = vld [vmem:[%s2266 + $0x28] sm:$0xf]
        %v2278 = vld [vmem:[%s2266 + $0x2c] sm:$0xf]
        %v2279 = vld [vmem:[%s2266 + $0x30] sm:$0xf]
        %v2280 = vld [vmem:[%s2266 + $0x34] sm:$0xf]
        %v2281 = vld [vmem:[%s2266 + $0x38] sm:$0xf]
        %v2282 = vld [vmem:[%s2266 + $0x3c] sm:$0xf]
        %v2283 = vrot.slane %v1833, 2
        %v2301 = vunpack.c.l.b16 %v2267
        %v2302 = vunpack.c.l.b16 %v2268
        %v2303 = vunpack.c.l.b16 %v2269
        %v2304 = vunpack.c.l.b16 %v2270
        %v2305 = vunpack.c.l.b16 %v2271
        %v2306 = vunpack.c.l.b16 %v2272
        %v2307 = vunpack.c.l.b16 %v2273
        %v2308 = vunpack.c.l.b16 %v2274
        %v2309 = vunpack.c.l.b16 %v2275
        %v2310 = vunpack.c.l.b16 %v2276
        %v2311 = vunpack.c.l.b16 %v2277
        %v2312 = vunpack.c.l.b16 %v2278
        %v2313 = vunpack.c.l.b16 %v2279
        %v2314 = vunpack.c.l.b16 %v2280
        %v2315 = vunpack.c.l.b16 %v2281
        %v2316 = vunpack.c.l.b16 %v2282
        %v2317 = vpack.c.b16 %v2302, %v2301
        %v2318 = vpack.c.b16 %v2304, %v2303
        %v2319 = vpack.c.b16 %v2306, %v2305
        %v2320 = vpack.c.b16 %v2308, %v2307
        %v2321 = vpack.c.b16 %v2310, %v2309
        %v2322 = vpack.c.b16 %v2312, %v2311
        %v2323 = vpack.c.b16 %v2314, %v2313
        %v2324 = vpack.c.b16 %v2316, %v2315
        %2333 = vmatprep.subr.bf16.mxu0 0
        %2334 = vmatpush1.bf16.xpose.msra.mxu0 %v2317
        %2335 = vmatprep.subr.bf16.mxu0 0
        %2336 = vmatpush1.bf16.xpose.msra.mxu0 %v2318
        %2337 = vmatprep.subr.bf16.mxu0 0
        %2338 = vmatpush1.bf16.xpose.msra.mxu0 %v2319
        %2339 = vmatprep.subr.bf16.mxu0 0
        %2340 = vmatpush1.bf16.xpose.msra.mxu0 %v2320
        %2341 = vmatprep.subr.bf16.mxu0 0
        %2342 = vmatpush1.bf16.xpose.msra.mxu0 %v2321
        %2343 = vmatprep.subr.bf16.mxu0 0
        %2344 = vmatpush1.bf16.xpose.msra.mxu0 %v2322
        %2345 = vmatprep.subr.bf16.mxu0 0
        %2346 = vmatpush1.bf16.xpose.msra.mxu0 %v2323
        %2347 = vmatprep.subr.bf16.mxu0 0
        %2348 = vmatpush1.bf16.xpose.msra.mxu0 %v2324
        %2349 = vmatprep.subr.bf16.mxu0 0
        %2350 = vmatpush1.bf16.xpose.msra.mxu0 0
        %2351 = vmatprep.subr.bf16.mxu0 0
        %2352 = vmatpush1.bf16.xpose.msra.mxu0 0
        %2353 = vmatprep.subr.bf16.mxu0 0
        %2354 = vmatpush1.bf16.xpose.msra.mxu0 0
        %2355 = vmatprep.subr.bf16.mxu0 0
        %2356 = vmatpush1.bf16.xpose.msra.mxu0 0
        %2357 = vmatprep.subr.bf16.mxu0 0
        %2358 = vmatpush1.bf16.xpose.msra.mxu0 0
        %2359 = vmatprep.subr.bf16.mxu0 0
        %2360 = vmatpush1.bf16.xpose.msra.mxu0 0
        %2361 = vmatprep.subr.bf16.mxu0 0
        %2362 = vmatpush1.bf16.xpose.msra.mxu0 0
        %2363 = vmatprep.subr.bf16.mxu0 0
        %2364 = vmatpush1.bf16.xpose.msra.mxu0 0
        %2365 = vmatprep.mubr.bf16.mxu0 0
        %2366 = vmatmul.mubr.bf16.gmra.mrb[0].mxu0 %v2283
        %v2367 = vpop.f32.mrb[0].mxu0
        %v2368 = vadd.f32 0.0, %v2367
        %v2369 = vpop.f32.mrb[0].mxu0
        %v2370 = vpop.f32.mrb[0].mxu0
        %v2371 = vpop.f32.mrb[0].mxu0
        %2372 = vdwg.mxu0
        %2373 = vst [vmem:[#allocation5 + $0x4] sm:$0x1] %v2368
        %s2374 = scalar_lea.vmem %s747, 320 [#allocation21]
        %v2375 = vld [vmem:[%s2374] sm:$0xf]
        %v2376 = vld [vmem:[%s2374 + $0x4] sm:$0xf]
        %v2377 = vld [vmem:[%s2374 + $0x8] sm:$0xf]
        %v2378 = vld [vmem:[%s2374 + $0xc] sm:$0xf]
        %v2379 = vld [vmem:[%s2374 + $0x10] sm:$0xf]
        %v2380 = vld [vmem:[%s2374 + $0x14] sm:$0xf]
        %v2381 = vld [vmem:[%s2374 + $0x18] sm:$0xf]
        %v2382 = vld [vmem:[%s2374 + $0x1c] sm:$0xf]
        %v2383 = vld [vmem:[%s2374 + $0x20] sm:$0xf]
        %v2384 = vld [vmem:[%s2374 + $0x24] sm:$0xf]
        %v2385 = vld [vmem:[%s2374 + $0x28] sm:$0xf]
        %v2386 = vld [vmem:[%s2374 + $0x2c] sm:$0xf]
        %v2387 = vld [vmem:[%s2374 + $0x30] sm:$0xf]
        %v2388 = vld [vmem:[%s2374 + $0x34] sm:$0xf]
        %v2389 = vld [vmem:[%s2374 + $0x38] sm:$0xf]
        %v2390 = vld [vmem:[%s2374 + $0x3c] sm:$0xf]
        %v2391 = vrot.slane %v1957, 2
        %v2409 = vunpack.c.l.b16 %v2375
        %v2410 = vunpack.c.l.b16 %v2376
        %v2411 = vunpack.c.l.b16 %v2377
        %v2412 = vunpack.c.l.b16 %v2378
        %v2413 = vunpack.c.l.b16 %v2379
        %v2414 = vunpack.c.l.b16 %v2380
        %v2415 = vunpack.c.l.b16 %v2381
        %v2416 = vunpack.c.l.b16 %v2382
        %v2417 = vunpack.c.l.b16 %v2383
        %v2418 = vunpack.c.l.b16 %v2384
        %v2419 = vunpack.c.l.b16 %v2385
        %v2420 = vunpack.c.l.b16 %v2386
        %v2421 = vunpack.c.l.b16 %v2387
        %v2422 = vunpack.c.l.b16 %v2388
        %v2423 = vunpack.c.l.b16 %v2389
        %v2424 = vunpack.c.l.b16 %v2390
        %v2425 = vpack.c.b16 %v2410, %v2409
        %v2426 = vpack.c.b16 %v2412, %v2411
        %v2427 = vpack.c.b16 %v2414, %v2413
        %v2428 = vpack.c.b16 %v2416, %v2415
        %v2429 = vpack.c.b16 %v2418, %v2417
        %v2430 = vpack.c.b16 %v2420, %v2419
        %v2431 = vpack.c.b16 %v2422, %v2421
        %v2432 = vpack.c.b16 %v2424, %v2423
        %2441 = vmatprep.subr.bf16.mxu0 0
        %2442 = vmatpush1.bf16.xpose.msra.mxu0 %v2425
        %2443 = vmatprep.subr.bf16.mxu0 0
        %2444 = vmatpush1.bf16.xpose.msra.mxu0 %v2426
        %2445 = vmatprep.subr.bf16.mxu0 0
        %2446 = vmatpush1.bf16.xpose.msra.mxu0 %v2427
        %2447 = vmatprep.subr.bf16.mxu0 0
        %2448 = vmatpush1.bf16.xpose.msra.mxu0 %v2428
        %2449 = vmatprep.subr.bf16.mxu0 0
        %2450 = vmatpush1.bf16.xpose.msra.mxu0 %v2429
        %2451 = vmatprep.subr.bf16.mxu0 0
        %2452 = vmatpush1.bf16.xpose.msra.mxu0 %v2430
        %2453 = vmatprep.subr.bf16.mxu0 0
        %2454 = vmatpush1.bf16.xpose.msra.mxu0 %v2431
        %2455 = vmatprep.subr.bf16.mxu0 0
        %2456 = vmatpush1.bf16.xpose.msra.mxu0 %v2432
        %2457 = vmatprep.subr.bf16.mxu0 0
        %2458 = vmatpush1.bf16.xpose.msra.mxu0 0
        %2459 = vmatprep.subr.bf16.mxu0 0
        %2460 = vmatpush1.bf16.xpose.msra.mxu0 0
        %2461 = vmatprep.subr.bf16.mxu0 0
        %2462 = vmatpush1.bf16.xpose.msra.mxu0 0
        %2463 = vmatprep.subr.bf16.mxu0 0
        %2464 = vmatpush1.bf16.xpose.msra.mxu0 0
        %2465 = vmatprep.subr.bf16.mxu0 0
        %2466 = vmatpush1.bf16.xpose.msra.mxu0 0
        %2467 = vmatprep.subr.bf16.mxu0 0
        %2468 = vmatpush1.bf16.xpose.msra.mxu0 0
        %2469 = vmatprep.subr.bf16.mxu0 0
        %2470 = vmatpush1.bf16.xpose.msra.mxu0 0
        %2471 = vmatprep.subr.bf16.mxu0 0
        %2472 = vmatpush1.bf16.xpose.msra.mxu0 0
        %2473 = vmatprep.mubr.bf16.mxu0 0
        %2474 = vmatmul.mubr.bf16.gmra.mrb[0].mxu0 %v2391
        %v2475 = vpop.f32.mrb[0].mxu0
        %v2476 = vadd.f32 0.0, %v2475
        %v2477 = vpop.f32.mrb[0].mxu0
        %v2478 = vpop.f32.mrb[0].mxu0
        %v2479 = vpop.f32.mrb[0].mxu0
        %2480 = vdwg.mxu0
        %2481 = vst [vmem:[#allocation5 + $0x5] sm:$0x1] %v2476
        %s2482 = scalar_lea.vmem %s747, 384 [#allocation21]
        %v2483 = vld [vmem:[%s2482] sm:$0xf]
        %v2484 = vld [vmem:[%s2482 + $0x4] sm:$0xf]
        %v2485 = vld [vmem:[%s2482 + $0x8] sm:$0xf]
        %v2486 = vld [vmem:[%s2482 + $0xc] sm:$0xf]
        %v2487 = vld [vmem:[%s2482 + $0x10] sm:$0xf]
        %v2488 = vld [vmem:[%s2482 + $0x14] sm:$0xf]
        %v2489 = vld [vmem:[%s2482 + $0x18] sm:$0xf]
        %v2490 = vld [vmem:[%s2482 + $0x1c] sm:$0xf]
        %v2491 = vld [vmem:[%s2482 + $0x20] sm:$0xf]
        %v2492 = vld [vmem:[%s2482 + $0x24] sm:$0xf]
        %v2493 = vld [vmem:[%s2482 + $0x28] sm:$0xf]
        %v2494 = vld [vmem:[%s2482 + $0x2c] sm:$0xf]
        %v2495 = vld [vmem:[%s2482 + $0x30] sm:$0xf]
        %v2496 = vld [vmem:[%s2482 + $0x34] sm:$0xf]
        %v2497 = vld [vmem:[%s2482 + $0x38] sm:$0xf]
        %v2498 = vld [vmem:[%s2482 + $0x3c] sm:$0xf]
        %v2499 = vrot.slane %v1833, 3
        %v2517 = vunpack.c.l.b16 %v2483
        %v2518 = vunpack.c.l.b16 %v2484
        %v2519 = vunpack.c.l.b16 %v2485
        %v2520 = vunpack.c.l.b16 %v2486
        %v2521 = vunpack.c.l.b16 %v2487
        %v2522 = vunpack.c.l.b16 %v2488
        %v2523 = vunpack.c.l.b16 %v2489
        %v2524 = vunpack.c.l.b16 %v2490
        %v2525 = vunpack.c.l.b16 %v2491
        %v2526 = vunpack.c.l.b16 %v2492
        %v2527 = vunpack.c.l.b16 %v2493
        %v2528 = vunpack.c.l.b16 %v2494
        %v2529 = vunpack.c.l.b16 %v2495
        %v2530 = vunpack.c.l.b16 %v2496
        %v2531 = vunpack.c.l.b16 %v2497
        %v2532 = vunpack.c.l.b16 %v2498
        %v2533 = vpack.c.b16 %v2518, %v2517
        %v2534 = vpack.c.b16 %v2520, %v2519
        %v2535 = vpack.c.b16 %v2522, %v2521
        %v2536 = vpack.c.b16 %v2524, %v2523
        %v2537 = vpack.c.b16 %v2526, %v2525
        %v2538 = vpack.c.b16 %v2528, %v2527
        %v2539 = vpack.c.b16 %v2530, %v2529
        %v2540 = vpack.c.b16 %v2532, %v2531
        %2549 = vmatprep.subr.bf16.mxu0 0
        %2550 = vmatpush1.bf16.xpose.msra.mxu0 %v2533
        %2551 = vmatprep.subr.bf16.mxu0 0
        %2552 = vmatpush1.bf16.xpose.msra.mxu0 %v2534
        %2553 = vmatprep.subr.bf16.mxu0 0
        %2554 = vmatpush1.bf16.xpose.msra.mxu0 %v2535
        %2555 = vmatprep.subr.bf16.mxu0 0
        %2556 = vmatpush1.bf16.xpose.msra.mxu0 %v2536
        %2557 = vmatprep.subr.bf16.mxu0 0
        %2558 = vmatpush1.bf16.xpose.msra.mxu0 %v2537
        %2559 = vmatprep.subr.bf16.mxu0 0
        %2560 = vmatpush1.bf16.xpose.msra.mxu0 %v2538
        %2561 = vmatprep.subr.bf16.mxu0 0
        %2562 = vmatpush1.bf16.xpose.msra.mxu0 %v2539
        %2563 = vmatprep.subr.bf16.mxu0 0
        %2564 = vmatpush1.bf16.xpose.msra.mxu0 %v2540
        %2565 = vmatprep.subr.bf16.mxu0 0
        %2566 = vmatpush1.bf16.xpose.msra.mxu0 0
        %2567 = vmatprep.subr.bf16.mxu0 0
        %2568 = vmatpush1.bf16.xpose.msra.mxu0 0
        %2569 = vmatprep.subr.bf16.mxu0 0
        %2570 = vmatpush1.bf16.xpose.msra.mxu0 0
        %2571 = vmatprep.subr.bf16.mxu0 0
        %2572 = vmatpush1.bf16.xpose.msra.mxu0 0
        %2573 = vmatprep.subr.bf16.mxu0 0
        %2574 = vmatpush1.bf16.xpose.msra.mxu0 0
        %2575 = vmatprep.subr.bf16.mxu0 0
        %2576 = vmatpush1.bf16.xpose.msra.mxu0 0
        %2577 = vmatprep.subr.bf16.mxu0 0
        %2578 = vmatpush1.bf16.xpose.msra.mxu0 0
        %2579 = vmatprep.subr.bf16.mxu0 0
        %2580 = vmatpush1.bf16.xpose.msra.mxu0 0
        %2581 = vmatprep.mubr.bf16.mxu0 0
        %2582 = vmatmul.mubr.bf16.gmra.mrb[0].mxu0 %v2499
        %v2583 = vpop.f32.mrb[0].mxu0
        %v2584 = vadd.f32 0.0, %v2583
        %v2585 = vpop.f32.mrb[0].mxu0
        %v2586 = vpop.f32.mrb[0].mxu0
        %v2587 = vpop.f32.mrb[0].mxu0
        %2588 = vdwg.mxu0
        %2589 = vst [vmem:[#allocation5 + $0x6] sm:$0x1] %v2584
        %s2590 = scalar_lea.vmem %s747, 448 [#allocation21]
        %v2591 = vld [vmem:[%s2590] sm:$0xf]
        %v2592 = vld [vmem:[%s2590 + $0x4] sm:$0xf]
        %v2593 = vld [vmem:[%s2590 + $0x8] sm:$0xf]
        %v2594 = vld [vmem:[%s2590 + $0xc] sm:$0xf]
        %v2595 = vld [vmem:[%s2590 + $0x10] sm:$0xf]
        %v2596 = vld [vmem:[%s2590 + $0x14] sm:$0xf]
        %v2597 = vld [vmem:[%s2590 + $0x18] sm:$0xf]
        %v2598 = vld [vmem:[%s2590 + $0x1c] sm:$0xf]
        %v2599 = vld [vmem:[%s2590 + $0x20] sm:$0xf]
        %v2600 = vld [vmem:[%s2590 + $0x24] sm:$0xf]
        %v2601 = vld [vmem:[%s2590 + $0x28] sm:$0xf]
        %v2602 = vld [vmem:[%s2590 + $0x2c] sm:$0xf]
        %v2603 = vld [vmem:[%s2590 + $0x30] sm:$0xf]
        %v2604 = vld [vmem:[%s2590 + $0x34] sm:$0xf]
        %v2605 = vld [vmem:[%s2590 + $0x38] sm:$0xf]
        %v2606 = vld [vmem:[%s2590 + $0x3c] sm:$0xf]
        %v2607 = vrot.slane %v1957, 3
        %v2625 = vunpack.c.l.b16 %v2591
        %v2626 = vunpack.c.l.b16 %v2592
        %v2627 = vunpack.c.l.b16 %v2593
        %v2628 = vunpack.c.l.b16 %v2594
        %v2629 = vunpack.c.l.b16 %v2595
        %v2630 = vunpack.c.l.b16 %v2596
        %v2631 = vunpack.c.l.b16 %v2597
        %v2632 = vunpack.c.l.b16 %v2598
        %v2633 = vunpack.c.l.b16 %v2599
        %v2634 = vunpack.c.l.b16 %v2600
        %v2635 = vunpack.c.l.b16 %v2601
        %v2636 = vunpack.c.l.b16 %v2602
        %v2637 = vunpack.c.l.b16 %v2603
        %v2638 = vunpack.c.l.b16 %v2604
        %v2639 = vunpack.c.l.b16 %v2605
        %v2640 = vunpack.c.l.b16 %v2606
        %v2641 = vpack.c.b16 %v2626, %v2625
        %v2642 = vpack.c.b16 %v2628, %v2627
        %v2643 = vpack.c.b16 %v2630, %v2629
        %v2644 = vpack.c.b16 %v2632, %v2631
        %v2645 = vpack.c.b16 %v2634, %v2633
        %v2646 = vpack.c.b16 %v2636, %v2635
        %v2647 = vpack.c.b16 %v2638, %v2637
        %v2648 = vpack.c.b16 %v2640, %v2639
        %2657 = vmatprep.subr.bf16.mxu0 0
        %2658 = vmatpush1.bf16.xpose.msra.mxu0 %v2641
        %2659 = vmatprep.subr.bf16.mxu0 0
        %2660 = vmatpush1.bf16.xpose.msra.mxu0 %v2642
        %2661 = vmatprep.subr.bf16.mxu0 0
        %2662 = vmatpush1.bf16.xpose.msra.mxu0 %v2643
        %2663 = vmatprep.subr.bf16.mxu0 0
        %2664 = vmatpush1.bf16.xpose.msra.mxu0 %v2644
        %2665 = vmatprep.subr.bf16.mxu0 0
        %2666 = vmatpush1.bf16.xpose.msra.mxu0 %v2645
        %2667 = vmatprep.subr.bf16.mxu0 0
        %2668 = vmatpush1.bf16.xpose.msra.mxu0 %v2646
        %2669 = vmatprep.subr.bf16.mxu0 0
        %2670 = vmatpush1.bf16.xpose.msra.mxu0 %v2647
        %2671 = vmatprep.subr.bf16.mxu0 0
        %2672 = vmatpush1.bf16.xpose.msra.mxu0 %v2648
        %2673 = vmatprep.subr.bf16.mxu0 0
        %2674 = vmatpush1.bf16.xpose.msra.mxu0 0
        %2675 = vmatprep.subr.bf16.mxu0 0
        %2676 = vmatpush1.bf16.xpose.msra.mxu0 0
        %2677 = vmatprep.subr.bf16.mxu0 0
        %2678 = vmatpush1.bf16.xpose.msra.mxu0 0
        %2679 = vmatprep.subr.bf16.mxu0 0
        %2680 = vmatpush1.bf16.xpose.msra.mxu0 0
        %2681 = vmatprep.subr.bf16.mxu0 0
        %2682 = vmatpush1.bf16.xpose.msra.mxu0 0
        %2683 = vmatprep.subr.bf16.mxu0 0
        %2684 = vmatpush1.bf16.xpose.msra.mxu0 0
        %2685 = vmatprep.subr.bf16.mxu0 0
        %2686 = vmatpush1.bf16.xpose.msra.mxu0 0
        %2687 = vmatprep.subr.bf16.mxu0 0
        %2688 = vmatpush1.bf16.xpose.msra.mxu0 0
        %2689 = vmatprep.mubr.bf16.mxu0 0
        %2690 = vmatmul.mubr.bf16.gmra.mrb[0].mxu0 %v2607
        %v2691 = vpop.f32.mrb[0].mxu0
        %v2692 = vadd.f32 0.0, %v2691
        %v2693 = vpop.f32.mrb[0].mxu0
        %v2694 = vpop.f32.mrb[0].mxu0
        %v2695 = vpop.f32.mrb[0].mxu0
        %2696 = vdwg.mxu0
        %2697 = vst [vmem:[#allocation5 + $0x7] sm:$0x1] %v2692
        %s2698 = scalar_lea.vmem %s747, 512 [#allocation21]
        %v2699 = vld [vmem:[%s2698] sm:$0xf]
        %v2700 = vld [vmem:[%s2698 + $0x4] sm:$0xf]
        %v2701 = vld [vmem:[%s2698 + $0x8] sm:$0xf]
        %v2702 = vld [vmem:[%s2698 + $0xc] sm:$0xf]
        %v2703 = vld [vmem:[%s2698 + $0x10] sm:$0xf]
        %v2704 = vld [vmem:[%s2698 + $0x14] sm:$0xf]
        %v2705 = vld [vmem:[%s2698 + $0x18] sm:$0xf]
        %v2706 = vld [vmem:[%s2698 + $0x1c] sm:$0xf]
        %v2707 = vld [vmem:[%s2698 + $0x20] sm:$0xf]
        %v2708 = vld [vmem:[%s2698 + $0x24] sm:$0xf]
        %v2709 = vld [vmem:[%s2698 + $0x28] sm:$0xf]
        %v2710 = vld [vmem:[%s2698 + $0x2c] sm:$0xf]
        %v2711 = vld [vmem:[%s2698 + $0x30] sm:$0xf]
        %v2712 = vld [vmem:[%s2698 + $0x34] sm:$0xf]
        %v2713 = vld [vmem:[%s2698 + $0x38] sm:$0xf]
        %v2714 = vld [vmem:[%s2698 + $0x3c] sm:$0xf]
        %v2715 = vrot.slane %v1833, 4
        %v2733 = vunpack.c.l.b16 %v2699
        %v2734 = vunpack.c.l.b16 %v2700
        %v2735 = vunpack.c.l.b16 %v2701
        %v2736 = vunpack.c.l.b16 %v2702
        %v2737 = vunpack.c.l.b16 %v2703
        %v2738 = vunpack.c.l.b16 %v2704
        %v2739 = vunpack.c.l.b16 %v2705
        %v2740 = vunpack.c.l.b16 %v2706
        %v2741 = vunpack.c.l.b16 %v2707
        %v2742 = vunpack.c.l.b16 %v2708
        %v2743 = vunpack.c.l.b16 %v2709
        %v2744 = vunpack.c.l.b16 %v2710
        %v2745 = vunpack.c.l.b16 %v2711
        %v2746 = vunpack.c.l.b16 %v2712
        %v2747 = vunpack.c.l.b16 %v2713
        %v2748 = vunpack.c.l.b16 %v2714
        %v2749 = vpack.c.b16 %v2734, %v2733
        %v2750 = vpack.c.b16 %v2736, %v2735
        %v2751 = vpack.c.b16 %v2738, %v2737
        %v2752 = vpack.c.b16 %v2740, %v2739
        %v2753 = vpack.c.b16 %v2742, %v2741
        %v2754 = vpack.c.b16 %v2744, %v2743
        %v2755 = vpack.c.b16 %v2746, %v2745
        %v2756 = vpack.c.b16 %v2748, %v2747
        %2765 = vmatprep.subr.bf16.mxu0 0
        %2766 = vmatpush1.bf16.xpose.msra.mxu0 %v2749
        %2767 = vmatprep.subr.bf16.mxu0 0
        %2768 = vmatpush1.bf16.xpose.msra.mxu0 %v2750
        %2769 = vmatprep.subr.bf16.mxu0 0
        %2770 = vmatpush1.bf16.xpose.msra.mxu0 %v2751
        %2771 = vmatprep.subr.bf16.mxu0 0
        %2772 = vmatpush1.bf16.xpose.msra.mxu0 %v2752
        %2773 = vmatprep.subr.bf16.mxu0 0
        %2774 = vmatpush1.bf16.xpose.msra.mxu0 %v2753
        %2775 = vmatprep.subr.bf16.mxu0 0
        %2776 = vmatpush1.bf16.xpose.msra.mxu0 %v2754
        %2777 = vmatprep.subr.bf16.mxu0 0
        %2778 = vmatpush1.bf16.xpose.msra.mxu0 %v2755
        %2779 = vmatprep.subr.bf16.mxu0 0
        %2780 = vmatpush1.bf16.xpose.msra.mxu0 %v2756
        %2781 = vmatprep.subr.bf16.mxu0 0
        %2782 = vmatpush1.bf16.xpose.msra.mxu0 0
        %2783 = vmatprep.subr.bf16.mxu0 0
        %2784 = vmatpush1.bf16.xpose.msra.mxu0 0
        %2785 = vmatprep.subr.bf16.mxu0 0
        %2786 = vmatpush1.bf16.xpose.msra.mxu0 0
        %2787 = vmatprep.subr.bf16.mxu0 0
        %2788 = vmatpush1.bf16.xpose.msra.mxu0 0
        %2789 = vmatprep.subr.bf16.mxu0 0
        %2790 = vmatpush1.bf16.xpose.msra.mxu0 0
        %2791 = vmatprep.subr.bf16.mxu0 0
        %2792 = vmatpush1.bf16.xpose.msra.mxu0 0
        %2793 = vmatprep.subr.bf16.mxu0 0
        %2794 = vmatpush1.bf16.xpose.msra.mxu0 0
        %2795 = vmatprep.subr.bf16.mxu0 0
        %2796 = vmatpush1.bf16.xpose.msra.mxu0 0
        %2797 = vmatprep.mubr.bf16.mxu0 0
        %2798 = vmatmul.mubr.bf16.gmra.mrb[0].mxu0 %v2715
        %v2799 = vpop.f32.mrb[0].mxu0
        %v2800 = vadd.f32 0.0, %v2799
        %v2801 = vpop.f32.mrb[0].mxu0
        %v2802 = vpop.f32.mrb[0].mxu0
        %v2803 = vpop.f32.mrb[0].mxu0
        %2804 = vdwg.mxu0
        %2805 = vst [vmem:[#allocation5 + $0x8] sm:$0x1] %v2800
        %s2806 = scalar_lea.vmem %s747, 576 [#allocation21]
        %v2807 = vld [vmem:[%s2806] sm:$0xf]
        %v2808 = vld [vmem:[%s2806 + $0x4] sm:$0xf]
        %v2809 = vld [vmem:[%s2806 + $0x8] sm:$0xf]
        %v2810 = vld [vmem:[%s2806 + $0xc] sm:$0xf]
        %v2811 = vld [vmem:[%s2806 + $0x10] sm:$0xf]
        %v2812 = vld [vmem:[%s2806 + $0x14] sm:$0xf]
        %v2813 = vld [vmem:[%s2806 + $0x18] sm:$0xf]
        %v2814 = vld [vmem:[%s2806 + $0x1c] sm:$0xf]
        %v2815 = vld [vmem:[%s2806 + $0x20] sm:$0xf]
        %v2816 = vld [vmem:[%s2806 + $0x24] sm:$0xf]
        %v2817 = vld [vmem:[%s2806 + $0x28] sm:$0xf]
        %v2818 = vld [vmem:[%s2806 + $0x2c] sm:$0xf]
        %v2819 = vld [vmem:[%s2806 + $0x30] sm:$0xf]
        %v2820 = vld [vmem:[%s2806 + $0x34] sm:$0xf]
        %v2821 = vld [vmem:[%s2806 + $0x38] sm:$0xf]
        %v2822 = vld [vmem:[%s2806 + $0x3c] sm:$0xf]
        %v2823 = vrot.slane %v1957, 4
        %v2841 = vunpack.c.l.b16 %v2807
        %v2842 = vunpack.c.l.b16 %v2808
        %v2843 = vunpack.c.l.b16 %v2809
        %v2844 = vunpack.c.l.b16 %v2810
        %v2845 = vunpack.c.l.b16 %v2811
        %v2846 = vunpack.c.l.b16 %v2812
        %v2847 = vunpack.c.l.b16 %v2813
        %v2848 = vunpack.c.l.b16 %v2814
        %v2849 = vunpack.c.l.b16 %v2815
        %v2850 = vunpack.c.l.b16 %v2816
        %v2851 = vunpack.c.l.b16 %v2817
        %v2852 = vunpack.c.l.b16 %v2818
        %v2853 = vunpack.c.l.b16 %v2819
        %v2854 = vunpack.c.l.b16 %v2820
        %v2855 = vunpack.c.l.b16 %v2821
        %v2856 = vunpack.c.l.b16 %v2822
        %v2857 = vpack.c.b16 %v2842, %v2841
        %v2858 = vpack.c.b16 %v2844, %v2843
        %v2859 = vpack.c.b16 %v2846, %v2845
        %v2860 = vpack.c.b16 %v2848, %v2847
        %v2861 = vpack.c.b16 %v2850, %v2849
        %v2862 = vpack.c.b16 %v2852, %v2851
        %v2863 = vpack.c.b16 %v2854, %v2853
        %v2864 = vpack.c.b16 %v2856, %v2855
        %2873 = vmatprep.subr.bf16.mxu0 0
        %2874 = vmatpush1.bf16.xpose.msra.mxu0 %v2857
        %2875 = vmatprep.subr.bf16.mxu0 0
        %2876 = vmatpush1.bf16.xpose.msra.mxu0 %v2858
        %2877 = vmatprep.subr.bf16.mxu0 0
        %2878 = vmatpush1.bf16.xpose.msra.mxu0 %v2859
        %2879 = vmatprep.subr.bf16.mxu0 0
        %2880 = vmatpush1.bf16.xpose.msra.mxu0 %v2860
        %2881 = vmatprep.subr.bf16.mxu0 0
        %2882 = vmatpush1.bf16.xpose.msra.mxu0 %v2861
        %2883 = vmatprep.subr.bf16.mxu0 0
        %2884 = vmatpush1.bf16.xpose.msra.mxu0 %v2862
        %2885 = vmatprep.subr.bf16.mxu0 0
        %2886 = vmatpush1.bf16.xpose.msra.mxu0 %v2863
        %2887 = vmatprep.subr.bf16.mxu0 0
        %2888 = vmatpush1.bf16.xpose.msra.mxu0 %v2864
        %2889 = vmatprep.subr.bf16.mxu0 0
        %2890 = vmatpush1.bf16.xpose.msra.mxu0 0
        %2891 = vmatprep.subr.bf16.mxu0 0
        %2892 = vmatpush1.bf16.xpose.msra.mxu0 0
        %2893 = vmatprep.subr.bf16.mxu0 0
        %2894 = vmatpush1.bf16.xpose.msra.mxu0 0
        %2895 = vmatprep.subr.bf16.mxu0 0
        %2896 = vmatpush1.bf16.xpose.msra.mxu0 0
        %2897 = vmatprep.subr.bf16.mxu0 0
        %2898 = vmatpush1.bf16.xpose.msra.mxu0 0
        %2899 = vmatprep.subr.bf16.mxu0 0
        %2900 = vmatpush1.bf16.xpose.msra.mxu0 0
        %2901 = vmatprep.subr.bf16.mxu0 0
        %2902 = vmatpush1.bf16.xpose.msra.mxu0 0
        %2903 = vmatprep.subr.bf16.mxu0 0
        %2904 = vmatpush1.bf16.xpose.msra.mxu0 0
        %2905 = vmatprep.mubr.bf16.mxu0 0
        %2906 = vmatmul.mubr.bf16.gmra.mrb[0].mxu0 %v2823
        %v2907 = vpop.f32.mrb[0].mxu0
        %v2908 = vadd.f32 0.0, %v2907
        %v2909 = vpop.f32.mrb[0].mxu0
        %v2910 = vpop.f32.mrb[0].mxu0
        %v2911 = vpop.f32.mrb[0].mxu0
        %2912 = vdwg.mxu0
        %2913 = vst [vmem:[#allocation5 + $0x9] sm:$0x1] %v2908
        %s2914 = scalar_lea.vmem %s747, 640 [#allocation21]
        %v2915 = vld [vmem:[%s2914] sm:$0xf]
        %v2916 = vld [vmem:[%s2914 + $0x4] sm:$0xf]
        %v2917 = vld [vmem:[%s2914 + $0x8] sm:$0xf]
        %v2918 = vld [vmem:[%s2914 + $0xc] sm:$0xf]
        %v2919 = vld [vmem:[%s2914 + $0x10] sm:$0xf]
        %v2920 = vld [vmem:[%s2914 + $0x14] sm:$0xf]
        %v2921 = vld [vmem:[%s2914 + $0x18] sm:$0xf]
        %v2922 = vld [vmem:[%s2914 + $0x1c] sm:$0xf]
        %v2923 = vld [vmem:[%s2914 + $0x20] sm:$0xf]
        %v2924 = vld [vmem:[%s2914 + $0x24] sm:$0xf]
        %v2925 = vld [vmem:[%s2914 + $0x28] sm:$0xf]
        %v2926 = vld [vmem:[%s2914 + $0x2c] sm:$0xf]
        %v2927 = vld [vmem:[%s2914 + $0x30] sm:$0xf]
        %v2928 = vld [vmem:[%s2914 + $0x34] sm:$0xf]
        %v2929 = vld [vmem:[%s2914 + $0x38] sm:$0xf]
        %v2930 = vld [vmem:[%s2914 + $0x3c] sm:$0xf]
        %v2931 = vrot.slane %v1833, 5
        %v2949 = vunpack.c.l.b16 %v2915
        %v2950 = vunpack.c.l.b16 %v2916
        %v2951 = vunpack.c.l.b16 %v2917
        %v2952 = vunpack.c.l.b16 %v2918
        %v2953 = vunpack.c.l.b16 %v2919
        %v2954 = vunpack.c.l.b16 %v2920
        %v2955 = vunpack.c.l.b16 %v2921
        %v2956 = vunpack.c.l.b16 %v2922
        %v2957 = vunpack.c.l.b16 %v2923
        %v2958 = vunpack.c.l.b16 %v2924
        %v2959 = vunpack.c.l.b16 %v2925
        %v2960 = vunpack.c.l.b16 %v2926
        %v2961 = vunpack.c.l.b16 %v2927
        %v2962 = vunpack.c.l.b16 %v2928
        %v2963 = vunpack.c.l.b16 %v2929
        %v2964 = vunpack.c.l.b16 %v2930
        %v2965 = vpack.c.b16 %v2950, %v2949
        %v2966 = vpack.c.b16 %v2952, %v2951
        %v2967 = vpack.c.b16 %v2954, %v2953
        %v2968 = vpack.c.b16 %v2956, %v2955
        %v2969 = vpack.c.b16 %v2958, %v2957
        %v2970 = vpack.c.b16 %v2960, %v2959
        %v2971 = vpack.c.b16 %v2962, %v2961
        %v2972 = vpack.c.b16 %v2964, %v2963
        %2981 = vmatprep.subr.bf16.mxu0 0
        %2982 = vmatpush1.bf16.xpose.msra.mxu0 %v2965
        %2983 = vmatprep.subr.bf16.mxu0 0
        %2984 = vmatpush1.bf16.xpose.msra.mxu0 %v2966
        %2985 = vmatprep.subr.bf16.mxu0 0
        %2986 = vmatpush1.bf16.xpose.msra.mxu0 %v2967
        %2987 = vmatprep.subr.bf16.mxu0 0
        %2988 = vmatpush1.bf16.xpose.msra.mxu0 %v2968
        %2989 = vmatprep.subr.bf16.mxu0 0
        %2990 = vmatpush1.bf16.xpose.msra.mxu0 %v2969
        %2991 = vmatprep.subr.bf16.mxu0 0
        %2992 = vmatpush1.bf16.xpose.msra.mxu0 %v2970
        %2993 = vmatprep.subr.bf16.mxu0 0
        %2994 = vmatpush1.bf16.xpose.msra.mxu0 %v2971
        %2995 = vmatprep.subr.bf16.mxu0 0
        %2996 = vmatpush1.bf16.xpose.msra.mxu0 %v2972
        %2997 = vmatprep.subr.bf16.mxu0 0
        %2998 = vmatpush1.bf16.xpose.msra.mxu0 0
        %2999 = vmatprep.subr.bf16.mxu0 0
        %3000 = vmatpush1.bf16.xpose.msra.mxu0 0
        %3001 = vmatprep.subr.bf16.mxu0 0
        %3002 = vmatpush1.bf16.xpose.msra.mxu0 0
        %3003 = vmatprep.subr.bf16.mxu0 0
        %3004 = vmatpush1.bf16.xpose.msra.mxu0 0
        %3005 = vmatprep.subr.bf16.mxu0 0
        %3006 = vmatpush1.bf16.xpose.msra.mxu0 0
        %3007 = vmatprep.subr.bf16.mxu0 0
        %3008 = vmatpush1.bf16.xpose.msra.mxu0 0
        %3009 = vmatprep.subr.bf16.mxu0 0
        %3010 = vmatpush1.bf16.xpose.msra.mxu0 0
        %3011 = vmatprep.subr.bf16.mxu0 0
        %3012 = vmatpush1.bf16.xpose.msra.mxu0 0
        %3013 = vmatprep.mubr.bf16.mxu0 0
        %3014 = vmatmul.mubr.bf16.gmra.mrb[0].mxu0 %v2931
        %v3015 = vpop.f32.mrb[0].mxu0
        %v3016 = vadd.f32 0.0, %v3015
        %v3017 = vpop.f32.mrb[0].mxu0
        %v3018 = vpop.f32.mrb[0].mxu0
        %v3019 = vpop.f32.mrb[0].mxu0
        %3020 = vdwg.mxu0
        %3021 = vst [vmem:[#allocation5 + $0xa] sm:$0x1] %v3016
        %s3022 = scalar_lea.vmem %s747, 704 [#allocation21]
        %v3023 = vld [vmem:[%s3022] sm:$0xf]
        %v3024 = vld [vmem:[%s3022 + $0x4] sm:$0xf]
        %v3025 = vld [vmem:[%s3022 + $0x8] sm:$0xf]
        %v3026 = vld [vmem:[%s3022 + $0xc] sm:$0xf]
        %v3027 = vld [vmem:[%s3022 + $0x10] sm:$0xf]
        %v3028 = vld [vmem:[%s3022 + $0x14] sm:$0xf]
        %v3029 = vld [vmem:[%s3022 + $0x18] sm:$0xf]
        %v3030 = vld [vmem:[%s3022 + $0x1c] sm:$0xf]
        %v3031 = vld [vmem:[%s3022 + $0x20] sm:$0xf]
        %v3032 = vld [vmem:[%s3022 + $0x24] sm:$0xf]
        %v3033 = vld [vmem:[%s3022 + $0x28] sm:$0xf]
        %v3034 = vld [vmem:[%s3022 + $0x2c] sm:$0xf]
        %v3035 = vld [vmem:[%s3022 + $0x30] sm:$0xf]
        %v3036 = vld [vmem:[%s3022 + $0x34] sm:$0xf]
        %v3037 = vld [vmem:[%s3022 + $0x38] sm:$0xf]
        %v3038 = vld [vmem:[%s3022 + $0x3c] sm:$0xf]
        %v3039 = vrot.slane %v1957, 5
        %v3057 = vunpack.c.l.b16 %v3023
        %v3058 = vunpack.c.l.b16 %v3024
        %v3059 = vunpack.c.l.b16 %v3025
        %v3060 = vunpack.c.l.b16 %v3026
        %v3061 = vunpack.c.l.b16 %v3027
        %v3062 = vunpack.c.l.b16 %v3028
        %v3063 = vunpack.c.l.b16 %v3029
        %v3064 = vunpack.c.l.b16 %v3030
        %v3065 = vunpack.c.l.b16 %v3031
        %v3066 = vunpack.c.l.b16 %v3032
        %v3067 = vunpack.c.l.b16 %v3033
        %v3068 = vunpack.c.l.b16 %v3034
        %v3069 = vunpack.c.l.b16 %v3035
        %v3070 = vunpack.c.l.b16 %v3036
        %v3071 = vunpack.c.l.b16 %v3037
        %v3072 = vunpack.c.l.b16 %v3038
        %v3073 = vpack.c.b16 %v3058, %v3057
        %v3074 = vpack.c.b16 %v3060, %v3059
        %v3075 = vpack.c.b16 %v3062, %v3061
        %v3076 = vpack.c.b16 %v3064, %v3063
        %v3077 = vpack.c.b16 %v3066, %v3065
        %v3078 = vpack.c.b16 %v3068, %v3067
        %v3079 = vpack.c.b16 %v3070, %v3069
        %v3080 = vpack.c.b16 %v3072, %v3071
        %3089 = vmatprep.subr.bf16.mxu0 0
        %3090 = vmatpush1.bf16.xpose.msra.mxu0 %v3073
        %3091 = vmatprep.subr.bf16.mxu0 0
        %3092 = vmatpush1.bf16.xpose.msra.mxu0 %v3074
        %3093 = vmatprep.subr.bf16.mxu0 0
        %3094 = vmatpush1.bf16.xpose.msra.mxu0 %v3075
        %3095 = vmatprep.subr.bf16.mxu0 0
        %3096 = vmatpush1.bf16.xpose.msra.mxu0 %v3076
        %3097 = vmatprep.subr.bf16.mxu0 0
        %3098 = vmatpush1.bf16.xpose.msra.mxu0 %v3077
        %3099 = vmatprep.subr.bf16.mxu0 0
        %3100 = vmatpush1.bf16.xpose.msra.mxu0 %v3078
        %3101 = vmatprep.subr.bf16.mxu0 0
        %3102 = vmatpush1.bf16.xpose.msra.mxu0 %v3079
        %3103 = vmatprep.subr.bf16.mxu0 0
        %3104 = vmatpush1.bf16.xpose.msra.mxu0 %v3080
        %3105 = vmatprep.subr.bf16.mxu0 0
        %3106 = vmatpush1.bf16.xpose.msra.mxu0 0
        %3107 = vmatprep.subr.bf16.mxu0 0
        %3108 = vmatpush1.bf16.xpose.msra.mxu0 0
        %3109 = vmatprep.subr.bf16.mxu0 0
        %3110 = vmatpush1.bf16.xpose.msra.mxu0 0
        %3111 = vmatprep.subr.bf16.mxu0 0
        %3112 = vmatpush1.bf16.xpose.msra.mxu0 0
        %3113 = vmatprep.subr.bf16.mxu0 0
        %3114 = vmatpush1.bf16.xpose.msra.mxu0 0
        %3115 = vmatprep.subr.bf16.mxu0 0
        %3116 = vmatpush1.bf16.xpose.msra.mxu0 0
        %3117 = vmatprep.subr.bf16.mxu0 0
        %3118 = vmatpush1.bf16.xpose.msra.mxu0 0
        %3119 = vmatprep.subr.bf16.mxu0 0
        %3120 = vmatpush1.bf16.xpose.msra.mxu0 0
        %3121 = vmatprep.mubr.bf16.mxu0 0
        %3122 = vmatmul.mubr.bf16.gmra.mrb[0].mxu0 %v3039
        %v3123 = vpop.f32.mrb[0].mxu0
        %v3124 = vadd.f32 0.0, %v3123
        %v3125 = vpop.f32.mrb[0].mxu0
        %v3126 = vpop.f32.mrb[0].mxu0
        %v3127 = vpop.f32.mrb[0].mxu0
        %3128 = vdwg.mxu0
        %3129 = vst [vmem:[#allocation5 + $0xb] sm:$0x1] %v3124
        %s3130 = scalar_lea.vmem %s747, 768 [#allocation21]
        %v3131 = vld [vmem:[%s3130] sm:$0xf]
        %v3132 = vld [vmem:[%s3130 + $0x4] sm:$0xf]
        %v3133 = vld [vmem:[%s3130 + $0x8] sm:$0xf]
        %v3134 = vld [vmem:[%s3130 + $0xc] sm:$0xf]
        %v3135 = vld [vmem:[%s3130 + $0x10] sm:$0xf]
        %v3136 = vld [vmem:[%s3130 + $0x14] sm:$0xf]
        %v3137 = vld [vmem:[%s3130 + $0x18] sm:$0xf]
        %v3138 = vld [vmem:[%s3130 + $0x1c] sm:$0xf]
        %v3139 = vld [vmem:[%s3130 + $0x20] sm:$0xf]
        %v3140 = vld [vmem:[%s3130 + $0x24] sm:$0xf]
        %v3141 = vld [vmem:[%s3130 + $0x28] sm:$0xf]
        %v3142 = vld [vmem:[%s3130 + $0x2c] sm:$0xf]
        %v3143 = vld [vmem:[%s3130 + $0x30] sm:$0xf]
        %v3144 = vld [vmem:[%s3130 + $0x34] sm:$0xf]
        %v3145 = vld [vmem:[%s3130 + $0x38] sm:$0xf]
        %v3146 = vld [vmem:[%s3130 + $0x3c] sm:$0xf]
        %v3147 = vrot.slane %v1833, 6
        %v3165 = vunpack.c.l.b16 %v3131
        %v3166 = vunpack.c.l.b16 %v3132
        %v3167 = vunpack.c.l.b16 %v3133
        %v3168 = vunpack.c.l.b16 %v3134
        %v3169 = vunpack.c.l.b16 %v3135
        %v3170 = vunpack.c.l.b16 %v3136
        %v3171 = vunpack.c.l.b16 %v3137
        %v3172 = vunpack.c.l.b16 %v3138
        %v3173 = vunpack.c.l.b16 %v3139
        %v3174 = vunpack.c.l.b16 %v3140
        %v3175 = vunpack.c.l.b16 %v3141
        %v3176 = vunpack.c.l.b16 %v3142
        %v3177 = vunpack.c.l.b16 %v3143
        %v3178 = vunpack.c.l.b16 %v3144
        %v3179 = vunpack.c.l.b16 %v3145
        %v3180 = vunpack.c.l.b16 %v3146
        %v3181 = vpack.c.b16 %v3166, %v3165
        %v3182 = vpack.c.b16 %v3168, %v3167
        %v3183 = vpack.c.b16 %v3170, %v3169
        %v3184 = vpack.c.b16 %v3172, %v3171
        %v3185 = vpack.c.b16 %v3174, %v3173
        %v3186 = vpack.c.b16 %v3176, %v3175
        %v3187 = vpack.c.b16 %v3178, %v3177
        %v3188 = vpack.c.b16 %v3180, %v3179
        %3197 = vmatprep.subr.bf16.mxu0 0
        %3198 = vmatpush1.bf16.xpose.msra.mxu0 %v3181
        %3199 = vmatprep.subr.bf16.mxu0 0
        %3200 = vmatpush1.bf16.xpose.msra.mxu0 %v3182
        %3201 = vmatprep.subr.bf16.mxu0 0
        %3202 = vmatpush1.bf16.xpose.msra.mxu0 %v3183
        %3203 = vmatprep.subr.bf16.mxu0 0
        %3204 = vmatpush1.bf16.xpose.msra.mxu0 %v3184
        %3205 = vmatprep.subr.bf16.mxu0 0
        %3206 = vmatpush1.bf16.xpose.msra.mxu0 %v3185
        %3207 = vmatprep.subr.bf16.mxu0 0
        %3208 = vmatpush1.bf16.xpose.msra.mxu0 %v3186
        %3209 = vmatprep.subr.bf16.mxu0 0
        %3210 = vmatpush1.bf16.xpose.msra.mxu0 %v3187
        %3211 = vmatprep.subr.bf16.mxu0 0
        %3212 = vmatpush1.bf16.xpose.msra.mxu0 %v3188
        %3213 = vmatprep.subr.bf16.mxu0 0
        %3214 = vmatpush1.bf16.xpose.msra.mxu0 0
        %3215 = vmatprep.subr.bf16.mxu0 0
        %3216 = vmatpush1.bf16.xpose.msra.mxu0 0
        %3217 = vmatprep.subr.bf16.mxu0 0
        %3218 = vmatpush1.bf16.xpose.msra.mxu0 0
        %3219 = vmatprep.subr.bf16.mxu0 0
        %3220 = vmatpush1.bf16.xpose.msra.mxu0 0
        %3221 = vmatprep.subr.bf16.mxu0 0
        %3222 = vmatpush1.bf16.xpose.msra.mxu0 0
        %3223 = vmatprep.subr.bf16.mxu0 0
        %3224 = vmatpush1.bf16.xpose.msra.mxu0 0
        %3225 = vmatprep.subr.bf16.mxu0 0
        %3226 = vmatpush1.bf16.xpose.msra.mxu0 0
        %3227 = vmatprep.subr.bf16.mxu0 0
        %3228 = vmatpush1.bf16.xpose.msra.mxu0 0
        %3229 = vmatprep.mubr.bf16.mxu0 0
        %3230 = vmatmul.mubr.bf16.gmra.mrb[0].mxu0 %v3147
        %v3231 = vpop.f32.mrb[0].mxu0
        %v3232 = vadd.f32 0.0, %v3231
        %v3233 = vpop.f32.mrb[0].mxu0
        %v3234 = vpop.f32.mrb[0].mxu0
        %v3235 = vpop.f32.mrb[0].mxu0
        %3236 = vdwg.mxu0
        %3237 = vst [vmem:[#allocation5 + $0xc] sm:$0x1] %v3232
        %s3238 = scalar_lea.vmem %s747, 832 [#allocation21]
        %v3239 = vld [vmem:[%s3238] sm:$0xf]
        %v3240 = vld [vmem:[%s3238 + $0x4] sm:$0xf]
        %v3241 = vld [vmem:[%s3238 + $0x8] sm:$0xf]
        %v3242 = vld [vmem:[%s3238 + $0xc] sm:$0xf]
        %v3243 = vld [vmem:[%s3238 + $0x10] sm:$0xf]
        %v3244 = vld [vmem:[%s3238 + $0x14] sm:$0xf]
        %v3245 = vld [vmem:[%s3238 + $0x18] sm:$0xf]
        %v3246 = vld [vmem:[%s3238 + $0x1c] sm:$0xf]
        %v3247 = vld [vmem:[%s3238 + $0x20] sm:$0xf]
        %v3248 = vld [vmem:[%s3238 + $0x24] sm:$0xf]
        %v3249 = vld [vmem:[%s3238 + $0x28] sm:$0xf]
        %v3250 = vld [vmem:[%s3238 + $0x2c] sm:$0xf]
        %v3251 = vld [vmem:[%s3238 + $0x30] sm:$0xf]
        %v3252 = vld [vmem:[%s3238 + $0x34] sm:$0xf]
        %v3253 = vld [vmem:[%s3238 + $0x38] sm:$0xf]
        %v3254 = vld [vmem:[%s3238 + $0x3c] sm:$0xf]
        %v3255 = vrot.slane %v1957, 6
        %v3273 = vunpack.c.l.b16 %v3239
        %v3274 = vunpack.c.l.b16 %v3240
        %v3275 = vunpack.c.l.b16 %v3241
        %v3276 = vunpack.c.l.b16 %v3242
        %v3277 = vunpack.c.l.b16 %v3243
        %v3278 = vunpack.c.l.b16 %v3244
        %v3279 = vunpack.c.l.b16 %v3245
        %v3280 = vunpack.c.l.b16 %v3246
        %v3281 = vunpack.c.l.b16 %v3247
        %v3282 = vunpack.c.l.b16 %v3248
        %v3283 = vunpack.c.l.b16 %v3249
        %v3284 = vunpack.c.l.b16 %v3250
        %v3285 = vunpack.c.l.b16 %v3251
        %v3286 = vunpack.c.l.b16 %v3252
        %v3287 = vunpack.c.l.b16 %v3253
        %v3288 = vunpack.c.l.b16 %v3254
        %v3289 = vpack.c.b16 %v3274, %v3273
        %v3290 = vpack.c.b16 %v3276, %v3275
        %v3291 = vpack.c.b16 %v3278, %v3277
        %v3292 = vpack.c.b16 %v3280, %v3279
        %v3293 = vpack.c.b16 %v3282, %v3281
        %v3294 = vpack.c.b16 %v3284, %v3283
        %v3295 = vpack.c.b16 %v3286, %v3285
        %v3296 = vpack.c.b16 %v3288, %v3287
        %3305 = vmatprep.subr.bf16.mxu0 0
        %3306 = vmatpush1.bf16.xpose.msra.mxu0 %v3289
        %3307 = vmatprep.subr.bf16.mxu0 0
        %3308 = vmatpush1.bf16.xpose.msra.mxu0 %v3290
        %3309 = vmatprep.subr.bf16.mxu0 0
        %3310 = vmatpush1.bf16.xpose.msra.mxu0 %v3291
        %3311 = vmatprep.subr.bf16.mxu0 0
        %3312 = vmatpush1.bf16.xpose.msra.mxu0 %v3292
        %3313 = vmatprep.subr.bf16.mxu0 0
        %3314 = vmatpush1.bf16.xpose.msra.mxu0 %v3293
        %3315 = vmatprep.subr.bf16.mxu0 0
        %3316 = vmatpush1.bf16.xpose.msra.mxu0 %v3294
        %3317 = vmatprep.subr.bf16.mxu0 0
        %3318 = vmatpush1.bf16.xpose.msra.mxu0 %v3295
        %3319 = vmatprep.subr.bf16.mxu0 0
        %3320 = vmatpush1.bf16.xpose.msra.mxu0 %v3296
        %3321 = vmatprep.subr.bf16.mxu0 0
        %3322 = vmatpush1.bf16.xpose.msra.mxu0 0
        %3323 = vmatprep.subr.bf16.mxu0 0
        %3324 = vmatpush1.bf16.xpose.msra.mxu0 0
        %3325 = vmatprep.subr.bf16.mxu0 0
        %3326 = vmatpush1.bf16.xpose.msra.mxu0 0
        %3327 = vmatprep.subr.bf16.mxu0 0
        %3328 = vmatpush1.bf16.xpose.msra.mxu0 0
        %3329 = vmatprep.subr.bf16.mxu0 0
        %3330 = vmatpush1.bf16.xpose.msra.mxu0 0
        %3331 = vmatprep.subr.bf16.mxu0 0
        %3332 = vmatpush1.bf16.xpose.msra.mxu0 0
        %3333 = vmatprep.subr.bf16.mxu0 0
        %3334 = vmatpush1.bf16.xpose.msra.mxu0 0
        %3335 = vmatprep.subr.bf16.mxu0 0
        %3336 = vmatpush1.bf16.xpose.msra.mxu0 0
        %3337 = vmatprep.mubr.bf16.mxu0 0
        %3338 = vmatmul.mubr.bf16.gmra.mrb[0].mxu0 %v3255
        %v3339 = vpop.f32.mrb[0].mxu0
        %v3340 = vadd.f32 0.0, %v3339
        %v3341 = vpop.f32.mrb[0].mxu0
        %v3342 = vpop.f32.mrb[0].mxu0
        %v3343 = vpop.f32.mrb[0].mxu0
        %3344 = vdwg.mxu0
        %3345 = vst [vmem:[#allocation5 + $0xd] sm:$0x1] %v3340
        %s3346 = scalar_lea.vmem %s747, 896 [#allocation21]
        %v3347 = vld [vmem:[%s3346] sm:$0xf]
        %v3348 = vld [vmem:[%s3346 + $0x4] sm:$0xf]
        %v3349 = vld [vmem:[%s3346 + $0x8] sm:$0xf]
        %v3350 = vld [vmem:[%s3346 + $0xc] sm:$0xf]
        %v3351 = vld [vmem:[%s3346 + $0x10] sm:$0xf]
        %v3352 = vld [vmem:[%s3346 + $0x14] sm:$0xf]
        %v3353 = vld [vmem:[%s3346 + $0x18] sm:$0xf]
        %v3354 = vld [vmem:[%s3346 + $0x1c] sm:$0xf]
        %v3355 = vld [vmem:[%s3346 + $0x20] sm:$0xf]
        %v3356 = vld [vmem:[%s3346 + $0x24] sm:$0xf]
        %v3357 = vld [vmem:[%s3346 + $0x28] sm:$0xf]
        %v3358 = vld [vmem:[%s3346 + $0x2c] sm:$0xf]
        %v3359 = vld [vmem:[%s3346 + $0x30] sm:$0xf]
        %v3360 = vld [vmem:[%s3346 + $0x34] sm:$0xf]
        %v3361 = vld [vmem:[%s3346 + $0x38] sm:$0xf]
        %v3362 = vld [vmem:[%s3346 + $0x3c] sm:$0xf]
        %v3363 = vrot.slane %v1833, 7
        %v3381 = vunpack.c.l.b16 %v3347
        %v3382 = vunpack.c.l.b16 %v3348
        %v3383 = vunpack.c.l.b16 %v3349
        %v3384 = vunpack.c.l.b16 %v3350
        %v3385 = vunpack.c.l.b16 %v3351
        %v3386 = vunpack.c.l.b16 %v3352
        %v3387 = vunpack.c.l.b16 %v3353
        %v3388 = vunpack.c.l.b16 %v3354
        %v3389 = vunpack.c.l.b16 %v3355
        %v3390 = vunpack.c.l.b16 %v3356
        %v3391 = vunpack.c.l.b16 %v3357
        %v3392 = vunpack.c.l.b16 %v3358
        %v3393 = vunpack.c.l.b16 %v3359
        %v3394 = vunpack.c.l.b16 %v3360
        %v3395 = vunpack.c.l.b16 %v3361
        %v3396 = vunpack.c.l.b16 %v3362
        %v3397 = vpack.c.b16 %v3382, %v3381
        %v3398 = vpack.c.b16 %v3384, %v3383
        %v3399 = vpack.c.b16 %v3386, %v3385
        %v3400 = vpack.c.b16 %v3388, %v3387
        %v3401 = vpack.c.b16 %v3390, %v3389
        %v3402 = vpack.c.b16 %v3392, %v3391
        %v3403 = vpack.c.b16 %v3394, %v3393
        %v3404 = vpack.c.b16 %v3396, %v3395
        %3413 = vmatprep.subr.bf16.mxu0 0
        %3414 = vmatpush1.bf16.xpose.msra.mxu0 %v3397
        %3415 = vmatprep.subr.bf16.mxu0 0
        %3416 = vmatpush1.bf16.xpose.msra.mxu0 %v3398
        %3417 = vmatprep.subr.bf16.mxu0 0
        %3418 = vmatpush1.bf16.xpose.msra.mxu0 %v3399
        %3419 = vmatprep.subr.bf16.mxu0 0
        %3420 = vmatpush1.bf16.xpose.msra.mxu0 %v3400
        %3421 = vmatprep.subr.bf16.mxu0 0
        %3422 = vmatpush1.bf16.xpose.msra.mxu0 %v3401
        %3423 = vmatprep.subr.bf16.mxu0 0
        %3424 = vmatpush1.bf16.xpose.msra.mxu0 %v3402
        %3425 = vmatprep.subr.bf16.mxu0 0
        %3426 = vmatpush1.bf16.xpose.msra.mxu0 %v3403
        %3427 = vmatprep.subr.bf16.mxu0 0
        %3428 = vmatpush1.bf16.xpose.msra.mxu0 %v3404
        %3429 = vmatprep.subr.bf16.mxu0 0
        %3430 = vmatpush1.bf16.xpose.msra.mxu0 0
        %3431 = vmatprep.subr.bf16.mxu0 0
        %3432 = vmatpush1.bf16.xpose.msra.mxu0 0
        %3433 = vmatprep.subr.bf16.mxu0 0
        %3434 = vmatpush1.bf16.xpose.msra.mxu0 0
        %3435 = vmatprep.subr.bf16.mxu0 0
        %3436 = vmatpush1.bf16.xpose.msra.mxu0 0
        %3437 = vmatprep.subr.bf16.mxu0 0
        %3438 = vmatpush1.bf16.xpose.msra.mxu0 0
        %3439 = vmatprep.subr.bf16.mxu0 0
        %3440 = vmatpush1.bf16.xpose.msra.mxu0 0
        %3441 = vmatprep.subr.bf16.mxu0 0
        %3442 = vmatpush1.bf16.xpose.msra.mxu0 0
        %3443 = vmatprep.subr.bf16.mxu0 0
        %3444 = vmatpush1.bf16.xpose.msra.mxu0 0
        %3445 = vmatprep.mubr.bf16.mxu0 0
        %3446 = vmatmul.mubr.bf16.gmra.mrb[0].mxu0 %v3363
        %v3447 = vpop.f32.mrb[0].mxu0
        %v3448 = vadd.f32 0.0, %v3447
        %v3449 = vpop.f32.mrb[0].mxu0
        %v3450 = vpop.f32.mrb[0].mxu0
        %v3451 = vpop.f32.mrb[0].mxu0
        %3452 = vdwg.mxu0
        %3453 = vst [vmem:[#allocation5 + $0xe] sm:$0x1] %v3448
        %s3454 = scalar_lea.vmem %s747, 960 [#allocation21]
        %v3455 = vld [vmem:[%s3454] sm:$0xf]
        %v3456 = vld [vmem:[%s3454 + $0x4] sm:$0xf]
        %v3457 = vld [vmem:[%s3454 + $0x8] sm:$0xf]
        %v3458 = vld [vmem:[%s3454 + $0xc] sm:$0xf]
        %v3459 = vld [vmem:[%s3454 + $0x10] sm:$0xf]
        %v3460 = vld [vmem:[%s3454 + $0x14] sm:$0xf]
        %v3461 = vld [vmem:[%s3454 + $0x18] sm:$0xf]
        %v3462 = vld [vmem:[%s3454 + $0x1c] sm:$0xf]
        %v3463 = vld [vmem:[%s3454 + $0x20] sm:$0xf]
        %v3464 = vld [vmem:[%s3454 + $0x24] sm:$0xf]
        %v3465 = vld [vmem:[%s3454 + $0x28] sm:$0xf]
        %v3466 = vld [vmem:[%s3454 + $0x2c] sm:$0xf]
        %v3467 = vld [vmem:[%s3454 + $0x30] sm:$0xf]
        %v3468 = vld [vmem:[%s3454 + $0x34] sm:$0xf]
        %v3469 = vld [vmem:[%s3454 + $0x38] sm:$0xf]
        %v3470 = vld [vmem:[%s3454 + $0x3c] sm:$0xf]
        %v3471 = vrot.slane %v1957, 7
        %v3489 = vunpack.c.l.b16 %v3455
        %v3490 = vunpack.c.l.b16 %v3456
        %v3491 = vunpack.c.l.b16 %v3457
        %v3492 = vunpack.c.l.b16 %v3458
        %v3493 = vunpack.c.l.b16 %v3459
        %v3494 = vunpack.c.l.b16 %v3460
        %v3495 = vunpack.c.l.b16 %v3461
        %v3496 = vunpack.c.l.b16 %v3462
        %v3497 = vunpack.c.l.b16 %v3463
        %v3498 = vunpack.c.l.b16 %v3464
        %v3499 = vunpack.c.l.b16 %v3465
        %v3500 = vunpack.c.l.b16 %v3466
        %v3501 = vunpack.c.l.b16 %v3467
        %v3502 = vunpack.c.l.b16 %v3468
        %v3503 = vunpack.c.l.b16 %v3469
        %v3504 = vunpack.c.l.b16 %v3470
        %v3505 = vpack.c.b16 %v3490, %v3489
        %v3506 = vpack.c.b16 %v3492, %v3491
        %v3507 = vpack.c.b16 %v3494, %v3493
        %v3508 = vpack.c.b16 %v3496, %v3495
        %v3509 = vpack.c.b16 %v3498, %v3497
        %v3510 = vpack.c.b16 %v3500, %v3499
        %v3511 = vpack.c.b16 %v3502, %v3501
        %v3512 = vpack.c.b16 %v3504, %v3503
        %3521 = vmatprep.subr.bf16.mxu0 0
        %3522 = vmatpush1.bf16.xpose.msra.mxu0 %v3505
        %3523 = vmatprep.subr.bf16.mxu0 0
        %3524 = vmatpush1.bf16.xpose.msra.mxu0 %v3506
        %3525 = vmatprep.subr.bf16.mxu0 0
        %3526 = vmatpush1.bf16.xpose.msra.mxu0 %v3507
        %3527 = vmatprep.subr.bf16.mxu0 0
        %3528 = vmatpush1.bf16.xpose.msra.mxu0 %v3508
        %3529 = vmatprep.subr.bf16.mxu0 0
        %3530 = vmatpush1.bf16.xpose.msra.mxu0 %v3509
        %3531 = vmatprep.subr.bf16.mxu0 0
        %3532 = vmatpush1.bf16.xpose.msra.mxu0 %v3510
        %3533 = vmatprep.subr.bf16.mxu0 0
        %3534 = vmatpush1.bf16.xpose.msra.mxu0 %v3511
        %3535 = vmatprep.subr.bf16.mxu0 0
        %3536 = vmatpush1.bf16.xpose.msra.mxu0 %v3512
        %3537 = vmatprep.subr.bf16.mxu0 0
        %3538 = vmatpush1.bf16.xpose.msra.mxu0 0
        %3539 = vmatprep.subr.bf16.mxu0 0
        %3540 = vmatpush1.bf16.xpose.msra.mxu0 0
        %3541 = vmatprep.subr.bf16.mxu0 0
        %3542 = vmatpush1.bf16.xpose.msra.mxu0 0
        %3543 = vmatprep.subr.bf16.mxu0 0
        %3544 = vmatpush1.bf16.xpose.msra.mxu0 0
        %3545 = vmatprep.subr.bf16.mxu0 0
        %3546 = vmatpush1.bf16.xpose.msra.mxu0 0
        %3547 = vmatprep.subr.bf16.mxu0 0
        %3548 = vmatpush1.bf16.xpose.msra.mxu0 0
        %3549 = vmatprep.subr.bf16.mxu0 0
        %3550 = vmatpush1.bf16.xpose.msra.mxu0 0
        %3551 = vmatprep.subr.bf16.mxu0 0
        %3552 = vmatpush1.bf16.xpose.msra.mxu0 0
        %3553 = vmatprep.mubr.bf16.mxu0 0
        %3554 = vmatmul.mubr.bf16.gmra.mrb[0].mxu0 %v3471
        %v3555 = vpop.f32.mrb[0].mxu0
        %v3556 = vadd.f32 0.0, %v3555
        %v3557 = vpop.f32.mrb[0].mxu0
        %v3558 = vpop.f32.mrb[0].mxu0
        %v3559 = vpop.f32.mrb[0].mxu0
        %3560 = vdwg.mxu0
        %3561 = vst [vmem:[#allocation5 + $0xf] sm:$0x1] %v3556
        %v3562 = vld [vmem:[#allocation5] sm:$0xff]
        %v3563 = vld [vmem:[#allocation5 + $0x8] sm:$0xff]
        %v3564 = vld [vmem:[%s765] sm:$0xff]
        %v3565 = vld [vmem:[%s765 + $0x8] sm:$0xff]
        %v3566 = vadd.f32 %v3562, %v3564
        %v3567 = vadd.f32 %v3563, %v3565
        %3568 = vmax.xlane.f32.xlu0 %v3566
        %v3569 = vpop.xlane.xlu0 %3568
        %3570 = vmax.xlane.f32.xlu0 %v3567
        %v3571 = vpop.xlane.xlu0 %3570
        %v3572 = vsub.f32 %v3566, %v3569
        %v3573 = vsub.f32 %v3567, %v3571
        %v3574 = vmul.f32 %v3572, 1.442695
        %v3575 = vpow.pop %v3574
        %v3576 = vmul.f32 %v3573, 1.442695
        %v3577 = vpow.pop %v3576
        %3578 = vadd.xlane.f32.xlu0 %v3575
        %v3579 = vpop.xlane.xlu0 %3578
        %3580 = vadd.xlane.f32.xlu0 %v3577
        %v3581 = vpop.xlane.xlu0 %3580
        %v3582 = vrcp.pop %v3579
        %v3583 = vrcp.pop %v3581
        %v3584 = vmul.f32 %v3575, %v3582
        %v3585 = vmul.f32 %v3577, %v3583
        %3586 = vst [vmem:[%s846] sm:$0xff] %v3584
        %3587 = vst [vmem:[%s846 + $0x8] sm:$0xff] %v3585
        %v3588 = vpack.c.bf16 %v3585, %v3584
        %v3589 = vld [vmem:[%s756] sm:$0xff]
        %v3590 = vld [vmem:[%s756 + $0x8] sm:$0xff]
        %v3591 = vld [vmem:[%s756 + $0x10] sm:$0xff]
        %v3592 = vld [vmem:[%s756 + $0x18] sm:$0xff]
        %v3593 = vld [vmem:[%s756 + $0x20] sm:$0xff]
        %v3594 = vld [vmem:[%s756 + $0x28] sm:$0xff]
        %v3595 = vld [vmem:[%s756 + $0x30] sm:$0xff]
        %v3596 = vld [vmem:[%s756 + $0x38] sm:$0xff]
        %v3597 = vld [vmem:[%s756 + $0x40] sm:$0xff]
        %v3598 = vld [vmem:[%s756 + $0x48] sm:$0xff]
        %v3599 = vld [vmem:[%s756 + $0x50] sm:$0xff]
        %v3600 = vld [vmem:[%s756 + $0x58] sm:$0xff]
        %v3601 = vld [vmem:[%s756 + $0x60] sm:$0xff]
        %v3602 = vld [vmem:[%s756 + $0x68] sm:$0xff]
        %v3603 = vld [vmem:[%s756 + $0x70] sm:$0xff]
        %v3604 = vld [vmem:[%s756 + $0x78] sm:$0xff]
        %v3621 = vunpack.c.l.b16 %v3589
        %v3622 = vunpack.c.h.b16 %v3589
        %v3623 = vunpack.c.l.b16 %v3590
        %v3624 = vunpack.c.h.b16 %v3590
        %v3625 = vunpack.c.l.b16 %v3591
        %v3626 = vunpack.c.h.b16 %v3591
        %v3627 = vunpack.c.l.b16 %v3592
        %v3628 = vunpack.c.h.b16 %v3592
        %v3629 = vunpack.c.l.b16 %v3593
        %v3630 = vunpack.c.h.b16 %v3593
        %v3631 = vunpack.c.l.b16 %v3594
        %v3632 = vunpack.c.h.b16 %v3594
        %v3633 = vunpack.c.l.b16 %v3595
        %v3634 = vunpack.c.h.b16 %v3595
        %v3635 = vunpack.c.l.b16 %v3596
        %v3636 = vunpack.c.h.b16 %v3596
        %v3637 = vunpack.c.l.b16 %v3597
        %v3638 = vunpack.c.h.b16 %v3597
        %v3639 = vunpack.c.l.b16 %v3598
        %v3640 = vunpack.c.h.b16 %v3598
        %v3641 = vunpack.c.l.b16 %v3599
        %v3642 = vunpack.c.h.b16 %v3599
        %v3643 = vunpack.c.l.b16 %v3600
        %v3644 = vunpack.c.h.b16 %v3600
        %v3645 = vunpack.c.l.b16 %v3601
        %v3646 = vunpack.c.h.b16 %v3601
        %v3647 = vunpack.c.l.b16 %v3602
        %v3648 = vunpack.c.h.b16 %v3602
        %v3649 = vunpack.c.l.b16 %v3603
        %v3650 = vunpack.c.h.b16 %v3603
        %v3651 = vunpack.c.l.b16 %v3604
        %v3652 = vunpack.c.h.b16 %v3604
        %v3653 = vpack.c.b16 %v3623, %v3621
        %v3654 = vpack.c.b16 %v3624, %v3622
        %v3655 = vpack.c.b16 %v3627, %v3625
        %v3656 = vpack.c.b16 %v3628, %v3626
        %v3657 = vpack.c.b16 %v3631, %v3629
        %v3658 = vpack.c.b16 %v3632, %v3630
        %v3659 = vpack.c.b16 %v3635, %v3633
        %v3660 = vpack.c.b16 %v3636, %v3634
        %v3661 = vpack.c.b16 %v3639, %v3637
        %v3662 = vpack.c.b16 %v3640, %v3638
        %v3663 = vpack.c.b16 %v3643, %v3641
        %v3664 = vpack.c.b16 %v3644, %v3642
        %v3665 = vpack.c.b16 %v3647, %v3645
        %v3666 = vpack.c.b16 %v3648, %v3646
        %v3667 = vpack.c.b16 %v3651, %v3649
        %v3668 = vpack.c.b16 %v3652, %v3650
        %3685 = vmatprep.subr.bf16.mxu0 %v3654
        %3686 = vmatpush1.bf16.msra.mxu0 %v3653
        %3687 = vmatprep.subr.bf16.mxu0 %v3656
        %3688 = vmatpush1.bf16.msra.mxu0 %v3655
        %3689 = vmatprep.subr.bf16.mxu0 %v3658
        %3690 = vmatpush1.bf16.msra.mxu0 %v3657
        %3691 = vmatprep.subr.bf16.mxu0 %v3660
        %3692 = vmatpush1.bf16.msra.mxu0 %v3659
        %3693 = vmatprep.subr.bf16.mxu0 %v3662
        %3694 = vmatpush1.bf16.msra.mxu0 %v3661
        %3695 = vmatprep.subr.bf16.mxu0 %v3664
        %3696 = vmatpush1.bf16.msra.mxu0 %v3663
        %3697 = vmatprep.subr.bf16.mxu0 %v3666
        %3698 = vmatpush1.bf16.msra.mxu0 %v3665
        %3699 = vmatprep.subr.bf16.mxu0 %v3668
        %3700 = vmatpush1.bf16.msra.mxu0 %v3667
        %3701 = vmatprep.subr.bf16.mxu0 0
        %3702 = vmatpush1.bf16.msra.mxu0 0
        %3703 = vmatprep.subr.bf16.mxu0 0
        %3704 = vmatpush1.bf16.msra.mxu0 0
        %3705 = vmatprep.subr.bf16.mxu0 0
        %3706 = vmatpush1.bf16.msra.mxu0 0
        %3707 = vmatprep.subr.bf16.mxu0 0
        %3708 = vmatpush1.bf16.msra.mxu0 0
        %3709 = vmatprep.subr.bf16.mxu0 0
        %3710 = vmatpush1.bf16.msra.mxu0 0
        %3711 = vmatprep.subr.bf16.mxu0 0
        %3712 = vmatpush1.bf16.msra.mxu0 0
        %3713 = vmatprep.subr.bf16.mxu0 0
        %3714 = vmatpush1.bf16.msra.mxu0 0
        %3715 = vmatprep.subr.bf16.mxu0 0
        %3716 = vmatpush1.bf16.msra.mxu0 0
        %3717 = vmatprep.mubr.bf16.mxu0 0
        %3718 = vmatmul.mubr.bf16.gmra.mrb[0].mxu0 %v3588
        %v3719 = vpop.f32.mrb[0].mxu0
        %v3720 = vadd.f32 0.0, %v3719
        %v3721 = vpop.f32.mrb[0].mxu0
        %v3722 = vadd.f32 0.0, %v3721
        %v3723 = vpop.f32.mrb[0].mxu0
        %v3724 = vpop.f32.mrb[0].mxu0
        %3725 = vdwg.mxu0
        %v3728 = vcombine.low %v3720, %v3722
        %v3730 = vunpack.c.l.s4 1966171168
        %v3731 = vunpack.c.0.s8 %v3730
        %v3732 = vlaneseq
        %v3733 = vshrl.u32 %v3732, 7
        %v3734 = vsub.s32 %v3731, %v3733
        %v3735 = vrot.slane %v3728, %v3734
        %v3737 = vunpack.c.l.s4 1966171168
        %v3738 = vunpack.c.0.s8 %v3737
        %v3739 = vlaneseq
        %v3740 = vshrl.u32 %v3739, 7
        %v3741 = vsub.s32 %v3738, %v3740
        %v3742 = vrot.slane %v3735, %v3741
        %v3744 = vlaneseq
        %vm3745 = vcmp.ge.s32.totalorder %v3744, 0
        %vm3746 = vcmp.lt.s32.totalorder %v3744, 256
        %vm3747 = vmand %vm3745, %vm3746
        %3748 = vst.msk [vmem:[#allocation6] ss:$8 sm:$0x3] %vm3747, %v3742
        %3749 = vst.msk [vmem:[#allocation6] ss:$8 sm:$0x0] %vm3747, %v3742
        %s3750 = scalar_lea.vmem %s756, 128 [#allocation22]
        %v3751 = vld [vmem:[%s3750] sm:$0xff]
        %v3752 = vld [vmem:[%s3750 + $0x8] sm:$0xff]
        %v3753 = vld [vmem:[%s3750 + $0x10] sm:$0xff]
        %v3754 = vld [vmem:[%s3750 + $0x18] sm:$0xff]
        %v3755 = vld [vmem:[%s3750 + $0x20] sm:$0xff]
        %v3756 = vld [vmem:[%s3750 + $0x28] sm:$0xff]
        %v3757 = vld [vmem:[%s3750 + $0x30] sm:$0xff]
        %v3758 = vld [vmem:[%s3750 + $0x38] sm:$0xff]
        %v3759 = vld [vmem:[%s3750 + $0x40] sm:$0xff]
        %v3760 = vld [vmem:[%s3750 + $0x48] sm:$0xff]
        %v3761 = vld [vmem:[%s3750 + $0x50] sm:$0xff]
        %v3762 = vld [vmem:[%s3750 + $0x58] sm:$0xff]
        %v3763 = vld [vmem:[%s3750 + $0x60] sm:$0xff]
        %v3764 = vld [vmem:[%s3750 + $0x68] sm:$0xff]
        %v3765 = vld [vmem:[%s3750 + $0x70] sm:$0xff]
        %v3766 = vld [vmem:[%s3750 + $0x78] sm:$0xff]
        %v3768 = vshrl.u32 %v3588, 16
        %v3787 = vunpack.c.l.b16 %v3751
        %v3788 = vunpack.c.h.b16 %v3751
        %v3789 = vunpack.c.l.b16 %v3752
        %v3790 = vunpack.c.h.b16 %v3752
        %v3791 = vunpack.c.l.b16 %v3753
        %v3792 = vunpack.c.h.b16 %v3753
        %v3793 = vunpack.c.l.b16 %v3754
        %v3794 = vunpack.c.h.b16 %v3754
        %v3795 = vunpack.c.l.b16 %v3755
        %v3796 = vunpack.c.h.b16 %v3755
        %v3797 = vunpack.c.l.b16 %v3756
        %v3798 = vunpack.c.h.b16 %v3756
        %v3799 = vunpack.c.l.b16 %v3757
        %v3800 = vunpack.c.h.b16 %v3757
        %v3801 = vunpack.c.l.b16 %v3758
        %v3802 = vunpack.c.h.b16 %v3758
        %v3803 = vunpack.c.l.b16 %v3759
        %v3804 = vunpack.c.h.b16 %v3759
        %v3805 = vunpack.c.l.b16 %v3760
        %v3806 = vunpack.c.h.b16 %v3760
        %v3807 = vunpack.c.l.b16 %v3761
        %v3808 = vunpack.c.h.b16 %v3761
        %v3809 = vunpack.c.l.b16 %v3762
        %v3810 = vunpack.c.h.b16 %v3762
        %v3811 = vunpack.c.l.b16 %v3763
        %v3812 = vunpack.c.h.b16 %v3763
        %v3813 = vunpack.c.l.b16 %v3764
        %v3814 = vunpack.c.h.b16 %v3764
        %v3815 = vunpack.c.l.b16 %v3765
        %v3816 = vunpack.c.h.b16 %v3765
        %v3817 = vunpack.c.l.b16 %v3766
        %v3818 = vunpack.c.h.b16 %v3766
        %v3819 = vpack.c.b16 %v3789, %v3787
        %v3820 = vpack.c.b16 %v3790, %v3788
        %v3821 = vpack.c.b16 %v3793, %v3791
        %v3822 = vpack.c.b16 %v3794, %v3792
        %v3823 = vpack.c.b16 %v3797, %v3795
        %v3824 = vpack.c.b16 %v3798, %v3796
        %v3825 = vpack.c.b16 %v3801, %v3799
        %v3826 = vpack.c.b16 %v3802, %v3800
        %v3827 = vpack.c.b16 %v3805, %v3803
        %v3828 = vpack.c.b16 %v3806, %v3804
        %v3829 = vpack.c.b16 %v3809, %v3807
        %v3830 = vpack.c.b16 %v3810, %v3808
        %v3831 = vpack.c.b16 %v3813, %v3811
        %v3832 = vpack.c.b16 %v3814, %v3812
        %v3833 = vpack.c.b16 %v3817, %v3815
        %v3834 = vpack.c.b16 %v3818, %v3816
        %3851 = vmatprep.subr.bf16.mxu0 %v3820
        %3852 = vmatpush1.bf16.msra.mxu0 %v3819
        %3853 = vmatprep.subr.bf16.mxu0 %v3822
        %3854 = vmatpush1.bf16.msra.mxu0 %v3821
        %3855 = vmatprep.subr.bf16.mxu0 %v3824
        %3856 = vmatpush1.bf16.msra.mxu0 %v3823
        %3857 = vmatprep.subr.bf16.mxu0 %v3826
        %3858 = vmatpush1.bf16.msra.mxu0 %v3825
        %3859 = vmatprep.subr.bf16.mxu0 %v3828
        %3860 = vmatpush1.bf16.msra.mxu0 %v3827
        %3861 = vmatprep.subr.bf16.mxu0 %v3830
        %3862 = vmatpush1.bf16.msra.mxu0 %v3829
        %3863 = vmatprep.subr.bf16.mxu0 %v3832
        %3864 = vmatpush1.bf16.msra.mxu0 %v3831
        %3865 = vmatprep.subr.bf16.mxu0 %v3834
        %3866 = vmatpush1.bf16.msra.mxu0 %v3833
        %3867 = vmatprep.subr.bf16.mxu0 0
        %3868 = vmatpush1.bf16.msra.mxu0 0
        %3869 = vmatprep.subr.bf16.mxu0 0
        %3870 = vmatpush1.bf16.msra.mxu0 0
        %3871 = vmatprep.subr.bf16.mxu0 0
        %3872 = vmatpush1.bf16.msra.mxu0 0
        %3873 = vmatprep.subr.bf16.mxu0 0
        %3874 = vmatpush1.bf16.msra.mxu0 0
        %3875 = vmatprep.subr.bf16.mxu0 0
        %3876 = vmatpush1.bf16.msra.mxu0 0
        %3877 = vmatprep.subr.bf16.mxu0 0
        %3878 = vmatpush1.bf16.msra.mxu0 0
        %3879 = vmatprep.subr.bf16.mxu0 0
        %3880 = vmatpush1.bf16.msra.mxu0 0
        %3881 = vmatprep.subr.bf16.mxu0 0
        %3882 = vmatpush1.bf16.msra.mxu0 0
        %3883 = vmatprep.mubr.bf16.mxu0 0
        %3884 = vmatmul.mubr.bf16.gmra.mrb[0].mxu0 %v3768
        %v3885 = vpop.f32.mrb[0].mxu0
        %v3886 = vadd.f32 0.0, %v3885
        %v3887 = vpop.f32.mrb[0].mxu0
        %v3888 = vadd.f32 0.0, %v3887
        %v3889 = vpop.f32.mrb[0].mxu0
        %v3890 = vpop.f32.mrb[0].mxu0
        %3891 = vdwg.mxu0
        %v3894 = vcombine.low %v3886, %v3888
        %v3896 = vunpack.c.l.s4 1966171168
        %v3897 = vunpack.c.0.s8 %v3896
        %v3898 = vlaneseq
        %v3899 = vshrl.u32 %v3898, 7
        %v3900 = vsub.s32 %v3897, %v3899
        %v3901 = vrot.slane %v3894, %v3900
        %v3903 = vunpack.c.l.s4 1966171168
        %v3904 = vunpack.c.0.s8 %v3903
        %v3905 = vlaneseq
        %v3906 = vshrl.u32 %v3905, 7
        %v3907 = vsub.s32 %v3904, %v3906
        %v3908 = vrot.slane %v3901, %v3907
        %s3910 = scalar_lea.vmem [#allocation6], 1
        %3911 = vst.msk [vmem:[%s3910] ss:$8 sm:$0x3] %vm3747, %v3908
        %3912 = vst.msk [vmem:[%s3910] ss:$8 sm:$0x0] %vm3747, %v3908
        %s3913 = scalar_lea.vmem %s756, 256 [#allocation22]
        %v3914 = vld [vmem:[%s3913] sm:$0xff]
        %v3915 = vld [vmem:[%s3913 + $0x8] sm:$0xff]
        %v3916 = vld [vmem:[%s3913 + $0x10] sm:$0xff]
        %v3917 = vld [vmem:[%s3913 + $0x18] sm:$0xff]
        %v3918 = vld [vmem:[%s3913 + $0x20] sm:$0xff]
        %v3919 = vld [vmem:[%s3913 + $0x28] sm:$0xff]
        %v3920 = vld [vmem:[%s3913 + $0x30] sm:$0xff]
        %v3921 = vld [vmem:[%s3913 + $0x38] sm:$0xff]
        %v3922 = vld [vmem:[%s3913 + $0x40] sm:$0xff]
        %v3923 = vld [vmem:[%s3913 + $0x48] sm:$0xff]
        %v3924 = vld [vmem:[%s3913 + $0x50] sm:$0xff]
        %v3925 = vld [vmem:[%s3913 + $0x58] sm:$0xff]
        %v3926 = vld [vmem:[%s3913 + $0x60] sm:$0xff]
        %v3927 = vld [vmem:[%s3913 + $0x68] sm:$0xff]
        %v3928 = vld [vmem:[%s3913 + $0x70] sm:$0xff]
        %v3929 = vld [vmem:[%s3913 + $0x78] sm:$0xff]
        %v3931 = vrot.slane %v3588, 1
        %v3949 = vunpack.c.l.b16 %v3914
        %v3950 = vunpack.c.h.b16 %v3914
        %v3951 = vunpack.c.l.b16 %v3915
        %v3952 = vunpack.c.h.b16 %v3915
        %v3953 = vunpack.c.l.b16 %v3916
        %v3954 = vunpack.c.h.b16 %v3916
        %v3955 = vunpack.c.l.b16 %v3917
        %v3956 = vunpack.c.h.b16 %v3917
        %v3957 = vunpack.c.l.b16 %v3918
        %v3958 = vunpack.c.h.b16 %v3918
        %v3959 = vunpack.c.l.b16 %v3919
        %v3960 = vunpack.c.h.b16 %v3919
        %v3961 = vunpack.c.l.b16 %v3920
        %v3962 = vunpack.c.h.b16 %v3920
        %v3963 = vunpack.c.l.b16 %v3921
        %v3964 = vunpack.c.h.b16 %v3921
        %v3965 = vunpack.c.l.b16 %v3922
        %v3966 = vunpack.c.h.b16 %v3922
        %v3967 = vunpack.c.l.b16 %v3923
        %v3968 = vunpack.c.h.b16 %v3923
        %v3969 = vunpack.c.l.b16 %v3924
        %v3970 = vunpack.c.h.b16 %v3924
        %v3971 = vunpack.c.l.b16 %v3925
        %v3972 = vunpack.c.h.b16 %v3925
        %v3973 = vunpack.c.l.b16 %v3926
        %v3974 = vunpack.c.h.b16 %v3926
        %v3975 = vunpack.c.l.b16 %v3927
        %v3976 = vunpack.c.h.b16 %v3927
        %v3977 = vunpack.c.l.b16 %v3928
        %v3978 = vunpack.c.h.b16 %v3928
        %v3979 = vunpack.c.l.b16 %v3929
        %v3980 = vunpack.c.h.b16 %v3929
        %v3981 = vpack.c.b16 %v3951, %v3949
        %v3982 = vpack.c.b16 %v3952, %v3950
        %v3983 = vpack.c.b16 %v3955, %v3953
        %v3984 = vpack.c.b16 %v3956, %v3954
        %v3985 = vpack.c.b16 %v3959, %v3957
        %v3986 = vpack.c.b16 %v3960, %v3958
        %v3987 = vpack.c.b16 %v3963, %v3961
        %v3988 = vpack.c.b16 %v3964, %v3962
        %v3989 = vpack.c.b16 %v3967, %v3965
        %v3990 = vpack.c.b16 %v3968, %v3966
        %v3991 = vpack.c.b16 %v3971, %v3969
        %v3992 = vpack.c.b16 %v3972, %v3970
        %v3993 = vpack.c.b16 %v3975, %v3973
        %v3994 = vpack.c.b16 %v3976, %v3974
        %v3995 = vpack.c.b16 %v3979, %v3977
        %v3996 = vpack.c.b16 %v3980, %v3978
        %4013 = vmatprep.subr.bf16.mxu0 %v3982
        %4014 = vmatpush1.bf16.msra.mxu0 %v3981
        %4015 = vmatprep.subr.bf16.mxu0 %v3984
        %4016 = vmatpush1.bf16.msra.mxu0 %v3983
        %4017 = vmatprep.subr.bf16.mxu0 %v3986
        %4018 = vmatpush1.bf16.msra.mxu0 %v3985
        %4019 = vmatprep.subr.bf16.mxu0 %v3988
        %4020 = vmatpush1.bf16.msra.mxu0 %v3987
        %4021 = vmatprep.subr.bf16.mxu0 %v3990
        %4022 = vmatpush1.bf16.msra.mxu0 %v3989
        %4023 = vmatprep.subr.bf16.mxu0 %v3992
        %4024 = vmatpush1.bf16.msra.mxu0 %v3991
        %4025 = vmatprep.subr.bf16.mxu0 %v3994
        %4026 = vmatpush1.bf16.msra.mxu0 %v3993
        %4027 = vmatprep.subr.bf16.mxu0 %v3996
        %4028 = vmatpush1.bf16.msra.mxu0 %v3995
        %4029 = vmatprep.subr.bf16.mxu0 0
        %4030 = vmatpush1.bf16.msra.mxu0 0
        %4031 = vmatprep.subr.bf16.mxu0 0
        %4032 = vmatpush1.bf16.msra.mxu0 0
        %4033 = vmatprep.subr.bf16.mxu0 0
        %4034 = vmatpush1.bf16.msra.mxu0 0
        %4035 = vmatprep.subr.bf16.mxu0 0
        %4036 = vmatpush1.bf16.msra.mxu0 0
        %4037 = vmatprep.subr.bf16.mxu0 0
        %4038 = vmatpush1.bf16.msra.mxu0 0
        %4039 = vmatprep.subr.bf16.mxu0 0
        %4040 = vmatpush1.bf16.msra.mxu0 0
        %4041 = vmatprep.subr.bf16.mxu0 0
        %4042 = vmatpush1.bf16.msra.mxu0 0
        %4043 = vmatprep.subr.bf16.mxu0 0
        %4044 = vmatpush1.bf16.msra.mxu0 0
        %4045 = vmatprep.mubr.bf16.mxu0 0
        %4046 = vmatmul.mubr.bf16.gmra.mrb[0].mxu0 %v3931
        %v4047 = vpop.f32.mrb[0].mxu0
        %v4048 = vadd.f32 0.0, %v4047
        %v4049 = vpop.f32.mrb[0].mxu0
        %v4050 = vadd.f32 0.0, %v4049
        %v4051 = vpop.f32.mrb[0].mxu0
        %v4052 = vpop.f32.mrb[0].mxu0
        %4053 = vdwg.mxu0
        %v4056 = vcombine.low %v4048, %v4050
        %v4058 = vunpack.c.l.s4 1966171168
        %v4059 = vunpack.c.0.s8 %v4058
        %v4060 = vlaneseq
        %v4061 = vshrl.u32 %v4060, 7
        %v4062 = vsub.s32 %v4059, %v4061
        %v4063 = vrot.slane %v4056, %v4062
        %v4065 = vunpack.c.l.s4 1966171168
        %v4066 = vunpack.c.0.s8 %v4065
        %v4067 = vlaneseq
        %v4068 = vshrl.u32 %v4067, 7
        %v4069 = vsub.s32 %v4066, %v4068
        %v4070 = vrot.slane %v4063, %v4069
        %s4072 = scalar_lea.vmem [#allocation6], 2
        %4073 = vst.msk [vmem:[%s4072] ss:$8 sm:$0x3] %vm3747, %v4070
        %4074 = vst.msk [vmem:[%s4072] ss:$8 sm:$0x0] %vm3747, %v4070
        %s4075 = scalar_lea.vmem %s756, 384 [#allocation22]
        %v4076 = vld [vmem:[%s4075] sm:$0xff]
        %v4077 = vld [vmem:[%s4075 + $0x8] sm:$0xff]
        %v4078 = vld [vmem:[%s4075 + $0x10] sm:$0xff]
        %v4079 = vld [vmem:[%s4075 + $0x18] sm:$0xff]
        %v4080 = vld [vmem:[%s4075 + $0x20] sm:$0xff]
        %v4081 = vld [vmem:[%s4075 + $0x28] sm:$0xff]
        %v4082 = vld [vmem:[%s4075 + $0x30] sm:$0xff]
        %v4083 = vld [vmem:[%s4075 + $0x38] sm:$0xff]
        %v4084 = vld [vmem:[%s4075 + $0x40] sm:$0xff]
        %v4085 = vld [vmem:[%s4075 + $0x48] sm:$0xff]
        %v4086 = vld [vmem:[%s4075 + $0x50] sm:$0xff]
        %v4087 = vld [vmem:[%s4075 + $0x58] sm:$0xff]
        %v4088 = vld [vmem:[%s4075 + $0x60] sm:$0xff]
        %v4089 = vld [vmem:[%s4075 + $0x68] sm:$0xff]
        %v4090 = vld [vmem:[%s4075 + $0x70] sm:$0xff]
        %v4091 = vld [vmem:[%s4075 + $0x78] sm:$0xff]
        %v4092 = vrot.slane %v3768, 1
        %v4110 = vunpack.c.l.b16 %v4076
        %v4111 = vunpack.c.h.b16 %v4076
        %v4112 = vunpack.c.l.b16 %v4077
        %v4113 = vunpack.c.h.b16 %v4077
        %v4114 = vunpack.c.l.b16 %v4078
        %v4115 = vunpack.c.h.b16 %v4078
        %v4116 = vunpack.c.l.b16 %v4079
        %v4117 = vunpack.c.h.b16 %v4079
        %v4118 = vunpack.c.l.b16 %v4080
        %v4119 = vunpack.c.h.b16 %v4080
        %v4120 = vunpack.c.l.b16 %v4081
        %v4121 = vunpack.c.h.b16 %v4081
        %v4122 = vunpack.c.l.b16 %v4082
        %v4123 = vunpack.c.h.b16 %v4082
        %v4124 = vunpack.c.l.b16 %v4083
        %v4125 = vunpack.c.h.b16 %v4083
        %v4126 = vunpack.c.l.b16 %v4084
        %v4127 = vunpack.c.h.b16 %v4084
        %v4128 = vunpack.c.l.b16 %v4085
        %v4129 = vunpack.c.h.b16 %v4085
        %v4130 = vunpack.c.l.b16 %v4086
        %v4131 = vunpack.c.h.b16 %v4086
        %v4132 = vunpack.c.l.b16 %v4087
        %v4133 = vunpack.c.h.b16 %v4087
        %v4134 = vunpack.c.l.b16 %v4088
        %v4135 = vunpack.c.h.b16 %v4088
        %v4136 = vunpack.c.l.b16 %v4089
        %v4137 = vunpack.c.h.b16 %v4089
        %v4138 = vunpack.c.l.b16 %v4090
        %v4139 = vunpack.c.h.b16 %v4090
        %v4140 = vunpack.c.l.b16 %v4091
        %v4141 = vunpack.c.h.b16 %v4091
        %v4142 = vpack.c.b16 %v4112, %v4110
        %v4143 = vpack.c.b16 %v4113, %v4111
        %v4144 = vpack.c.b16 %v4116, %v4114
        %v4145 = vpack.c.b16 %v4117, %v4115
        %v4146 = vpack.c.b16 %v4120, %v4118
        %v4147 = vpack.c.b16 %v4121, %v4119
        %v4148 = vpack.c.b16 %v4124, %v4122
        %v4149 = vpack.c.b16 %v4125, %v4123
        %v4150 = vpack.c.b16 %v4128, %v4126
        %v4151 = vpack.c.b16 %v4129, %v4127
        %v4152 = vpack.c.b16 %v4132, %v4130
        %v4153 = vpack.c.b16 %v4133, %v4131
        %v4154 = vpack.c.b16 %v4136, %v4134
        %v4155 = vpack.c.b16 %v4137, %v4135
        %v4156 = vpack.c.b16 %v4140, %v4138
        %v4157 = vpack.c.b16 %v4141, %v4139
        %4174 = vmatprep.subr.bf16.mxu0 %v4143
        %4175 = vmatpush1.bf16.msra.mxu0 %v4142
        %4176 = vmatprep.subr.bf16.mxu0 %v4145
        %4177 = vmatpush1.bf16.msra.mxu0 %v4144
        %4178 = vmatprep.subr.bf16.mxu0 %v4147
        %4179 = vmatpush1.bf16.msra.mxu0 %v4146
        %4180 = vmatprep.subr.bf16.mxu0 %v4149
        %4181 = vmatpush1.bf16.msra.mxu0 %v4148
        %4182 = vmatprep.subr.bf16.mxu0 %v4151
        %4183 = vmatpush1.bf16.msra.mxu0 %v4150
        %4184 = vmatprep.subr.bf16.mxu0 %v4153
        %4185 = vmatpush1.bf16.msra.mxu0 %v4152
        %4186 = vmatprep.subr.bf16.mxu0 %v4155
        %4187 = vmatpush1.bf16.msra.mxu0 %v4154
        %4188 = vmatprep.subr.bf16.mxu0 %v4157
        %4189 = vmatpush1.bf16.msra.mxu0 %v4156
        %4190 = vmatprep.subr.bf16.mxu0 0
        %4191 = vmatpush1.bf16.msra.mxu0 0
        %4192 = vmatprep.subr.bf16.mxu0 0
        %4193 = vmatpush1.bf16.msra.mxu0 0
        %4194 = vmatprep.subr.bf16.mxu0 0
        %4195 = vmatpush1.bf16.msra.mxu0 0
        %4196 = vmatprep.subr.bf16.mxu0 0
        %4197 = vmatpush1.bf16.msra.mxu0 0
        %4198 = vmatprep.subr.bf16.mxu0 0
        %4199 = vmatpush1.bf16.msra.mxu0 0
        %4200 = vmatprep.subr.bf16.mxu0 0
        %4201 = vmatpush1.bf16.msra.mxu0 0
        %4202 = vmatprep.subr.bf16.mxu0 0
        %4203 = vmatpush1.bf16.msra.mxu0 0
        %4204 = vmatprep.subr.bf16.mxu0 0
        %4205 = vmatpush1.bf16.msra.mxu0 0
        %4206 = vmatprep.mubr.bf16.mxu0 0
        %4207 = vmatmul.mubr.bf16.gmra.mrb[0].mxu0 %v4092
        %v4208 = vpop.f32.mrb[0].mxu0
        %v4209 = vadd.f32 0.0, %v4208
        %v4210 = vpop.f32.mrb[0].mxu0
        %v4211 = vadd.f32 0.0, %v4210
        %v4212 = vpop.f32.mrb[0].mxu0
        %v4213 = vpop.f32.mrb[0].mxu0
        %4214 = vdwg.mxu0
        %v4217 = vcombine.low %v4209, %v4211
        %v4219 = vunpack.c.l.s4 1966171168
        %v4220 = vunpack.c.0.s8 %v4219
        %v4221 = vlaneseq
        %v4222 = vshrl.u32 %v4221, 7
        %v4223 = vsub.s32 %v4220, %v4222
        %v4224 = vrot.slane %v4217, %v4223
        %v4226 = vunpack.c.l.s4 1966171168
        %v4227 = vunpack.c.0.s8 %v4226
        %v4228 = vlaneseq
        %v4229 = vshrl.u32 %v4228, 7
        %v4230 = vsub.s32 %v4227, %v4229
        %v4231 = vrot.slane %v4224, %v4230
        %s4233 = scalar_lea.vmem [#allocation6], 3
        %4234 = vst.msk [vmem:[%s4233] ss:$8 sm:$0x3] %vm3747, %v4231
        %4235 = vst.msk [vmem:[%s4233] ss:$8 sm:$0x0] %vm3747, %v4231
        %s4236 = scalar_lea.vmem %s756, 512 [#allocation22]
        %v4237 = vld [vmem:[%s4236] sm:$0xff]
        %v4238 = vld [vmem:[%s4236 + $0x8] sm:$0xff]
        %v4239 = vld [vmem:[%s4236 + $0x10] sm:$0xff]
        %v4240 = vld [vmem:[%s4236 + $0x18] sm:$0xff]
        %v4241 = vld [vmem:[%s4236 + $0x20] sm:$0xff]
        %v4242 = vld [vmem:[%s4236 + $0x28] sm:$0xff]
        %v4243 = vld [vmem:[%s4236 + $0x30] sm:$0xff]
        %v4244 = vld [vmem:[%s4236 + $0x38] sm:$0xff]
        %v4245 = vld [vmem:[%s4236 + $0x40] sm:$0xff]
        %v4246 = vld [vmem:[%s4236 + $0x48] sm:$0xff]
        %v4247 = vld [vmem:[%s4236 + $0x50] sm:$0xff]
        %v4248 = vld [vmem:[%s4236 + $0x58] sm:$0xff]
        %v4249 = vld [vmem:[%s4236 + $0x60] sm:$0xff]
        %v4250 = vld [vmem:[%s4236 + $0x68] sm:$0xff]
        %v4251 = vld [vmem:[%s4236 + $0x70] sm:$0xff]
        %v4252 = vld [vmem:[%s4236 + $0x78] sm:$0xff]
        %v4253 = vrot.slane %v3588, 2
        %v4271 = vunpack.c.l.b16 %v4237
        %v4272 = vunpack.c.h.b16 %v4237
        %v4273 = vunpack.c.l.b16 %v4238
        %v4274 = vunpack.c.h.b16 %v4238
        %v4275 = vunpack.c.l.b16 %v4239
        %v4276 = vunpack.c.h.b16 %v4239
        %v4277 = vunpack.c.l.b16 %v4240
        %v4278 = vunpack.c.h.b16 %v4240
        %v4279 = vunpack.c.l.b16 %v4241
        %v4280 = vunpack.c.h.b16 %v4241
        %v4281 = vunpack.c.l.b16 %v4242
        %v4282 = vunpack.c.h.b16 %v4242
        %v4283 = vunpack.c.l.b16 %v4243
        %v4284 = vunpack.c.h.b16 %v4243
        %v4285 = vunpack.c.l.b16 %v4244
        %v4286 = vunpack.c.h.b16 %v4244
        %v4287 = vunpack.c.l.b16 %v4245
        %v4288 = vunpack.c.h.b16 %v4245
        %v4289 = vunpack.c.l.b16 %v4246
        %v4290 = vunpack.c.h.b16 %v4246
        %v4291 = vunpack.c.l.b16 %v4247
        %v4292 = vunpack.c.h.b16 %v4247
        %v4293 = vunpack.c.l.b16 %v4248
        %v4294 = vunpack.c.h.b16 %v4248
        %v4295 = vunpack.c.l.b16 %v4249
        %v4296 = vunpack.c.h.b16 %v4249
        %v4297 = vunpack.c.l.b16 %v4250
        %v4298 = vunpack.c.h.b16 %v4250
        %v4299 = vunpack.c.l.b16 %v4251
        %v4300 = vunpack.c.h.b16 %v4251
        %v4301 = vunpack.c.l.b16 %v4252
        %v4302 = vunpack.c.h.b16 %v4252
        %v4303 = vpack.c.b16 %v4273, %v4271
        %v4304 = vpack.c.b16 %v4274, %v4272
        %v4305 = vpack.c.b16 %v4277, %v4275
        %v4306 = vpack.c.b16 %v4278, %v4276
        %v4307 = vpack.c.b16 %v4281, %v4279
        %v4308 = vpack.c.b16 %v4282, %v4280
        %v4309 = vpack.c.b16 %v4285, %v4283
        %v4310 = vpack.c.b16 %v4286, %v4284
        %v4311 = vpack.c.b16 %v4289, %v4287
        %v4312 = vpack.c.b16 %v4290, %v4288
        %v4313 = vpack.c.b16 %v4293, %v4291
        %v4314 = vpack.c.b16 %v4294, %v4292
        %v4315 = vpack.c.b16 %v4297, %v4295
        %v4316 = vpack.c.b16 %v4298, %v4296
        %v4317 = vpack.c.b16 %v4301, %v4299
        %v4318 = vpack.c.b16 %v4302, %v4300
        %4335 = vmatprep.subr.bf16.mxu0 %v4304
        %4336 = vmatpush1.bf16.msra.mxu0 %v4303
        %4337 = vmatprep.subr.bf16.mxu0 %v4306
        %4338 = vmatpush1.bf16.msra.mxu0 %v4305
        %4339 = vmatprep.subr.bf16.mxu0 %v4308
        %4340 = vmatpush1.bf16.msra.mxu0 %v4307
        %4341 = vmatprep.subr.bf16.mxu0 %v4310
        %4342 = vmatpush1.bf16.msra.mxu0 %v4309
        %4343 = vmatprep.subr.bf16.mxu0 %v4312
        %4344 = vmatpush1.bf16.msra.mxu0 %v4311
        %4345 = vmatprep.subr.bf16.mxu0 %v4314
        %4346 = vmatpush1.bf16.msra.mxu0 %v4313
        %4347 = vmatprep.subr.bf16.mxu0 %v4316
        %4348 = vmatpush1.bf16.msra.mxu0 %v4315
        %4349 = vmatprep.subr.bf16.mxu0 %v4318
        %4350 = vmatpush1.bf16.msra.mxu0 %v4317
        %4351 = vmatprep.subr.bf16.mxu0 0
        %4352 = vmatpush1.bf16.msra.mxu0 0
        %4353 = vmatprep.subr.bf16.mxu0 0
        %4354 = vmatpush1.bf16.msra.mxu0 0
        %4355 = vmatprep.subr.bf16.mxu0 0
        %4356 = vmatpush1.bf16.msra.mxu0 0
        %4357 = vmatprep.subr.bf16.mxu0 0
        %4358 = vmatpush1.bf16.msra.mxu0 0
        %4359 = vmatprep.subr.bf16.mxu0 0
        %4360 = vmatpush1.bf16.msra.mxu0 0
        %4361 = vmatprep.subr.bf16.mxu0 0
        %4362 = vmatpush1.bf16.msra.mxu0 0
        %4363 = vmatprep.subr.bf16.mxu0 0
        %4364 = vmatpush1.bf16.msra.mxu0 0
        %4365 = vmatprep.subr.bf16.mxu0 0
        %4366 = vmatpush1.bf16.msra.mxu0 0
        %4367 = vmatprep.mubr.bf16.mxu0 0
        %4368 = vmatmul.mubr.bf16.gmra.mrb[0].mxu0 %v4253
        %v4369 = vpop.f32.mrb[0].mxu0
        %v4370 = vadd.f32 0.0, %v4369
        %v4371 = vpop.f32.mrb[0].mxu0
        %v4372 = vadd.f32 0.0, %v4371
        %v4373 = vpop.f32.mrb[0].mxu0
        %v4374 = vpop.f32.mrb[0].mxu0
        %4375 = vdwg.mxu0
        %v4378 = vcombine.low %v4370, %v4372
        %v4380 = vunpack.c.l.s4 1966171168
        %v4381 = vunpack.c.0.s8 %v4380
        %v4382 = vlaneseq
        %v4383 = vshrl.u32 %v4382, 7
        %v4384 = vsub.s32 %v4381, %v4383
        %v4385 = vrot.slane %v4378, %v4384
        %v4387 = vunpack.c.l.s4 1966171168
        %v4388 = vunpack.c.0.s8 %v4387
        %v4389 = vlaneseq
        %v4390 = vshrl.u32 %v4389, 7
        %v4391 = vsub.s32 %v4388, %v4390
        %v4392 = vrot.slane %v4385, %v4391
        %s4394 = scalar_lea.vmem [#allocation6], 4
        %4395 = vst.msk [vmem:[%s4394] ss:$8 sm:$0x3] %vm3747, %v4392
        %4396 = vst.msk [vmem:[%s4394] ss:$8 sm:$0x0] %vm3747, %v4392
        %s4397 = scalar_lea.vmem %s756, 640 [#allocation22]
        %v4398 = vld [vmem:[%s4397] sm:$0xff]
        %v4399 = vld [vmem:[%s4397 + $0x8] sm:$0xff]
        %v4400 = vld [vmem:[%s4397 + $0x10] sm:$0xff]
        %v4401 = vld [vmem:[%s4397 + $0x18] sm:$0xff]
        %v4402 = vld [vmem:[%s4397 + $0x20] sm:$0xff]
        %v4403 = vld [vmem:[%s4397 + $0x28] sm:$0xff]
        %v4404 = vld [vmem:[%s4397 + $0x30] sm:$0xff]
        %v4405 = vld [vmem:[%s4397 + $0x38] sm:$0xff]
        %v4406 = vld [vmem:[%s4397 + $0x40] sm:$0xff]
        %v4407 = vld [vmem:[%s4397 + $0x48] sm:$0xff]
        %v4408 = vld [vmem:[%s4397 + $0x50] sm:$0xff]
        %v4409 = vld [vmem:[%s4397 + $0x58] sm:$0xff]
        %v4410 = vld [vmem:[%s4397 + $0x60] sm:$0xff]
        %v4411 = vld [vmem:[%s4397 + $0x68] sm:$0xff]
        %v4412 = vld [vmem:[%s4397 + $0x70] sm:$0xff]
        %v4413 = vld [vmem:[%s4397 + $0x78] sm:$0xff]
        %v4414 = vrot.slane %v3768, 2
        %v4432 = vunpack.c.l.b16 %v4398
        %v4433 = vunpack.c.h.b16 %v4398
        %v4434 = vunpack.c.l.b16 %v4399
        %v4435 = vunpack.c.h.b16 %v4399
        %v4436 = vunpack.c.l.b16 %v4400
        %v4437 = vunpack.c.h.b16 %v4400
        %v4438 = vunpack.c.l.b16 %v4401
        %v4439 = vunpack.c.h.b16 %v4401
        %v4440 = vunpack.c.l.b16 %v4402
        %v4441 = vunpack.c.h.b16 %v4402
        %v4442 = vunpack.c.l.b16 %v4403
        %v4443 = vunpack.c.h.b16 %v4403
        %v4444 = vunpack.c.l.b16 %v4404
        %v4445 = vunpack.c.h.b16 %v4404
        %v4446 = vunpack.c.l.b16 %v4405
        %v4447 = vunpack.c.h.b16 %v4405
        %v4448 = vunpack.c.l.b16 %v4406
        %v4449 = vunpack.c.h.b16 %v4406
        %v4450 = vunpack.c.l.b16 %v4407
        %v4451 = vunpack.c.h.b16 %v4407
        %v4452 = vunpack.c.l.b16 %v4408
        %v4453 = vunpack.c.h.b16 %v4408
        %v4454 = vunpack.c.l.b16 %v4409
        %v4455 = vunpack.c.h.b16 %v4409
        %v4456 = vunpack.c.l.b16 %v4410
        %v4457 = vunpack.c.h.b16 %v4410
        %v4458 = vunpack.c.l.b16 %v4411
        %v4459 = vunpack.c.h.b16 %v4411
        %v4460 = vunpack.c.l.b16 %v4412
        %v4461 = vunpack.c.h.b16 %v4412
        %v4462 = vunpack.c.l.b16 %v4413
        %v4463 = vunpack.c.h.b16 %v4413
        %v4464 = vpack.c.b16 %v4434, %v4432
        %v4465 = vpack.c.b16 %v4435, %v4433
        %v4466 = vpack.c.b16 %v4438, %v4436
        %v4467 = vpack.c.b16 %v4439, %v4437
        %v4468 = vpack.c.b16 %v4442, %v4440
        %v4469 = vpack.c.b16 %v4443, %v4441
        %v4470 = vpack.c.b16 %v4446, %v4444
        %v4471 = vpack.c.b16 %v4447, %v4445
        %v4472 = vpack.c.b16 %v4450, %v4448
        %v4473 = vpack.c.b16 %v4451, %v4449
        %v4474 = vpack.c.b16 %v4454, %v4452
        %v4475 = vpack.c.b16 %v4455, %v4453
        %v4476 = vpack.c.b16 %v4458, %v4456
        %v4477 = vpack.c.b16 %v4459, %v4457
        %v4478 = vpack.c.b16 %v4462, %v4460
        %v4479 = vpack.c.b16 %v4463, %v4461
        %4496 = vmatprep.subr.bf16.mxu0 %v4465
        %4497 = vmatpush1.bf16.msra.mxu0 %v4464
        %4498 = vmatprep.subr.bf16.mxu0 %v4467
        %4499 = vmatpush1.bf16.msra.mxu0 %v4466
        %4500 = vmatprep.subr.bf16.mxu0 %v4469
        %4501 = vmatpush1.bf16.msra.mxu0 %v4468
        %4502 = vmatprep.subr.bf16.mxu0 %v4471
        %4503 = vmatpush1.bf16.msra.mxu0 %v4470
        %4504 = vmatprep.subr.bf16.mxu0 %v4473
        %4505 = vmatpush1.bf16.msra.mxu0 %v4472
        %4506 = vmatprep.subr.bf16.mxu0 %v4475
        %4507 = vmatpush1.bf16.msra.mxu0 %v4474
        %4508 = vmatprep.subr.bf16.mxu0 %v4477
        %4509 = vmatpush1.bf16.msra.mxu0 %v4476
        %4510 = vmatprep.subr.bf16.mxu0 %v4479
        %4511 = vmatpush1.bf16.msra.mxu0 %v4478
        %4512 = vmatprep.subr.bf16.mxu0 0
        %4513 = vmatpush1.bf16.msra.mxu0 0
        %4514 = vmatprep.subr.bf16.mxu0 0
        %4515 = vmatpush1.bf16.msra.mxu0 0
        %4516 = vmatprep.subr.bf16.mxu0 0
        %4517 = vmatpush1.bf16.msra.mxu0 0
        %4518 = vmatprep.subr.bf16.mxu0 0
        %4519 = vmatpush1.bf16.msra.mxu0 0
        %4520 = vmatprep.subr.bf16.mxu0 0
        %4521 = vmatpush1.bf16.msra.mxu0 0
        %4522 = vmatprep.subr.bf16.mxu0 0
        %4523 = vmatpush1.bf16.msra.mxu0 0
        %4524 = vmatprep.subr.bf16.mxu0 0
        %4525 = vmatpush1.bf16.msra.mxu0 0
        %4526 = vmatprep.subr.bf16.mxu0 0
        %4527 = vmatpush1.bf16.msra.mxu0 0
        %4528 = vmatprep.mubr.bf16.mxu0 0
        %4529 = vmatmul.mubr.bf16.gmra.mrb[0].mxu0 %v4414
        %v4530 = vpop.f32.mrb[0].mxu0
        %v4531 = vadd.f32 0.0, %v4530
        %v4532 = vpop.f32.mrb[0].mxu0
        %v4533 = vadd.f32 0.0, %v4532
        %v4534 = vpop.f32.mrb[0].mxu0
        %v4535 = vpop.f32.mrb[0].mxu0
        %4536 = vdwg.mxu0
        %v4539 = vcombine.low %v4531, %v4533
        %v4541 = vunpack.c.l.s4 1966171168
        %v4542 = vunpack.c.0.s8 %v4541
        %v4543 = vlaneseq
        %v4544 = vshrl.u32 %v4543, 7
        %v4545 = vsub.s32 %v4542, %v4544
        %v4546 = vrot.slane %v4539, %v4545
        %v4548 = vunpack.c.l.s4 1966171168
        %v4549 = vunpack.c.0.s8 %v4548
        %v4550 = vlaneseq
        %v4551 = vshrl.u32 %v4550, 7
        %v4552 = vsub.s32 %v4549, %v4551
        %v4553 = vrot.slane %v4546, %v4552
        %s4555 = scalar_lea.vmem [#allocation6], 5
        %4556 = vst.msk [vmem:[%s4555] ss:$8 sm:$0x3] %vm3747, %v4553
        %4557 = vst.msk [vmem:[%s4555] ss:$8 sm:$0x0] %vm3747, %v4553
        %s4558 = scalar_lea.vmem %s756, 768 [#allocation22]
        %v4559 = vld [vmem:[%s4558] sm:$0xff]
        %v4560 = vld [vmem:[%s4558 + $0x8] sm:$0xff]
        %v4561 = vld [vmem:[%s4558 + $0x10] sm:$0xff]
        %v4562 = vld [vmem:[%s4558 + $0x18] sm:$0xff]
        %v4563 = vld [vmem:[%s4558 + $0x20] sm:$0xff]
        %v4564 = vld [vmem:[%s4558 + $0x28] sm:$0xff]
        %v4565 = vld [vmem:[%s4558 + $0x30] sm:$0xff]
        %v4566 = vld [vmem:[%s4558 + $0x38] sm:$0xff]
        %v4567 = vld [vmem:[%s4558 + $0x40] sm:$0xff]
        %v4568 = vld [vmem:[%s4558 + $0x48] sm:$0xff]
        %v4569 = vld [vmem:[%s4558 + $0x50] sm:$0xff]
        %v4570 = vld [vmem:[%s4558 + $0x58] sm:$0xff]
        %v4571 = vld [vmem:[%s4558 + $0x60] sm:$0xff]
        %v4572 = vld [vmem:[%s4558 + $0x68] sm:$0xff]
        %v4573 = vld [vmem:[%s4558 + $0x70] sm:$0xff]
        %v4574 = vld [vmem:[%s4558 + $0x78] sm:$0xff]
        %v4575 = vrot.slane %v3588, 3
        %v4593 = vunpack.c.l.b16 %v4559
        %v4594 = vunpack.c.h.b16 %v4559
        %v4595 = vunpack.c.l.b16 %v4560
        %v4596 = vunpack.c.h.b16 %v4560
        %v4597 = vunpack.c.l.b16 %v4561
        %v4598 = vunpack.c.h.b16 %v4561
        %v4599 = vunpack.c.l.b16 %v4562
        %v4600 = vunpack.c.h.b16 %v4562
        %v4601 = vunpack.c.l.b16 %v4563
        %v4602 = vunpack.c.h.b16 %v4563
        %v4603 = vunpack.c.l.b16 %v4564
        %v4604 = vunpack.c.h.b16 %v4564
        %v4605 = vunpack.c.l.b16 %v4565
        %v4606 = vunpack.c.h.b16 %v4565
        %v4607 = vunpack.c.l.b16 %v4566
        %v4608 = vunpack.c.h.b16 %v4566
        %v4609 = vunpack.c.l.b16 %v4567
        %v4610 = vunpack.c.h.b16 %v4567
        %v4611 = vunpack.c.l.b16 %v4568
        %v4612 = vunpack.c.h.b16 %v4568
        %v4613 = vunpack.c.l.b16 %v4569
        %v4614 = vunpack.c.h.b16 %v4569
        %v4615 = vunpack.c.l.b16 %v4570
        %v4616 = vunpack.c.h.b16 %v4570
        %v4617 = vunpack.c.l.b16 %v4571
        %v4618 = vunpack.c.h.b16 %v4571
        %v4619 = vunpack.c.l.b16 %v4572
        %v4620 = vunpack.c.h.b16 %v4572
        %v4621 = vunpack.c.l.b16 %v4573
        %v4622 = vunpack.c.h.b16 %v4573
        %v4623 = vunpack.c.l.b16 %v4574
        %v4624 = vunpack.c.h.b16 %v4574
        %v4625 = vpack.c.b16 %v4595, %v4593
        %v4626 = vpack.c.b16 %v4596, %v4594
        %v4627 = vpack.c.b16 %v4599, %v4597
        %v4628 = vpack.c.b16 %v4600, %v4598
        %v4629 = vpack.c.b16 %v4603, %v4601
        %v4630 = vpack.c.b16 %v4604, %v4602
        %v4631 = vpack.c.b16 %v4607, %v4605
        %v4632 = vpack.c.b16 %v4608, %v4606
        %v4633 = vpack.c.b16 %v4611, %v4609
        %v4634 = vpack.c.b16 %v4612, %v4610
        %v4635 = vpack.c.b16 %v4615, %v4613
        %v4636 = vpack.c.b16 %v4616, %v4614
        %v4637 = vpack.c.b16 %v4619, %v4617
        %v4638 = vpack.c.b16 %v4620, %v4618
        %v4639 = vpack.c.b16 %v4623, %v4621
        %v4640 = vpack.c.b16 %v4624, %v4622
        %4657 = vmatprep.subr.bf16.mxu0 %v4626
        %4658 = vmatpush1.bf16.msra.mxu0 %v4625
        %4659 = vmatprep.subr.bf16.mxu0 %v4628
        %4660 = vmatpush1.bf16.msra.mxu0 %v4627
        %4661 = vmatprep.subr.bf16.mxu0 %v4630
        %4662 = vmatpush1.bf16.msra.mxu0 %v4629
        %4663 = vmatprep.subr.bf16.mxu0 %v4632
        %4664 = vmatpush1.bf16.msra.mxu0 %v4631
        %4665 = vmatprep.subr.bf16.mxu0 %v4634
        %4666 = vmatpush1.bf16.msra.mxu0 %v4633
        %4667 = vmatprep.subr.bf16.mxu0 %v4636
        %4668 = vmatpush1.bf16.msra.mxu0 %v4635
        %4669 = vmatprep.subr.bf16.mxu0 %v4638
        %4670 = vmatpush1.bf16.msra.mxu0 %v4637
        %4671 = vmatprep.subr.bf16.mxu0 %v4640
        %4672 = vmatpush1.bf16.msra.mxu0 %v4639
        %4673 = vmatprep.subr.bf16.mxu0 0
        %4674 = vmatpush1.bf16.msra.mxu0 0
        %4675 = vmatprep.subr.bf16.mxu0 0
        %4676 = vmatpush1.bf16.msra.mxu0 0
        %4677 = vmatprep.subr.bf16.mxu0 0
        %4678 = vmatpush1.bf16.msra.mxu0 0
        %4679 = vmatprep.subr.bf16.mxu0 0
        %4680 = vmatpush1.bf16.msra.mxu0 0
        %4681 = vmatprep.subr.bf16.mxu0 0
        %4682 = vmatpush1.bf16.msra.mxu0 0
        %4683 = vmatprep.subr.bf16.mxu0 0
        %4684 = vmatpush1.bf16.msra.mxu0 0
        %4685 = vmatprep.subr.bf16.mxu0 0
        %4686 = vmatpush1.bf16.msra.mxu0 0
        %4687 = vmatprep.subr.bf16.mxu0 0
        %4688 = vmatpush1.bf16.msra.mxu0 0
        %4689 = vmatprep.mubr.bf16.mxu0 0
        %4690 = vmatmul.mubr.bf16.gmra.mrb[0].mxu0 %v4575
        %v4691 = vpop.f32.mrb[0].mxu0
        %v4692 = vadd.f32 0.0, %v4691
        %v4693 = vpop.f32.mrb[0].mxu0
        %v4694 = vadd.f32 0.0, %v4693
        %v4695 = vpop.f32.mrb[0].mxu0
        %v4696 = vpop.f32.mrb[0].mxu0
        %4697 = vdwg.mxu0
        %v4700 = vcombine.low %v4692, %v4694
        %v4702 = vunpack.c.l.s4 1966171168
        %v4703 = vunpack.c.0.s8 %v4702
        %v4704 = vlaneseq
        %v4705 = vshrl.u32 %v4704, 7
        %v4706 = vsub.s32 %v4703, %v4705
        %v4707 = vrot.slane %v4700, %v4706
        %v4709 = vunpack.c.l.s4 1966171168
        %v4710 = vunpack.c.0.s8 %v4709
        %v4711 = vlaneseq
        %v4712 = vshrl.u32 %v4711, 7
        %v4713 = vsub.s32 %v4710, %v4712
        %v4714 = vrot.slane %v4707, %v4713
        %s4716 = scalar_lea.vmem [#allocation6], 6
        %4717 = vst.msk [vmem:[%s4716] ss:$8 sm:$0x3] %vm3747, %v4714
        %4718 = vst.msk [vmem:[%s4716] ss:$8 sm:$0x0] %vm3747, %v4714
        %s4719 = scalar_lea.vmem %s756, 896 [#allocation22]
        %v4720 = vld [vmem:[%s4719] sm:$0xff]
        %v4721 = vld [vmem:[%s4719 + $0x8] sm:$0xff]
        %v4722 = vld [vmem:[%s4719 + $0x10] sm:$0xff]
        %v4723 = vld [vmem:[%s4719 + $0x18] sm:$0xff]
        %v4724 = vld [vmem:[%s4719 + $0x20] sm:$0xff]
        %v4725 = vld [vmem:[%s4719 + $0x28] sm:$0xff]
        %v4726 = vld [vmem:[%s4719 + $0x30] sm:$0xff]
        %v4727 = vld [vmem:[%s4719 + $0x38] sm:$0xff]
        %v4728 = vld [vmem:[%s4719 + $0x40] sm:$0xff]
        %v4729 = vld [vmem:[%s4719 + $0x48] sm:$0xff]
        %v4730 = vld [vmem:[%s4719 + $0x50] sm:$0xff]
        %v4731 = vld [vmem:[%s4719 + $0x58] sm:$0xff]
        %v4732 = vld [vmem:[%s4719 + $0x60] sm:$0xff]
        %v4733 = vld [vmem:[%s4719 + $0x68] sm:$0xff]
        %v4734 = vld [vmem:[%s4719 + $0x70] sm:$0xff]
        %v4735 = vld [vmem:[%s4719 + $0x78] sm:$0xff]
        %v4736 = vrot.slane %v3768, 3
        %v4754 = vunpack.c.l.b16 %v4720
        %v4755 = vunpack.c.h.b16 %v4720
        %v4756 = vunpack.c.l.b16 %v4721
        %v4757 = vunpack.c.h.b16 %v4721
        %v4758 = vunpack.c.l.b16 %v4722
        %v4759 = vunpack.c.h.b16 %v4722
        %v4760 = vunpack.c.l.b16 %v4723
        %v4761 = vunpack.c.h.b16 %v4723
        %v4762 = vunpack.c.l.b16 %v4724
        %v4763 = vunpack.c.h.b16 %v4724
        %v4764 = vunpack.c.l.b16 %v4725
        %v4765 = vunpack.c.h.b16 %v4725
        %v4766 = vunpack.c.l.b16 %v4726
        %v4767 = vunpack.c.h.b16 %v4726
        %v4768 = vunpack.c.l.b16 %v4727
        %v4769 = vunpack.c.h.b16 %v4727
        %v4770 = vunpack.c.l.b16 %v4728
        %v4771 = vunpack.c.h.b16 %v4728
        %v4772 = vunpack.c.l.b16 %v4729
        %v4773 = vunpack.c.h.b16 %v4729
        %v4774 = vunpack.c.l.b16 %v4730
        %v4775 = vunpack.c.h.b16 %v4730
        %v4776 = vunpack.c.l.b16 %v4731
        %v4777 = vunpack.c.h.b16 %v4731
        %v4778 = vunpack.c.l.b16 %v4732
        %v4779 = vunpack.c.h.b16 %v4732
        %v4780 = vunpack.c.l.b16 %v4733
        %v4781 = vunpack.c.h.b16 %v4733
        %v4782 = vunpack.c.l.b16 %v4734
        %v4783 = vunpack.c.h.b16 %v4734
        %v4784 = vunpack.c.l.b16 %v4735
        %v4785 = vunpack.c.h.b16 %v4735
        %v4786 = vpack.c.b16 %v4756, %v4754
        %v4787 = vpack.c.b16 %v4757, %v4755
        %v4788 = vpack.c.b16 %v4760, %v4758
        %v4789 = vpack.c.b16 %v4761, %v4759
        %v4790 = vpack.c.b16 %v4764, %v4762
        %v4791 = vpack.c.b16 %v4765, %v4763
        %v4792 = vpack.c.b16 %v4768, %v4766
        %v4793 = vpack.c.b16 %v4769, %v4767
        %v4794 = vpack.c.b16 %v4772, %v4770
        %v4795 = vpack.c.b16 %v4773, %v4771
        %v4796 = vpack.c.b16 %v4776, %v4774
        %v4797 = vpack.c.b16 %v4777, %v4775
        %v4798 = vpack.c.b16 %v4780, %v4778
        %v4799 = vpack.c.b16 %v4781, %v4779
        %v4800 = vpack.c.b16 %v4784, %v4782
        %v4801 = vpack.c.b16 %v4785, %v4783
        %4818 = vmatprep.subr.bf16.mxu0 %v4787
        %4819 = vmatpush1.bf16.msra.mxu0 %v4786
        %4820 = vmatprep.subr.bf16.mxu0 %v4789
        %4821 = vmatpush1.bf16.msra.mxu0 %v4788
        %4822 = vmatprep.subr.bf16.mxu0 %v4791
        %4823 = vmatpush1.bf16.msra.mxu0 %v4790
        %4824 = vmatprep.subr.bf16.mxu0 %v4793
        %4825 = vmatpush1.bf16.msra.mxu0 %v4792
        %4826 = vmatprep.subr.bf16.mxu0 %v4795
        %4827 = vmatpush1.bf16.msra.mxu0 %v4794
        %4828 = vmatprep.subr.bf16.mxu0 %v4797
        %4829 = vmatpush1.bf16.msra.mxu0 %v4796
        %4830 = vmatprep.subr.bf16.mxu0 %v4799
        %4831 = vmatpush1.bf16.msra.mxu0 %v4798
        %4832 = vmatprep.subr.bf16.mxu0 %v4801
        %4833 = vmatpush1.bf16.msra.mxu0 %v4800
        %4834 = vmatprep.subr.bf16.mxu0 0
        %4835 = vmatpush1.bf16.msra.mxu0 0
        %4836 = vmatprep.subr.bf16.mxu0 0
        %4837 = vmatpush1.bf16.msra.mxu0 0
        %4838 = vmatprep.subr.bf16.mxu0 0
        %4839 = vmatpush1.bf16.msra.mxu0 0
        %4840 = vmatprep.subr.bf16.mxu0 0
        %4841 = vmatpush1.bf16.msra.mxu0 0
        %4842 = vmatprep.subr.bf16.mxu0 0
        %4843 = vmatpush1.bf16.msra.mxu0 0
        %4844 = vmatprep.subr.bf16.mxu0 0
        %4845 = vmatpush1.bf16.msra.mxu0 0
        %4846 = vmatprep.subr.bf16.mxu0 0
        %4847 = vmatpush1.bf16.msra.mxu0 0
        %4848 = vmatprep.subr.bf16.mxu0 0
        %4849 = vmatpush1.bf16.msra.mxu0 0
        %4850 = vmatprep.mubr.bf16.mxu0 0
        %4851 = vmatmul.mubr.bf16.gmra.mrb[0].mxu0 %v4736
        %v4852 = vpop.f32.mrb[0].mxu0
        %v4853 = vadd.f32 0.0, %v4852
        %v4854 = vpop.f32.mrb[0].mxu0
        %v4855 = vadd.f32 0.0, %v4854
        %v4856 = vpop.f32.mrb[0].mxu0
        %v4857 = vpop.f32.mrb[0].mxu0
        %4858 = vdwg.mxu0
        %v4861 = vcombine.low %v4853, %v4855
        %v4863 = vunpack.c.l.s4 1966171168
        %v4864 = vunpack.c.0.s8 %v4863
        %v4865 = vlaneseq
        %v4866 = vshrl.u32 %v4865, 7
        %v4867 = vsub.s32 %v4864, %v4866
        %v4868 = vrot.slane %v4861, %v4867
        %v4870 = vunpack.c.l.s4 1966171168
        %v4871 = vunpack.c.0.s8 %v4870
        %v4872 = vlaneseq
        %v4873 = vshrl.u32 %v4872, 7
        %v4874 = vsub.s32 %v4871, %v4873
        %v4875 = vrot.slane %v4868, %v4874
        %s4877 = scalar_lea.vmem [#allocation6], 7
        %4878 = vst.msk [vmem:[%s4877] ss:$8 sm:$0x3] %vm3747, %v4875
        %4879 = vst.msk [vmem:[%s4877] ss:$8 sm:$0x0] %vm3747, %v4875
        %s4880 = scalar_lea.vmem %s756, 1024 [#allocation22]
        %v4881 = vld [vmem:[%s4880] sm:$0xff]
        %v4882 = vld [vmem:[%s4880 + $0x8] sm:$0xff]
        %v4883 = vld [vmem:[%s4880 + $0x10] sm:$0xff]
        %v4884 = vld [vmem:[%s4880 + $0x18] sm:$0xff]
        %v4885 = vld [vmem:[%s4880 + $0x20] sm:$0xff]
        %v4886 = vld [vmem:[%s4880 + $0x28] sm:$0xff]
        %v4887 = vld [vmem:[%s4880 + $0x30] sm:$0xff]
        %v4888 = vld [vmem:[%s4880 + $0x38] sm:$0xff]
        %v4889 = vld [vmem:[%s4880 + $0x40] sm:$0xff]
        %v4890 = vld [vmem:[%s4880 + $0x48] sm:$0xff]
        %v4891 = vld [vmem:[%s4880 + $0x50] sm:$0xff]
        %v4892 = vld [vmem:[%s4880 + $0x58] sm:$0xff]
        %v4893 = vld [vmem:[%s4880 + $0x60] sm:$0xff]
        %v4894 = vld [vmem:[%s4880 + $0x68] sm:$0xff]
        %v4895 = vld [vmem:[%s4880 + $0x70] sm:$0xff]
        %v4896 = vld [vmem:[%s4880 + $0x78] sm:$0xff]
        %v4897 = vrot.slane %v3588, 4
        %v4915 = vunpack.c.l.b16 %v4881
        %v4916 = vunpack.c.h.b16 %v4881
        %v4917 = vunpack.c.l.b16 %v4882
        %v4918 = vunpack.c.h.b16 %v4882
        %v4919 = vunpack.c.l.b16 %v4883
        %v4920 = vunpack.c.h.b16 %v4883
        %v4921 = vunpack.c.l.b16 %v4884
        %v4922 = vunpack.c.h.b16 %v4884
        %v4923 = vunpack.c.l.b16 %v4885
        %v4924 = vunpack.c.h.b16 %v4885
        %v4925 = vunpack.c.l.b16 %v4886
        %v4926 = vunpack.c.h.b16 %v4886
        %v4927 = vunpack.c.l.b16 %v4887
        %v4928 = vunpack.c.h.b16 %v4887
        %v4929 = vunpack.c.l.b16 %v4888
        %v4930 = vunpack.c.h.b16 %v4888
        %v4931 = vunpack.c.l.b16 %v4889
        %v4932 = vunpack.c.h.b16 %v4889
        %v4933 = vunpack.c.l.b16 %v4890
        %v4934 = vunpack.c.h.b16 %v4890
        %v4935 = vunpack.c.l.b16 %v4891
        %v4936 = vunpack.c.h.b16 %v4891
        %v4937 = vunpack.c.l.b16 %v4892
        %v4938 = vunpack.c.h.b16 %v4892
        %v4939 = vunpack.c.l.b16 %v4893
        %v4940 = vunpack.c.h.b16 %v4893
        %v4941 = vunpack.c.l.b16 %v4894
        %v4942 = vunpack.c.h.b16 %v4894
        %v4943 = vunpack.c.l.b16 %v4895
        %v4944 = vunpack.c.h.b16 %v4895
        %v4945 = vunpack.c.l.b16 %v4896
        %v4946 = vunpack.c.h.b16 %v4896
        %v4947 = vpack.c.b16 %v4917, %v4915
        %v4948 = vpack.c.b16 %v4918, %v4916
        %v4949 = vpack.c.b16 %v4921, %v4919
        %v4950 = vpack.c.b16 %v4922, %v4920
        %v4951 = vpack.c.b16 %v4925, %v4923
        %v4952 = vpack.c.b16 %v4926, %v4924
        %v4953 = vpack.c.b16 %v4929, %v4927
        %v4954 = vpack.c.b16 %v4930, %v4928
        %v4955 = vpack.c.b16 %v4933, %v4931
        %v4956 = vpack.c.b16 %v4934, %v4932
        %v4957 = vpack.c.b16 %v4937, %v4935
        %v4958 = vpack.c.b16 %v4938, %v4936
        %v4959 = vpack.c.b16 %v4941, %v4939
        %v4960 = vpack.c.b16 %v4942, %v4940
        %v4961 = vpack.c.b16 %v4945, %v4943
        %v4962 = vpack.c.b16 %v4946, %v4944
        %4979 = vmatprep.subr.bf16.mxu0 %v4948
        %4980 = vmatpush1.bf16.msra.mxu0 %v4947
        %4981 = vmatprep.subr.bf16.mxu0 %v4950
        %4982 = vmatpush1.bf16.msra.mxu0 %v4949
        %4983 = vmatprep.subr.bf16.mxu0 %v4952
        %4984 = vmatpush1.bf16.msra.mxu0 %v4951
        %4985 = vmatprep.subr.bf16.mxu0 %v4954
        %4986 = vmatpush1.bf16.msra.mxu0 %v4953
        %4987 = vmatprep.subr.bf16.mxu0 %v4956
        %4988 = vmatpush1.bf16.msra.mxu0 %v4955
        %4989 = vmatprep.subr.bf16.mxu0 %v4958
        %4990 = vmatpush1.bf16.msra.mxu0 %v4957
        %4991 = vmatprep.subr.bf16.mxu0 %v4960
        %4992 = vmatpush1.bf16.msra.mxu0 %v4959
        %4993 = vmatprep.subr.bf16.mxu0 %v4962
        %4994 = vmatpush1.bf16.msra.mxu0 %v4961
        %4995 = vmatprep.subr.bf16.mxu0 0
        %4996 = vmatpush1.bf16.msra.mxu0 0
        %4997 = vmatprep.subr.bf16.mxu0 0
        %4998 = vmatpush1.bf16.msra.mxu0 0
        %4999 = vmatprep.subr.bf16.mxu0 0
        %5000 = vmatpush1.bf16.msra.mxu0 0
        %5001 = vmatprep.subr.bf16.mxu0 0
        %5002 = vmatpush1.bf16.msra.mxu0 0
        %5003 = vmatprep.subr.bf16.mxu0 0
        %5004 = vmatpush1.bf16.msra.mxu0 0
        %5005 = vmatprep.subr.bf16.mxu0 0
        %5006 = vmatpush1.bf16.msra.mxu0 0
        %5007 = vmatprep.subr.bf16.mxu0 0
        %5008 = vmatpush1.bf16.msra.mxu0 0
        %5009 = vmatprep.subr.bf16.mxu0 0
        %5010 = vmatpush1.bf16.msra.mxu0 0
        %5011 = vmatprep.mubr.bf16.mxu0 0
        %5012 = vmatmul.mubr.bf16.gmra.mrb[0].mxu0 %v4897
        %v5013 = vpop.f32.mrb[0].mxu0
        %v5014 = vadd.f32 0.0, %v5013
        %v5015 = vpop.f32.mrb[0].mxu0
        %v5016 = vadd.f32 0.0, %v5015
        %v5017 = vpop.f32.mrb[0].mxu0
        %v5018 = vpop.f32.mrb[0].mxu0
        %5019 = vdwg.mxu0
        %v5022 = vcombine.low %v5014, %v5016
        %v5024 = vunpack.c.l.s4 1966171168
        %v5025 = vunpack.c.0.s8 %v5024
        %v5026 = vlaneseq
        %v5027 = vshrl.u32 %v5026, 7
        %v5028 = vsub.s32 %v5025, %v5027
        %v5029 = vrot.slane %v5022, %v5028
        %v5031 = vunpack.c.l.s4 1966171168
        %v5032 = vunpack.c.0.s8 %v5031
        %v5033 = vlaneseq
        %v5034 = vshrl.u32 %v5033, 7
        %v5035 = vsub.s32 %v5032, %v5034
        %v5036 = vrot.slane %v5029, %v5035
        %s5038 = scalar_lea.vmem [#allocation6], 16
        %5039 = vst.msk [vmem:[%s5038] ss:$8 sm:$0x3] %vm3747, %v5036
        %5040 = vst.msk [vmem:[%s5038] ss:$8 sm:$0x0] %vm3747, %v5036
        %s5041 = scalar_lea.vmem %s756, 1152 [#allocation22]
        %v5042 = vld [vmem:[%s5041] sm:$0xff]
        %v5043 = vld [vmem:[%s5041 + $0x8] sm:$0xff]
        %v5044 = vld [vmem:[%s5041 + $0x10] sm:$0xff]
        %v5045 = vld [vmem:[%s5041 + $0x18] sm:$0xff]
        %v5046 = vld [vmem:[%s5041 + $0x20] sm:$0xff]
        %v5047 = vld [vmem:[%s5041 + $0x28] sm:$0xff]
        %v5048 = vld [vmem:[%s5041 + $0x30] sm:$0xff]
        %v5049 = vld [vmem:[%s5041 + $0x38] sm:$0xff]
        %v5050 = vld [vmem:[%s5041 + $0x40] sm:$0xff]
        %v5051 = vld [vmem:[%s5041 + $0x48] sm:$0xff]
        %v5052 = vld [vmem:[%s5041 + $0x50] sm:$0xff]
        %v5053 = vld [vmem:[%s5041 + $0x58] sm:$0xff]
        %v5054 = vld [vmem:[%s5041 + $0x60] sm:$0xff]
        %v5055 = vld [vmem:[%s5041 + $0x68] sm:$0xff]
        %v5056 = vld [vmem:[%s5041 + $0x70] sm:$0xff]
        %v5057 = vld [vmem:[%s5041 + $0x78] sm:$0xff]
        %v5058 = vrot.slane %v3768, 4
        %v5076 = vunpack.c.l.b16 %v5042
        %v5077 = vunpack.c.h.b16 %v5042
        %v5078 = vunpack.c.l.b16 %v5043
        %v5079 = vunpack.c.h.b16 %v5043
        %v5080 = vunpack.c.l.b16 %v5044
        %v5081 = vunpack.c.h.b16 %v5044
        %v5082 = vunpack.c.l.b16 %v5045
        %v5083 = vunpack.c.h.b16 %v5045
        %v5084 = vunpack.c.l.b16 %v5046
        %v5085 = vunpack.c.h.b16 %v5046
        %v5086 = vunpack.c.l.b16 %v5047
        %v5087 = vunpack.c.h.b16 %v5047
        %v5088 = vunpack.c.l.b16 %v5048
        %v5089 = vunpack.c.h.b16 %v5048
        %v5090 = vunpack.c.l.b16 %v5049
        %v5091 = vunpack.c.h.b16 %v5049
        %v5092 = vunpack.c.l.b16 %v5050
        %v5093 = vunpack.c.h.b16 %v5050
        %v5094 = vunpack.c.l.b16 %v5051
        %v5095 = vunpack.c.h.b16 %v5051
        %v5096 = vunpack.c.l.b16 %v5052
        %v5097 = vunpack.c.h.b16 %v5052
        %v5098 = vunpack.c.l.b16 %v5053
        %v5099 = vunpack.c.h.b16 %v5053
        %v5100 = vunpack.c.l.b16 %v5054
        %v5101 = vunpack.c.h.b16 %v5054
        %v5102 = vunpack.c.l.b16 %v5055
        %v5103 = vunpack.c.h.b16 %v5055
        %v5104 = vunpack.c.l.b16 %v5056
        %v5105 = vunpack.c.h.b16 %v5056
        %v5106 = vunpack.c.l.b16 %v5057
        %v5107 = vunpack.c.h.b16 %v5057
        %v5108 = vpack.c.b16 %v5078, %v5076
        %v5109 = vpack.c.b16 %v5079, %v5077
        %v5110 = vpack.c.b16 %v5082, %v5080
        %v5111 = vpack.c.b16 %v5083, %v5081
        %v5112 = vpack.c.b16 %v5086, %v5084
        %v5113 = vpack.c.b16 %v5087, %v5085
        %v5114 = vpack.c.b16 %v5090, %v5088
        %v5115 = vpack.c.b16 %v5091, %v5089
        %v5116 = vpack.c.b16 %v5094, %v5092
        %v5117 = vpack.c.b16 %v5095, %v5093
        %v5118 = vpack.c.b16 %v5098, %v5096
        %v5119 = vpack.c.b16 %v5099, %v5097
        %v5120 = vpack.c.b16 %v5102, %v5100
        %v5121 = vpack.c.b16 %v5103, %v5101
        %v5122 = vpack.c.b16 %v5106, %v5104
        %v5123 = vpack.c.b16 %v5107, %v5105
        %5140 = vmatprep.subr.bf16.mxu0 %v5109
        %5141 = vmatpush1.bf16.msra.mxu0 %v5108
        %5142 = vmatprep.subr.bf16.mxu0 %v5111
        %5143 = vmatpush1.bf16.msra.mxu0 %v5110
        %5144 = vmatprep.subr.bf16.mxu0 %v5113
        %5145 = vmatpush1.bf16.msra.mxu0 %v5112
        %5146 = vmatprep.subr.bf16.mxu0 %v5115
        %5147 = vmatpush1.bf16.msra.mxu0 %v5114
        %5148 = vmatprep.subr.bf16.mxu0 %v5117
        %5149 = vmatpush1.bf16.msra.mxu0 %v5116
        %5150 = vmatprep.subr.bf16.mxu0 %v5119
        %5151 = vmatpush1.bf16.msra.mxu0 %v5118
        %5152 = vmatprep.subr.bf16.mxu0 %v5121
        %5153 = vmatpush1.bf16.msra.mxu0 %v5120
        %5154 = vmatprep.subr.bf16.mxu0 %v5123
        %5155 = vmatpush1.bf16.msra.mxu0 %v5122
        %5156 = vmatprep.subr.bf16.mxu0 0
        %5157 = vmatpush1.bf16.msra.mxu0 0
        %5158 = vmatprep.subr.bf16.mxu0 0
        %5159 = vmatpush1.bf16.msra.mxu0 0
        %5160 = vmatprep.subr.bf16.mxu0 0
        %5161 = vmatpush1.bf16.msra.mxu0 0
        %5162 = vmatprep.subr.bf16.mxu0 0
        %5163 = vmatpush1.bf16.msra.mxu0 0
        %5164 = vmatprep.subr.bf16.mxu0 0
        %5165 = vmatpush1.bf16.msra.mxu0 0
        %5166 = vmatprep.subr.bf16.mxu0 0
        %5167 = vmatpush1.bf16.msra.mxu0 0
        %5168 = vmatprep.subr.bf16.mxu0 0
        %5169 = vmatpush1.bf16.msra.mxu0 0
        %5170 = vmatprep.subr.bf16.mxu0 0
        %5171 = vmatpush1.bf16.msra.mxu0 0
        %5172 = vmatprep.mubr.bf16.mxu0 0
        %5173 = vmatmul.mubr.bf16.gmra.mrb[0].mxu0 %v5058
        %v5174 = vpop.f32.mrb[0].mxu0
        %v5175 = vadd.f32 0.0, %v5174
        %v5176 = vpop.f32.mrb[0].mxu0
        %v5177 = vadd.f32 0.0, %v5176
        %v5178 = vpop.f32.mrb[0].mxu0
        %v5179 = vpop.f32.mrb[0].mxu0
        %5180 = vdwg.mxu0
        %v5183 = vcombine.low %v5175, %v5177
        %v5185 = vunpack.c.l.s4 1966171168
        %v5186 = vunpack.c.0.s8 %v5185
        %v5187 = vlaneseq
        %v5188 = vshrl.u32 %v5187, 7
        %v5189 = vsub.s32 %v5186, %v5188
        %v5190 = vrot.slane %v5183, %v5189
        %v5192 = vunpack.c.l.s4 1966171168
        %v5193 = vunpack.c.0.s8 %v5192
        %v5194 = vlaneseq
        %v5195 = vshrl.u32 %v5194, 7
        %v5196 = vsub.s32 %v5193, %v5195
        %v5197 = vrot.slane %v5190, %v5196
        %s5199 = scalar_lea.vmem [#allocation6], 17
        %5200 = vst.msk [vmem:[%s5199] ss:$8 sm:$0x3] %vm3747, %v5197
        %5201 = vst.msk [vmem:[%s5199] ss:$8 sm:$0x0] %vm3747, %v5197
        %s5202 = scalar_lea.vmem %s756, 1280 [#allocation22]
        %v5203 = vld [vmem:[%s5202] sm:$0xff]
        %v5204 = vld [vmem:[%s5202 + $0x8] sm:$0xff]
        %v5205 = vld [vmem:[%s5202 + $0x10] sm:$0xff]
        %v5206 = vld [vmem:[%s5202 + $0x18] sm:$0xff]
        %v5207 = vld [vmem:[%s5202 + $0x20] sm:$0xff]
        %v5208 = vld [vmem:[%s5202 + $0x28] sm:$0xff]
        %v5209 = vld [vmem:[%s5202 + $0x30] sm:$0xff]
        %v5210 = vld [vmem:[%s5202 + $0x38] sm:$0xff]
        %v5211 = vld [vmem:[%s5202 + $0x40] sm:$0xff]
        %v5212 = vld [vmem:[%s5202 + $0x48] sm:$0xff]
        %v5213 = vld [vmem:[%s5202 + $0x50] sm:$0xff]
        %v5214 = vld [vmem:[%s5202 + $0x58] sm:$0xff]
        %v5215 = vld [vmem:[%s5202 + $0x60] sm:$0xff]
        %v5216 = vld [vmem:[%s5202 + $0x68] sm:$0xff]
        %v5217 = vld [vmem:[%s5202 + $0x70] sm:$0xff]
        %v5218 = vld [vmem:[%s5202 + $0x78] sm:$0xff]
        %v5219 = vrot.slane %v3588, 5
        %v5237 = vunpack.c.l.b16 %v5203
        %v5238 = vunpack.c.h.b16 %v5203
        %v5239 = vunpack.c.l.b16 %v5204
        %v5240 = vunpack.c.h.b16 %v5204
        %v5241 = vunpack.c.l.b16 %v5205
        %v5242 = vunpack.c.h.b16 %v5205
        %v5243 = vunpack.c.l.b16 %v5206
        %v5244 = vunpack.c.h.b16 %v5206
        %v5245 = vunpack.c.l.b16 %v5207
        %v5246 = vunpack.c.h.b16 %v5207
        %v5247 = vunpack.c.l.b16 %v5208
        %v5248 = vunpack.c.h.b16 %v5208
        %v5249 = vunpack.c.l.b16 %v5209
        %v5250 = vunpack.c.h.b16 %v5209
        %v5251 = vunpack.c.l.b16 %v5210
        %v5252 = vunpack.c.h.b16 %v5210
        %v5253 = vunpack.c.l.b16 %v5211
        %v5254 = vunpack.c.h.b16 %v5211
        %v5255 = vunpack.c.l.b16 %v5212
        %v5256 = vunpack.c.h.b16 %v5212
        %v5257 = vunpack.c.l.b16 %v5213
        %v5258 = vunpack.c.h.b16 %v5213
        %v5259 = vunpack.c.l.b16 %v5214
        %v5260 = vunpack.c.h.b16 %v5214
        %v5261 = vunpack.c.l.b16 %v5215
        %v5262 = vunpack.c.h.b16 %v5215
        %v5263 = vunpack.c.l.b16 %v5216
        %v5264 = vunpack.c.h.b16 %v5216
        %v5265 = vunpack.c.l.b16 %v5217
        %v5266 = vunpack.c.h.b16 %v5217
        %v5267 = vunpack.c.l.b16 %v5218
        %v5268 = vunpack.c.h.b16 %v5218
        %v5269 = vpack.c.b16 %v5239, %v5237
        %v5270 = vpack.c.b16 %v5240, %v5238
        %v5271 = vpack.c.b16 %v5243, %v5241
        %v5272 = vpack.c.b16 %v5244, %v5242
        %v5273 = vpack.c.b16 %v5247, %v5245
        %v5274 = vpack.c.b16 %v5248, %v5246
        %v5275 = vpack.c.b16 %v5251, %v5249
        %v5276 = vpack.c.b16 %v5252, %v5250
        %v5277 = vpack.c.b16 %v5255, %v5253
        %v5278 = vpack.c.b16 %v5256, %v5254
        %v5279 = vpack.c.b16 %v5259, %v5257
        %v5280 = vpack.c.b16 %v5260, %v5258
        %v5281 = vpack.c.b16 %v5263, %v5261
        %v5282 = vpack.c.b16 %v5264, %v5262
        %v5283 = vpack.c.b16 %v5267, %v5265
        %v5284 = vpack.c.b16 %v5268, %v5266
        %5301 = vmatprep.subr.bf16.mxu0 %v5270
        %5302 = vmatpush1.bf16.msra.mxu0 %v5269
        %5303 = vmatprep.subr.bf16.mxu0 %v5272
        %5304 = vmatpush1.bf16.msra.mxu0 %v5271
        %5305 = vmatprep.subr.bf16.mxu0 %v5274
        %5306 = vmatpush1.bf16.msra.mxu0 %v5273
        %5307 = vmatprep.subr.bf16.mxu0 %v5276
        %5308 = vmatpush1.bf16.msra.mxu0 %v5275
        %5309 = vmatprep.subr.bf16.mxu0 %v5278
        %5310 = vmatpush1.bf16.msra.mxu0 %v5277
        %5311 = vmatprep.subr.bf16.mxu0 %v5280
        %5312 = vmatpush1.bf16.msra.mxu0 %v5279
        %5313 = vmatprep.subr.bf16.mxu0 %v5282
        %5314 = vmatpush1.bf16.msra.mxu0 %v5281
        %5315 = vmatprep.subr.bf16.mxu0 %v5284
        %5316 = vmatpush1.bf16.msra.mxu0 %v5283
        %5317 = vmatprep.subr.bf16.mxu0 0
        %5318 = vmatpush1.bf16.msra.mxu0 0
        %5319 = vmatprep.subr.bf16.mxu0 0
        %5320 = vmatpush1.bf16.msra.mxu0 0
        %5321 = vmatprep.subr.bf16.mxu0 0
        %5322 = vmatpush1.bf16.msra.mxu0 0
        %5323 = vmatprep.subr.bf16.mxu0 0
        %5324 = vmatpush1.bf16.msra.mxu0 0
        %5325 = vmatprep.subr.bf16.mxu0 0
        %5326 = vmatpush1.bf16.msra.mxu0 0
        %5327 = vmatprep.subr.bf16.mxu0 0
        %5328 = vmatpush1.bf16.msra.mxu0 0
        %5329 = vmatprep.subr.bf16.mxu0 0
        %5330 = vmatpush1.bf16.msra.mxu0 0
        %5331 = vmatprep.subr.bf16.mxu0 0
        %5332 = vmatpush1.bf16.msra.mxu0 0
        %5333 = vmatprep.mubr.bf16.mxu0 0
        %5334 = vmatmul.mubr.bf16.gmra.mrb[0].mxu0 %v5219
        %v5335 = vpop.f32.mrb[0].mxu0
        %v5336 = vadd.f32 0.0, %v5335
        %v5337 = vpop.f32.mrb[0].mxu0
        %v5338 = vadd.f32 0.0, %v5337
        %v5339 = vpop.f32.mrb[0].mxu0
        %v5340 = vpop.f32.mrb[0].mxu0
        %5341 = vdwg.mxu0
        %v5344 = vcombine.low %v5336, %v5338
        %v5346 = vunpack.c.l.s4 1966171168
        %v5347 = vunpack.c.0.s8 %v5346
        %v5348 = vlaneseq
        %v5349 = vshrl.u32 %v5348, 7
        %v5350 = vsub.s32 %v5347, %v5349
        %v5351 = vrot.slane %v5344, %v5350
        %v5353 = vunpack.c.l.s4 1966171168
        %v5354 = vunpack.c.0.s8 %v5353
        %v5355 = vlaneseq
        %v5356 = vshrl.u32 %v5355, 7
        %v5357 = vsub.s32 %v5354, %v5356
        %v5358 = vrot.slane %v5351, %v5357
        %s5360 = scalar_lea.vmem [#allocation6], 18
        %5361 = vst.msk [vmem:[%s5360] ss:$8 sm:$0x3] %vm3747, %v5358
        %5362 = vst.msk [vmem:[%s5360] ss:$8 sm:$0x0] %vm3747, %v5358
        %s5363 = scalar_lea.vmem %s756, 1408 [#allocation22]
        %v5364 = vld [vmem:[%s5363] sm:$0xff]
        %v5365 = vld [vmem:[%s5363 + $0x8] sm:$0xff]
        %v5366 = vld [vmem:[%s5363 + $0x10] sm:$0xff]
        %v5367 = vld [vmem:[%s5363 + $0x18] sm:$0xff]
        %v5368 = vld [vmem:[%s5363 + $0x20] sm:$0xff]
        %v5369 = vld [vmem:[%s5363 + $0x28] sm:$0xff]
        %v5370 = vld [vmem:[%s5363 + $0x30] sm:$0xff]
        %v5371 = vld [vmem:[%s5363 + $0x38] sm:$0xff]
        %v5372 = vld [vmem:[%s5363 + $0x40] sm:$0xff]
        %v5373 = vld [vmem:[%s5363 + $0x48] sm:$0xff]
        %v5374 = vld [vmem:[%s5363 + $0x50] sm:$0xff]
        %v5375 = vld [vmem:[%s5363 + $0x58] sm:$0xff]
        %v5376 = vld [vmem:[%s5363 + $0x60] sm:$0xff]
        %v5377 = vld [vmem:[%s5363 + $0x68] sm:$0xff]
        %v5378 = vld [vmem:[%s5363 + $0x70] sm:$0xff]
        %v5379 = vld [vmem:[%s5363 + $0x78] sm:$0xff]
        %v5380 = vrot.slane %v3768, 5
        %v5398 = vunpack.c.l.b16 %v5364
        %v5399 = vunpack.c.h.b16 %v5364
        %v5400 = vunpack.c.l.b16 %v5365
        %v5401 = vunpack.c.h.b16 %v5365
        %v5402 = vunpack.c.l.b16 %v5366
        %v5403 = vunpack.c.h.b16 %v5366
        %v5404 = vunpack.c.l.b16 %v5367
        %v5405 = vunpack.c.h.b16 %v5367
        %v5406 = vunpack.c.l.b16 %v5368
        %v5407 = vunpack.c.h.b16 %v5368
        %v5408 = vunpack.c.l.b16 %v5369
        %v5409 = vunpack.c.h.b16 %v5369
        %v5410 = vunpack.c.l.b16 %v5370
        %v5411 = vunpack.c.h.b16 %v5370
        %v5412 = vunpack.c.l.b16 %v5371
        %v5413 = vunpack.c.h.b16 %v5371
        %v5414 = vunpack.c.l.b16 %v5372
        %v5415 = vunpack.c.h.b16 %v5372
        %v5416 = vunpack.c.l.b16 %v5373
        %v5417 = vunpack.c.h.b16 %v5373
        %v5418 = vunpack.c.l.b16 %v5374
        %v5419 = vunpack.c.h.b16 %v5374
        %v5420 = vunpack.c.l.b16 %v5375
        %v5421 = vunpack.c.h.b16 %v5375
        %v5422 = vunpack.c.l.b16 %v5376
        %v5423 = vunpack.c.h.b16 %v5376
        %v5424 = vunpack.c.l.b16 %v5377
        %v5425 = vunpack.c.h.b16 %v5377
        %v5426 = vunpack.c.l.b16 %v5378
        %v5427 = vunpack.c.h.b16 %v5378
        %v5428 = vunpack.c.l.b16 %v5379
        %v5429 = vunpack.c.h.b16 %v5379
        %v5430 = vpack.c.b16 %v5400, %v5398
        %v5431 = vpack.c.b16 %v5401, %v5399
        %v5432 = vpack.c.b16 %v5404, %v5402
        %v5433 = vpack.c.b16 %v5405, %v5403
        %v5434 = vpack.c.b16 %v5408, %v5406
        %v5435 = vpack.c.b16 %v5409, %v5407
        %v5436 = vpack.c.b16 %v5412, %v5410
        %v5437 = vpack.c.b16 %v5413, %v5411
        %v5438 = vpack.c.b16 %v5416, %v5414
        %v5439 = vpack.c.b16 %v5417, %v5415
        %v5440 = vpack.c.b16 %v5420, %v5418
        %v5441 = vpack.c.b16 %v5421, %v5419
        %v5442 = vpack.c.b16 %v5424, %v5422
        %v5443 = vpack.c.b16 %v5425, %v5423
        %v5444 = vpack.c.b16 %v5428, %v5426
        %v5445 = vpack.c.b16 %v5429, %v5427
        %5462 = vmatprep.subr.bf16.mxu0 %v5431
        %5463 = vmatpush1.bf16.msra.mxu0 %v5430
        %5464 = vmatprep.subr.bf16.mxu0 %v5433
        %5465 = vmatpush1.bf16.msra.mxu0 %v5432
        %5466 = vmatprep.subr.bf16.mxu0 %v5435
        %5467 = vmatpush1.bf16.msra.mxu0 %v5434
        %5468 = vmatprep.subr.bf16.mxu0 %v5437
        %5469 = vmatpush1.bf16.msra.mxu0 %v5436
        %5470 = vmatprep.subr.bf16.mxu0 %v5439
        %5471 = vmatpush1.bf16.msra.mxu0 %v5438
        %5472 = vmatprep.subr.bf16.mxu0 %v5441
        %5473 = vmatpush1.bf16.msra.mxu0 %v5440
        %5474 = vmatprep.subr.bf16.mxu0 %v5443
        %5475 = vmatpush1.bf16.msra.mxu0 %v5442
        %5476 = vmatprep.subr.bf16.mxu0 %v5445
        %5477 = vmatpush1.bf16.msra.mxu0 %v5444
        %5478 = vmatprep.subr.bf16.mxu0 0
        %5479 = vmatpush1.bf16.msra.mxu0 0
        %5480 = vmatprep.subr.bf16.mxu0 0
        %5481 = vmatpush1.bf16.msra.mxu0 0
        %5482 = vmatprep.subr.bf16.mxu0 0
        %5483 = vmatpush1.bf16.msra.mxu0 0
        %5484 = vmatprep.subr.bf16.mxu0 0
        %5485 = vmatpush1.bf16.msra.mxu0 0
        %5486 = vmatprep.subr.bf16.mxu0 0
        %5487 = vmatpush1.bf16.msra.mxu0 0
        %5488 = vmatprep.subr.bf16.mxu0 0
        %5489 = vmatpush1.bf16.msra.mxu0 0
        %5490 = vmatprep.subr.bf16.mxu0 0
        %5491 = vmatpush1.bf16.msra.mxu0 0
        %5492 = vmatprep.subr.bf16.mxu0 0
        %5493 = vmatpush1.bf16.msra.mxu0 0
        %5494 = vmatprep.mubr.bf16.mxu0 0
        %5495 = vmatmul.mubr.bf16.gmra.mrb[0].mxu0 %v5380
        %v5496 = vpop.f32.mrb[0].mxu0
        %v5497 = vadd.f32 0.0, %v5496
        %v5498 = vpop.f32.mrb[0].mxu0
        %v5499 = vadd.f32 0.0, %v5498
        %v5500 = vpop.f32.mrb[0].mxu0
        %v5501 = vpop.f32.mrb[0].mxu0
        %5502 = vdwg.mxu0
        %v5505 = vcombine.low %v5497, %v5499
        %v5507 = vunpack.c.l.s4 1966171168
        %v5508 = vunpack.c.0.s8 %v5507
        %v5509 = vlaneseq
        %v5510 = vshrl.u32 %v5509, 7
        %v5511 = vsub.s32 %v5508, %v5510
        %v5512 = vrot.slane %v5505, %v5511
        %v5514 = vunpack.c.l.s4 1966171168
        %v5515 = vunpack.c.0.s8 %v5514
        %v5516 = vlaneseq
        %v5517 = vshrl.u32 %v5516, 7
        %v5518 = vsub.s32 %v5515, %v5517
        %v5519 = vrot.slane %v5512, %v5518
        %s5521 = scalar_lea.vmem [#allocation6], 19
        %5522 = vst.msk [vmem:[%s5521] ss:$8 sm:$0x3] %vm3747, %v5519
        %5523 = vst.msk [vmem:[%s5521] ss:$8 sm:$0x0] %vm3747, %v5519
        %s5524 = scalar_lea.vmem %s756, 1536 [#allocation22]
        %v5525 = vld [vmem:[%s5524] sm:$0xff]
        %v5526 = vld [vmem:[%s5524 + $0x8] sm:$0xff]
        %v5527 = vld [vmem:[%s5524 + $0x10] sm:$0xff]
        %v5528 = vld [vmem:[%s5524 + $0x18] sm:$0xff]
        %v5529 = vld [vmem:[%s5524 + $0x20] sm:$0xff]
        %v5530 = vld [vmem:[%s5524 + $0x28] sm:$0xff]
        %v5531 = vld [vmem:[%s5524 + $0x30] sm:$0xff]
        %v5532 = vld [vmem:[%s5524 + $0x38] sm:$0xff]
        %v5533 = vld [vmem:[%s5524 + $0x40] sm:$0xff]
        %v5534 = vld [vmem:[%s5524 + $0x48] sm:$0xff]
        %v5535 = vld [vmem:[%s5524 + $0x50] sm:$0xff]
        %v5536 = vld [vmem:[%s5524 + $0x58] sm:$0xff]
        %v5537 = vld [vmem:[%s5524 + $0x60] sm:$0xff]
        %v5538 = vld [vmem:[%s5524 + $0x68] sm:$0xff]
        %v5539 = vld [vmem:[%s5524 + $0x70] sm:$0xff]
        %v5540 = vld [vmem:[%s5524 + $0x78] sm:$0xff]
        %v5541 = vrot.slane %v3588, 6
        %v5559 = vunpack.c.l.b16 %v5525
        %v5560 = vunpack.c.h.b16 %v5525
        %v5561 = vunpack.c.l.b16 %v5526
        %v5562 = vunpack.c.h.b16 %v5526
        %v5563 = vunpack.c.l.b16 %v5527
        %v5564 = vunpack.c.h.b16 %v5527
        %v5565 = vunpack.c.l.b16 %v5528
        %v5566 = vunpack.c.h.b16 %v5528
        %v5567 = vunpack.c.l.b16 %v5529
        %v5568 = vunpack.c.h.b16 %v5529
        %v5569 = vunpack.c.l.b16 %v5530
        %v5570 = vunpack.c.h.b16 %v5530
        %v5571 = vunpack.c.l.b16 %v5531
        %v5572 = vunpack.c.h.b16 %v5531
        %v5573 = vunpack.c.l.b16 %v5532
        %v5574 = vunpack.c.h.b16 %v5532
        %v5575 = vunpack.c.l.b16 %v5533
        %v5576 = vunpack.c.h.b16 %v5533
        %v5577 = vunpack.c.l.b16 %v5534
        %v5578 = vunpack.c.h.b16 %v5534
        %v5579 = vunpack.c.l.b16 %v5535
        %v5580 = vunpack.c.h.b16 %v5535
        %v5581 = vunpack.c.l.b16 %v5536
        %v5582 = vunpack.c.h.b16 %v5536
        %v5583 = vunpack.c.l.b16 %v5537
        %v5584 = vunpack.c.h.b16 %v5537
        %v5585 = vunpack.c.l.b16 %v5538
        %v5586 = vunpack.c.h.b16 %v5538
        %v5587 = vunpack.c.l.b16 %v5539
        %v5588 = vunpack.c.h.b16 %v5539
        %v5589 = vunpack.c.l.b16 %v5540
        %v5590 = vunpack.c.h.b16 %v5540
        %v5591 = vpack.c.b16 %v5561, %v5559
        %v5592 = vpack.c.b16 %v5562, %v5560
        %v5593 = vpack.c.b16 %v5565, %v5563
        %v5594 = vpack.c.b16 %v5566, %v5564
        %v5595 = vpack.c.b16 %v5569, %v5567
        %v5596 = vpack.c.b16 %v5570, %v5568
        %v5597 = vpack.c.b16 %v5573, %v5571
        %v5598 = vpack.c.b16 %v5574, %v5572
        %v5599 = vpack.c.b16 %v5577, %v5575
        %v5600 = vpack.c.b16 %v5578, %v5576
        %v5601 = vpack.c.b16 %v5581, %v5579
        %v5602 = vpack.c.b16 %v5582, %v5580
        %v5603 = vpack.c.b16 %v5585, %v5583
        %v5604 = vpack.c.b16 %v5586, %v5584
        %v5605 = vpack.c.b16 %v5589, %v5587
        %v5606 = vpack.c.b16 %v5590, %v5588
        %5623 = vmatprep.subr.bf16.mxu0 %v5592
        %5624 = vmatpush1.bf16.msra.mxu0 %v5591
        %5625 = vmatprep.subr.bf16.mxu0 %v5594
        %5626 = vmatpush1.bf16.msra.mxu0 %v5593
        %5627 = vmatprep.subr.bf16.mxu0 %v5596
        %5628 = vmatpush1.bf16.msra.mxu0 %v5595
        %5629 = vmatprep.subr.bf16.mxu0 %v5598
        %5630 = vmatpush1.bf16.msra.mxu0 %v5597
        %5631 = vmatprep.subr.bf16.mxu0 %v5600
        %5632 = vmatpush1.bf16.msra.mxu0 %v5599
        %5633 = vmatprep.subr.bf16.mxu0 %v5602
        %5634 = vmatpush1.bf16.msra.mxu0 %v5601
        %5635 = vmatprep.subr.bf16.mxu0 %v5604
        %5636 = vmatpush1.bf16.msra.mxu0 %v5603
        %5637 = vmatprep.subr.bf16.mxu0 %v5606
        %5638 = vmatpush1.bf16.msra.mxu0 %v5605
        %5639 = vmatprep.subr.bf16.mxu0 0
        %5640 = vmatpush1.bf16.msra.mxu0 0
        %5641 = vmatprep.subr.bf16.mxu0 0
        %5642 = vmatpush1.bf16.msra.mxu0 0
        %5643 = vmatprep.subr.bf16.mxu0 0
        %5644 = vmatpush1.bf16.msra.mxu0 0
        %5645 = vmatprep.subr.bf16.mxu0 0
        %5646 = vmatpush1.bf16.msra.mxu0 0
        %5647 = vmatprep.subr.bf16.mxu0 0
        %5648 = vmatpush1.bf16.msra.mxu0 0
        %5649 = vmatprep.subr.bf16.mxu0 0
        %5650 = vmatpush1.bf16.msra.mxu0 0
        %5651 = vmatprep.subr.bf16.mxu0 0
        %5652 = vmatpush1.bf16.msra.mxu0 0
        %5653 = vmatprep.subr.bf16.mxu0 0
        %5654 = vmatpush1.bf16.msra.mxu0 0
        %5655 = vmatprep.mubr.bf16.mxu0 0
        %5656 = vmatmul.mubr.bf16.gmra.mrb[0].mxu0 %v5541
        %v5657 = vpop.f32.mrb[0].mxu0
        %v5658 = vadd.f32 0.0, %v5657
        %v5659 = vpop.f32.mrb[0].mxu0
        %v5660 = vadd.f32 0.0, %v5659
        %v5661 = vpop.f32.mrb[0].mxu0
        %v5662 = vpop.f32.mrb[0].mxu0
        %5663 = vdwg.mxu0
        %v5666 = vcombine.low %v5658, %v5660
        %v5668 = vunpack.c.l.s4 1966171168
        %v5669 = vunpack.c.0.s8 %v5668
        %v5670 = vlaneseq
        %v5671 = vshrl.u32 %v5670, 7
        %v5672 = vsub.s32 %v5669, %v5671
        %v5673 = vrot.slane %v5666, %v5672
        %v5675 = vunpack.c.l.s4 1966171168
        %v5676 = vunpack.c.0.s8 %v5675
        %v5677 = vlaneseq
        %v5678 = vshrl.u32 %v5677, 7
        %v5679 = vsub.s32 %v5676, %v5678
        %v5680 = vrot.slane %v5673, %v5679
        %s5682 = scalar_lea.vmem [#allocation6], 20
        %5683 = vst.msk [vmem:[%s5682] ss:$8 sm:$0x3] %vm3747, %v5680
        %5684 = vst.msk [vmem:[%s5682] ss:$8 sm:$0x0] %vm3747, %v5680
        %s5685 = scalar_lea.vmem %s756, 1664 [#allocation22]
        %v5686 = vld [vmem:[%s5685] sm:$0xff]
        %v5687 = vld [vmem:[%s5685 + $0x8] sm:$0xff]
        %v5688 = vld [vmem:[%s5685 + $0x10] sm:$0xff]
        %v5689 = vld [vmem:[%s5685 + $0x18] sm:$0xff]
        %v5690 = vld [vmem:[%s5685 + $0x20] sm:$0xff]
        %v5691 = vld [vmem:[%s5685 + $0x28] sm:$0xff]
        %v5692 = vld [vmem:[%s5685 + $0x30] sm:$0xff]
        %v5693 = vld [vmem:[%s5685 + $0x38] sm:$0xff]
        %v5694 = vld [vmem:[%s5685 + $0x40] sm:$0xff]
        %v5695 = vld [vmem:[%s5685 + $0x48] sm:$0xff]
        %v5696 = vld [vmem:[%s5685 + $0x50] sm:$0xff]
        %v5697 = vld [vmem:[%s5685 + $0x58] sm:$0xff]
        %v5698 = vld [vmem:[%s5685 + $0x60] sm:$0xff]
        %v5699 = vld [vmem:[%s5685 + $0x68] sm:$0xff]
        %v5700 = vld [vmem:[%s5685 + $0x70] sm:$0xff]
        %v5701 = vld [vmem:[%s5685 + $0x78] sm:$0xff]
        %v5702 = vrot.slane %v3768, 6
        %v5720 = vunpack.c.l.b16 %v5686
        %v5721 = vunpack.c.h.b16 %v5686
        %v5722 = vunpack.c.l.b16 %v5687
        %v5723 = vunpack.c.h.b16 %v5687
        %v5724 = vunpack.c.l.b16 %v5688
        %v5725 = vunpack.c.h.b16 %v5688
        %v5726 = vunpack.c.l.b16 %v5689
        %v5727 = vunpack.c.h.b16 %v5689
        %v5728 = vunpack.c.l.b16 %v5690
        %v5729 = vunpack.c.h.b16 %v5690
        %v5730 = vunpack.c.l.b16 %v5691
        %v5731 = vunpack.c.h.b16 %v5691
        %v5732 = vunpack.c.l.b16 %v5692
        %v5733 = vunpack.c.h.b16 %v5692
        %v5734 = vunpack.c.l.b16 %v5693
        %v5735 = vunpack.c.h.b16 %v5693
        %v5736 = vunpack.c.l.b16 %v5694
        %v5737 = vunpack.c.h.b16 %v5694
        %v5738 = vunpack.c.l.b16 %v5695
        %v5739 = vunpack.c.h.b16 %v5695
        %v5740 = vunpack.c.l.b16 %v5696
        %v5741 = vunpack.c.h.b16 %v5696
        %v5742 = vunpack.c.l.b16 %v5697
        %v5743 = vunpack.c.h.b16 %v5697
        %v5744 = vunpack.c.l.b16 %v5698
        %v5745 = vunpack.c.h.b16 %v5698
        %v5746 = vunpack.c.l.b16 %v5699
        %v5747 = vunpack.c.h.b16 %v5699
        %v5748 = vunpack.c.l.b16 %v5700
        %v5749 = vunpack.c.h.b16 %v5700
        %v5750 = vunpack.c.l.b16 %v5701
        %v5751 = vunpack.c.h.b16 %v5701
        %v5752 = vpack.c.b16 %v5722, %v5720
        %v5753 = vpack.c.b16 %v5723, %v5721
        %v5754 = vpack.c.b16 %v5726, %v5724
        %v5755 = vpack.c.b16 %v5727, %v5725
        %v5756 = vpack.c.b16 %v5730, %v5728
        %v5757 = vpack.c.b16 %v5731, %v5729
        %v5758 = vpack.c.b16 %v5734, %v5732
        %v5759 = vpack.c.b16 %v5735, %v5733
        %v5760 = vpack.c.b16 %v5738, %v5736
        %v5761 = vpack.c.b16 %v5739, %v5737
        %v5762 = vpack.c.b16 %v5742, %v5740
        %v5763 = vpack.c.b16 %v5743, %v5741
        %v5764 = vpack.c.b16 %v5746, %v5744
        %v5765 = vpack.c.b16 %v5747, %v5745
        %v5766 = vpack.c.b16 %v5750, %v5748
        %v5767 = vpack.c.b16 %v5751, %v5749
        %5784 = vmatprep.subr.bf16.mxu0 %v5753
        %5785 = vmatpush1.bf16.msra.mxu0 %v5752
        %5786 = vmatprep.subr.bf16.mxu0 %v5755
        %5787 = vmatpush1.bf16.msra.mxu0 %v5754
        %5788 = vmatprep.subr.bf16.mxu0 %v5757
        %5789 = vmatpush1.bf16.msra.mxu0 %v5756
        %5790 = vmatprep.subr.bf16.mxu0 %v5759
        %5791 = vmatpush1.bf16.msra.mxu0 %v5758
        %5792 = vmatprep.subr.bf16.mxu0 %v5761
        %5793 = vmatpush1.bf16.msra.mxu0 %v5760
        %5794 = vmatprep.subr.bf16.mxu0 %v5763
        %5795 = vmatpush1.bf16.msra.mxu0 %v5762
        %5796 = vmatprep.subr.bf16.mxu0 %v5765
        %5797 = vmatpush1.bf16.msra.mxu0 %v5764
        %5798 = vmatprep.subr.bf16.mxu0 %v5767
        %5799 = vmatpush1.bf16.msra.mxu0 %v5766
        %5800 = vmatprep.subr.bf16.mxu0 0
        %5801 = vmatpush1.bf16.msra.mxu0 0
        %5802 = vmatprep.subr.bf16.mxu0 0
        %5803 = vmatpush1.bf16.msra.mxu0 0
        %5804 = vmatprep.subr.bf16.mxu0 0
        %5805 = vmatpush1.bf16.msra.mxu0 0
        %5806 = vmatprep.subr.bf16.mxu0 0
        %5807 = vmatpush1.bf16.msra.mxu0 0
        %5808 = vmatprep.subr.bf16.mxu0 0
        %5809 = vmatpush1.bf16.msra.mxu0 0
        %5810 = vmatprep.subr.bf16.mxu0 0
        %5811 = vmatpush1.bf16.msra.mxu0 0
        %5812 = vmatprep.subr.bf16.mxu0 0
        %5813 = vmatpush1.bf16.msra.mxu0 0
        %5814 = vmatprep.subr.bf16.mxu0 0
        %5815 = vmatpush1.bf16.msra.mxu0 0
        %5816 = vmatprep.mubr.bf16.mxu0 0
        %5817 = vmatmul.mubr.bf16.gmra.mrb[0].mxu0 %v5702
        %v5818 = vpop.f32.mrb[0].mxu0
        %v5819 = vadd.f32 0.0, %v5818
        %v5820 = vpop.f32.mrb[0].mxu0
        %v5821 = vadd.f32 0.0, %v5820
        %v5822 = vpop.f32.mrb[0].mxu0
        %v5823 = vpop.f32.mrb[0].mxu0
        %5824 = vdwg.mxu0
        %v5827 = vcombine.low %v5819, %v5821
        %v5829 = vunpack.c.l.s4 1966171168
        %v5830 = vunpack.c.0.s8 %v5829
        %v5831 = vlaneseq
        %v5832 = vshrl.u32 %v5831, 7
        %v5833 = vsub.s32 %v5830, %v5832
        %v5834 = vrot.slane %v5827, %v5833
        %v5836 = vunpack.c.l.s4 1966171168
        %v5837 = vunpack.c.0.s8 %v5836
        %v5838 = vlaneseq
        %v5839 = vshrl.u32 %v5838, 7
        %v5840 = vsub.s32 %v5837, %v5839
        %v5841 = vrot.slane %v5834, %v5840
        %s5843 = scalar_lea.vmem [#allocation6], 21
        %5844 = vst.msk [vmem:[%s5843] ss:$8 sm:$0x3] %vm3747, %v5841
        %5845 = vst.msk [vmem:[%s5843] ss:$8 sm:$0x0] %vm3747, %v5841
        %s5846 = scalar_lea.vmem %s756, 1792 [#allocation22]
        %v5847 = vld [vmem:[%s5846] sm:$0xff]
        %v5848 = vld [vmem:[%s5846 + $0x8] sm:$0xff]
        %v5849 = vld [vmem:[%s5846 + $0x10] sm:$0xff]
        %v5850 = vld [vmem:[%s5846 + $0x18] sm:$0xff]
        %v5851 = vld [vmem:[%s5846 + $0x20] sm:$0xff]
        %v5852 = vld [vmem:[%s5846 + $0x28] sm:$0xff]
        %v5853 = vld [vmem:[%s5846 + $0x30] sm:$0xff]
        %v5854 = vld [vmem:[%s5846 + $0x38] sm:$0xff]
        %v5855 = vld [vmem:[%s5846 + $0x40] sm:$0xff]
        %v5856 = vld [vmem:[%s5846 + $0x48] sm:$0xff]
        %v5857 = vld [vmem:[%s5846 + $0x50] sm:$0xff]
        %v5858 = vld [vmem:[%s5846 + $0x58] sm:$0xff]
        %v5859 = vld [vmem:[%s5846 + $0x60] sm:$0xff]
        %v5860 = vld [vmem:[%s5846 + $0x68] sm:$0xff]
        %v5861 = vld [vmem:[%s5846 + $0x70] sm:$0xff]
        %v5862 = vld [vmem:[%s5846 + $0x78] sm:$0xff]
        %v5863 = vrot.slane %v3588, 7
        %v5881 = vunpack.c.l.b16 %v5847
        %v5882 = vunpack.c.h.b16 %v5847
        %v5883 = vunpack.c.l.b16 %v5848
        %v5884 = vunpack.c.h.b16 %v5848
        %v5885 = vunpack.c.l.b16 %v5849
        %v5886 = vunpack.c.h.b16 %v5849
        %v5887 = vunpack.c.l.b16 %v5850
        %v5888 = vunpack.c.h.b16 %v5850
        %v5889 = vunpack.c.l.b16 %v5851
        %v5890 = vunpack.c.h.b16 %v5851
        %v5891 = vunpack.c.l.b16 %v5852
        %v5892 = vunpack.c.h.b16 %v5852
        %v5893 = vunpack.c.l.b16 %v5853
        %v5894 = vunpack.c.h.b16 %v5853
        %v5895 = vunpack.c.l.b16 %v5854
        %v5896 = vunpack.c.h.b16 %v5854
        %v5897 = vunpack.c.l.b16 %v5855
        %v5898 = vunpack.c.h.b16 %v5855
        %v5899 = vunpack.c.l.b16 %v5856
        %v5900 = vunpack.c.h.b16 %v5856
        %v5901 = vunpack.c.l.b16 %v5857
        %v5902 = vunpack.c.h.b16 %v5857
        %v5903 = vunpack.c.l.b16 %v5858
        %v5904 = vunpack.c.h.b16 %v5858
        %v5905 = vunpack.c.l.b16 %v5859
        %v5906 = vunpack.c.h.b16 %v5859
        %v5907 = vunpack.c.l.b16 %v5860
        %v5908 = vunpack.c.h.b16 %v5860
        %v5909 = vunpack.c.l.b16 %v5861
        %v5910 = vunpack.c.h.b16 %v5861
        %v5911 = vunpack.c.l.b16 %v5862
        %v5912 = vunpack.c.h.b16 %v5862
        %v5913 = vpack.c.b16 %v5883, %v5881
        %v5914 = vpack.c.b16 %v5884, %v5882
        %v5915 = vpack.c.b16 %v5887, %v5885
        %v5916 = vpack.c.b16 %v5888, %v5886
        %v5917 = vpack.c.b16 %v5891, %v5889
        %v5918 = vpack.c.b16 %v5892, %v5890
        %v5919 = vpack.c.b16 %v5895, %v5893
        %v5920 = vpack.c.b16 %v5896, %v5894
        %v5921 = vpack.c.b16 %v5899, %v5897
        %v5922 = vpack.c.b16 %v5900, %v5898
        %v5923 = vpack.c.b16 %v5903, %v5901
        %v5924 = vpack.c.b16 %v5904, %v5902
        %v5925 = vpack.c.b16 %v5907, %v5905
        %v5926 = vpack.c.b16 %v5908, %v5906
        %v5927 = vpack.c.b16 %v5911, %v5909
        %v5928 = vpack.c.b16 %v5912, %v5910
        %5945 = vmatprep.subr.bf16.mxu0 %v5914
        %5946 = vmatpush1.bf16.msra.mxu0 %v5913
        %5947 = vmatprep.subr.bf16.mxu0 %v5916
        %5948 = vmatpush1.bf16.msra.mxu0 %v5915
        %5949 = vmatprep.subr.bf16.mxu0 %v5918
        %5950 = vmatpush1.bf16.msra.mxu0 %v5917
        %5951 = vmatprep.subr.bf16.mxu0 %v5920
        %5952 = vmatpush1.bf16.msra.mxu0 %v5919
        %5953 = vmatprep.subr.bf16.mxu0 %v5922
        %5954 = vmatpush1.bf16.msra.mxu0 %v5921
        %5955 = vmatprep.subr.bf16.mxu0 %v5924
        %5956 = vmatpush1.bf16.msra.mxu0 %v5923
        %5957 = vmatprep.subr.bf16.mxu0 %v5926
        %5958 = vmatpush1.bf16.msra.mxu0 %v5925
        %5959 = vmatprep.subr.bf16.mxu0 %v5928
        %5960 = vmatpush1.bf16.msra.mxu0 %v5927
        %5961 = vmatprep.subr.bf16.mxu0 0
        %5962 = vmatpush1.bf16.msra.mxu0 0
        %5963 = vmatprep.subr.bf16.mxu0 0
        %5964 = vmatpush1.bf16.msra.mxu0 0
        %5965 = vmatprep.subr.bf16.mxu0 0
        %5966 = vmatpush1.bf16.msra.mxu0 0
        %5967 = vmatprep.subr.bf16.mxu0 0
        %5968 = vmatpush1.bf16.msra.mxu0 0
        %5969 = vmatprep.subr.bf16.mxu0 0
        %5970 = vmatpush1.bf16.msra.mxu0 0
        %5971 = vmatprep.subr.bf16.mxu0 0
        %5972 = vmatpush1.bf16.msra.mxu0 0
        %5973 = vmatprep.subr.bf16.mxu0 0
        %5974 = vmatpush1.bf16.msra.mxu0 0
        %5975 = vmatprep.subr.bf16.mxu0 0
        %5976 = vmatpush1.bf16.msra.mxu0 0
        %5977 = vmatprep.mubr.bf16.mxu0 0
        %5978 = vmatmul.mubr.bf16.gmra.mrb[0].mxu0 %v5863
        %v5979 = vpop.f32.mrb[0].mxu0
        %v5980 = vadd.f32 0.0, %v5979
        %v5981 = vpop.f32.mrb[0].mxu0
        %v5982 = vadd.f32 0.0, %v5981
        %v5983 = vpop.f32.mrb[0].mxu0
        %v5984 = vpop.f32.mrb[0].mxu0
        %5985 = vdwg.mxu0
        %v5988 = vcombine.low %v5980, %v5982
        %v5990 = vunpack.c.l.s4 1966171168
        %v5991 = vunpack.c.0.s8 %v5990
        %v5992 = vlaneseq
        %v5993 = vshrl.u32 %v5992, 7
        %v5994 = vsub.s32 %v5991, %v5993
        %v5995 = vrot.slane %v5988, %v5994
        %v5997 = vunpack.c.l.s4 1966171168
        %v5998 = vunpack.c.0.s8 %v5997
        %v5999 = vlaneseq
        %v6000 = vshrl.u32 %v5999, 7
        %v6001 = vsub.s32 %v5998, %v6000
        %v6002 = vrot.slane %v5995, %v6001
        %s6004 = scalar_lea.vmem [#allocation6], 22
        %6005 = vst.msk [vmem:[%s6004] ss:$8 sm:$0x3] %vm3747, %v6002
        %6006 = vst.msk [vmem:[%s6004] ss:$8 sm:$0x0] %vm3747, %v6002
        %s6007 = scalar_lea.vmem %s756, 1920 [#allocation22]
        %v6008 = vld [vmem:[%s6007] sm:$0xff]
        %v6009 = vld [vmem:[%s6007 + $0x8] sm:$0xff]
        %v6010 = vld [vmem:[%s6007 + $0x10] sm:$0xff]
        %v6011 = vld [vmem:[%s6007 + $0x18] sm:$0xff]
        %v6012 = vld [vmem:[%s6007 + $0x20] sm:$0xff]
        %v6013 = vld [vmem:[%s6007 + $0x28] sm:$0xff]
        %v6014 = vld [vmem:[%s6007 + $0x30] sm:$0xff]
        %v6015 = vld [vmem:[%s6007 + $0x38] sm:$0xff]
        %v6016 = vld [vmem:[%s6007 + $0x40] sm:$0xff]
        %v6017 = vld [vmem:[%s6007 + $0x48] sm:$0xff]
        %v6018 = vld [vmem:[%s6007 + $0x50] sm:$0xff]
        %v6019 = vld [vmem:[%s6007 + $0x58] sm:$0xff]
        %v6020 = vld [vmem:[%s6007 + $0x60] sm:$0xff]
        %v6021 = vld [vmem:[%s6007 + $0x68] sm:$0xff]
        %v6022 = vld [vmem:[%s6007 + $0x70] sm:$0xff]
        %v6023 = vld [vmem:[%s6007 + $0x78] sm:$0xff]
        %v6024 = vrot.slane %v3768, 7
        %v6042 = vunpack.c.l.b16 %v6008
        %v6043 = vunpack.c.h.b16 %v6008
        %v6044 = vunpack.c.l.b16 %v6009
        %v6045 = vunpack.c.h.b16 %v6009
        %v6046 = vunpack.c.l.b16 %v6010
        %v6047 = vunpack.c.h.b16 %v6010
        %v6048 = vunpack.c.l.b16 %v6011
        %v6049 = vunpack.c.h.b16 %v6011
        %v6050 = vunpack.c.l.b16 %v6012
        %v6051 = vunpack.c.h.b16 %v6012
        %v6052 = vunpack.c.l.b16 %v6013
        %v6053 = vunpack.c.h.b16 %v6013
        %v6054 = vunpack.c.l.b16 %v6014
        %v6055 = vunpack.c.h.b16 %v6014
        %v6056 = vunpack.c.l.b16 %v6015
        %v6057 = vunpack.c.h.b16 %v6015
        %v6058 = vunpack.c.l.b16 %v6016
        %v6059 = vunpack.c.h.b16 %v6016
        %v6060 = vunpack.c.l.b16 %v6017
        %v6061 = vunpack.c.h.b16 %v6017
        %v6062 = vunpack.c.l.b16 %v6018
        %v6063 = vunpack.c.h.b16 %v6018
        %v6064 = vunpack.c.l.b16 %v6019
        %v6065 = vunpack.c.h.b16 %v6019
        %v6066 = vunpack.c.l.b16 %v6020
        %v6067 = vunpack.c.h.b16 %v6020
        %v6068 = vunpack.c.l.b16 %v6021
        %v6069 = vunpack.c.h.b16 %v6021
        %v6070 = vunpack.c.l.b16 %v6022
        %v6071 = vunpack.c.h.b16 %v6022
        %v6072 = vunpack.c.l.b16 %v6023
        %v6073 = vunpack.c.h.b16 %v6023
        %v6074 = vpack.c.b16 %v6044, %v6042
        %v6075 = vpack.c.b16 %v6045, %v6043
        %v6076 = vpack.c.b16 %v6048, %v6046
        %v6077 = vpack.c.b16 %v6049, %v6047
        %v6078 = vpack.c.b16 %v6052, %v6050
        %v6079 = vpack.c.b16 %v6053, %v6051
        %v6080 = vpack.c.b16 %v6056, %v6054
        %v6081 = vpack.c.b16 %v6057, %v6055
        %v6082 = vpack.c.b16 %v6060, %v6058
        %v6083 = vpack.c.b16 %v6061, %v6059
        %v6084 = vpack.c.b16 %v6064, %v6062
        %v6085 = vpack.c.b16 %v6065, %v6063
        %v6086 = vpack.c.b16 %v6068, %v6066
        %v6087 = vpack.c.b16 %v6069, %v6067
        %v6088 = vpack.c.b16 %v6072, %v6070
        %v6089 = vpack.c.b16 %v6073, %v6071
        %6106 = vmatprep.subr.bf16.mxu0 %v6075
        %6107 = vmatpush1.bf16.msra.mxu0 %v6074
        %6108 = vmatprep.subr.bf16.mxu0 %v6077
        %6109 = vmatpush1.bf16.msra.mxu0 %v6076
        %6110 = vmatprep.subr.bf16.mxu0 %v6079
        %6111 = vmatpush1.bf16.msra.mxu0 %v6078
        %6112 = vmatprep.subr.bf16.mxu0 %v6081
        %6113 = vmatpush1.bf16.msra.mxu0 %v6080
        %6114 = vmatprep.subr.bf16.mxu0 %v6083
        %6115 = vmatpush1.bf16.msra.mxu0 %v6082
        %6116 = vmatprep.subr.bf16.mxu0 %v6085
        %6117 = vmatpush1.bf16.msra.mxu0 %v6084
        %6118 = vmatprep.subr.bf16.mxu0 %v6087
        %6119 = vmatpush1.bf16.msra.mxu0 %v6086
        %6120 = vmatprep.subr.bf16.mxu0 %v6089
        %6121 = vmatpush1.bf16.msra.mxu0 %v6088
        %6122 = vmatprep.subr.bf16.mxu0 0
        %6123 = vmatpush1.bf16.msra.mxu0 0
        %6124 = vmatprep.subr.bf16.mxu0 0
        %6125 = vmatpush1.bf16.msra.mxu0 0
        %6126 = vmatprep.subr.bf16.mxu0 0
        %6127 = vmatpush1.bf16.msra.mxu0 0
        %6128 = vmatprep.subr.bf16.mxu0 0
        %6129 = vmatpush1.bf16.msra.mxu0 0
        %6130 = vmatprep.subr.bf16.mxu0 0
        %6131 = vmatpush1.bf16.msra.mxu0 0
        %6132 = vmatprep.subr.bf16.mxu0 0
        %6133 = vmatpush1.bf16.msra.mxu0 0
        %6134 = vmatprep.subr.bf16.mxu0 0
        %6135 = vmatpush1.bf16.msra.mxu0 0
        %6136 = vmatprep.subr.bf16.mxu0 0
        %6137 = vmatpush1.bf16.msra.mxu0 0
        %6138 = vmatprep.mubr.bf16.mxu0 0
        %6139 = vmatmul.mubr.bf16.gmra.mrb[0].mxu0 %v6024
        %v6140 = vpop.f32.mrb[0].mxu0
        %v6141 = vadd.f32 0.0, %v6140
        %v6142 = vpop.f32.mrb[0].mxu0
        %v6143 = vadd.f32 0.0, %v6142
        %v6144 = vpop.f32.mrb[0].mxu0
        %v6145 = vpop.f32.mrb[0].mxu0
        %6146 = vdwg.mxu0
        %v6149 = vcombine.low %v6141, %v6143
        %v6151 = vunpack.c.l.s4 1966171168
        %v6152 = vunpack.c.0.s8 %v6151
        %v6153 = vlaneseq
        %v6154 = vshrl.u32 %v6153, 7
        %v6155 = vsub.s32 %v6152, %v6154
        %v6156 = vrot.slane %v6149, %v6155
        %v6158 = vunpack.c.l.s4 1966171168
        %v6159 = vunpack.c.0.s8 %v6158
        %v6160 = vlaneseq
        %v6161 = vshrl.u32 %v6160, 7
        %v6162 = vsub.s32 %v6159, %v6161
        %v6163 = vrot.slane %v6156, %v6162
        %s6165 = scalar_lea.vmem [#allocation6], 23
        %6166 = vst.msk [vmem:[%s6165] ss:$8 sm:$0x3] %vm3747, %v6163
        %6167 = vst.msk [vmem:[%s6165] ss:$8 sm:$0x0] %vm3747, %v6163
        %v6168 = vld [vmem:[#allocation6] sm:$0xff]
        %v6169 = vld [vmem:[#allocation6 + $0x8] sm:$0xff]
        %v6170 = vld [vmem:[#allocation6 + $0x10] sm:$0xff]
        %v6171 = vld [vmem:[#allocation6 + $0x18] sm:$0xff]
        %v6172 = vpack.c.bf16 %v6170, %v6168
        %v6173 = vpack.c.bf16 %v6171, %v6169
        %v6174 = vld [vmem:[#allocation24] sm:$0xf]
        %v6175 = vld [vmem:[#allocation24 + $0x4] sm:$0xf]
        %v6176 = vld [vmem:[#allocation24 + $0x8] sm:$0xf]
        %v6177 = vld [vmem:[#allocation24 + $0xc] sm:$0xf]
        %v6178 = vld [vmem:[#allocation24 + $0x10] sm:$0xf]
        %v6179 = vld [vmem:[#allocation24 + $0x14] sm:$0xf]
        %v6180 = vld [vmem:[#allocation24 + $0x18] sm:$0xf]
        %v6181 = vld [vmem:[#allocation24 + $0x1c] sm:$0xf]
        %v6182 = vld [vmem:[#allocation24 + $0x20] sm:$0xf]
        %v6183 = vld [vmem:[#allocation24 + $0x24] sm:$0xf]
        %v6184 = vld [vmem:[#allocation24 + $0x28] sm:$0xf]
        %v6185 = vld [vmem:[#allocation24 + $0x2c] sm:$0xf]
        %v6186 = vld [vmem:[#allocation24 + $0x30] sm:$0xf]
        %v6187 = vld [vmem:[#allocation24 + $0x34] sm:$0xf]
        %v6188 = vld [vmem:[#allocation24 + $0x38] sm:$0xf]
        %v6189 = vld [vmem:[#allocation24 + $0x3c] sm:$0xf]
        %v6190 = vld [vmem:[#allocation24 + $0x40] sm:$0xf]
        %v6191 = vld [vmem:[#allocation24 + $0x44] sm:$0xf]
        %v6192 = vld [vmem:[#allocation24 + $0x48] sm:$0xf]
        %v6193 = vld [vmem:[#allocation24 + $0x4c] sm:$0xf]
        %v6194 = vld [vmem:[#allocation24 + $0x50] sm:$0xf]
        %v6195 = vld [vmem:[#allocation24 + $0x54] sm:$0xf]
        %v6196 = vld [vmem:[#allocation24 + $0x58] sm:$0xf]
        %v6197 = vld [vmem:[#allocation24 + $0x5c] sm:$0xf]
        %v6198 = vld [vmem:[#allocation24 + $0x60] sm:$0xf]
        %v6199 = vld [vmem:[#allocation24 + $0x64] sm:$0xf]
        %v6200 = vld [vmem:[#allocation24 + $0x68] sm:$0xf]
        %v6201 = vld [vmem:[#allocation24 + $0x6c] sm:$0xf]
        %v6202 = vld [vmem:[#allocation24 + $0x70] sm:$0xf]
        %v6203 = vld [vmem:[#allocation24 + $0x74] sm:$0xf]
        %v6204 = vld [vmem:[#allocation24 + $0x78] sm:$0xf]
        %v6205 = vld [vmem:[#allocation24 + $0x7c] sm:$0xf]
        %v6206 = vld [vmem:[#allocation24 + $0x80] sm:$0xf]
        %v6207 = vld [vmem:[#allocation24 + $0x84] sm:$0xf]
        %v6208 = vld [vmem:[#allocation24 + $0x88] sm:$0xf]
        %v6209 = vld [vmem:[#allocation24 + $0x8c] sm:$0xf]
        %v6210 = vld [vmem:[#allocation24 + $0x90] sm:$0xf]
        %v6211 = vld [vmem:[#allocation24 + $0x94] sm:$0xf]
        %v6212 = vld [vmem:[#allocation24 + $0x98] sm:$0xf]
        %v6213 = vld [vmem:[#allocation24 + $0x9c] sm:$0xf]
        %v6214 = vld [vmem:[#allocation24 + $0xa0] sm:$0xf]
        %v6215 = vld [vmem:[#allocation24 + $0xa4] sm:$0xf]
        %v6216 = vld [vmem:[#allocation24 + $0xa8] sm:$0xf]
        %v6217 = vld [vmem:[#allocation24 + $0xac] sm:$0xf]
        %v6218 = vld [vmem:[#allocation24 + $0xb0] sm:$0xf]
        %v6219 = vld [vmem:[#allocation24 + $0xb4] sm:$0xf]
        %v6220 = vld [vmem:[#allocation24 + $0xb8] sm:$0xf]
        %v6221 = vld [vmem:[#allocation24 + $0xbc] sm:$0xf]
        %v6238 = vunpack.c.l.b16 %v6206
        %v6239 = vunpack.c.l.b16 %v6207
        %v6240 = vunpack.c.l.b16 %v6208
        %v6241 = vunpack.c.l.b16 %v6209
        %v6242 = vunpack.c.l.b16 %v6210
        %v6243 = vunpack.c.l.b16 %v6211
        %v6244 = vunpack.c.l.b16 %v6212
        %v6245 = vunpack.c.l.b16 %v6213
        %v6246 = vunpack.c.l.b16 %v6214
        %v6247 = vunpack.c.l.b16 %v6215
        %v6248 = vunpack.c.l.b16 %v6216
        %v6249 = vunpack.c.l.b16 %v6217
        %v6250 = vunpack.c.l.b16 %v6218
        %v6251 = vunpack.c.l.b16 %v6219
        %v6252 = vunpack.c.l.b16 %v6220
        %v6253 = vunpack.c.l.b16 %v6221
        %v6254 = vpack.c.b16 %v6239, %v6238
        %v6255 = vpack.c.b16 %v6241, %v6240
        %v6256 = vpack.c.b16 %v6243, %v6242
        %v6257 = vpack.c.b16 %v6245, %v6244
        %v6258 = vpack.c.b16 %v6247, %v6246
        %v6259 = vpack.c.b16 %v6249, %v6248
        %v6260 = vpack.c.b16 %v6251, %v6250
        %v6261 = vpack.c.b16 %v6253, %v6252
        %6270 = vmatprep.subr.bf16.mxu0 0
        %6271 = vmatpush1.bf16.msra.mxu0 %v6254
        %6272 = vmatprep.subr.bf16.mxu0 0
        %6273 = vmatpush1.bf16.msra.mxu0 %v6255
        %6274 = vmatprep.subr.bf16.mxu0 0
        %6275 = vmatpush1.bf16.msra.mxu0 %v6256
        %6276 = vmatprep.subr.bf16.mxu0 0
        %6277 = vmatpush1.bf16.msra.mxu0 %v6257
        %6278 = vmatprep.subr.bf16.mxu0 0
        %6279 = vmatpush1.bf16.msra.mxu0 %v6258
        %6280 = vmatprep.subr.bf16.mxu0 0
        %6281 = vmatpush1.bf16.msra.mxu0 %v6259
        %6282 = vmatprep.subr.bf16.mxu0 0
        %6283 = vmatpush1.bf16.msra.mxu0 %v6260
        %6284 = vmatprep.subr.bf16.mxu0 0
        %6285 = vmatpush1.bf16.msra.mxu0 %v6261
        %6286 = vmatprep.subr.bf16.mxu0 0
        %6287 = vmatpush1.bf16.msra.mxu0 0
        %6288 = vmatprep.subr.bf16.mxu0 0
        %6289 = vmatpush1.bf16.msra.mxu0 0
        %6290 = vmatprep.subr.bf16.mxu0 0
        %6291 = vmatpush1.bf16.msra.mxu0 0
        %6292 = vmatprep.subr.bf16.mxu0 0
        %6293 = vmatpush1.bf16.msra.mxu0 0
        %6294 = vmatprep.subr.bf16.mxu0 0
        %6295 = vmatpush1.bf16.msra.mxu0 0
        %6296 = vmatprep.subr.bf16.mxu0 0
        %6297 = vmatpush1.bf16.msra.mxu0 0
        %6298 = vmatprep.subr.bf16.mxu0 0
        %6299 = vmatpush1.bf16.msra.mxu0 0
        %6300 = vmatprep.subr.bf16.mxu0 0
        %6301 = vmatpush1.bf16.msra.mxu0 0
        %6302 = vmatprep.mubr.bf16.mxu0 0
        %6303 = vmatmul.mubr.bf16.gmra.mrb[0].mxu0 %v1833
        %v6304 = vpop.f32.mrb[0].mxu0
        %v6305 = vadd.f32 0.0, %v6304
        %v6306 = vpop.f32.mrb[0].mxu0
        %v6307 = vpop.f32.mrb[0].mxu0
        %v6308 = vadd.f32 0.0, %v6307
        %v6309 = vpop.f32.mrb[0].mxu0
        %6310 = vdwg.mxu0
        %v6343 = vunpack.c.l.b16 %v6174
        %v6344 = vunpack.c.l.b16 %v6175
        %v6345 = vunpack.c.l.b16 %v6176
        %v6346 = vunpack.c.l.b16 %v6177
        %v6347 = vunpack.c.l.b16 %v6178
        %v6348 = vunpack.c.l.b16 %v6179
        %v6349 = vunpack.c.l.b16 %v6180
        %v6350 = vunpack.c.l.b16 %v6181
        %v6351 = vunpack.c.l.b16 %v6182
        %v6352 = vunpack.c.l.b16 %v6183
        %v6353 = vunpack.c.l.b16 %v6184
        %v6354 = vunpack.c.l.b16 %v6185
        %v6355 = vunpack.c.l.b16 %v6186
        %v6356 = vunpack.c.l.b16 %v6187
        %v6357 = vunpack.c.l.b16 %v6188
        %v6358 = vunpack.c.l.b16 %v6189
        %v6359 = vunpack.c.l.b16 %v6190
        %v6360 = vunpack.c.l.b16 %v6191
        %v6361 = vunpack.c.l.b16 %v6192
        %v6362 = vunpack.c.l.b16 %v6193
        %v6363 = vunpack.c.l.b16 %v6194
        %v6364 = vunpack.c.l.b16 %v6195
        %v6365 = vunpack.c.l.b16 %v6196
        %v6366 = vunpack.c.l.b16 %v6197
        %v6367 = vunpack.c.l.b16 %v6198
        %v6368 = vunpack.c.l.b16 %v6199
        %v6369 = vunpack.c.l.b16 %v6200
        %v6370 = vunpack.c.l.b16 %v6201
        %v6371 = vunpack.c.l.b16 %v6202
        %v6372 = vunpack.c.l.b16 %v6203
        %v6373 = vunpack.c.l.b16 %v6204
        %v6374 = vunpack.c.l.b16 %v6205
        %v6375 = vpack.c.b16 %v6344, %v6343
        %v6376 = vpack.c.b16 %v6346, %v6345
        %v6377 = vpack.c.b16 %v6348, %v6347
        %v6378 = vpack.c.b16 %v6350, %v6349
        %v6379 = vpack.c.b16 %v6352, %v6351
        %v6380 = vpack.c.b16 %v6354, %v6353
        %v6381 = vpack.c.b16 %v6356, %v6355
        %v6382 = vpack.c.b16 %v6358, %v6357
        %v6383 = vpack.c.b16 %v6360, %v6359
        %v6384 = vpack.c.b16 %v6362, %v6361
        %v6385 = vpack.c.b16 %v6364, %v6363
        %v6386 = vpack.c.b16 %v6366, %v6365
        %v6387 = vpack.c.b16 %v6368, %v6367
        %v6388 = vpack.c.b16 %v6370, %v6369
        %v6389 = vpack.c.b16 %v6372, %v6371
        %v6390 = vpack.c.b16 %v6374, %v6373
        %6407 = vmatprep.subr.bf16.mxu0 0
        %6408 = vmatpush1.bf16.msra.mxu0 %v6375
        %6409 = vmatprep.subr.bf16.mxu0 0
        %6410 = vmatpush1.bf16.msra.mxu0 %v6376
        %6411 = vmatprep.subr.bf16.mxu0 0
        %6412 = vmatpush1.bf16.msra.mxu0 %v6377
        %6413 = vmatprep.subr.bf16.mxu0 0
        %6414 = vmatpush1.bf16.msra.mxu0 %v6378
        %6415 = vmatprep.subr.bf16.mxu0 0
        %6416 = vmatpush1.bf16.msra.mxu0 %v6379
        %6417 = vmatprep.subr.bf16.mxu0 0
        %6418 = vmatpush1.bf16.msra.mxu0 %v6380
        %6419 = vmatprep.subr.bf16.mxu0 0
        %6420 = vmatpush1.bf16.msra.mxu0 %v6381
        %6421 = vmatprep.subr.bf16.mxu0 0
        %6422 = vmatpush1.bf16.msra.mxu0 %v6382
        %6423 = vmatprep.subr.bf16.mxu0 0
        %6424 = vmatpush1.bf16.msra.mxu0 %v6383
        %6425 = vmatprep.subr.bf16.mxu0 0
        %6426 = vmatpush1.bf16.msra.mxu0 %v6384
        %6427 = vmatprep.subr.bf16.mxu0 0
        %6428 = vmatpush1.bf16.msra.mxu0 %v6385
        %6429 = vmatprep.subr.bf16.mxu0 0
        %6430 = vmatpush1.bf16.msra.mxu0 %v6386
        %6431 = vmatprep.subr.bf16.mxu0 0
        %6432 = vmatpush1.bf16.msra.mxu0 %v6387
        %6433 = vmatprep.subr.bf16.mxu0 0
        %6434 = vmatpush1.bf16.msra.mxu0 %v6388
        %6435 = vmatprep.subr.bf16.mxu0 0
        %6436 = vmatpush1.bf16.msra.mxu0 %v6389
        %6437 = vmatprep.subr.bf16.mxu0 0
        %6438 = vmatpush1.bf16.msra.mxu0 %v6390
        %6439 = vmatprep.mubr.bf16.mxu0 %v6173
        %6440 = vmatmul.mubr.bf16.gmra.mrb[0].mxu0 %v6172
        %v6441 = vpop.f32.mrb[0].mxu0
        %v6442 = vadd.f32 %v6305, %v6441
        %v6443 = vpop.f32.mrb[0].mxu0
        %v6444 = vpop.f32.mrb[0].mxu0
        %v6445 = vadd.f32 %v6308, %v6444
        %v6446 = vpop.f32.mrb[0].mxu0
        %6447 = vdwg.mxu0
        %v6448 = vtanh.pop %v6442
        %v6449 = vtanh.pop %v6445
        %6450 = vst [vmem:[#allocation4] sm:$0xff] %v6448
        %6451 = vst [vmem:[#allocation4 + $0x8] sm:$0xff] %v6449
        %6452 = vst [vmem:[%s839] sm:$0xff] %v6448
        %6453 = vst [vmem:[%s839 + $0x8] sm:$0xff] %v6449
        %s6454 = sand.u32 %s358, 1
        %s6455 = scalar_lea.sflag [#allocation9], %s6454
        %s6456 = sand.u32 %s358, 1
        %s6457 = smul.addr %s6456, 16
        %s6458 = scalar_lea.vmem [#allocation25], %s6457
        %s6459 = sand.u32 %s47, 1
        %s6460 = scalar_lea.sflag [#allocation27], %s6459
        %s6461 = sand.u32 %s386, 1
        %s6462 = smul.addr %s6461, 16
        %s6463 = scalar_lea.vmem [#allocation26], %s6462
        %s6464 = sand.u32 %s47, 1
        %s6465 = scalar_lea.sflag [#allocation27], %s6464
        %s6466 = sand.u32 %s412, 1
        %s6467 = smul.addr %s6466, 16
        %s6468 = scalar_lea.vmem [#allocation28], %s6467
        %s6469 = sand.u32 %s438, 1
        %s6470 = scalar_lea.sflag [#allocation30], %s6469
        %s6471 = sand.u32 %s438, 1
        %s6472 = smul.addr %s6471, 16
        %s6473 = scalar_lea.vmem [#allocation29], %s6472
        // Predicated region
        $region121: #{tpu_custom_call.1} parent=67 // pred_check
          %p6474 = pneg %p368
        $region122: #{tpu_custom_call.1} parent=67 // pred_check_branch
          %6476 = sbr.rel (%p6474) target = $region124
        $region123: #{tpu_custom_call.1} parent=67 // pred_region
          %s6477 = smul.u32 2, %s51
          %s6479 = ssub.s32 256, 256
          %6480 = vsyncadd %s6455, %s6479
          %s6481 = smul.addr %s52, 4
          %s6482 = sadd.s32 %s6477, %s6481
          %s6483 = smul.addr %s6482, 128
          %s6484 = scalar_lea.hbm %s12, %s6483
          %s6485 = sshll.u32 %s6458, 4
          %s6486 = int_to_ptr.vmem [resolvable:$true] %s6485
          %6491 = dma.vmem_to_hbm [thread:$0]  %s6486, 256, %s6484, %s6455, 128, 128, 8
        $region124: #{tpu_custom_call.1} parent=67 // pred_fallthru
          _
        // Predicated region
        $region125: #{tpu_custom_call.1} parent=67 // pred_check
          %p6492 = pneg %p396
        $region126: #{tpu_custom_call.1} parent=67 // pred_check_branch
          %6494 = sbr.rel (%p6492) target = $region128
        $region127: #{tpu_custom_call.1} parent=67 // pred_region
          %s6495 = smul.u32 2, %s51
          %s6497 = ssub.s32 256, 256
          %6498 = vsyncadd %s6460, %s6497
          %s6499 = smul.addr %s52, 4
          %s6500 = sadd.s32 %s6495, %s6499
          %s6501 = smul.addr %s6500, 128
          %s6502 = scalar_lea.hbm %s13, %s6501
          %s6503 = sshll.u32 %s6463, 4
          %s6504 = int_to_ptr.vmem [resolvable:$true] %s6503
          %6509 = dma.vmem_to_hbm [thread:$0]  %s6504, 256, %s6502, %s6460, 128, 128, 8
        $region128: #{tpu_custom_call.1} parent=67 // pred_fallthru
          _
        // Predicated region
        $region129: #{tpu_custom_call.1} parent=67 // pred_check
          %p6510 = pneg %p422
        $region130: #{tpu_custom_call.1} parent=67 // pred_check_branch
          %6512 = sbr.rel (%p6510) target = $region132
        $region131: #{tpu_custom_call.1} parent=67 // pred_region
          %s6513 = smul.u32 2, %s51
          %s6515 = ssub.s32 256, 256
          %6516 = vsyncadd %s6465, %s6515
          %s6517 = smul.addr %s6513, 128
          %s6518 = scalar_lea.hbm %s14, %s6517
          %s6519 = sshll.u32 %s6468, 4
          %s6520 = int_to_ptr.vmem [resolvable:$true] %s6519
          %6525 = dma.vmem_to_hbm [thread:$0]  %s6520, 256, %s6518, %s6465, 128, 128, 8
        $region132: #{tpu_custom_call.1} parent=67 // pred_fallthru
          _
        // Predicated region
        $region133: #{tpu_custom_call.1} parent=67 // pred_check
          %p6526 = pneg %p448
        $region134: #{tpu_custom_call.1} parent=67 // pred_check_branch
          %6528 = sbr.rel (%p6526) target = $region136
        $region135: #{tpu_custom_call.1} parent=67 // pred_region
          %s6529 = smul.u32 2, %s51
          %s6531 = ssub.s32 256, 256
          %6532 = vsyncadd %s6470, %s6531
          %s6533 = smul.addr %s6529, 128
          %s6534 = scalar_lea.hbm %s15, %s6533
          %s6535 = sshll.u32 %s6473, 4
          %s6536 = int_to_ptr.vmem [resolvable:$true] %s6535
          %6541 = dma.vmem_to_hbm [thread:$0]  %s6536, 256, %s6534, %s6470, 128, 128, 8
        $region136: #{tpu_custom_call.1} parent=67 // pred_fallthru
          _
      $region68: #{tpu_custom_call.1} parent=5 // pred_fallthru
        _
      %p6542 = scmp.le.s32.totalorder 2, %s42
      // Predicated region
      $region137: #{tpu_custom_call.1} parent=5 // pred_check
        %p6543 = pneg %p6542
      $region138: #{tpu_custom_call.1} parent=5 // pred_check_branch
        %6545 = sbr.rel (%p6543) target = $region140
      $region139: #{tpu_custom_call.1} parent=5 // pred_region
        %s6546 = ssub.s32 %s42, 2
        // Predicated region
        $region141: #{tpu_custom_call.1} parent=139 // pred_check
          %p6547 = pneg %p374
        $region142: #{tpu_custom_call.1} parent=139 // pred_check_branch
          %6549 = sbr.rel (%p6547) target = $region144
        $region143: #{tpu_custom_call.1} parent=139 // pred_region
          %s6550 = sand.u32 %s359, 1
          %s6551 = scalar_lea.sflag [#allocation9], %s6550
          %s6552 = sand.u32 %s359, 1
          %s6553 = smul.addr %s6552, 16
          %s6554 = scalar_lea.vmem [#allocation25], %s6553
          %6555 = dma.done %s6551, 256
        $region144: #{tpu_custom_call.1} parent=139 // pred_fallthru
          _
        // Predicated region
        $region145: #{tpu_custom_call.1} parent=139 // pred_check
          %p6556 = pneg %p402
        $region146: #{tpu_custom_call.1} parent=139 // pred_check_branch
          %6558 = sbr.rel (%p6556) target = $region148
        $region147: #{tpu_custom_call.1} parent=139 // pred_region
          %s6559 = sand.u32 %s48, 1
          %s6560 = scalar_lea.sflag [#allocation27], %s6559
          %s6561 = sand.u32 %s387, 1
          %s6562 = smul.addr %s6561, 16
          %s6563 = scalar_lea.vmem [#allocation26], %s6562
          %6564 = dma.done %s6560, 256
        $region148: #{tpu_custom_call.1} parent=139 // pred_fallthru
          _
        // Predicated region
        $region149: #{tpu_custom_call.1} parent=139 // pred_check
          %p6565 = pneg %p428
        $region150: #{tpu_custom_call.1} parent=139 // pred_check_branch
          %6567 = sbr.rel (%p6565) target = $region152
        $region151: #{tpu_custom_call.1} parent=139 // pred_region
          %s6568 = sand.u32 %s48, 1
          %s6569 = scalar_lea.sflag [#allocation27], %s6568
          %s6570 = sand.u32 %s413, 1
          %s6571 = smul.addr %s6570, 16
          %s6572 = scalar_lea.vmem [#allocation28], %s6571
          %6573 = dma.done %s6569, 256
        $region152: #{tpu_custom_call.1} parent=139 // pred_fallthru
          _
        // Predicated region
        $region153: #{tpu_custom_call.1} parent=139 // pred_check
          %p6574 = pneg %p454
        $region154: #{tpu_custom_call.1} parent=139 // pred_check_branch
          %6576 = sbr.rel (%p6574) target = $region156
        $region155: #{tpu_custom_call.1} parent=139 // pred_region
          %s6577 = sand.u32 %s439, 1
          %s6578 = scalar_lea.sflag [#allocation30], %s6577
          %s6579 = sand.u32 %s439, 1
          %s6580 = smul.addr %s6579, 16
          %s6581 = scalar_lea.vmem [#allocation29], %s6580
          %6582 = dma.done %s6578, 256
        $region156: #{tpu_custom_call.1} parent=139 // pred_fallthru
          _
      $region140: #{tpu_custom_call.1} parent=5 // pred_fallthru
        _
    $region6: #{tpu_custom_call.1} parent=1 // loop_footer
      %s46 = sadd.s32 1, %s42
    $region7: #{tpu_custom_call.1} parent=1 // loop_footer_branch
      %41 = sbr.rel target = $region3
    $region8: #{tpu_custom_call.1} parent=1 // loop_exit
      _
    %6583 = vsyncpa [#allocation8], 1
    %s6584 = scalar_lea.sflag [#allocation8], 1
    %6585 = vsyncpa %s6584, 1
    %6586 = vsyncpa [#allocation11], 1
    %s6587 = scalar_lea.sflag [#allocation11], 1
    %6588 = vsyncpa %s6587, 1
    %6589 = vsyncpa [#allocation14], 1
    %s6590 = scalar_lea.sflag [#allocation14], 1
    %6591 = vsyncpa %s6590, 1
    %6592 = vsyncpa [#allocation17], 1
    %6593 = vsyncpa [#allocation20], 1
    %6594 = vsyncpa [#allocation9], 1
    %s6595 = scalar_lea.sflag [#allocation9], 1
    %6596 = vsyncpa %s6595, 1
    %6597 = vsyncpa [#allocation27], 1
    %s6598 = scalar_lea.sflag [#allocation27], 1
    %6599 = vsyncpa %s6598, 1
    %6600 = vsyncpa [#allocation30], 1
    %s6601 = scalar_lea.sflag [#allocation30], 1
    %6602 = vsyncpa %s6601, 1

</llo_original>
